<compile_context>
chip_gen: v6e
topology: v6e:2x2x1
jax: 0.10.0
libtpu: 0.0.40
codegen_flags: <defaults>
</compile_context>

<pallas_src>
import math
import functools

import jax
import jax.numpy as jnp
from jax.experimental import pallas as pl
from jax.experimental.pallas import tpu as pltpu


def _llama_kernel(n_heads, head_dim, batch, seq, eps,
                  x_ref, pad_ref, cos_ref, sin_ref, poolw_ref, invlen_ref,
                  norm_ref, wqkv_ref, wo_ref, w13_ref, w2_ref,
                  pooled_ref, h_ref):
    """Grid = (layer,).  One invocation applies one decoder layer to the resident
    (B*S, D) f32 hidden state carried in VMEM scratch across the layer axis."""
    layer = pl.program_id(0)
    n_layers = pl.num_programs(0)
    D = h_ref.shape[1]
    F = w2_ref.shape[0]
    scale = 1.0 / math.sqrt(head_dim)

    # Initialize the resident hidden state on the first layer step.
    @pl.when(layer == 0)
    def _():
        h_ref[...] = x_ref[...]

    cosf = cos_ref[...]                         # (S, D) f32
    sinf = sin_ref[...]                         # (S, D) f32, rotation sign folded in
    pad_vals = pad_ref[...]                     # (B, S) f32, +1.0 at padded keys (bool quirk)
    norms = norm_ref[...]                       # (2, D) f32
    attn_w = norms[0:1, :]
    ffn_w = norms[1:2, :]

    # Even-lane mask for the interleaved pair swap (hoisted; shared by q and k RoPE).
    lane = jax.lax.broadcasted_iota(jnp.int32, (seq, D), 1)
    even = (lane & 1) == 0

    def rmsnorm(xb, w):                         # f32 math
        ms = jnp.mean(xb * xb, axis=-1, keepdims=True)
        return (xb * jax.lax.rsqrt(ms + eps)) * w

    def rope(t):                                # t: (S, D); interleaved pair rotation via XLU rolls
        right = pltpu.roll(t, 1, 1)             # right[j] = t[j-1]
        left = pltpu.roll(t, D - 1, 1)          # left[j]  = t[j+1]
        swapped = jnp.where(even, left, right)  # out[2i] = t[2i+1], out[2i+1] = t[2i]
        return t * cosf + swapped * sinf        # rotation sign folded into sinf

    x_b = h_ref[...]                            # (B*S, D) f32 resident hidden state

    # ---------------- attention ----------------
    xn = rmsnorm(x_b, attn_w).astype(jnp.bfloat16)
    qkv = jnp.dot(xn, wqkv_ref[...], preferred_element_type=jnp.float32)   # (B*S, 3D)
    wo = wo_ref[...]                                                       # (D, D) bf16

    h1_parts = []
    for b in range(batch):                      # TODO(synk): at real head/batch counts use
        rows = slice(b * seq, (b + 1) * seq)    # lax.fori_loop to bound live ranges.
        qrow = qkv[rows, :]
        qb = (rope(qrow[:, :D]) * scale).astype(jnp.bfloat16)      # scale folded in once
        kb = rope(qrow[:, D:2 * D]).astype(jnp.bfloat16)
        vb = qrow[:, 2 * D:].astype(jnp.bfloat16)
        pad_b = jnp.broadcast_to(pad_vals[b:b + 1, :], (seq, seq))  # hoisted out of head loop

        acc = x_b[rows, :]                      # start from the residual (f32)
        for hi in range(n_heads):
            cols = slice(hi * head_dim, (hi + 1) * head_dim)
            s = jax.lax.dot_general(qb[:, cols], kb[:, cols],
                                    (((1,), (1,)), ((), ())),
                                    preferred_element_type=jnp.float32)     # (S, S)
            s = s + pad_b
            m = jnp.max(s, axis=-1, keepdims=True)
            e = jnp.exp(s - m)
            p = e * pl.reciprocal(jnp.sum(e, axis=-1, keepdims=True), approx=False)
            o = jnp.dot(p.astype(jnp.bfloat16), vb[:, cols],
                        preferred_element_type=jnp.float32)                 # (S, hd)
            # Fold the head output straight into the output projection: equivalent to
            # concat(heads) @ wo, but with only full-lane-width stores/assembly.
            acc = acc + jnp.dot(o.astype(jnp.bfloat16), wo[cols, :],
                                preferred_element_type=jnp.float32)         # (S, D)
        h1_parts.append(acc)
    h1 = jnp.concatenate(h1_parts, axis=0) if batch > 1 else h1_parts[0]    # (B*S, D)

    # ---------------- SwiGLU feed-forward ----------------
    hn = rmsnorm(h1, ffn_w).astype(jnp.bfloat16)
    gu = jnp.dot(hn, w13_ref[...], preferred_element_type=jnp.float32)      # (B*S, 2F)
    g = gu[:, :F]
    u = gu[:, F:]
    act = (g * jax.nn.sigmoid(g)) * u                                       # SiLU * up (f32)
    h2 = h1 + jnp.dot(act.astype(jnp.bfloat16), w2_ref[...],
                      preferred_element_type=jnp.float32)

    h_ref[...] = h2

    # ---------------- masked mean pooling (last layer only) ----------------
    @pl.when(layer == n_layers - 1)
    def _():
        # poolw is block-diagonal (B, B*S) with (1 - pad) weights -> one matmul.
        pooled = jnp.dot(poolw_ref[...], h2, preferred_element_type=jnp.float32)
        pooled_ref[...] = pooled * invlen_ref[...]


def init_params(key, n_layers, dim, hidden_dim, n_heads):
    """Deterministic synthetic weights.  Matmul weights are stored transposed to
    (in, out), fused (qkv / w1w3), and in bfloat16; norm weights stay f32."""
    ks = jax.random.split(key, 7)

    def w(k, shape, fan_in):
        return (jax.random.normal(k, shape, jnp.float32) / math.sqrt(fan_in)
                ).astype(jnp.bfloat16)

    wq = w(ks[0], (n_layers, dim, dim), dim)
    wk = w(ks[1], (n_layers, dim, dim), dim)
    wv = w(ks[2], (n_layers, dim, dim), dim)
    w1 = w(ks[4], (n_layers, dim, hidden_dim), dim)
    w3 = w(ks[5], (n_layers, dim, hidden_dim), dim)
    return {
        "wqkv": jnp.concatenate([wq, wk, wv], axis=-1),        # (L, D, 3D)
        "wo": w(ks[3], (n_layers, dim, dim), dim),             # (L, D, D)
        "w13": jnp.concatenate([w1, w3], axis=-1),             # (L, D, 2F)
        "w2": w(ks[6], (n_layers, hidden_dim, dim), hidden_dim),  # (L, F, D)
        "norms": jnp.ones((n_layers, 2, dim), jnp.float32),    # [attn_norm; ffn_norm]
    }


def llama_model_forward(params, src, attn_mask, src_padding_mask, src_len,
                        *, n_heads, norm_eps):
    # src: (S, B, D) f32;  src_padding_mask: (B, S) bool (True = pad);  src_len: (B,)
    # attn_mask is accepted but unused, exactly like the reference forward.
    del attn_mask
    S, B, D = src.shape
    head_dim = D // n_heads
    L = params["wqkv"].shape[0]
    F = params["w2"].shape[1]

    # Flattened (B*S, D) hidden-state layout so all matmuls amortize the weight stream.
    x = jnp.transpose(src, (1, 0, 2)).astype(jnp.float32).reshape(B * S, D)

    # Additive score mask: reproduces the bool masked_fill quirk (+1.0 at pad, not -inf).
    pad_add = src_padding_mask.astype(jnp.float32)                      # (B, S)
    inv_len = (1.0 / src_len.astype(jnp.float32)).reshape(B, 1)

    # Block-diagonal pooling weights: pool_w[b, b*S + s] = 1 - pad[b, s].
    eye = jnp.eye(B, dtype=jnp.float32)
    pool_w = (eye[:, :, None] * (1.0 - pad_add)[None, :, :]).reshape(B, B * S)

    # Rotary tables (precompute_freqs_cis equivalent) expanded to (S, D); rotation
    # sign folded into the sin table (-sin at even columns, +sin at odd columns).
    theta = 1.0 / (10000.0 ** (jnp.arange(0, head_dim, 2, dtype=jnp.float32) / head_dim))
    m = jnp.arange(S, dtype=jnp.float32)
    freqs = jnp.outer(m, theta)                                         # (S, head_dim//2)
    cos_h = jnp.repeat(jnp.cos(freqs), 2, axis=1)                       # (S, head_dim)
    sin_h = jnp.repeat(jnp.sin(freqs), 2, axis=1)
    sign = jnp.tile(jnp.array([-1.0, 1.0], jnp.float32), head_dim // 2)
    cosf = jnp.tile(cos_h, (1, n_heads))                                # (S, D)
    sinf = jnp.tile(sin_h * sign[None, :], (1, n_heads))                # (S, D), sign-folded

    kern = functools.partial(_llama_kernel, n_heads, head_dim, B, S, norm_eps)

    def full(shape):
        return pl.BlockSpec(shape, lambda l: (0,) * len(shape))

    def per_layer(shape):
        return pl.BlockSpec((None,) + shape, lambda l: (l,) + (0,) * len(shape))

    # VMEM budget: double-buffered bf16 per-layer weight stream + constant inputs +
    # resident hidden state + live-activation headroom, capped by the queried
    # physical VMEM of this generation (fallback 64 MiB if the query is unavailable).
    w_layer = (D * 3 * D + D * D + D * 2 * F + F * D) * 2 + 2 * D * 4
    consts = (B * S * D + 2 * S * D + B * S + B * B * S + B) * 4
    resident = B * S * D * 4 + B * D * 4
    live = (B * S * (6 * D + 4 * F) + 3 * S * S + 2 * S * D) * 4
    need = 2 * w_layer + 2 * consts + 2 * resident + live
    try:
        cap = int(pltpu.get_tpu_info().vmem_capacity_bytes)
    except Exception:
        cap = 64 * 2 ** 20
    vmem_limit = int(min(max(need, 32 * 2 ** 20), (cap * 7) // 8))

    pooled = pl.pallas_call(
        kern,
        grid=(L,),
        in_specs=[
            full((B * S, D)),          # x  (read only at layer 0)
            full((B, S)),              # additive pad mask (+1.0 quirk)
            full((S, D)),              # rotary cos
            full((S, D)),              # rotary sin (sign-folded)
            full((B, B * S)),          # block-diagonal pooling weights
            full((B, 1)),              # 1 / src_len
            per_layer((2, D)),         # [attn_norm; ffn_norm]
            per_layer((D, 3 * D)),     # fused wq|wk|wv
            per_layer((D, D)),         # wo
            per_layer((D, 2 * F)),     # fused w1|w3
            per_layer((F, D)),         # w2
        ],
        out_specs=pl.BlockSpec((B, D), lambda l: (0, 0)),
        out_shape=jax.ShapeDtypeStruct((B, D), jnp.float32),
        scratch_shapes=[
            pltpu.VMEM((B * S, D), jnp.float32),   # resident hidden state (layer-carried)
        ],
        compiler_params=pltpu.CompilerParams(
            dimension_semantics=("arbitrary",),
            vmem_limit_bytes=vmem_limit),
    )(x, pad_add, cosf, sinf, pool_w, inv_len,
      params["norms"], params["wqkv"], params["wo"], params["w13"], params["w2"])

    # TODO(synk): for S >> 1k, re-tile attention flash-style (blocked online softmax)
    # instead of materializing (S, S) scores.
    return pooled                                                      # (B, D)


if __name__ == "__main__":
    # Small, lane-aligned ModelArgs-consistent shapes.
    dim, n_layers, n_heads, hidden_dim = 128, 2, 4, 256
    norm_eps = 1e-5
    S, B = 128, 2

    key = jax.random.PRNGKey(0)
    kp, kx = jax.random.split(key)
    params = init_params(kp, n_layers, dim, hidden_dim, n_heads)

    src = jax.random.normal(kx, (S, B, dim), jnp.float32)              # (seq, batch, dim)
    src_len = jnp.array([S, 80], jnp.int32)                            # valid lengths per batch
    pos = jnp.arange(S)[None, :]
    src_padding_mask = pos >= src_len[:, None]                         # (B, S) bool, True = pad
    attn_mask = None                                                   # unused by the reference

    out = llama_model_forward(params, src, attn_mask, src_padding_mask, src_len,
                              n_heads=n_heads, norm_eps=norm_eps)
    jax.block_until_ready(out)
    assert out.shape == (B, dim)
    print("KERNEL_OK")
</pallas_src>

<mosaic_0001>
module attributes {stable_mosaic.version = 11 : i64} {
  func.func @_llama_kernel(%arg0: i32, %arg1: memref<256x128xf32, #tpu.memory_space<vmem>>, %arg2: memref<2x128xf32, #tpu.memory_space<vmem>>, %arg3: memref<128x128xf32, #tpu.memory_space<vmem>>, %arg4: memref<128x128xf32, #tpu.memory_space<vmem>>, %arg5: memref<2x256xf32, #tpu.memory_space<vmem>>, %arg6: memref<2x1xf32, #tpu.memory_space<vmem>>, %arg7: memref<1x2x128xf32, #tpu.memory_space<vmem>>, %arg8: memref<1x128x384xbf16, #tpu.memory_space<vmem>>, %arg9: memref<1x128x128xbf16, #tpu.memory_space<vmem>>, %arg10: memref<1x128x512xbf16, #tpu.memory_space<vmem>>, %arg11: memref<1x256x128xbf16, #tpu.memory_space<vmem>>, %arg12: memref<2x128xf32, #tpu.memory_space<vmem>>, %arg13: memref<256x128xf32, #tpu.memory_space<vmem>>) attributes {dimension_semantics = [#tpu.dimension_semantics<arbitrary>], iteration_bounds = array<i64: 2>, scalar_prefetch = 0 : i64, scratch_operands = 1 : i64, tpu.core_type = #tpu.core_type<tc>, window_params = [{pipeline_mode = #tpu.pipeline_mode<synchronous>, transform_indices = @transform_0, window_bounds = array<i64: 256, 128>}, {pipeline_mode = #tpu.pipeline_mode<synchronous>, transform_indices = @transform_1, window_bounds = array<i64: 2, 128>}, {pipeline_mode = #tpu.pipeline_mode<synchronous>, transform_indices = @transform_2, window_bounds = array<i64: 128, 128>}, {pipeline_mode = #tpu.pipeline_mode<synchronous>, transform_indices = @transform_3, window_bounds = array<i64: 128, 128>}, {pipeline_mode = #tpu.pipeline_mode<synchronous>, transform_indices = @transform_4, window_bounds = array<i64: 2, 256>}, {pipeline_mode = #tpu.pipeline_mode<synchronous>, transform_indices = @transform_5, window_bounds = array<i64: 2, 1>}, {transform_indices = @transform_6, window_bounds = array<i64: 1, 2, 128>}, {transform_indices = @transform_7, window_bounds = array<i64: 1, 128, 384>}, {transform_indices = @transform_8, window_bounds = array<i64: 1, 128, 128>}, {transform_indices = @transform_9, window_bounds = array<i64: 1, 128, 512>}, {transform_indices = @transform_10, window_bounds = array<i64: 1, 256, 128>}, {pipeline_mode = #tpu.pipeline_mode<synchronous>, transform_indices = @transform_11, window_bounds = array<i64: 2, 128>}]} {
    %c0_i32 = arith.constant 0 : i32
    %0 = arith.cmpi eq, %arg0, %c0_i32 : i32
    %1 = arith.extui %0 : i1 to i32
    %c0_i32_0 = arith.constant 0 : i32
    %2 = arith.cmpi ne, %1, %c0_i32_0 : i32
    scf.if %2 {
      %c0_86 = arith.constant 0 : index
      %c0_87 = arith.constant 0 : index
      %287 = vector.load %arg1[%c0_86, %c0_87] : memref<256x128xf32, #tpu.memory_space<vmem>>, vector<256x128xf32>
      %c0_88 = arith.constant 0 : index
      %c0_89 = arith.constant 0 : index
      %288 = vector.load %arg13[%c0_88, %c0_89] : memref<256x128xf32, #tpu.memory_space<vmem>>, vector<256x128xf32>
      tpu.vector_store %arg13[%c0_88, %c0_89], %287 {strides = array<i32>} : memref<256x128xf32, #tpu.memory_space<vmem>>, vector<256x128xf32>,
    } else {
    }
    %c0 = arith.constant 0 : index
    %c0_1 = arith.constant 0 : index
    %3 = vector.load %arg3[%c0, %c0_1] : memref<128x128xf32, #tpu.memory_space<vmem>>, vector<128x128xf32>
    %c0_2 = arith.constant 0 : index
    %c0_3 = arith.constant 0 : index
    %4 = vector.load %arg4[%c0_2, %c0_3] : memref<128x128xf32, #tpu.memory_space<vmem>>, vector<128x128xf32>
    %c0_4 = arith.constant 0 : index
    %c0_5 = arith.constant 0 : index
    %5 = vector.load %arg2[%c0_4, %c0_5] : memref<2x128xf32, #tpu.memory_space<vmem>>, vector<2x128xf32>
    %c0_6 = arith.constant 0 : index
    %c0_7 = arith.constant 0 : index
    %c0_8 = arith.constant 0 : index
    %6 = vector.load %arg7[%c0_6, %c0_7, %c0_8] : memref<1x2x128xf32, #tpu.memory_space<vmem>>, vector<1x2x128xf32>
    %7 = vector.shape_cast %6 : vector<1x2x128xf32> to vector<2x128xf32>
    %8 = vector.extract_strided_slice %7 {offsets = [0, 0], sizes = [1, 128], strides = [1, 1]} : vector<2x128xf32> to vector<1x128xf32>
    %9 = vector.extract_strided_slice %7 {offsets = [1, 0], sizes = [1, 128], strides = [1, 1]} : vector<2x128xf32> to vector<1x128xf32>
    %10 = tpu.iota {dimensions = array<i32: 1>} : vector<128x128xi32>
    %c1_i32 = arith.constant 1 : i32
    %11 = vector.broadcast %c1_i32 : i32 to vector<128x128xi32>
    %12 = arith.andi %10, %11 : vector<128x128xi32>
    %c0_i32_9 = arith.constant 0 : i32
    %13 = vector.broadcast %c0_i32_9 : i32 to vector<128x128xi32>
    %14 = arith.cmpi eq, %12, %13 : vector<128x128xi32>
    %c0_10 = arith.constant 0 : index
    %c0_11 = arith.constant 0 : index
    %15 = vector.load %arg13[%c0_10, %c0_11] : memref<256x128xf32, #tpu.memory_space<vmem>>, vector<256x128xf32>
    %16 = arith.mulf %15, %15 : vector<256x128xf32>
    %cst = arith.constant dense<0.000000e+00> : vector<256xf32>
    %17 = vector.multi_reduction <add>, %16, %cst [1] : vector<256x128xf32> to vector<256xf32>
    %18 = vector.shape_cast %17 : vector<256xf32> to vector<256x1xf32>
    %cst_12 = arith.constant 1.280000e+02 : f32
    %19 = vector.broadcast %cst_12 : f32 to vector<256x1xf32>
    %20 = arith.divf %18, %19 : vector<256x1xf32>
    %cst_13 = arith.constant 9.99999974E-6 : f32
    %21 = vector.broadcast %cst_13 : f32 to vector<256x1xf32>
    %22 = arith.addf %20, %21 : vector<256x1xf32>
    %23 = math.rsqrt %22 : vector<256x1xf32>
    %24 = vector.broadcast %23 : vector<256x1xf32> to vector<256x128xf32>
    %25 = arith.mulf %15, %24 : vector<256x128xf32>
    %26 = vector.broadcast %8 : vector<1x128xf32> to vector<256x128xf32>
    %27 = arith.mulf %25, %26 : vector<256x128xf32>
    %28 = arith.truncf %27 : vector<256x128xf32> to vector<256x128xbf16>
    %c0_14 = arith.constant 0 : index
    %c0_15 = arith.constant 0 : index
    %c0_16 = arith.constant 0 : index
    %29 = vector.load %arg8[%c0_14, %c0_15, %c0_16] : memref<1x128x384xbf16, #tpu.memory_space<vmem>>, vector<1x128x384xbf16>
    %30 = vector.shape_cast %29 : vector<1x128x384xbf16> to vector<128x384xbf16>
    %cst_17 = arith.constant dense<0.000000e+00> : vector<256x384xf32>
    %31 = tpu.matmul %28, %30, %cst_17 {dimension_numbers = #tpu.dot_dimension_numbers<[1], [0], [0], [1], [0, 0, 1, 1], [], []>} : vector<256x128xbf16>, vector<128x384xbf16>, vector<256x384xf32> -> vector<256x384xf32>
    %c0_18 = arith.constant 0 : index
    %c0_19 = arith.constant 0 : index
    %c0_20 = arith.constant 0 : index
    %32 = vector.load %arg9[%c0_18, %c0_19, %c0_20] : memref<1x128x128xbf16, #tpu.memory_space<vmem>>, vector<1x128x128xbf16>
    %33 = vector.shape_cast %32 : vector<1x128x128xbf16> to vector<128x128xbf16>
    %34 = vector.extract_strided_slice %31 {offsets = [0, 0], sizes = [128, 384], strides = [1, 1]} : vector<256x384xf32> to vector<128x384xf32>
    %35 = vector.extract_strided_slice %34 {offsets = [0, 0], sizes = [128, 128], strides = [1, 1]} : vector<128x384xf32> to vector<128x128xf32>
    %c1_i32_21 = arith.constant 1 : i32
    %36 = tpu.dynamic_rotate %35 by %c1_i32_21 dim 1 : vector<128x128xf32>, i32 -> vector<128x128xf32>
    %c127_i32 = arith.constant 127 : i32
    %37 = tpu.dynamic_rotate %35 by %c127_i32 dim 1 : vector<128x128xf32>, i32 -> vector<128x128xf32>
    %38 = arith.select %14, %37, %36 : vector<128x128xi1>, vector<128x128xf32>
    %39 = arith.mulf %35, %3 : vector<128x128xf32>
    %40 = arith.mulf %38, %4 : vector<128x128xf32>
    %41 = arith.addf %39, %40 : vector<128x128xf32>
    %cst_22 = arith.constant 0.176776692 : f32
    %42 = vector.broadcast %cst_22 : f32 to vector<128x128xf32>
    %43 = arith.mulf %41, %42 : vector<128x128xf32>
    %44 = arith.truncf %43 : vector<128x128xf32> to vector<128x128xbf16>
    %45 = vector.extract_strided_slice %34 {offsets = [0, 128], sizes = [128, 128], strides = [1, 1]} : vector<128x384xf32> to vector<128x128xf32>
    %c1_i32_23 = arith.constant 1 : i32
    %46 = tpu.dynamic_rotate %45 by %c1_i32_23 dim 1 : vector<128x128xf32>, i32 -> vector<128x128xf32>
    %c127_i32_24 = arith.constant 127 : i32
    %47 = tpu.dynamic_rotate %45 by %c127_i32_24 dim 1 : vector<128x128xf32>, i32 -> vector<128x128xf32>
    %48 = arith.select %14, %47, %46 : vector<128x128xi1>, vector<128x128xf32>
    %49 = arith.mulf %45, %3 : vector<128x128xf32>
    %50 = arith.mulf %48, %4 : vector<128x128xf32>
    %51 = arith.addf %49, %50 : vector<128x128xf32>
    %52 = arith.truncf %51 : vector<128x128xf32> to vector<128x128xbf16>
    %53 = vector.extract_strided_slice %34 {offsets = [0, 256], sizes = [128, 128], strides = [1, 1]} : vector<128x384xf32> to vector<128x128xf32>
    %54 = arith.truncf %53 : vector<128x128xf32> to vector<128x128xbf16>
    %55 = vector.extract_strided_slice %5 {offsets = [0, 0], sizes = [1, 128], strides = [1, 1]} : vector<2x128xf32> to vector<1x128xf32>
    %56 = vector.shape_cast %55 : vector<1x128xf32> to vector<1x128xf32>
    %57 = vector.broadcast %56 : vector<1x128xf32> to vector<128x128xf32>
    %58 = vector.extract_strided_slice %15 {offsets = [0, 0], sizes = [128, 128], strides = [1, 1]} : vector<256x128xf32> to vector<128x128xf32>
    %59 = vector.extract_strided_slice %44 {offsets = [0, 0], sizes = [128, 32], strides = [1, 1]} : vector<128x128xbf16> to vector<128x32xbf16>
    %60 = vector.extract_strided_slice %52 {offsets = [0, 0], sizes = [128, 32], strides = [1, 1]} : vector<128x128xbf16> to vector<128x32xbf16>
    %cst_25 = arith.constant dense<0.000000e+00> : vector<128x128xf32>
    %61 = tpu.matmul %59, %60, %cst_25 {dimension_numbers = #tpu.dot_dimension_numbers<[1], [1], [0], [0], [0, 0, 1, 0], [], []>} : vector<128x32xbf16>, vector<128x32xbf16>, vector<128x128xf32> -> vector<128x128xf32>
    %62 = arith.addf %61, %57 : vector<128x128xf32>
    %cst_26 = arith.constant dense<0xFF800000> : vector<128xf32>
    %63 = vector.multi_reduction <maximumf>, %62, %cst_26 [1] : vector<128x128xf32> to vector<128xf32>
    %64 = vector.shape_cast %63 : vector<128xf32> to vector<128x1xf32>
    %65 = vector.broadcast %64 : vector<128x1xf32> to vector<128x128xf32>
    %66 = arith.subf %62, %65 : vector<128x128xf32>
    %67 = math.exp %66 : vector<128x128xf32>
    %cst_27 = arith.constant dense<0.000000e+00> : vector<128xf32>
    %68 = vector.multi_reduction <add>, %67, %cst_27 [1] : vector<128x128xf32> to vector<128xf32>
    %69 = vector.shape_cast %68 : vector<128xf32> to vector<128x1xf32>
    %70 = tpu.reciprocal %69 : vector<128x1xf32> -> vector<128x1xf32>
    %71 = vector.broadcast %70 : vector<128x1xf32> to vector<128x128xf32>
    %72 = arith.mulf %67, %71 : vector<128x128xf32>
    %73 = arith.truncf %72 : vector<128x128xf32> to vector<128x128xbf16>
    %74 = vector.extract_strided_slice %54 {offsets = [0, 0], sizes = [128, 32], strides = [1, 1]} : vector<128x128xbf16> to vector<128x32xbf16>
    %cst_28 = arith.constant dense<0.000000e+00> : vector<128x32xf32>
    %75 = tpu.matmul %73, %74, %cst_28 {dimension_numbers = #tpu.dot_dimension_numbers<[1], [0], [0], [1], [0, 0, 1, 1], [], []>} : vector<128x128xbf16>, vector<128x32xbf16>, vector<128x32xf32> -> vector<128x32xf32>
    %76 = arith.truncf %75 : vector<128x32xf32> to vector<128x32xbf16>
    %77 = vector.extract_strided_slice %33 {offsets = [0, 0], sizes = [32, 128], strides = [1, 1]} : vector<128x128xbf16> to vector<32x128xbf16>
    %cst_29 = arith.constant dense<0.000000e+00> : vector<128x128xf32>
    %78 = tpu.matmul %76, %77, %cst_29 {dimension_numbers = #tpu.dot_dimension_numbers<[1], [0], [0], [1], [0, 0, 1, 1], [], []>} : vector<128x32xbf16>, vector<32x128xbf16>, vector<128x128xf32> -> vector<128x128xf32>
    %79 = arith.addf %58, %78 : vector<128x128xf32>
    %80 = vector.extract_strided_slice %44 {offsets = [0, 32], sizes = [128, 32], strides = [1, 1]} : vector<128x128xbf16> to vector<128x32xbf16>
    %81 = vector.extract_strided_slice %52 {offsets = [0, 32], sizes = [128, 32], strides = [1, 1]} : vector<128x128xbf16> to vector<128x32xbf16>
    %cst_30 = arith.constant dense<0.000000e+00> : vector<128x128xf32>
    %82 = tpu.matmul %80, %81, %cst_30 {dimension_numbers = #tpu.dot_dimension_numbers<[1], [1], [0], [0], [0, 0, 1, 0], [], []>} : vector<128x32xbf16>, vector<128x32xbf16>, vector<128x128xf32> -> vector<128x128xf32>
    %83 = arith.addf %82, %57 : vector<128x128xf32>
    %cst_31 = arith.constant dense<0xFF800000> : vector<128xf32>
    %84 = vector.multi_reduction <maximumf>, %83, %cst_31 [1] : vector<128x128xf32> to vector<128xf32>
    %85 = vector.shape_cast %84 : vector<128xf32> to vector<128x1xf32>
    %86 = vector.broadcast %85 : vector<128x1xf32> to vector<128x128xf32>
    %87 = arith.subf %83, %86 : vector<128x128xf32>
    %88 = math.exp %87 : vector<128x128xf32>
    %cst_32 = arith.constant dense<0.000000e+00> : vector<128xf32>
    %89 = vector.multi_reduction <add>, %88, %cst_32 [1] : vector<128x128xf32> to vector<128xf32>
    %90 = vector.shape_cast %89 : vector<128xf32> to vector<128x1xf32>
    %91 = tpu.reciprocal %90 : vector<128x1xf32> -> vector<128x1xf32>
    %92 = vector.broadcast %91 : vector<128x1xf32> to vector<128x128xf32>
    %93 = arith.mulf %88, %92 : vector<128x128xf32>
    %94 = arith.truncf %93 : vector<128x128xf32> to vector<128x128xbf16>
    %95 = vector.extract_strided_slice %54 {offsets = [0, 32], sizes = [128, 32], strides = [1, 1]} : vector<128x128xbf16> to vector<128x32xbf16>
    %cst_33 = arith.constant dense<0.000000e+00> : vector<128x32xf32>
    %96 = tpu.matmul %94, %95, %cst_33 {dimension_numbers = #tpu.dot_dimension_numbers<[1], [0], [0], [1], [0, 0, 1, 1], [], []>} : vector<128x128xbf16>, vector<128x32xbf16>, vector<128x32xf32> -> vector<128x32xf32>
    %97 = arith.truncf %96 : vector<128x32xf32> to vector<128x32xbf16>
    %98 = vector.extract_strided_slice %33 {offsets = [32, 0], sizes = [32, 128], strides = [1, 1]} : vector<128x128xbf16> to vector<32x128xbf16>
    %cst_34 = arith.constant dense<0.000000e+00> : vector<128x128xf32>
    %99 = tpu.matmul %97, %98, %cst_34 {dimension_numbers = #tpu.dot_dimension_numbers<[1], [0], [0], [1], [0, 0, 1, 1], [], []>} : vector<128x32xbf16>, vector<32x128xbf16>, vector<128x128xf32> -> vector<128x128xf32>
    %100 = arith.addf %79, %99 : vector<128x128xf32>
    %101 = vector.extract_strided_slice %44 {offsets = [0, 64], sizes = [128, 32], strides = [1, 1]} : vector<128x128xbf16> to vector<128x32xbf16>
    %102 = vector.extract_strided_slice %52 {offsets = [0, 64], sizes = [128, 32], strides = [1, 1]} : vector<128x128xbf16> to vector<128x32xbf16>
    %cst_35 = arith.constant dense<0.000000e+00> : vector<128x128xf32>
    %103 = tpu.matmul %101, %102, %cst_35 {dimension_numbers = #tpu.dot_dimension_numbers<[1], [1], [0], [0], [0, 0, 1, 0], [], []>} : vector<128x32xbf16>, vector<128x32xbf16>, vector<128x128xf32> -> vector<128x128xf32>
    %104 = arith.addf %103, %57 : vector<128x128xf32>
    %cst_36 = arith.constant dense<0xFF800000> : vector<128xf32>
    %105 = vector.multi_reduction <maximumf>, %104, %cst_36 [1] : vector<128x128xf32> to vector<128xf32>
    %106 = vector.shape_cast %105 : vector<128xf32> to vector<128x1xf32>
    %107 = vector.broadcast %106 : vector<128x1xf32> to vector<128x128xf32>
    %108 = arith.subf %104, %107 : vector<128x128xf32>
    %109 = math.exp %108 : vector<128x128xf32>
    %cst_37 = arith.constant dense<0.000000e+00> : vector<128xf32>
    %110 = vector.multi_reduction <add>, %109, %cst_37 [1] : vector<128x128xf32> to vector<128xf32>
    %111 = vector.shape_cast %110 : vector<128xf32> to vector<128x1xf32>
    %112 = tpu.reciprocal %111 : vector<128x1xf32> -> vector<128x1xf32>
    %113 = vector.broadcast %112 : vector<128x1xf32> to vector<128x128xf32>
    %114 = arith.mulf %109, %113 : vector<128x128xf32>
    %115 = arith.truncf %114 : vector<128x128xf32> to vector<128x128xbf16>
    %116 = vector.extract_strided_slice %54 {offsets = [0, 64], sizes = [128, 32], strides = [1, 1]} : vector<128x128xbf16> to vector<128x32xbf16>
    %cst_38 = arith.constant dense<0.000000e+00> : vector<128x32xf32>
    %117 = tpu.matmul %115, %116, %cst_38 {dimension_numbers = #tpu.dot_dimension_numbers<[1], [0], [0], [1], [0, 0, 1, 1], [], []>} : vector<128x128xbf16>, vector<128x32xbf16>, vector<128x32xf32> -> vector<128x32xf32>
    %118 = arith.truncf %117 : vector<128x32xf32> to vector<128x32xbf16>
    %119 = vector.extract_strided_slice %33 {offsets = [64, 0], sizes = [32, 128], strides = [1, 1]} : vector<128x128xbf16> to vector<32x128xbf16>
    %cst_39 = arith.constant dense<0.000000e+00> : vector<128x128xf32>
    %120 = tpu.matmul %118, %119, %cst_39 {dimension_numbers = #tpu.dot_dimension_numbers<[1], [0], [0], [1], [0, 0, 1, 1], [], []>} : vector<128x32xbf16>, vector<32x128xbf16>, vector<128x128xf32> -> vector<128x128xf32>
    %121 = arith.addf %100, %120 : vector<128x128xf32>
    %122 = vector.extract_strided_slice %44 {offsets = [0, 96], sizes = [128, 32], strides = [1, 1]} : vector<128x128xbf16> to vector<128x32xbf16>
    %123 = vector.extract_strided_slice %52 {offsets = [0, 96], sizes = [128, 32], strides = [1, 1]} : vector<128x128xbf16> to vector<128x32xbf16>
    %cst_40 = arith.constant dense<0.000000e+00> : vector<128x128xf32>
    %124 = tpu.matmul %122, %123, %cst_40 {dimension_numbers = #tpu.dot_dimension_numbers<[1], [1], [0], [0], [0, 0, 1, 0], [], []>} : vector<128x32xbf16>, vector<128x32xbf16>, vector<128x128xf32> -> vector<128x128xf32>
    %125 = arith.addf %124, %57 : vector<128x128xf32>
    %cst_41 = arith.constant dense<0xFF800000> : vector<128xf32>
    %126 = vector.multi_reduction <maximumf>, %125, %cst_41 [1] : vector<128x128xf32> to vector<128xf32>
    %127 = vector.shape_cast %126 : vector<128xf32> to vector<128x1xf32>
    %128 = vector.broadcast %127 : vector<128x1xf32> to vector<128x128xf32>
    %129 = arith.subf %125, %128 : vector<128x128xf32>
    %130 = math.exp %129 : vector<128x128xf32>
    %cst_42 = arith.constant dense<0.000000e+00> : vector<128xf32>
    %131 = vector.multi_reduction <add>, %130, %cst_42 [1] : vector<128x128xf32> to vector<128xf32>
    %132 = vector.shape_cast %131 : vector<128xf32> to vector<128x1xf32>
    %133 = tpu.reciprocal %132 : vector<128x1xf32> -> vector<128x1xf32>
    %134 = vector.broadcast %133 : vector<128x1xf32> to vector<128x128xf32>
    %135 = arith.mulf %130, %134 : vector<128x128xf32>
    %136 = arith.truncf %135 : vector<128x128xf32> to vector<128x128xbf16>
    %137 = vector.extract_strided_slice %54 {offsets = [0, 96], sizes = [128, 32], strides = [1, 1]} : vector<128x128xbf16> to vector<128x32xbf16>
    %cst_43 = arith.constant dense<0.000000e+00> : vector<128x32xf32>
    %138 = tpu.matmul %136, %137, %cst_43 {dimension_numbers = #tpu.dot_dimension_numbers<[1], [0], [0], [1], [0, 0, 1, 1], [], []>} : vector<128x128xbf16>, vector<128x32xbf16>, vector<128x32xf32> -> vector<128x32xf32>
    %139 = arith.truncf %138 : vector<128x32xf32> to vector<128x32xbf16>
    %140 = vector.extract_strided_slice %33 {offsets = [96, 0], sizes = [32, 128], strides = [1, 1]} : vector<128x128xbf16> to vector<32x128xbf16>
    %cst_44 = arith.constant dense<0.000000e+00> : vector<128x128xf32>
    %141 = tpu.matmul %139, %140, %cst_44 {dimension_numbers = #tpu.dot_dimension_numbers<[1], [0], [0], [1], [0, 0, 1, 1], [], []>} : vector<128x32xbf16>, vector<32x128xbf16>, vector<128x128xf32> -> vector<128x128xf32>
    %142 = arith.addf %121, %141 : vector<128x128xf32>
    %143 = vector.extract_strided_slice %31 {offsets = [128, 0], sizes = [128, 384], strides = [1, 1]} : vector<256x384xf32> to vector<128x384xf32>
    %144 = vector.extract_strided_slice %143 {offsets = [0, 0], sizes = [128, 128], strides = [1, 1]} : vector<128x384xf32> to vector<128x128xf32>
    %c1_i32_45 = arith.constant 1 : i32
    %145 = tpu.dynamic_rotate %144 by %c1_i32_45 dim 1 : vector<128x128xf32>, i32 -> vector<128x128xf32>
    %c127_i32_46 = arith.constant 127 : i32
    %146 = tpu.dynamic_rotate %144 by %c127_i32_46 dim 1 : vector<128x128xf32>, i32 -> vector<128x128xf32>
    %147 = arith.select %14, %146, %145 : vector<128x128xi1>, vector<128x128xf32>
    %148 = arith.mulf %144, %3 : vector<128x128xf32>
    %149 = arith.mulf %147, %4 : vector<128x128xf32>
    %150 = arith.addf %148, %149 : vector<128x128xf32>
    %cst_47 = arith.constant 0.176776692 : f32
    %151 = vector.broadcast %cst_47 : f32 to vector<128x128xf32>
    %152 = arith.mulf %150, %151 : vector<128x128xf32>
    %153 = arith.truncf %152 : vector<128x128xf32> to vector<128x128xbf16>
    %154 = vector.extract_strided_slice %143 {offsets = [0, 128], sizes = [128, 128], strides = [1, 1]} : vector<128x384xf32> to vector<128x128xf32>
    %c1_i32_48 = arith.constant 1 : i32
    %155 = tpu.dynamic_rotate %154 by %c1_i32_48 dim 1 : vector<128x128xf32>, i32 -> vector<128x128xf32>
    %c127_i32_49 = arith.constant 127 : i32
    %156 = tpu.dynamic_rotate %154 by %c127_i32_49 dim 1 : vector<128x128xf32>, i32 -> vector<128x128xf32>
    %157 = arith.select %14, %156, %155 : vector<128x128xi1>, vector<128x128xf32>
    %158 = arith.mulf %154, %3 : vector<128x128xf32>
    %159 = arith.mulf %157, %4 : vector<128x128xf32>
    %160 = arith.addf %158, %159 : vector<128x128xf32>
    %161 = arith.truncf %160 : vector<128x128xf32> to vector<128x128xbf16>
    %162 = vector.extract_strided_slice %143 {offsets = [0, 256], sizes = [128, 128], strides = [1, 1]} : vector<128x384xf32> to vector<128x128xf32>
    %163 = arith.truncf %162 : vector<128x128xf32> to vector<128x128xbf16>
    %164 = vector.extract_strided_slice %5 {offsets = [1, 0], sizes = [1, 128], strides = [1, 1]} : vector<2x128xf32> to vector<1x128xf32>
    %165 = vector.shape_cast %164 : vector<1x128xf32> to vector<1x128xf32>
    %166 = vector.broadcast %165 : vector<1x128xf32> to vector<128x128xf32>
    %167 = vector.extract_strided_slice %15 {offsets = [128, 0], sizes = [128, 128], strides = [1, 1]} : vector<256x128xf32> to vector<128x128xf32>
    %168 = vector.extract_strided_slice %153 {offsets = [0, 0], sizes = [128, 32], strides = [1, 1]} : vector<128x128xbf16> to vector<128x32xbf16>
    %169 = vector.extract_strided_slice %161 {offsets = [0, 0], sizes = [128, 32], strides = [1, 1]} : vector<128x128xbf16> to vector<128x32xbf16>
    %cst_50 = arith.constant dense<0.000000e+00> : vector<128x128xf32>
    %170 = tpu.matmul %168, %169, %cst_50 {dimension_numbers = #tpu.dot_dimension_numbers<[1], [1], [0], [0], [0, 0, 1, 0], [], []>} : vector<128x32xbf16>, vector<128x32xbf16>, vector<128x128xf32> -> vector<128x128xf32>
    %171 = arith.addf %170, %166 : vector<128x128xf32>
    %cst_51 = arith.constant dense<0xFF800000> : vector<128xf32>
    %172 = vector.multi_reduction <maximumf>, %171, %cst_51 [1] : vector<128x128xf32> to vector<128xf32>
    %173 = vector.shape_cast %172 : vector<128xf32> to vector<128x1xf32>
    %174 = vector.broadcast %173 : vector<128x1xf32> to vector<128x128xf32>
    %175 = arith.subf %171, %174 : vector<128x128xf32>
    %176 = math.exp %175 : vector<128x128xf32>
    %cst_52 = arith.constant dense<0.000000e+00> : vector<128xf32>
    %177 = vector.multi_reduction <add>, %176, %cst_52 [1] : vector<128x128xf32> to vector<128xf32>
    %178 = vector.shape_cast %177 : vector<128xf32> to vector<128x1xf32>
    %179 = tpu.reciprocal %178 : vector<128x1xf32> -> vector<128x1xf32>
    %180 = vector.broadcast %179 : vector<128x1xf32> to vector<128x128xf32>
    %181 = arith.mulf %176, %180 : vector<128x128xf32>
    %182 = arith.truncf %181 : vector<128x128xf32> to vector<128x128xbf16>
    %183 = vector.extract_strided_slice %163 {offsets = [0, 0], sizes = [128, 32], strides = [1, 1]} : vector<128x128xbf16> to vector<128x32xbf16>
    %cst_53 = arith.constant dense<0.000000e+00> : vector<128x32xf32>
    %184 = tpu.matmul %182, %183, %cst_53 {dimension_numbers = #tpu.dot_dimension_numbers<[1], [0], [0], [1], [0, 0, 1, 1], [], []>} : vector<128x128xbf16>, vector<128x32xbf16>, vector<128x32xf32> -> vector<128x32xf32>
    %185 = arith.truncf %184 : vector<128x32xf32> to vector<128x32xbf16>
    %186 = vector.extract_strided_slice %33 {offsets = [0, 0], sizes = [32, 128], strides = [1, 1]} : vector<128x128xbf16> to vector<32x128xbf16>
    %cst_54 = arith.constant dense<0.000000e+00> : vector<128x128xf32>
    %187 = tpu.matmul %185, %186, %cst_54 {dimension_numbers = #tpu.dot_dimension_numbers<[1], [0], [0], [1], [0, 0, 1, 1], [], []>} : vector<128x32xbf16>, vector<32x128xbf16>, vector<128x128xf32> -> vector<128x128xf32>
    %188 = arith.addf %167, %187 : vector<128x128xf32>
    %189 = vector.extract_strided_slice %153 {offsets = [0, 32], sizes = [128, 32], strides = [1, 1]} : vector<128x128xbf16> to vector<128x32xbf16>
    %190 = vector.extract_strided_slice %161 {offsets = [0, 32], sizes = [128, 32], strides = [1, 1]} : vector<128x128xbf16> to vector<128x32xbf16>
    %cst_55 = arith.constant dense<0.000000e+00> : vector<128x128xf32>
    %191 = tpu.matmul %189, %190, %cst_55 {dimension_numbers = #tpu.dot_dimension_numbers<[1], [1], [0], [0], [0, 0, 1, 0], [], []>} : vector<128x32xbf16>, vector<128x32xbf16>, vector<128x128xf32> -> vector<128x128xf32>
    %192 = arith.addf %191, %166 : vector<128x128xf32>
    %cst_56 = arith.constant dense<0xFF800000> : vector<128xf32>
    %193 = vector.multi_reduction <maximumf>, %192, %cst_56 [1] : vector<128x128xf32> to vector<128xf32>
    %194 = vector.shape_cast %193 : vector<128xf32> to vector<128x1xf32>
    %195 = vector.broadcast %194 : vector<128x1xf32> to vector<128x128xf32>
    %196 = arith.subf %192, %195 : vector<128x128xf32>
    %197 = math.exp %196 : vector<128x128xf32>
    %cst_57 = arith.constant dense<0.000000e+00> : vector<128xf32>
    %198 = vector.multi_reduction <add>, %197, %cst_57 [1] : vector<128x128xf32> to vector<128xf32>
    %199 = vector.shape_cast %198 : vector<128xf32> to vector<128x1xf32>
    %200 = tpu.reciprocal %199 : vector<128x1xf32> -> vector<128x1xf32>
    %201 = vector.broadcast %200 : vector<128x1xf32> to vector<128x128xf32>
    %202 = arith.mulf %197, %201 : vector<128x128xf32>
    %203 = arith.truncf %202 : vector<128x128xf32> to vector<128x128xbf16>
    %204 = vector.extract_strided_slice %163 {offsets = [0, 32], sizes = [128, 32], strides = [1, 1]} : vector<128x128xbf16> to vector<128x32xbf16>
    %cst_58 = arith.constant dense<0.000000e+00> : vector<128x32xf32>
    %205 = tpu.matmul %203, %204, %cst_58 {dimension_numbers = #tpu.dot_dimension_numbers<[1], [0], [0], [1], [0, 0, 1, 1], [], []>} : vector<128x128xbf16>, vector<128x32xbf16>, vector<128x32xf32> -> vector<128x32xf32>
    %206 = arith.truncf %205 : vector<128x32xf32> to vector<128x32xbf16>
    %207 = vector.extract_strided_slice %33 {offsets = [32, 0], sizes = [32, 128], strides = [1, 1]} : vector<128x128xbf16> to vector<32x128xbf16>
    %cst_59 = arith.constant dense<0.000000e+00> : vector<128x128xf32>
    %208 = tpu.matmul %206, %207, %cst_59 {dimension_numbers = #tpu.dot_dimension_numbers<[1], [0], [0], [1], [0, 0, 1, 1], [], []>} : vector<128x32xbf16>, vector<32x128xbf16>, vector<128x128xf32> -> vector<128x128xf32>
    %209 = arith.addf %188, %208 : vector<128x128xf32>
    %210 = vector.extract_strided_slice %153 {offsets = [0, 64], sizes = [128, 32], strides = [1, 1]} : vector<128x128xbf16> to vector<128x32xbf16>
    %211 = vector.extract_strided_slice %161 {offsets = [0, 64], sizes = [128, 32], strides = [1, 1]} : vector<128x128xbf16> to vector<128x32xbf16>
    %cst_60 = arith.constant dense<0.000000e+00> : vector<128x128xf32>
    %212 = tpu.matmul %210, %211, %cst_60 {dimension_numbers = #tpu.dot_dimension_numbers<[1], [1], [0], [0], [0, 0, 1, 0], [], []>} : vector<128x32xbf16>, vector<128x32xbf16>, vector<128x128xf32> -> vector<128x128xf32>
    %213 = arith.addf %212, %166 : vector<128x128xf32>
    %cst_61 = arith.constant dense<0xFF800000> : vector<128xf32>
    %214 = vector.multi_reduction <maximumf>, %213, %cst_61 [1] : vector<128x128xf32> to vector<128xf32>
    %215 = vector.shape_cast %214 : vector<128xf32> to vector<128x1xf32>
    %216 = vector.broadcast %215 : vector<128x1xf32> to vector<128x128xf32>
    %217 = arith.subf %213, %216 : vector<128x128xf32>
    %218 = math.exp %217 : vector<128x128xf32>
    %cst_62 = arith.constant dense<0.000000e+00> : vector<128xf32>
    %219 = vector.multi_reduction <add>, %218, %cst_62 [1] : vector<128x128xf32> to vector<128xf32>
    %220 = vector.shape_cast %219 : vector<128xf32> to vector<128x1xf32>
    %221 = tpu.reciprocal %220 : vector<128x1xf32> -> vector<128x1xf32>
    %222 = vector.broadcast %221 : vector<128x1xf32> to vector<128x128xf32>
    %223 = arith.mulf %218, %222 : vector<128x128xf32>
    %224 = arith.truncf %223 : vector<128x128xf32> to vector<128x128xbf16>
    %225 = vector.extract_strided_slice %163 {offsets = [0, 64], sizes = [128, 32], strides = [1, 1]} : vector<128x128xbf16> to vector<128x32xbf16>
    %cst_63 = arith.constant dense<0.000000e+00> : vector<128x32xf32>
    %226 = tpu.matmul %224, %225, %cst_63 {dimension_numbers = #tpu.dot_dimension_numbers<[1], [0], [0], [1], [0, 0, 1, 1], [], []>} : vector<128x128xbf16>, vector<128x32xbf16>, vector<128x32xf32> -> vector<128x32xf32>
    %227 = arith.truncf %226 : vector<128x32xf32> to vector<128x32xbf16>
    %228 = vector.extract_strided_slice %33 {offsets = [64, 0], sizes = [32, 128], strides = [1, 1]} : vector<128x128xbf16> to vector<32x128xbf16>
    %cst_64 = arith.constant dense<0.000000e+00> : vector<128x128xf32>
    %229 = tpu.matmul %227, %228, %cst_64 {dimension_numbers = #tpu.dot_dimension_numbers<[1], [0], [0], [1], [0, 0, 1, 1], [], []>} : vector<128x32xbf16>, vector<32x128xbf16>, vector<128x128xf32> -> vector<128x128xf32>
    %230 = arith.addf %209, %229 : vector<128x128xf32>
    %231 = vector.extract_strided_slice %153 {offsets = [0, 96], sizes = [128, 32], strides = [1, 1]} : vector<128x128xbf16> to vector<128x32xbf16>
    %232 = vector.extract_strided_slice %161 {offsets = [0, 96], sizes = [128, 32], strides = [1, 1]} : vector<128x128xbf16> to vector<128x32xbf16>
    %cst_65 = arith.constant dense<0.000000e+00> : vector<128x128xf32>
    %233 = tpu.matmul %231, %232, %cst_65 {dimension_numbers = #tpu.dot_dimension_numbers<[1], [1], [0], [0], [0, 0, 1, 0], [], []>} : vector<128x32xbf16>, vector<128x32xbf16>, vector<128x128xf32> -> vector<128x128xf32>
    %234 = arith.addf %233, %166 : vector<128x128xf32>
    %cst_66 = arith.constant dense<0xFF800000> : vector<128xf32>
    %235 = vector.multi_reduction <maximumf>, %234, %cst_66 [1] : vector<128x128xf32> to vector<128xf32>
    %236 = vector.shape_cast %235 : vector<128xf32> to vector<128x1xf32>
    %237 = vector.broadcast %236 : vector<128x1xf32> to vector<128x128xf32>
    %238 = arith.subf %234, %237 : vector<128x128xf32>
    %239 = math.exp %238 : vector<128x128xf32>
    %cst_67 = arith.constant dense<0.000000e+00> : vector<128xf32>
    %240 = vector.multi_reduction <add>, %239, %cst_67 [1] : vector<128x128xf32> to vector<128xf32>
    %241 = vector.shape_cast %240 : vector<128xf32> to vector<128x1xf32>
    %242 = tpu.reciprocal %241 : vector<128x1xf32> -> vector<128x1xf32>
    %243 = vector.broadcast %242 : vector<128x1xf32> to vector<128x128xf32>
    %244 = arith.mulf %239, %243 : vector<128x128xf32>
    %245 = arith.truncf %244 : vector<128x128xf32> to vector<128x128xbf16>
    %246 = vector.extract_strided_slice %163 {offsets = [0, 96], sizes = [128, 32], strides = [1, 1]} : vector<128x128xbf16> to vector<128x32xbf16>
    %cst_68 = arith.constant dense<0.000000e+00> : vector<128x32xf32>
    %247 = tpu.matmul %245, %246, %cst_68 {dimension_numbers = #tpu.dot_dimension_numbers<[1], [0], [0], [1], [0, 0, 1, 1], [], []>} : vector<128x128xbf16>, vector<128x32xbf16>, vector<128x32xf32> -> vector<128x32xf32>
    %248 = arith.truncf %247 : vector<128x32xf32> to vector<128x32xbf16>
    %249 = vector.extract_strided_slice %33 {offsets = [96, 0], sizes = [32, 128], strides = [1, 1]} : vector<128x128xbf16> to vector<32x128xbf16>
    %cst_69 = arith.constant dense<0.000000e+00> : vector<128x128xf32>
    %250 = tpu.matmul %248, %249, %cst_69 {dimension_numbers = #tpu.dot_dimension_numbers<[1], [0], [0], [1], [0, 0, 1, 1], [], []>} : vector<128x32xbf16>, vector<32x128xbf16>, vector<128x128xf32> -> vector<128x128xf32>
    %251 = arith.addf %230, %250 : vector<128x128xf32>
    %252 = tpu.concatenate %142, %251 in 0 : vector<128x128xf32>, vector<128x128xf32> -> vector<256x128xf32>
    %253 = arith.mulf %252, %252 : vector<256x128xf32>
    %cst_70 = arith.constant dense<0.000000e+00> : vector<256xf32>
    %254 = vector.multi_reduction <add>, %253, %cst_70 [1] : vector<256x128xf32> to vector<256xf32>
    %255 = vector.shape_cast %254 : vector<256xf32> to vector<256x1xf32>
    %cst_71 = arith.constant 1.280000e+02 : f32
    %256 = vector.broadcast %cst_71 : f32 to vector<256x1xf32>
    %257 = arith.divf %255, %256 : vector<256x1xf32>
    %cst_72 = arith.constant 9.99999974E-6 : f32
    %258 = vector.broadcast %cst_72 : f32 to vector<256x1xf32>
    %259 = arith.addf %257, %258 : vector<256x1xf32>
    %260 = math.rsqrt %259 : vector<256x1xf32>
    %261 = vector.broadcast %260 : vector<256x1xf32> to vector<256x128xf32>
    %262 = arith.mulf %252, %261 : vector<256x128xf32>
    %263 = vector.broadcast %9 : vector<1x128xf32> to vector<256x128xf32>
    %264 = arith.mulf %262, %263 : vector<256x128xf32>
    %265 = arith.truncf %264 : vector<256x128xf32> to vector<256x128xbf16>
    %c0_73 = arith.constant 0 : index
    %c0_74 = arith.constant 0 : index
    %c0_75 = arith.constant 0 : index
    %266 = vector.load %arg10[%c0_73, %c0_74, %c0_75] : memref<1x128x512xbf16, #tpu.memory_space<vmem>>, vector<1x128x512xbf16>
    %267 = vector.shape_cast %266 : vector<1x128x512xbf16> to vector<128x512xbf16>
    %cst_76 = arith.constant dense<0.000000e+00> : vector<256x512xf32>
    %268 = tpu.matmul %265, %267, %cst_76 {dimension_numbers = #tpu.dot_dimension_numbers<[1], [0], [0], [1], [0, 0, 1, 1], [], []>} : vector<256x128xbf16>, vector<128x512xbf16>, vector<256x512xf32> -> vector<256x512xf32>
    %269 = vector.extract_strided_slice %268 {offsets = [0, 0], sizes = [256, 256], strides = [1, 1]} : vector<256x512xf32> to vector<256x256xf32>
    %270 = vector.extract_strided_slice %268 {offsets = [0, 256], sizes = [256, 256], strides = [1, 1]} : vector<256x512xf32> to vector<256x256xf32>
    %271 = arith.negf %269 : vector<256x256xf32>
    %272 = math.exp %271 : vector<256x256xf32>
    %cst_77 = arith.constant 1.000000e+00 : f32
    %273 = vector.broadcast %cst_77 : f32 to vector<256x256xf32>
    %274 = arith.addf %273, %272 : vector<256x256xf32>
    %275 = arith.divf %273, %274 : vector<256x256xf32>
    %276 = arith.mulf %269, %275 : vector<256x256xf32>
    %277 = arith.mulf %276, %270 : vector<256x256xf32>
    %278 = arith.truncf %277 : vector<256x256xf32> to vector<256x256xbf16>
    %c0_78 = arith.constant 0 : index
    %c0_79 = arith.constant 0 : index
    %c0_80 = arith.constant 0 : index
    %279 = vector.load %arg11[%c0_78, %c0_79, %c0_80] : memref<1x256x128xbf16, #tpu.memory_space<vmem>>, vector<1x256x128xbf16>
    %280 = vector.shape_cast %279 : vector<1x256x128xbf16> to vector<256x128xbf16>
    %cst_81 = arith.constant dense<0.000000e+00> : vector<256x128xf32>
    %281 = tpu.matmul %278, %280, %cst_81 {dimension_numbers = #tpu.dot_dimension_numbers<[1], [0], [0], [1], [0, 0, 1, 1], [], []>} : vector<256x256xbf16>, vector<256x128xbf16>, vector<256x128xf32> -> vector<256x128xf32>
    %282 = arith.addf %252, %281 : vector<256x128xf32>
    %c0_82 = arith.constant 0 : index
    %c0_83 = arith.constant 0 : index
    %283 = vector.load %arg13[%c0_82, %c0_83] : memref<256x128xf32, #tpu.memory_space<vmem>>, vector<256x128xf32>
    tpu.vector_store %arg13[%c0_82, %c0_83], %282 {strides = array<i32>} : memref<256x128xf32, #tpu.memory_space<vmem>>, vector<256x128xf32>,
    %c1_i32_84 = arith.constant 1 : i32
    %284 = arith.cmpi eq, %arg0, %c1_i32_84 : i32
    %285 = arith.extui %284 : i1 to i32
    %c0_i32_85 = arith.constant 0 : i32
    %286 = arith.cmpi ne, %285, %c0_i32_85 : i32
    scf.if %286 {
      %c0_86 = arith.constant 0 : index
      %c0_87 = arith.constant 0 : index
      %287 = vector.load %arg5[%c0_86, %c0_87] : memref<2x256xf32, #tpu.memory_space<vmem>>, vector<2x256xf32>
      %cst_88 = arith.constant dense<0.000000e+00> : vector<2x128xf32>
      %288 = tpu.matmul %287, %282, %cst_88 {dimension_numbers = #tpu.dot_dimension_numbers<[1], [0], [0], [1], [0, 0, 1, 1], [], []>} : vector<2x256xf32>, vector<256x128xf32>, vector<2x128xf32> -> vector<2x128xf32>
      %c0_89 = arith.constant 0 : index
      %c0_90 = arith.constant 0 : index
      %289 = vector.load %arg6[%c0_89, %c0_90] : memref<2x1xf32, #tpu.memory_space<vmem>>, vector<2x1xf32>
      %290 = vector.broadcast %289 : vector<2x1xf32> to vector<2x128xf32>
      %291 = arith.mulf %288, %290 : vector<2x128xf32>
      %c0_91 = arith.constant 0 : index
      %c0_92 = arith.constant 0 : index
      %292 = vector.load %arg12[%c0_91, %c0_92] : memref<2x128xf32, #tpu.memory_space<vmem>>, vector<2x128xf32>
      tpu.vector_store %arg12[%c0_91, %c0_92], %291 {strides = array<i32>} : memref<2x128xf32, #tpu.memory_space<vmem>>, vector<2x128xf32>,
    } else {
    }
    return
  }
  func.func @transform_0(%arg0: i32) -> (i32, i32) {
    %c0_i32 = arith.constant 0 : i32
    %c0_i32_0 = arith.constant 0 : i32
    %c0_i32_1 = arith.constant 0 : i32
    return %c0_i32, %c0_i32_0 : i32, i32
  }
  func.func @transform_1(%arg0: i32) -> (i32, i32) {
    %c0_i32 = arith.constant 0 : i32
    %c0_i32_0 = arith.constant 0 : i32
    %c0_i32_1 = arith.constant 0 : i32
    return %c0_i32, %c0_i32_0 : i32, i32
  }
  func.func @transform_2(%arg0: i32) -> (i32, i32) {
    %c0_i32 = arith.constant 0 : i32
    %c0_i32_0 = arith.constant 0 : i32
    %c0_i32_1 = arith.constant 0 : i32
    return %c0_i32, %c0_i32_0 : i32, i32
  }
  func.func @transform_3(%arg0: i32) -> (i32, i32) {
    %c0_i32 = arith.constant 0 : i32
    %c0_i32_0 = arith.constant 0 : i32
    %c0_i32_1 = arith.constant 0 : i32
    return %c0_i32, %c0_i32_0 : i32, i32
  }
  func.func @transform_4(%arg0: i32) -> (i32, i32) {
    %c0_i32 = arith.constant 0 : i32
    %c0_i32_0 = arith.constant 0 : i32
    %c0_i32_1 = arith.constant 0 : i32
    return %c0_i32, %c0_i32_0 : i32, i32
  }
  func.func @transform_5(%arg0: i32) -> (i32, i32) {
    %c0_i32 = arith.constant 0 : i32
    %c0_i32_0 = arith.constant 0 : i32
    %c0_i32_1 = arith.constant 0 : i32
    return %c0_i32, %c0_i32_0 : i32, i32
  }
  func.func @transform_6(%arg0: i32) -> (i32, i32, i32) {
    %c0_i32 = arith.constant 0 : i32
    %c0_i32_0 = arith.constant 0 : i32
    %c0_i32_1 = arith.constant 0 : i32
    return %arg0, %c0_i32, %c0_i32_0 : i32, i32, i32
  }
  func.func @transform_7(%arg0: i32) -> (i32, i32, i32) {
    %c0_i32 = arith.constant 0 : i32
    %c0_i32_0 = arith.constant 0 : i32
    %c0_i32_1 = arith.constant 0 : i32
    return %arg0, %c0_i32, %c0_i32_0 : i32, i32, i32
  }
  func.func @transform_8(%arg0: i32) -> (i32, i32, i32) {
    %c0_i32 = arith.constant 0 : i32
    %c0_i32_0 = arith.constant 0 : i32
    %c0_i32_1 = arith.constant 0 : i32
    return %arg0, %c0_i32, %c0_i32_0 : i32, i32, i32
  }
  func.func @transform_9(%arg0: i32) -> (i32, i32, i32) {
    %c0_i32 = arith.constant 0 : i32
    %c0_i32_0 = arith.constant 0 : i32
    %c0_i32_1 = arith.constant 0 : i32
    return %arg0, %c0_i32, %c0_i32_0 : i32, i32, i32
  }
  func.func @transform_10(%arg0: i32) -> (i32, i32, i32) {
    %c0_i32 = arith.constant 0 : i32
    %c0_i32_0 = arith.constant 0 : i32
    %c0_i32_1 = arith.constant 0 : i32
    return %arg0, %c0_i32, %c0_i32_0 : i32, i32, i32
  }
  func.func @transform_11(%arg0: i32) -> (i32, i32) {
    %c0_i32 = arith.constant 0 : i32
    %c0_i32_0 = arith.constant 0 : i32
    %c0_i32_1 = arith.constant 0 : i32
    return %c0_i32, %c0_i32_0 : i32, i32
  }
}

</mosaic_0001>

<llo_original>
// kernel: tpu_custom_call.1
$region0: #{tpu_custom_call.1}
  #allocation0 [shape = 'u32[]', space=smem, size = 0x4, offset = 0x4, fixed_abs, tag = 'smem constant byte address 0x4 - core index']
  #allocation1 [shape = 'u32[144,128]{1,0:T(1,128)}', space=vmem, size = 0x12000, scoped, tag = 'internal scratch']
  #allocation2 [shape = 'f32[256,128]{1,0:T(8,128)}', space=vmem, size = 0x20000, scoped, tag = 'scratch operand']
  %s0 = inlined_call_operand.hbm [shape: f32[256,128], index: 0, kind: input, shape index: {}]
  %s1 = inlined_call_operand.hbm [shape: f32[2,128], index: 1, kind: input, shape index: {}]
  %s2 = inlined_call_operand.hbm [shape: f32[128,128], index: 2, kind: input, shape index: {}]
  %s3 = inlined_call_operand.hbm [shape: f32[128,128], index: 3, kind: input, shape index: {}]
  %s4 = inlined_call_operand.vmem [shape: f32[2,256], index: 4, kind: input, shape index: {}]
  %s5 = inlined_call_operand.vmem [shape: f32[2,1], index: 5, kind: input, shape index: {}]
  %s6 = inlined_call_operand.vmem [shape: f32[2,2,128], index: 6, kind: input, shape index: {}]
  %s7 = inlined_call_operand.hbm [shape: bf16[2,128,384], index: 7, kind: input, shape index: {}]
  %s8 = inlined_call_operand.hbm [shape: bf16[2,128,128], index: 8, kind: input, shape index: {}]
  %s9 = inlined_call_operand.hbm [shape: bf16[2,128,512], index: 9, kind: input, shape index: {}]
  %s10 = inlined_call_operand.hbm [shape: bf16[2,256,128], index: 10, kind: input, shape index: {}]
  %s11 = inlined_call_operand.hbm [shape: f32[2,128], index: 11, kind: output, shape index: {}]
  %s12 = sld [smem:[#allocation0]]
  $region117: #{tpu_custom_call.1} parent=0
    _
  %s14 = ssub.s32 1, %s12
  %s15 = scalar_select 0, %s14, %s12
  $region1: #{tpu_custom_call.1} parent=0
    #allocation3 [shape = 'u8[131072]{0}', space=vmem, size = 0x20000, scoped, tag = 'input window, operand 0, single buffered']
    #allocation4 [shape = 's32[2]{0}', space=sflag, size = 0x8, scoped, tag = 'scoped memory for tpu_custom_call.1']
    #allocation5 [shape = 's32[2]{0}', space=sflag, size = 0x8, scoped, tag = 'scoped memory for tpu_custom_call.1']
    #allocation6 [shape = 'u8[1024]{0}', space=vmem, size = 0x400, scoped, tag = 'input window, operand 1, single buffered']
    #allocation7 [shape = 's32[1]{0}', space=sflag, size = 0x4, scoped, tag = 'scoped memory for tpu_custom_call.1']
    #allocation8 [shape = 'u8[65536]{0}', space=vmem, size = 0x10000, scoped, tag = 'input window, operand 2, single buffered']
    #allocation9 [shape = 'u8[65536]{0}', space=vmem, size = 0x10000, scoped, tag = 'input window, operand 3, single buffered']
    #allocation10 [shape = 's32[1]{0}', space=sflag, size = 0x4, scoped, tag = 'scoped memory for tpu_custom_call.1']
    #allocation11 [shape = 'u8[196608]{0}', space=vmem, size = 0x30000, scoped, tag = 'input window, operand 7']
    #allocation12 [shape = 'u8[65536]{0}', space=vmem, size = 0x10000, scoped, tag = 'input window, operand 8']
    #allocation13 [shape = 'u8[262144]{0}', space=vmem, size = 0x40000, scoped, tag = 'input window, operand 9']
    #allocation14 [shape = 'u8[131072]{0}', space=vmem, size = 0x20000, scoped, tag = 'input window, operand 10']
    #allocation15 [shape = 'u8[1024]{0}', space=vmem, size = 0x400, scoped, tag = 'output window, operand 0, single buffered']
    %16 = vsyncpa [#allocation4], 0
    %17 = vsyncpa [#allocation7], 0
    %18 = vsyncpa [#allocation10], 0
    %19 = vsyncpa [#allocation5], 0
    loop: start=0, step=1, limit=4
    $region2: #{tpu_custom_call.1} parent=1 // loop_pre_header
      _
    $region3: #{tpu_custom_call.1} parent=1 // loop_header
      %s21 = sphi 0, %s25
      %p22 = scmp.ge.s32.totalorder %s21, 4
      %s29 = sphi 0, %s29
      %s31 = sphi 0, %s29
      %s32 = sphi 0, %s31
      %s46 = sphi 0, %s32
      %s50 = sphi 0, %s50
      %s52 = sphi 0, %s50
      %s53 = sphi 0, %s52
      %s67 = sphi 0, %s53
      %s71 = sphi 0, %s71
      %s73 = sphi 0, %s71
      %s74 = sphi 0, %s73
      %s88 = sphi 0, %s74
      %s92 = sphi 0, %s92
      %s94 = sphi 0, %s92
      %s95 = sphi 0, %s94
      %s109 = sphi 0, %s95
      %s113 = sphi 0, %s113
      %s115 = sphi 0, %s113
      %s116 = sphi 0, %s115
      %s130 = sphi 0, %s116
      %s134 = sphi 0, %s134
      %s136 = sphi 0, %s134
      %s137 = sphi 0, %s136
      %s151 = sphi 0, %s137
      %s157 = sphi 0, %s159
      %s160 = sphi 0, %s157
      %s161 = sphi 0, %s160
      %s177 = sphi 0, %s161
      %s183 = sphi 0, %s185
      %s186 = sphi 0, %s183
      %s187 = sphi 0, %s186
      %s203 = sphi 0, %s187
      %s209 = sphi 0, %s211
      %s212 = sphi 0, %s209
      %s213 = sphi 0, %s212
      %s229 = sphi 0, %s213
      %s235 = sphi 0, %s237
      %s238 = sphi 0, %s235
      %s239 = sphi 0, %s238
      %s255 = sphi 0, %s239
      %s261 = sphi 0, %s263
      %s264 = sphi 0, %s261
      %s265 = sphi 0, %s264
      %s281 = sphi 0, %s265
      %s285 = sphi 0, %s285
      %s287 = sphi 0, %s285
      %s288 = sphi 0, %s287
      %s302 = sphi 0, %s288
    $region4: #{tpu_custom_call.1} parent=1 // loop_header_branch
      %24 = sbr.rel (%p22) target = $region8
    $region5: #{tpu_custom_call.1} parent=1 // loop_body
      %s26 = ssub.s32 %s21, 1
      %s27 = ssub.s32 %s21, 2
      %s28 = sadd.s32 %s21, 1
      %s30 = sadd.s32 %s29, 1
      %p33 = scmp.eq.s32.totalorder %s21, 1
      %p34 = scmp.ne.s32.totalorder %s29, %s31
      %p35 = scmp.eq.s32.totalorder %s21, 0
      %p36 = por %p34, %p35
      %p37 = scmp.ne.s32.totalorder %s29, %s31
      %p38 = scmp.eq.s32.totalorder %s26, 1
      %p39 = por %p37, %p38
      %p40 = scmp.ne.s32.totalorder %s31, %s32
      %p41 = scmp.eq.s32.totalorder %s26, 0
      %p42 = por %p40, %p41
      %p43 = scmp.ne.s32.totalorder %s31, %s32
      %p44 = scmp.eq.s32.totalorder %s27, 1
      %p45 = por %p43, %p44
      %p47 = scmp.ne.s32.totalorder %s32, %s46
      %p48 = scmp.eq.s32.totalorder %s27, 0
      %p49 = por %p47, %p48
      %s51 = sadd.s32 %s50, 1
      %p54 = scmp.eq.s32.totalorder %s21, 1
      %p55 = scmp.ne.s32.totalorder %s50, %s52
      %p56 = scmp.eq.s32.totalorder %s21, 0
      %p57 = por %p55, %p56
      %p58 = scmp.ne.s32.totalorder %s50, %s52
      %p59 = scmp.eq.s32.totalorder %s26, 1
      %p60 = por %p58, %p59
      %p61 = scmp.ne.s32.totalorder %s52, %s53
      %p62 = scmp.eq.s32.totalorder %s26, 0
      %p63 = por %p61, %p62
      %p64 = scmp.ne.s32.totalorder %s52, %s53
      %p65 = scmp.eq.s32.totalorder %s27, 1
      %p66 = por %p64, %p65
      %p68 = scmp.ne.s32.totalorder %s53, %s67
      %p69 = scmp.eq.s32.totalorder %s27, 0
      %p70 = por %p68, %p69
      %s72 = sadd.s32 %s71, 1
      %p75 = scmp.eq.s32.totalorder %s21, 1
      %p76 = scmp.ne.s32.totalorder %s71, %s73
      %p77 = scmp.eq.s32.totalorder %s21, 0
      %p78 = por %p76, %p77
      %p79 = scmp.ne.s32.totalorder %s71, %s73
      %p80 = scmp.eq.s32.totalorder %s26, 1
      %p81 = por %p79, %p80
      %p82 = scmp.ne.s32.totalorder %s73, %s74
      %p83 = scmp.eq.s32.totalorder %s26, 0
      %p84 = por %p82, %p83
      %p85 = scmp.ne.s32.totalorder %s73, %s74
      %p86 = scmp.eq.s32.totalorder %s27, 1
      %p87 = por %p85, %p86
      %p89 = scmp.ne.s32.totalorder %s74, %s88
      %p90 = scmp.eq.s32.totalorder %s27, 0
      %p91 = por %p89, %p90
      %s93 = sadd.s32 %s92, 1
      %p96 = scmp.eq.s32.totalorder %s21, 1
      %p97 = scmp.ne.s32.totalorder %s92, %s94
      %p98 = scmp.eq.s32.totalorder %s21, 0
      %p99 = por %p97, %p98
      %p100 = scmp.ne.s32.totalorder %s92, %s94
      %p101 = scmp.eq.s32.totalorder %s26, 1
      %p102 = por %p100, %p101
      %p103 = scmp.ne.s32.totalorder %s94, %s95
      %p104 = scmp.eq.s32.totalorder %s26, 0
      %p105 = por %p103, %p104
      %p106 = scmp.ne.s32.totalorder %s94, %s95
      %p107 = scmp.eq.s32.totalorder %s27, 1
      %p108 = por %p106, %p107
      %p110 = scmp.ne.s32.totalorder %s95, %s109
      %p111 = scmp.eq.s32.totalorder %s27, 0
      %p112 = por %p110, %p111
      %s114 = sadd.s32 %s113, 1
      %p117 = scmp.eq.s32.totalorder %s21, 1
      %p118 = scmp.ne.s32.totalorder %s113, %s115
      %p119 = scmp.eq.s32.totalorder %s21, 0
      %p120 = por %p118, %p119
      %p121 = scmp.ne.s32.totalorder %s113, %s115
      %p122 = scmp.eq.s32.totalorder %s26, 1
      %p123 = por %p121, %p122
      %p124 = scmp.ne.s32.totalorder %s115, %s116
      %p125 = scmp.eq.s32.totalorder %s26, 0
      %p126 = por %p124, %p125
      %p127 = scmp.ne.s32.totalorder %s115, %s116
      %p128 = scmp.eq.s32.totalorder %s27, 1
      %p129 = por %p127, %p128
      %p131 = scmp.ne.s32.totalorder %s116, %s130
      %p132 = scmp.eq.s32.totalorder %s27, 0
      %p133 = por %p131, %p132
      %s135 = sadd.s32 %s134, 1
      %p138 = scmp.eq.s32.totalorder %s21, 1
      %p139 = scmp.ne.s32.totalorder %s134, %s136
      %p140 = scmp.eq.s32.totalorder %s21, 0
      %p141 = por %p139, %p140
      %p142 = scmp.ne.s32.totalorder %s134, %s136
      %p143 = scmp.eq.s32.totalorder %s26, 1
      %p144 = por %p142, %p143
      %p145 = scmp.ne.s32.totalorder %s136, %s137
      %p146 = scmp.eq.s32.totalorder %s26, 0
      %p147 = por %p145, %p146
      %p148 = scmp.ne.s32.totalorder %s136, %s137
      %p149 = scmp.eq.s32.totalorder %s27, 1
      %p150 = por %p148, %p149
      %p152 = scmp.ne.s32.totalorder %s137, %s151
      %p153 = scmp.eq.s32.totalorder %s27, 0
      %p154 = por %p152, %p153
      %s155 = ssub.s32 %s21, %s28
      %p156 = scmp.eq.s32.totalorder %s155, 0
      %s158 = sadd.s32 %s157, 1
      %s159 = scalar_select %p156, %s157, %s158
      %p162 = pneg %p156
      %p163 = scmp.eq.s32.totalorder %s21, 1
      %p164 = por %p162, %p163
      %p165 = scmp.ne.s32.totalorder %s157, %s160
      %p166 = scmp.eq.s32.totalorder %s21, 0
      %p167 = por %p165, %p166
      %p168 = scmp.ne.s32.totalorder %s157, %s160
      %p169 = scmp.eq.s32.totalorder %s26, 1
      %p170 = por %p168, %p169
      %p171 = scmp.ne.s32.totalorder %s160, %s161
      %p172 = scmp.eq.s32.totalorder %s26, 0
      %p173 = por %p171, %p172
      %p174 = scmp.ne.s32.totalorder %s160, %s161
      %p175 = scmp.eq.s32.totalorder %s27, 1
      %p176 = por %p174, %p175
      %p178 = scmp.ne.s32.totalorder %s161, %s177
      %p179 = scmp.eq.s32.totalorder %s27, 0
      %p180 = por %p178, %p179
      %s181 = ssub.s32 %s21, %s28
      %p182 = scmp.eq.s32.totalorder %s181, 0
      %s184 = sadd.s32 %s183, 1
      %s185 = scalar_select %p182, %s183, %s184
      %p188 = pneg %p182
      %p189 = scmp.eq.s32.totalorder %s21, 1
      %p190 = por %p188, %p189
      %p191 = scmp.ne.s32.totalorder %s183, %s186
      %p192 = scmp.eq.s32.totalorder %s21, 0
      %p193 = por %p191, %p192
      %p194 = scmp.ne.s32.totalorder %s183, %s186
      %p195 = scmp.eq.s32.totalorder %s26, 1
      %p196 = por %p194, %p195
      %p197 = scmp.ne.s32.totalorder %s186, %s187
      %p198 = scmp.eq.s32.totalorder %s26, 0
      %p199 = por %p197, %p198
      %p200 = scmp.ne.s32.totalorder %s186, %s187
      %p201 = scmp.eq.s32.totalorder %s27, 1
      %p202 = por %p200, %p201
      %p204 = scmp.ne.s32.totalorder %s187, %s203
      %p205 = scmp.eq.s32.totalorder %s27, 0
      %p206 = por %p204, %p205
      %s207 = ssub.s32 %s21, %s28
      %p208 = scmp.eq.s32.totalorder %s207, 0
      %s210 = sadd.s32 %s209, 1
      %s211 = scalar_select %p208, %s209, %s210
      %p214 = pneg %p208
      %p215 = scmp.eq.s32.totalorder %s21, 1
      %p216 = por %p214, %p215
      %p217 = scmp.ne.s32.totalorder %s209, %s212
      %p218 = scmp.eq.s32.totalorder %s21, 0
      %p219 = por %p217, %p218
      %p220 = scmp.ne.s32.totalorder %s209, %s212
      %p221 = scmp.eq.s32.totalorder %s26, 1
      %p222 = por %p220, %p221
      %p223 = scmp.ne.s32.totalorder %s212, %s213
      %p224 = scmp.eq.s32.totalorder %s26, 0
      %p225 = por %p223, %p224
      %p226 = scmp.ne.s32.totalorder %s212, %s213
      %p227 = scmp.eq.s32.totalorder %s27, 1
      %p228 = por %p226, %p227
      %p230 = scmp.ne.s32.totalorder %s213, %s229
      %p231 = scmp.eq.s32.totalorder %s27, 0
      %p232 = por %p230, %p231
      %s233 = ssub.s32 %s21, %s28
      %p234 = scmp.eq.s32.totalorder %s233, 0
      %s236 = sadd.s32 %s235, 1
      %s237 = scalar_select %p234, %s235, %s236
      %p240 = pneg %p234
      %p241 = scmp.eq.s32.totalorder %s21, 1
      %p242 = por %p240, %p241
      %p243 = scmp.ne.s32.totalorder %s235, %s238
      %p244 = scmp.eq.s32.totalorder %s21, 0
      %p245 = por %p243, %p244
      %p246 = scmp.ne.s32.totalorder %s235, %s238
      %p247 = scmp.eq.s32.totalorder %s26, 1
      %p248 = por %p246, %p247
      %p249 = scmp.ne.s32.totalorder %s238, %s239
      %p250 = scmp.eq.s32.totalorder %s26, 0
      %p251 = por %p249, %p250
      %p252 = scmp.ne.s32.totalorder %s238, %s239
      %p253 = scmp.eq.s32.totalorder %s27, 1
      %p254 = por %p252, %p253
      %p256 = scmp.ne.s32.totalorder %s239, %s255
      %p257 = scmp.eq.s32.totalorder %s27, 0
      %p258 = por %p256, %p257
      %s259 = ssub.s32 %s21, %s28
      %p260 = scmp.eq.s32.totalorder %s259, 0
      %s262 = sadd.s32 %s261, 1
      %s263 = scalar_select %p260, %s261, %s262
      %p266 = pneg %p260
      %p267 = scmp.eq.s32.totalorder %s21, 1
      %p268 = por %p266, %p267
      %p269 = scmp.ne.s32.totalorder %s261, %s264
      %p270 = scmp.eq.s32.totalorder %s21, 0
      %p271 = por %p269, %p270
      %p272 = scmp.ne.s32.totalorder %s261, %s264
      %p273 = scmp.eq.s32.totalorder %s26, 1
      %p274 = por %p272, %p273
      %p275 = scmp.ne.s32.totalorder %s264, %s265
      %p276 = scmp.eq.s32.totalorder %s26, 0
      %p277 = por %p275, %p276
      %p278 = scmp.ne.s32.totalorder %s264, %s265
      %p279 = scmp.eq.s32.totalorder %s27, 1
      %p280 = por %p278, %p279
      %p282 = scmp.ne.s32.totalorder %s265, %s281
      %p283 = scmp.eq.s32.totalorder %s27, 0
      %p284 = por %p282, %p283
      %s286 = sadd.s32 %s285, 1
      %p289 = scmp.eq.s32.totalorder %s21, 1
      %p290 = scmp.ne.s32.totalorder %s285, %s287
      %p291 = scmp.eq.s32.totalorder %s21, 0
      %p292 = por %p290, %p291
      %p293 = scmp.ne.s32.totalorder %s285, %s287
      %p294 = scmp.eq.s32.totalorder %s26, 1
      %p295 = por %p293, %p294
      %p296 = scmp.ne.s32.totalorder %s287, %s288
      %p297 = scmp.eq.s32.totalorder %s26, 0
      %p298 = por %p296, %p297
      %p299 = scmp.ne.s32.totalorder %s287, %s288
      %p300 = scmp.eq.s32.totalorder %s27, 1
      %p301 = por %p299, %p300
      %p303 = scmp.ne.s32.totalorder %s288, %s302
      %p304 = scmp.eq.s32.totalorder %s27, 0
      %p305 = por %p303, %p304
      %p306 = scmp.le.s32.totalorder 1, %s21
      %p307 = scmp.lt.s32.totalorder %s21, 3
      %p308 = pnand %p306, %p307
      %p309 = pneg %p308
      // Predicated region
      $region9: #{tpu_custom_call.1} parent=5 // pred_check
        _
      $region10: #{tpu_custom_call.1} parent=5 // pred_check_branch
        %311 = sbr.rel (%p308) target = $region12
      $region11: #{tpu_custom_call.1} parent=5 // pred_region
        %s312 = ssub.s32 %s21, 1
        // Predicated region
        $region13: #{tpu_custom_call.1} parent=11 // pred_check
          %p313 = pneg %p42
        $region14: #{tpu_custom_call.1} parent=11 // pred_check_branch
          %315 = sbr.rel (%p313) target = $region16
        $region15: #{tpu_custom_call.1} parent=11 // pred_region
          %s317 = ssub.s32 4096, 4096
          %318 = vsyncadd [#allocation4], %s317
          %s319 = sshll.u32 [#allocation3], 4
          %s320 = int_to_ptr.vmem [resolvable:$true] %s319
          %325 = dma.hbm_to_vmem [thread:$0]  %s0, 4096, %s320, [#allocation4], 128, 128, 8
        $region16: #{tpu_custom_call.1} parent=11 // pred_fallthru
          _
        // Predicated region
        $region17: #{tpu_custom_call.1} parent=11 // pred_check
          %p326 = pneg %p63
        $region18: #{tpu_custom_call.1} parent=11 // pred_check_branch
          %328 = sbr.rel (%p326) target = $region20
        $region19: #{tpu_custom_call.1} parent=11 // pred_region
          %s330 = ssub.s32 32, 32
          %331 = vsyncadd [#allocation7], %s330
          %s333 = sshll.u32 [#allocation6], 4
          %s334 = int_to_ptr.vmem [resolvable:$true] %s333
          %336 = dma.hbm_to_vmem [thread:$0]  %s1, 32, %s334, [#allocation7]
        $region20: #{tpu_custom_call.1} parent=11 // pred_fallthru
          _
        // Predicated region
        $region21: #{tpu_custom_call.1} parent=11 // pred_check
          %p337 = pneg %p84
        $region22: #{tpu_custom_call.1} parent=11 // pred_check_branch
          %339 = sbr.rel (%p337) target = $region24
        $region23: #{tpu_custom_call.1} parent=11 // pred_region
          %s341 = ssub.s32 2048, 2048
          %342 = vsyncadd [#allocation7], %s341
          %s343 = sshll.u32 [#allocation8], 4
          %s344 = int_to_ptr.vmem [resolvable:$true] %s343
          %349 = dma.hbm_to_vmem [thread:$0]  %s2, 2048, %s344, [#allocation7], 128, 128, 8
        $region24: #{tpu_custom_call.1} parent=11 // pred_fallthru
          _
        // Predicated region
        $region25: #{tpu_custom_call.1} parent=11 // pred_check
          %p350 = pneg %p105
        $region26: #{tpu_custom_call.1} parent=11 // pred_check_branch
          %352 = sbr.rel (%p350) target = $region28
        $region27: #{tpu_custom_call.1} parent=11 // pred_region
          %s354 = ssub.s32 2048, 2048
          %355 = vsyncadd [#allocation10], %s354
          %s356 = sshll.u32 [#allocation9], 4
          %s357 = int_to_ptr.vmem [resolvable:$true] %s356
          %362 = dma.hbm_to_vmem [thread:$0]  %s3, 2048, %s357, [#allocation10], 128, 128, 8
        $region28: #{tpu_custom_call.1} parent=11 // pred_fallthru
          _
        // Predicated region
        $region29: #{tpu_custom_call.1} parent=11 // pred_check
          %p363 = pneg %p126
        $region30: #{tpu_custom_call.1} parent=11 // pred_check_branch
          %365 = sbr.rel (%p363) target = $region32
        $region31: #{tpu_custom_call.1} parent=11 // pred_region
          _
        $region32: #{tpu_custom_call.1} parent=11 // pred_fallthru
          _
        // Predicated region
        $region33: #{tpu_custom_call.1} parent=11 // pred_check
          %p366 = pneg %p147
        $region34: #{tpu_custom_call.1} parent=11 // pred_check_branch
          %368 = sbr.rel (%p366) target = $region36
        $region35: #{tpu_custom_call.1} parent=11 // pred_region
          _
        $region36: #{tpu_custom_call.1} parent=11 // pred_fallthru
          _
      $region12: #{tpu_custom_call.1} parent=5 // pred_fallthru
        _
      %p369 = scmp.lt.s32.totalorder %s21, 2
      // Predicated region
      $region37: #{tpu_custom_call.1} parent=5 // pred_check
        %p370 = pneg %p369
      $region38: #{tpu_custom_call.1} parent=5 // pred_check_branch
        %372 = sbr.rel (%p370) target = $region40
      $region39: #{tpu_custom_call.1} parent=5 // pred_region
        // Predicated region
        $region41: #{tpu_custom_call.1} parent=39 // pred_check
          %p373 = pneg %p167
        $region42: #{tpu_custom_call.1} parent=39 // pred_check_branch
          %375 = sbr.rel (%p373) target = $region44
        $region43: #{tpu_custom_call.1} parent=39 // pred_region
          %p376 = scmp.lt.s32.totalorder %s21, 1
          %s377 = scalar_select %p376, %s21, 1
          %s378 = smul.addr %s377, 2
          %s379 = scalar_lea.vmem %s6, %s378
        $region44: #{tpu_custom_call.1} parent=39 // pred_fallthru
          _
        // Predicated region
        $region45: #{tpu_custom_call.1} parent=39 // pred_check
          %p380 = pneg %p193
        $region46: #{tpu_custom_call.1} parent=39 // pred_check_branch
          %382 = sbr.rel (%p380) target = $region48
        $region47: #{tpu_custom_call.1} parent=39 // pred_region
          %s383 = sand.u32 %s21, 1
          %s384 = scalar_lea.sflag [#allocation4], %s383
          %s385 = sand.u32 %s183, 1
          %s386 = smul.addr %s385, 192
          %s387 = scalar_lea.vmem [#allocation11], %s386
          %s389 = ssub.s32 3072, 3072
          %390 = vsyncadd %s384, %s389
          %s391 = smul.addr %s21, 48
          %s392 = smul.addr %s391, 64
          %s393 = scalar_lea.hbm %s7, %s392
          %s394 = sshll.u32 %s387, 4
          %s395 = int_to_ptr.vmem [resolvable:$true] %s394
          %400 = dma.hbm_to_vmem [thread:$0]  %s393, 3072, %s395, %s384, 192, 192, 12
        $region48: #{tpu_custom_call.1} parent=39 // pred_fallthru
          _
        // Predicated region
        $region49: #{tpu_custom_call.1} parent=39 // pred_check
          %p401 = pneg %p219
        $region50: #{tpu_custom_call.1} parent=39 // pred_check_branch
          %403 = sbr.rel (%p401) target = $region52
        $region51: #{tpu_custom_call.1} parent=39 // pred_region
          %s404 = sand.u32 %s21, 1
          %s405 = scalar_lea.sflag [#allocation4], %s404
          %s406 = sand.u32 %s209, 1
          %s407 = smul.addr %s406, 64
          %s408 = scalar_lea.vmem [#allocation12], %s407
          %s410 = ssub.s32 1024, 1024
          %411 = vsyncadd %s405, %s410
          %s412 = smul.addr %s21, 16
          %s413 = smul.addr %s412, 64
          %s414 = scalar_lea.hbm %s8, %s413
          %s415 = sshll.u32 %s408, 4
          %s416 = int_to_ptr.vmem [resolvable:$true] %s415
          %421 = dma.hbm_to_vmem [thread:$0]  %s414, 1024, %s416, %s405, 64, 64, 4
        $region52: #{tpu_custom_call.1} parent=39 // pred_fallthru
          _
        // Predicated region
        $region53: #{tpu_custom_call.1} parent=39 // pred_check
          %p422 = pneg %p245
        $region54: #{tpu_custom_call.1} parent=39 // pred_check_branch
          %424 = sbr.rel (%p422) target = $region56
        $region55: #{tpu_custom_call.1} parent=39 // pred_region
          %s425 = sand.u32 %s21, 1
          %s426 = scalar_lea.sflag [#allocation4], %s425
          %s427 = sand.u32 %s235, 1
          %s428 = smul.addr %s427, 256
          %s429 = scalar_lea.vmem [#allocation13], %s428
          %s431 = ssub.s32 4096, 4096
          %432 = vsyncadd %s426, %s431
          %s433 = smul.addr %s21, 64
          %s434 = smul.addr %s433, 64
          %s435 = scalar_lea.hbm %s9, %s434
          %s436 = sshll.u32 %s429, 4
          %s437 = int_to_ptr.vmem [resolvable:$true] %s436
          %442 = dma.hbm_to_vmem [thread:$0]  %s435, 4096, %s437, %s426, 256, 256, 16
        $region56: #{tpu_custom_call.1} parent=39 // pred_fallthru
          _
        // Predicated region
        $region57: #{tpu_custom_call.1} parent=39 // pred_check
          %p443 = pneg %p271
        $region58: #{tpu_custom_call.1} parent=39 // pred_check_branch
          %445 = sbr.rel (%p443) target = $region60
        $region59: #{tpu_custom_call.1} parent=39 // pred_region
          %s446 = sand.u32 %s21, 1
          %s447 = scalar_lea.sflag [#allocation4], %s446
          %s448 = sand.u32 %s261, 1
          %s449 = smul.addr %s448, 128
          %s450 = scalar_lea.vmem [#allocation14], %s449
          %s452 = ssub.s32 2048, 2048
          %453 = vsyncadd %s447, %s452
          %s454 = smul.addr %s21, 32
          %s455 = smul.addr %s454, 64
          %s456 = scalar_lea.hbm %s10, %s455
          %s457 = sshll.u32 %s450, 4
          %s458 = int_to_ptr.vmem [resolvable:$true] %s457
          %463 = dma.hbm_to_vmem [thread:$0]  %s456, 2048, %s458, %s447, 64, 64, 4
        $region60: #{tpu_custom_call.1} parent=39 // pred_fallthru
          _
      $region40: #{tpu_custom_call.1} parent=5 // pred_fallthru
        _
      %p464 = scmp.le.s32.totalorder 1, %s21
      %p465 = scmp.lt.s32.totalorder %s21, 3
      %p466 = pnand %p464, %p465
      %p467 = pneg %p466
      // Predicated region
      $region61: #{tpu_custom_call.1} parent=5 // pred_check
        _
      $region62: #{tpu_custom_call.1} parent=5 // pred_check_branch
        %469 = sbr.rel (%p466) target = $region64
      $region63: #{tpu_custom_call.1} parent=5 // pred_region
        %s470 = ssub.s32 %s21, 1
        // Predicated region
        $region65: #{tpu_custom_call.1} parent=63 // pred_check
          %p471 = pneg %p42
        $region66: #{tpu_custom_call.1} parent=63 // pred_check_branch
          %473 = sbr.rel (%p471) target = $region68
        $region67: #{tpu_custom_call.1} parent=63 // pred_region
          %474 = dma.done [#allocation4], 4096
        $region68: #{tpu_custom_call.1} parent=63 // pred_fallthru
          _
        // Predicated region
        $region69: #{tpu_custom_call.1} parent=63 // pred_check
          %p475 = pneg %p63
        $region70: #{tpu_custom_call.1} parent=63 // pred_check_branch
          %477 = sbr.rel (%p475) target = $region72
        $region71: #{tpu_custom_call.1} parent=63 // pred_region
          %478 = dma.done [#allocation7], 32
        $region72: #{tpu_custom_call.1} parent=63 // pred_fallthru
          _
        // Predicated region
        $region73: #{tpu_custom_call.1} parent=63 // pred_check
          %p479 = pneg %p84
        $region74: #{tpu_custom_call.1} parent=63 // pred_check_branch
          %481 = sbr.rel (%p479) target = $region76
        $region75: #{tpu_custom_call.1} parent=63 // pred_region
          %482 = dma.done [#allocation7], 2048
        $region76: #{tpu_custom_call.1} parent=63 // pred_fallthru
          _
        // Predicated region
        $region77: #{tpu_custom_call.1} parent=63 // pred_check
          %p483 = pneg %p105
        $region78: #{tpu_custom_call.1} parent=63 // pred_check_branch
          %485 = sbr.rel (%p483) target = $region80
        $region79: #{tpu_custom_call.1} parent=63 // pred_region
          %486 = dma.done [#allocation10], 2048
        $region80: #{tpu_custom_call.1} parent=63 // pred_fallthru
          _
        %s487 = sand.u32 %s26, 1
        %s488 = scalar_lea.sflag [#allocation4], %s487
        %s489 = sand.u32 %s186, 1
        %s490 = smul.addr %s489, 192
        %s491 = scalar_lea.vmem [#allocation11], %s490
        // Predicated region
        $region81: #{tpu_custom_call.1} parent=63 // pred_check
          %p492 = pneg %p199
        $region82: #{tpu_custom_call.1} parent=63 // pred_check_branch
          %494 = sbr.rel (%p492) target = $region84
        $region83: #{tpu_custom_call.1} parent=63 // pred_region
          %495 = dma.done %s488, 3072
        $region84: #{tpu_custom_call.1} parent=63 // pred_fallthru
          _
        %s496 = sand.u32 %s26, 1
        %s497 = scalar_lea.sflag [#allocation4], %s496
        %s498 = sand.u32 %s212, 1
        %s499 = smul.addr %s498, 64
        %s500 = scalar_lea.vmem [#allocation12], %s499
        // Predicated region
        $region85: #{tpu_custom_call.1} parent=63 // pred_check
          %p501 = pneg %p225
        $region86: #{tpu_custom_call.1} parent=63 // pred_check_branch
          %503 = sbr.rel (%p501) target = $region88
        $region87: #{tpu_custom_call.1} parent=63 // pred_region
          %504 = dma.done %s497, 1024
        $region88: #{tpu_custom_call.1} parent=63 // pred_fallthru
          _
        %s505 = sand.u32 %s26, 1
        %s506 = scalar_lea.sflag [#allocation4], %s505
        %s507 = sand.u32 %s238, 1
        %s508 = smul.addr %s507, 256
        %s509 = scalar_lea.vmem [#allocation13], %s508
        // Predicated region
        $region89: #{tpu_custom_call.1} parent=63 // pred_check
          %p510 = pneg %p251
        $region90: #{tpu_custom_call.1} parent=63 // pred_check_branch
          %512 = sbr.rel (%p510) target = $region92
        $region91: #{tpu_custom_call.1} parent=63 // pred_region
          %513 = dma.done %s506, 4096
        $region92: #{tpu_custom_call.1} parent=63 // pred_fallthru
          _
        %s514 = sand.u32 %s26, 1
        %s515 = scalar_lea.sflag [#allocation4], %s514
        %s516 = sand.u32 %s264, 1
        %s517 = smul.addr %s516, 128
        %s518 = scalar_lea.vmem [#allocation14], %s517
        // Predicated region
        $region93: #{tpu_custom_call.1} parent=63 // pred_check
          %p519 = pneg %p277
        $region94: #{tpu_custom_call.1} parent=63 // pred_check_branch
          %521 = sbr.rel (%p519) target = $region96
        $region95: #{tpu_custom_call.1} parent=63 // pred_region
          %522 = dma.done %s515, 2048
        $region96: #{tpu_custom_call.1} parent=63 // pred_fallthru
          _
        %p523 = pneg %p42
        %p524 = pneg %p39
        %p525 = pneg %p63
        %p526 = pneg %p60
        %p527 = pneg %p84
        %p528 = pneg %p81
        %p529 = pneg %p105
        %p530 = pneg %p102
        %p531 = pneg %p126
        %p532 = pneg %p123
        %p533 = pneg %p147
        %p534 = pneg %p144
        %p535 = scmp.lt.s32.totalorder %s26, 1
        %s536 = scalar_select %p535, %s26, 1
        %s537 = smul.addr %s536, 2
        %s538 = scalar_lea.vmem %s6, %s537
        %p539 = pneg %p173
        %p540 = pneg %p170
        %s541 = sand.u32 %s26, 1
        %s542 = scalar_lea.sflag [#allocation4], %s541
        %s543 = sand.u32 %s186, 1
        %s544 = smul.addr %s543, 192
        %s545 = scalar_lea.vmem [#allocation11], %s544
        %p546 = pneg %p199
        %p547 = pneg %p196
        %s548 = sand.u32 %s26, 1
        %s549 = scalar_lea.sflag [#allocation4], %s548
        %s550 = sand.u32 %s212, 1
        %s551 = smul.addr %s550, 64
        %s552 = scalar_lea.vmem [#allocation12], %s551
        %p553 = pneg %p225
        %p554 = pneg %p222
        %s555 = sand.u32 %s26, 1
        %s556 = scalar_lea.sflag [#allocation4], %s555
        %s557 = sand.u32 %s238, 1
        %s558 = smul.addr %s557, 256
        %s559 = scalar_lea.vmem [#allocation13], %s558
        %p560 = pneg %p251
        %p561 = pneg %p248
        %s562 = sand.u32 %s26, 1
        %s563 = scalar_lea.sflag [#allocation4], %s562
        %s564 = sand.u32 %s264, 1
        %s565 = smul.addr %s564, 128
        %s566 = scalar_lea.vmem [#allocation14], %s565
        %p567 = pneg %p277
        %p568 = pneg %p274
        %p569 = pneg %p298
        %p570 = pneg %p295
        %p571 = scmp.lt.s32.totalorder %s26, 1
        %s572 = scalar_select %p571, %s26, 1
        %s573 = smul.addr %s572, 2
        %s574 = scalar_lea.vmem %s6, %s573
        %p576 = scmp.eq.s32.totalorder %s26, 0
        // Predicated region
        $region97: #{tpu_custom_call.1} parent=63 // pred_check
          %p577 = pneg %p576
        $region98: #{tpu_custom_call.1} parent=63 // pred_check_branch
          %579 = sbr.rel (%p577) target = $region100
        $region99: #{tpu_custom_call.1} parent=63 // pred_region
          %v580 = vld [vmem:[#allocation3] sm:$0xff]
          %v581 = vld [vmem:[#allocation3 + $0x8] sm:$0xff]
          %v582 = vld [vmem:[#allocation3 + $0x10] sm:$0xff]
          %v583 = vld [vmem:[#allocation3 + $0x18] sm:$0xff]
          %v584 = vld [vmem:[#allocation3 + $0x20] sm:$0xff]
          %v585 = vld [vmem:[#allocation3 + $0x28] sm:$0xff]
          %v586 = vld [vmem:[#allocation3 + $0x30] sm:$0xff]
          %v587 = vld [vmem:[#allocation3 + $0x38] sm:$0xff]
          %v588 = vld [vmem:[#allocation3 + $0x40] sm:$0xff]
          %v589 = vld [vmem:[#allocation3 + $0x48] sm:$0xff]
          %v590 = vld [vmem:[#allocation3 + $0x50] sm:$0xff]
          %v591 = vld [vmem:[#allocation3 + $0x58] sm:$0xff]
          %v592 = vld [vmem:[#allocation3 + $0x60] sm:$0xff]
          %v593 = vld [vmem:[#allocation3 + $0x68] sm:$0xff]
          %v594 = vld [vmem:[#allocation3 + $0x70] sm:$0xff]
          %v595 = vld [vmem:[#allocation3 + $0x78] sm:$0xff]
          %v596 = vld [vmem:[#allocation3 + $0x80] sm:$0xff]
          %v597 = vld [vmem:[#allocation3 + $0x88] sm:$0xff]
          %v598 = vld [vmem:[#allocation3 + $0x90] sm:$0xff]
          %v599 = vld [vmem:[#allocation3 + $0x98] sm:$0xff]
          %v600 = vld [vmem:[#allocation3 + $0xa0] sm:$0xff]
          %v601 = vld [vmem:[#allocation3 + $0xa8] sm:$0xff]
          %v602 = vld [vmem:[#allocation3 + $0xb0] sm:$0xff]
          %v603 = vld [vmem:[#allocation3 + $0xb8] sm:$0xff]
          %v604 = vld [vmem:[#allocation3 + $0xc0] sm:$0xff]
          %v605 = vld [vmem:[#allocation3 + $0xc8] sm:$0xff]
          %v606 = vld [vmem:[#allocation3 + $0xd0] sm:$0xff]
          %v607 = vld [vmem:[#allocation3 + $0xd8] sm:$0xff]
          %v608 = vld [vmem:[#allocation3 + $0xe0] sm:$0xff]
          %v609 = vld [vmem:[#allocation3 + $0xe8] sm:$0xff]
          %v610 = vld [vmem:[#allocation3 + $0xf0] sm:$0xff]
          %v611 = vld [vmem:[#allocation3 + $0xf8] sm:$0xff]
          %612 = vst [vmem:[#allocation2] sm:$0xff] %v580
          %613 = vst [vmem:[#allocation2 + $0x8] sm:$0xff] %v581
          %614 = vst [vmem:[#allocation2 + $0x10] sm:$0xff] %v582
          %615 = vst [vmem:[#allocation2 + $0x18] sm:$0xff] %v583
          %616 = vst [vmem:[#allocation2 + $0x20] sm:$0xff] %v584
          %617 = vst [vmem:[#allocation2 + $0x28] sm:$0xff] %v585
          %618 = vst [vmem:[#allocation2 + $0x30] sm:$0xff] %v586
          %619 = vst [vmem:[#allocation2 + $0x38] sm:$0xff] %v587
          %620 = vst [vmem:[#allocation2 + $0x40] sm:$0xff] %v588
          %621 = vst [vmem:[#allocation2 + $0x48] sm:$0xff] %v589
          %622 = vst [vmem:[#allocation2 + $0x50] sm:$0xff] %v590
          %623 = vst [vmem:[#allocation2 + $0x58] sm:$0xff] %v591
          %624 = vst [vmem:[#allocation2 + $0x60] sm:$0xff] %v592
          %625 = vst [vmem:[#allocation2 + $0x68] sm:$0xff] %v593
          %626 = vst [vmem:[#allocation2 + $0x70] sm:$0xff] %v594
          %627 = vst [vmem:[#allocation2 + $0x78] sm:$0xff] %v595
          %628 = vst [vmem:[#allocation2 + $0x80] sm:$0xff] %v596
          %629 = vst [vmem:[#allocation2 + $0x88] sm:$0xff] %v597
          %630 = vst [vmem:[#allocation2 + $0x90] sm:$0xff] %v598
          %631 = vst [vmem:[#allocation2 + $0x98] sm:$0xff] %v599
          %632 = vst [vmem:[#allocation2 + $0xa0] sm:$0xff] %v600
          %633 = vst [vmem:[#allocation2 + $0xa8] sm:$0xff] %v601
          %634 = vst [vmem:[#allocation2 + $0xb0] sm:$0xff] %v602
          %635 = vst [vmem:[#allocation2 + $0xb8] sm:$0xff] %v603
          %636 = vst [vmem:[#allocation2 + $0xc0] sm:$0xff] %v604
          %637 = vst [vmem:[#allocation2 + $0xc8] sm:$0xff] %v605
          %638 = vst [vmem:[#allocation2 + $0xd0] sm:$0xff] %v606
          %639 = vst [vmem:[#allocation2 + $0xd8] sm:$0xff] %v607
          %640 = vst [vmem:[#allocation2 + $0xe0] sm:$0xff] %v608
          %641 = vst [vmem:[#allocation2 + $0xe8] sm:$0xff] %v609
          %642 = vst [vmem:[#allocation2 + $0xf0] sm:$0xff] %v610
          %643 = vst [vmem:[#allocation2 + $0xf8] sm:$0xff] %v611
        $region100: #{tpu_custom_call.1} parent=63 // pred_fallthru
          _
        %v644 = vld [vmem:[#allocation8] sm:$0xff]
        %v645 = vld [vmem:[#allocation8 + $0x8] sm:$0xff]
        %v646 = vld [vmem:[#allocation8 + $0x10] sm:$0xff]
        %v647 = vld [vmem:[#allocation8 + $0x18] sm:$0xff]
        %v648 = vld [vmem:[#allocation8 + $0x20] sm:$0xff]
        %v649 = vld [vmem:[#allocation8 + $0x28] sm:$0xff]
        %v650 = vld [vmem:[#allocation8 + $0x30] sm:$0xff]
        %v651 = vld [vmem:[#allocation8 + $0x38] sm:$0xff]
        %v652 = vld [vmem:[#allocation8 + $0x40] sm:$0xff]
        %v653 = vld [vmem:[#allocation8 + $0x48] sm:$0xff]
        %v654 = vld [vmem:[#allocation8 + $0x50] sm:$0xff]
        %v655 = vld [vmem:[#allocation8 + $0x58] sm:$0xff]
        %v656 = vld [vmem:[#allocation8 + $0x60] sm:$0xff]
        %v657 = vld [vmem:[#allocation8 + $0x68] sm:$0xff]
        %v658 = vld [vmem:[#allocation8 + $0x70] sm:$0xff]
        %v659 = vld [vmem:[#allocation8 + $0x78] sm:$0xff]
        %v660 = vld [vmem:[#allocation9] sm:$0xff]
        %v661 = vld [vmem:[#allocation9 + $0x8] sm:$0xff]
        %v662 = vld [vmem:[#allocation9 + $0x10] sm:$0xff]
        %v663 = vld [vmem:[#allocation9 + $0x18] sm:$0xff]
        %v664 = vld [vmem:[#allocation9 + $0x20] sm:$0xff]
        %v665 = vld [vmem:[#allocation9 + $0x28] sm:$0xff]
        %v666 = vld [vmem:[#allocation9 + $0x30] sm:$0xff]
        %v667 = vld [vmem:[#allocation9 + $0x38] sm:$0xff]
        %v668 = vld [vmem:[#allocation9 + $0x40] sm:$0xff]
        %v669 = vld [vmem:[#allocation9 + $0x48] sm:$0xff]
        %v670 = vld [vmem:[#allocation9 + $0x50] sm:$0xff]
        %v671 = vld [vmem:[#allocation9 + $0x58] sm:$0xff]
        %v672 = vld [vmem:[#allocation9 + $0x60] sm:$0xff]
        %v673 = vld [vmem:[#allocation9 + $0x68] sm:$0xff]
        %v674 = vld [vmem:[#allocation9 + $0x70] sm:$0xff]
        %v675 = vld [vmem:[#allocation9 + $0x78] sm:$0xff]
        %v676 = vld [vmem:[#allocation6] sm:$0x3]
        %v677 = vld [vmem:[%s574] sm:$0x3]
        %v678 = vlaneseq
        %v679 = vand.u32 %v678, 127
        %v680 = vand.u32 %v679, 1
        %vm681 = vcmp.eq.s32.totalorder %v680, 0
        %v682 = vld [vmem:[#allocation2] sm:$0xff]
        %v683 = vld [vmem:[#allocation2 + $0x8] sm:$0xff]
        %v684 = vld [vmem:[#allocation2 + $0x10] sm:$0xff]
        %v685 = vld [vmem:[#allocation2 + $0x18] sm:$0xff]
        %v686 = vld [vmem:[#allocation2 + $0x20] sm:$0xff]
        %v687 = vld [vmem:[#allocation2 + $0x28] sm:$0xff]
        %v688 = vld [vmem:[#allocation2 + $0x30] sm:$0xff]
        %v689 = vld [vmem:[#allocation2 + $0x38] sm:$0xff]
        %v690 = vld [vmem:[#allocation2 + $0x40] sm:$0xff]
        %v691 = vld [vmem:[#allocation2 + $0x48] sm:$0xff]
        %v692 = vld [vmem:[#allocation2 + $0x50] sm:$0xff]
        %v693 = vld [vmem:[#allocation2 + $0x58] sm:$0xff]
        %v694 = vld [vmem:[#allocation2 + $0x60] sm:$0xff]
        %v695 = vld [vmem:[#allocation2 + $0x68] sm:$0xff]
        %v696 = vld [vmem:[#allocation2 + $0x70] sm:$0xff]
        %v697 = vld [vmem:[#allocation2 + $0x78] sm:$0xff]
        %v698 = vld [vmem:[#allocation2 + $0x80] sm:$0xff]
        %v699 = vld [vmem:[#allocation2 + $0x88] sm:$0xff]
        %v700 = vld [vmem:[#allocation2 + $0x90] sm:$0xff]
        %v701 = vld [vmem:[#allocation2 + $0x98] sm:$0xff]
        %v702 = vld [vmem:[#allocation2 + $0xa0] sm:$0xff]
        %v703 = vld [vmem:[#allocation2 + $0xa8] sm:$0xff]
        %v704 = vld [vmem:[#allocation2 + $0xb0] sm:$0xff]
        %v705 = vld [vmem:[#allocation2 + $0xb8] sm:$0xff]
        %v706 = vld [vmem:[#allocation2 + $0xc0] sm:$0xff]
        %v707 = vld [vmem:[#allocation2 + $0xc8] sm:$0xff]
        %v708 = vld [vmem:[#allocation2 + $0xd0] sm:$0xff]
        %v709 = vld [vmem:[#allocation2 + $0xd8] sm:$0xff]
        %v710 = vld [vmem:[#allocation2 + $0xe0] sm:$0xff]
        %v711 = vld [vmem:[#allocation2 + $0xe8] sm:$0xff]
        %v712 = vld [vmem:[#allocation2 + $0xf0] sm:$0xff]
        %v713 = vld [vmem:[#allocation2 + $0xf8] sm:$0xff]
        %v714 = vmul.f32 %v682, %v682
        %v715 = vmul.f32 %v683, %v683
        %v716 = vmul.f32 %v684, %v684
        %v717 = vmul.f32 %v685, %v685
        %v718 = vmul.f32 %v686, %v686
        %v719 = vmul.f32 %v687, %v687
        %v720 = vmul.f32 %v688, %v688
        %v721 = vmul.f32 %v689, %v689
        %v722 = vmul.f32 %v690, %v690
        %v723 = vmul.f32 %v691, %v691
        %v724 = vmul.f32 %v692, %v692
        %v725 = vmul.f32 %v693, %v693
        %v726 = vmul.f32 %v694, %v694
        %v727 = vmul.f32 %v695, %v695
        %v728 = vmul.f32 %v696, %v696
        %v729 = vmul.f32 %v697, %v697
        %v730 = vmul.f32 %v698, %v698
        %v731 = vmul.f32 %v699, %v699
        %v732 = vmul.f32 %v700, %v700
        %v733 = vmul.f32 %v701, %v701
        %v734 = vmul.f32 %v702, %v702
        %v735 = vmul.f32 %v703, %v703
        %v736 = vmul.f32 %v704, %v704
        %v737 = vmul.f32 %v705, %v705
        %v738 = vmul.f32 %v706, %v706
        %v739 = vmul.f32 %v707, %v707
        %v740 = vmul.f32 %v708, %v708
        %v741 = vmul.f32 %v709, %v709
        %v742 = vmul.f32 %v710, %v710
        %v743 = vmul.f32 %v711, %v711
        %v744 = vmul.f32 %v712, %v712
        %v745 = vmul.f32 %v713, %v713
        %746 = vadd.xlane.f32.xlu0 %v714
        %v747 = vpop.xlane.xlu0 %746
        %748 = vadd.xlane.f32.xlu0 %v715
        %v749 = vpop.xlane.xlu0 %748
        %750 = vadd.xlane.f32.xlu0 %v716
        %v751 = vpop.xlane.xlu0 %750
        %752 = vadd.xlane.f32.xlu0 %v717
        %v753 = vpop.xlane.xlu0 %752
        %754 = vadd.xlane.f32.xlu0 %v718
        %v755 = vpop.xlane.xlu0 %754
        %756 = vadd.xlane.f32.xlu0 %v719
        %v757 = vpop.xlane.xlu0 %756
        %758 = vadd.xlane.f32.xlu0 %v720
        %v759 = vpop.xlane.xlu0 %758
        %760 = vadd.xlane.f32.xlu0 %v721
        %v761 = vpop.xlane.xlu0 %760
        %762 = vadd.xlane.f32.xlu0 %v722
        %v763 = vpop.xlane.xlu0 %762
        %764 = vadd.xlane.f32.xlu0 %v723
        %v765 = vpop.xlane.xlu0 %764
        %766 = vadd.xlane.f32.xlu0 %v724
        %v767 = vpop.xlane.xlu0 %766
        %768 = vadd.xlane.f32.xlu0 %v725
        %v769 = vpop.xlane.xlu0 %768
        %770 = vadd.xlane.f32.xlu0 %v726
        %v771 = vpop.xlane.xlu0 %770
        %772 = vadd.xlane.f32.xlu0 %v727
        %v773 = vpop.xlane.xlu0 %772
        %774 = vadd.xlane.f32.xlu0 %v728
        %v775 = vpop.xlane.xlu0 %774
        %776 = vadd.xlane.f32.xlu0 %v729
        %v777 = vpop.xlane.xlu0 %776
        %778 = vadd.xlane.f32.xlu0 %v730
        %v779 = vpop.xlane.xlu0 %778
        %780 = vadd.xlane.f32.xlu0 %v731
        %v781 = vpop.xlane.xlu0 %780
        %782 = vadd.xlane.f32.xlu0 %v732
        %v783 = vpop.xlane.xlu0 %782
        %784 = vadd.xlane.f32.xlu0 %v733
        %v785 = vpop.xlane.xlu0 %784
        %786 = vadd.xlane.f32.xlu0 %v734
        %v787 = vpop.xlane.xlu0 %786
        %788 = vadd.xlane.f32.xlu0 %v735
        %v789 = vpop.xlane.xlu0 %788
        %790 = vadd.xlane.f32.xlu0 %v736
        %v791 = vpop.xlane.xlu0 %790
        %792 = vadd.xlane.f32.xlu0 %v737
        %v793 = vpop.xlane.xlu0 %792
        %794 = vadd.xlane.f32.xlu0 %v738
        %v795 = vpop.xlane.xlu0 %794
        %796 = vadd.xlane.f32.xlu0 %v739
        %v797 = vpop.xlane.xlu0 %796
        %798 = vadd.xlane.f32.xlu0 %v740
        %v799 = vpop.xlane.xlu0 %798
        %800 = vadd.xlane.f32.xlu0 %v741
        %v801 = vpop.xlane.xlu0 %800
        %802 = vadd.xlane.f32.xlu0 %v742
        %v803 = vpop.xlane.xlu0 %802
        %804 = vadd.xlane.f32.xlu0 %v743
        %v805 = vpop.xlane.xlu0 %804
        %806 = vadd.xlane.f32.xlu0 %v744
        %v807 = vpop.xlane.xlu0 %806
        %808 = vadd.xlane.f32.xlu0 %v745
        %v809 = vpop.xlane.xlu0 %808
        %v810 = vrcp.pop 128.0
        %v811 = vmul.f32 %v747, %v810
        %v812 = vmul.f32 %v749, %v810
        %v813 = vmul.f32 %v751, %v810
        %v814 = vmul.f32 %v753, %v810
        %v815 = vmul.f32 %v755, %v810
        %v816 = vmul.f32 %v757, %v810
        %v817 = vmul.f32 %v759, %v810
        %v818 = vmul.f32 %v761, %v810
        %v819 = vmul.f32 %v763, %v810
        %v820 = vmul.f32 %v765, %v810
        %v821 = vmul.f32 %v767, %v810
        %v822 = vmul.f32 %v769, %v810
        %v823 = vmul.f32 %v771, %v810
        %v824 = vmul.f32 %v773, %v810
        %v825 = vmul.f32 %v775, %v810
        %v826 = vmul.f32 %v777, %v810
        %v827 = vmul.f32 %v779, %v810
        %v828 = vmul.f32 %v781, %v810
        %v829 = vmul.f32 %v783, %v810
        %v830 = vmul.f32 %v785, %v810
        %v831 = vmul.f32 %v787, %v810
        %v832 = vmul.f32 %v789, %v810
        %v833 = vmul.f32 %v791, %v810
        %v834 = vmul.f32 %v793, %v810
        %v835 = vmul.f32 %v795, %v810
        %v836 = vmul.f32 %v797, %v810
        %v837 = vmul.f32 %v799, %v810
        %v838 = vmul.f32 %v801, %v810
        %v839 = vmul.f32 %v803, %v810
        %v840 = vmul.f32 %v805, %v810
        %v841 = vmul.f32 %v807, %v810
        %v842 = vmul.f32 %v809, %v810
        %v843 = vadd.f32 %v811, 1e-05
        %v844 = vadd.f32 %v812, 1e-05
        %v845 = vadd.f32 %v813, 1e-05
        %v846 = vadd.f32 %v814, 1e-05
        %v847 = vadd.f32 %v815, 1e-05
        %v848 = vadd.f32 %v816, 1e-05
        %v849 = vadd.f32 %v817, 1e-05
        %v850 = vadd.f32 %v818, 1e-05
        %v851 = vadd.f32 %v819, 1e-05
        %v852 = vadd.f32 %v820, 1e-05
        %v853 = vadd.f32 %v821, 1e-05
        %v854 = vadd.f32 %v822, 1e-05
        %v855 = vadd.f32 %v823, 1e-05
        %v856 = vadd.f32 %v824, 1e-05
        %v857 = vadd.f32 %v825, 1e-05
        %v858 = vadd.f32 %v826, 1e-05
        %v859 = vadd.f32 %v827, 1e-05
        %v860 = vadd.f32 %v828, 1e-05
        %v861 = vadd.f32 %v829, 1e-05
        %v862 = vadd.f32 %v830, 1e-05
        %v863 = vadd.f32 %v831, 1e-05
        %v864 = vadd.f32 %v832, 1e-05
        %v865 = vadd.f32 %v833, 1e-05
        %v866 = vadd.f32 %v834, 1e-05
        %v867 = vadd.f32 %v835, 1e-05
        %v868 = vadd.f32 %v836, 1e-05
        %v869 = vadd.f32 %v837, 1e-05
        %v870 = vadd.f32 %v838, 1e-05
        %v871 = vadd.f32 %v839, 1e-05
        %v872 = vadd.f32 %v840, 1e-05
        %v873 = vadd.f32 %v841, 1e-05
        %v874 = vadd.f32 %v842, 1e-05
        %v875 = vrsqrt.pop %v843
        %v876 = vrsqrt.pop %v844
        %v877 = vrsqrt.pop %v845
        %v878 = vrsqrt.pop %v846
        %v879 = vrsqrt.pop %v847
        %v880 = vrsqrt.pop %v848
        %v881 = vrsqrt.pop %v849
        %v882 = vrsqrt.pop %v850
        %v883 = vrsqrt.pop %v851
        %v884 = vrsqrt.pop %v852
        %v885 = vrsqrt.pop %v853
        %v886 = vrsqrt.pop %v854
        %v887 = vrsqrt.pop %v855
        %v888 = vrsqrt.pop %v856
        %v889 = vrsqrt.pop %v857
        %v890 = vrsqrt.pop %v858
        %v891 = vrsqrt.pop %v859
        %v892 = vrsqrt.pop %v860
        %v893 = vrsqrt.pop %v861
        %v894 = vrsqrt.pop %v862
        %v895 = vrsqrt.pop %v863
        %v896 = vrsqrt.pop %v864
        %v897 = vrsqrt.pop %v865
        %v898 = vrsqrt.pop %v866
        %v899 = vrsqrt.pop %v867
        %v900 = vrsqrt.pop %v868
        %v901 = vrsqrt.pop %v869
        %v902 = vrsqrt.pop %v870
        %v903 = vrsqrt.pop %v871
        %v904 = vrsqrt.pop %v872
        %v905 = vrsqrt.pop %v873
        %v906 = vrsqrt.pop %v874
        %v907 = vmul.f32 %v682, %v875
        %v908 = vmul.f32 %v683, %v876
        %v909 = vmul.f32 %v684, %v877
        %v910 = vmul.f32 %v685, %v878
        %v911 = vmul.f32 %v686, %v879
        %v912 = vmul.f32 %v687, %v880
        %v913 = vmul.f32 %v688, %v881
        %v914 = vmul.f32 %v689, %v882
        %v915 = vmul.f32 %v690, %v883
        %v916 = vmul.f32 %v691, %v884
        %v917 = vmul.f32 %v692, %v885
        %v918 = vmul.f32 %v693, %v886
        %v919 = vmul.f32 %v694, %v887
        %v920 = vmul.f32 %v695, %v888
        %v921 = vmul.f32 %v696, %v889
        %v922 = vmul.f32 %v697, %v890
        %v923 = vmul.f32 %v698, %v891
        %v924 = vmul.f32 %v699, %v892
        %v925 = vmul.f32 %v700, %v893
        %v926 = vmul.f32 %v701, %v894
        %v927 = vmul.f32 %v702, %v895
        %v928 = vmul.f32 %v703, %v896
        %v929 = vmul.f32 %v704, %v897
        %v930 = vmul.f32 %v705, %v898
        %v931 = vmul.f32 %v706, %v899
        %v932 = vmul.f32 %v707, %v900
        %v933 = vmul.f32 %v708, %v901
        %v934 = vmul.f32 %v709, %v902
        %v935 = vmul.f32 %v710, %v903
        %v936 = vmul.f32 %v711, %v904
        %v937 = vmul.f32 %v712, %v905
        %v938 = vmul.f32 %v713, %v906
        %v939 = vlaneseq
        %v940 = vshrl.u32 %v939, 7
        %v941 = vsub.s32 0, %v940
        %v942 = vrot.slane %v677, %v941
        %v943 = vmul.f32 %v907, %v942
        %v944 = vmul.f32 %v908, %v942
        %v945 = vmul.f32 %v909, %v942
        %v946 = vmul.f32 %v910, %v942
        %v947 = vmul.f32 %v911, %v942
        %v948 = vmul.f32 %v912, %v942
        %v949 = vmul.f32 %v913, %v942
        %v950 = vmul.f32 %v914, %v942
        %v951 = vmul.f32 %v915, %v942
        %v952 = vmul.f32 %v916, %v942
        %v953 = vmul.f32 %v917, %v942
        %v954 = vmul.f32 %v918, %v942
        %v955 = vmul.f32 %v919, %v942
        %v956 = vmul.f32 %v920, %v942
        %v957 = vmul.f32 %v921, %v942
        %v958 = vmul.f32 %v922, %v942
        %v959 = vmul.f32 %v923, %v942
        %v960 = vmul.f32 %v924, %v942
        %v961 = vmul.f32 %v925, %v942
        %v962 = vmul.f32 %v926, %v942
        %v963 = vmul.f32 %v927, %v942
        %v964 = vmul.f32 %v928, %v942
        %v965 = vmul.f32 %v929, %v942
        %v966 = vmul.f32 %v930, %v942
        %v967 = vmul.f32 %v931, %v942
        %v968 = vmul.f32 %v932, %v942
        %v969 = vmul.f32 %v933, %v942
        %v970 = vmul.f32 %v934, %v942
        %v971 = vmul.f32 %v935, %v942
        %v972 = vmul.f32 %v936, %v942
        %v973 = vmul.f32 %v937, %v942
        %v974 = vmul.f32 %v938, %v942
        %v975 = vpack.c.bf16 %v944, %v943
        %v976 = vpack.c.bf16 %v946, %v945
        %v977 = vpack.c.bf16 %v948, %v947
        %v978 = vpack.c.bf16 %v950, %v949
        %v979 = vpack.c.bf16 %v952, %v951
        %v980 = vpack.c.bf16 %v954, %v953
        %v981 = vpack.c.bf16 %v956, %v955
        %v982 = vpack.c.bf16 %v958, %v957
        %v983 = vpack.c.bf16 %v960, %v959
        %v984 = vpack.c.bf16 %v962, %v961
        %v985 = vpack.c.bf16 %v964, %v963
        %v986 = vpack.c.bf16 %v966, %v965
        %v987 = vpack.c.bf16 %v968, %v967
        %v988 = vpack.c.bf16 %v970, %v969
        %v989 = vpack.c.bf16 %v972, %v971
        %v990 = vpack.c.bf16 %v974, %v973
        %v991 = vld [vmem:[%s491] sm:$0xff]
        %v992 = vld [vmem:[%s491 + $0x8] sm:$0xf]
        %v993 = vld [vmem:[%s491 + $0xc] sm:$0xff]
        %v994 = vld [vmem:[%s491 + $0x14] sm:$0xf]
        %v995 = vld [vmem:[%s491 + $0x18] sm:$0xff]
        %v996 = vld [vmem:[%s491 + $0x20] sm:$0xf]
        %v997 = vld [vmem:[%s491 + $0x24] sm:$0xff]
        %v998 = vld [vmem:[%s491 + $0x2c] sm:$0xf]
        %v999 = vld [vmem:[%s491 + $0x30] sm:$0xff]
        %v1000 = vld [vmem:[%s491 + $0x38] sm:$0xf]
        %v1001 = vld [vmem:[%s491 + $0x3c] sm:$0xff]
        %v1002 = vld [vmem:[%s491 + $0x44] sm:$0xf]
        %v1003 = vld [vmem:[%s491 + $0x48] sm:$0xff]
        %v1004 = vld [vmem:[%s491 + $0x50] sm:$0xf]
        %v1005 = vld [vmem:[%s491 + $0x54] sm:$0xff]
        %v1006 = vld [vmem:[%s491 + $0x5c] sm:$0xf]
        %v1007 = vld [vmem:[%s491 + $0x60] sm:$0xff]
        %v1008 = vld [vmem:[%s491 + $0x68] sm:$0xf]
        %v1009 = vld [vmem:[%s491 + $0x6c] sm:$0xff]
        %v1010 = vld [vmem:[%s491 + $0x74] sm:$0xf]
        %v1011 = vld [vmem:[%s491 + $0x78] sm:$0xff]
        %v1012 = vld [vmem:[%s491 + $0x80] sm:$0xf]
        %v1013 = vld [vmem:[%s491 + $0x84] sm:$0xff]
        %v1014 = vld [vmem:[%s491 + $0x8c] sm:$0xf]
        %v1015 = vld [vmem:[%s491 + $0x90] sm:$0xff]
        %v1016 = vld [vmem:[%s491 + $0x98] sm:$0xf]
        %v1017 = vld [vmem:[%s491 + $0x9c] sm:$0xff]
        %v1018 = vld [vmem:[%s491 + $0xa4] sm:$0xf]
        %v1019 = vld [vmem:[%s491 + $0xa8] sm:$0xff]
        %v1020 = vld [vmem:[%s491 + $0xb0] sm:$0xf]
        %v1021 = vld [vmem:[%s491 + $0xb4] sm:$0xff]
        %v1022 = vld [vmem:[%s491 + $0xbc] sm:$0xf]
        %v1055 = vunpack.c.l.b16 %v991
        %v1056 = vunpack.c.h.b16 %v991
        %v1057 = vunpack.c.l.b16 %v992
        %v1058 = vunpack.c.l.b16 %v993
        %v1059 = vunpack.c.h.b16 %v993
        %v1060 = vunpack.c.l.b16 %v994
        %v1061 = vunpack.c.l.b16 %v995
        %v1062 = vunpack.c.h.b16 %v995
        %v1063 = vunpack.c.l.b16 %v996
        %v1064 = vunpack.c.l.b16 %v997
        %v1065 = vunpack.c.h.b16 %v997
        %v1066 = vunpack.c.l.b16 %v998
        %v1067 = vunpack.c.l.b16 %v999
        %v1068 = vunpack.c.h.b16 %v999
        %v1069 = vunpack.c.l.b16 %v1000
        %v1070 = vunpack.c.l.b16 %v1001
        %v1071 = vunpack.c.h.b16 %v1001
        %v1072 = vunpack.c.l.b16 %v1002
        %v1073 = vunpack.c.l.b16 %v1003
        %v1074 = vunpack.c.h.b16 %v1003
        %v1075 = vunpack.c.l.b16 %v1004
        %v1076 = vunpack.c.l.b16 %v1005
        %v1077 = vunpack.c.h.b16 %v1005
        %v1078 = vunpack.c.l.b16 %v1006
        %v1079 = vunpack.c.l.b16 %v1007
        %v1080 = vunpack.c.h.b16 %v1007
        %v1081 = vunpack.c.l.b16 %v1008
        %v1082 = vunpack.c.l.b16 %v1009
        %v1083 = vunpack.c.h.b16 %v1009
        %v1084 = vunpack.c.l.b16 %v1010
        %v1085 = vunpack.c.l.b16 %v1011
        %v1086 = vunpack.c.h.b16 %v1011
        %v1087 = vunpack.c.l.b16 %v1012
        %v1088 = vunpack.c.l.b16 %v1013
        %v1089 = vunpack.c.h.b16 %v1013
        %v1090 = vunpack.c.l.b16 %v1014
        %v1091 = vunpack.c.l.b16 %v1015
        %v1092 = vunpack.c.h.b16 %v1015
        %v1093 = vunpack.c.l.b16 %v1016
        %v1094 = vunpack.c.l.b16 %v1017
        %v1095 = vunpack.c.h.b16 %v1017
        %v1096 = vunpack.c.l.b16 %v1018
        %v1097 = vunpack.c.l.b16 %v1019
        %v1098 = vunpack.c.h.b16 %v1019
        %v1099 = vunpack.c.l.b16 %v1020
        %v1100 = vunpack.c.l.b16 %v1021
        %v1101 = vunpack.c.h.b16 %v1021
        %v1102 = vunpack.c.l.b16 %v1022
        %v1103 = vpack.c.b16 %v1058, %v1055
        %v1104 = vpack.c.b16 %v1059, %v1056
        %v1105 = vpack.c.b16 %v1060, %v1057
        %v1106 = vpack.c.b16 %v1064, %v1061
        %v1107 = vpack.c.b16 %v1065, %v1062
        %v1108 = vpack.c.b16 %v1066, %v1063
        %v1109 = vpack.c.b16 %v1070, %v1067
        %v1110 = vpack.c.b16 %v1071, %v1068
        %v1111 = vpack.c.b16 %v1072, %v1069
        %v1112 = vpack.c.b16 %v1076, %v1073
        %v1113 = vpack.c.b16 %v1077, %v1074
        %v1114 = vpack.c.b16 %v1078, %v1075
        %v1115 = vpack.c.b16 %v1082, %v1079
        %v1116 = vpack.c.b16 %v1083, %v1080
        %v1117 = vpack.c.b16 %v1084, %v1081
        %v1118 = vpack.c.b16 %v1088, %v1085
        %v1119 = vpack.c.b16 %v1089, %v1086
        %v1120 = vpack.c.b16 %v1090, %v1087
        %v1121 = vpack.c.b16 %v1094, %v1091
        %v1122 = vpack.c.b16 %v1095, %v1092
        %v1123 = vpack.c.b16 %v1096, %v1093
        %v1124 = vpack.c.b16 %v1100, %v1097
        %v1125 = vpack.c.b16 %v1101, %v1098
        %v1126 = vpack.c.b16 %v1102, %v1099
        %1151 = vmatprep.subr.bf16.mxu0 %v1125
        %1152 = vmatpush1.bf16.msra.mxu0 %v1124
        %1153 = vmatprep.subr.bf16.mxu0 %v1122
        %1154 = vmatpush1.bf16.msra.mxu0 %v1121
        %1155 = vmatprep.subr.bf16.mxu0 %v1119
        %1156 = vmatpush1.bf16.msra.mxu0 %v1118
        %1157 = vmatprep.subr.bf16.mxu0 %v1116
        %1158 = vmatpush1.bf16.msra.mxu0 %v1115
        %1159 = vmatprep.subr.bf16.mxu0 %v1113
        %1160 = vmatpush1.bf16.msra.mxu0 %v1112
        %1161 = vmatprep.subr.bf16.mxu0 %v1110
        %1162 = vmatpush1.bf16.msra.mxu0 %v1109
        %1163 = vmatprep.subr.bf16.mxu0 %v1107
        %1164 = vmatpush1.bf16.msra.mxu0 %v1106
        %1165 = vmatprep.subr.bf16.mxu0 %v1104
        %1166 = vmatpush1.bf16.msra.mxu0 %v1103
        %1167 = vmatprep.subr.bf16.mxu0 0
        %1168 = vmatpush2.bf16.msra.mxu0 0
        %1169 = vmatprep.subr.bf16.mxu0 0
        %1170 = vmatpush2.bf16.msra.mxu0 0
        %1171 = vmatprep.subr.bf16.mxu0 0
        %1172 = vmatpush2.bf16.msra.mxu0 0
        %1173 = vmatprep.subr.bf16.mxu0 0
        %1174 = vmatpush2.bf16.msra.mxu0 0
        %1175 = vmatprep.subr.bf16.mxu0 0
        %1176 = vmatpush2.bf16.msra.mxu0 0
        %1177 = vmatprep.subr.bf16.mxu0 0
        %1178 = vmatpush2.bf16.msra.mxu0 0
        %1179 = vmatprep.subr.bf16.mxu0 0
        %1180 = vmatpush2.bf16.msra.mxu0 0
        %1181 = vmatprep.subr.bf16.mxu0 0
        %1182 = vmatpush2.bf16.msra.mxu0 0
        %1183 = vmatprep.mubr.bf16.mxu0 0
        %1184 = vmatmul.mubr.bf16.gmra.mxu0 %v975
        %v1185 = vpop.f32.mrf.mxu0
        %v1186 = vadd.f32 0.0, %v1185
        %v1187 = vpop.f32.mrf.mxu0
        %v1188 = vadd.f32 0.0, %v1187
        %v1189 = vpop.f32.mrf.mxu0
        %v1190 = vadd.f32 0.0, %v1189
        %v1191 = vpop.f32.mrf.mxu0
        %v1192 = vadd.f32 0.0, %v1191
        %1193 = vmatprep.mubr.bf16.mxu0 0
        %1194 = vmatmul.mubr.bf16.gmra.mxu0 %v976
        %v1195 = vpop.f32.mrf.mxu0
        %v1196 = vadd.f32 0.0, %v1195
        %v1197 = vpop.f32.mrf.mxu0
        %v1198 = vadd.f32 0.0, %v1197
        %v1199 = vpop.f32.mrf.mxu0
        %v1200 = vadd.f32 0.0, %v1199
        %v1201 = vpop.f32.mrf.mxu0
        %v1202 = vadd.f32 0.0, %v1201
        %1203 = vmatprep.mubr.bf16.mxu0 0
        %1204 = vmatmul.mubr.bf16.gmra.mxu0 %v977
        %v1205 = vpop.f32.mrf.mxu0
        %v1206 = vadd.f32 0.0, %v1205
        %v1207 = vpop.f32.mrf.mxu0
        %v1208 = vadd.f32 0.0, %v1207
        %v1209 = vpop.f32.mrf.mxu0
        %v1210 = vadd.f32 0.0, %v1209
        %v1211 = vpop.f32.mrf.mxu0
        %v1212 = vadd.f32 0.0, %v1211
        %1213 = vmatprep.mubr.bf16.mxu0 0
        %1214 = vmatmul.mubr.bf16.gmra.mxu0 %v978
        %v1215 = vpop.f32.mrf.mxu0
        %v1216 = vadd.f32 0.0, %v1215
        %v1217 = vpop.f32.mrf.mxu0
        %v1218 = vadd.f32 0.0, %v1217
        %v1219 = vpop.f32.mrf.mxu0
        %v1220 = vadd.f32 0.0, %v1219
        %v1221 = vpop.f32.mrf.mxu0
        %v1222 = vadd.f32 0.0, %v1221
        %1223 = vmatprep.mubr.bf16.mxu0 0
        %1224 = vmatmul.mubr.bf16.gmra.mxu0 %v979
        %v1225 = vpop.f32.mrf.mxu0
        %v1226 = vadd.f32 0.0, %v1225
        %v1227 = vpop.f32.mrf.mxu0
        %v1228 = vadd.f32 0.0, %v1227
        %v1229 = vpop.f32.mrf.mxu0
        %v1230 = vadd.f32 0.0, %v1229
        %v1231 = vpop.f32.mrf.mxu0
        %v1232 = vadd.f32 0.0, %v1231
        %1233 = vmatprep.mubr.bf16.mxu0 0
        %1234 = vmatmul.mubr.bf16.gmra.mxu0 %v980
        %v1235 = vpop.f32.mrf.mxu0
        %v1236 = vadd.f32 0.0, %v1235
        %v1237 = vpop.f32.mrf.mxu0
        %v1238 = vadd.f32 0.0, %v1237
        %v1239 = vpop.f32.mrf.mxu0
        %v1240 = vadd.f32 0.0, %v1239
        %v1241 = vpop.f32.mrf.mxu0
        %v1242 = vadd.f32 0.0, %v1241
        %1243 = vmatprep.mubr.bf16.mxu0 0
        %1244 = vmatmul.mubr.bf16.gmra.mxu0 %v981
        %v1245 = vpop.f32.mrf.mxu0
        %v1246 = vadd.f32 0.0, %v1245
        %v1247 = vpop.f32.mrf.mxu0
        %v1248 = vadd.f32 0.0, %v1247
        %v1249 = vpop.f32.mrf.mxu0
        %v1250 = vadd.f32 0.0, %v1249
        %v1251 = vpop.f32.mrf.mxu0
        %v1252 = vadd.f32 0.0, %v1251
        %1253 = vmatprep.mubr.bf16.mxu0 0
        %1254 = vmatmul.mubr.bf16.gmra.mxu0 %v982
        %v1255 = vpop.f32.mrf.mxu0
        %v1256 = vadd.f32 0.0, %v1255
        %v1257 = vpop.f32.mrf.mxu0
        %v1258 = vadd.f32 0.0, %v1257
        %v1259 = vpop.f32.mrf.mxu0
        %v1260 = vadd.f32 0.0, %v1259
        %v1261 = vpop.f32.mrf.mxu0
        %v1262 = vadd.f32 0.0, %v1261
        %1263 = vmatprep.mubr.bf16.mxu0 0
        %1264 = vmatmul.mubr.bf16.gmra.mxu0 %v983
        %v1265 = vpop.f32.mrf.mxu0
        %v1266 = vadd.f32 0.0, %v1265
        %v1267 = vpop.f32.mrf.mxu0
        %v1268 = vadd.f32 0.0, %v1267
        %v1269 = vpop.f32.mrf.mxu0
        %v1270 = vadd.f32 0.0, %v1269
        %v1271 = vpop.f32.mrf.mxu0
        %v1272 = vadd.f32 0.0, %v1271
        %1273 = vmatprep.mubr.bf16.mxu0 0
        %1274 = vmatmul.mubr.bf16.gmra.mxu0 %v984
        %v1275 = vpop.f32.mrf.mxu0
        %v1276 = vadd.f32 0.0, %v1275
        %v1277 = vpop.f32.mrf.mxu0
        %v1278 = vadd.f32 0.0, %v1277
        %v1279 = vpop.f32.mrf.mxu0
        %v1280 = vadd.f32 0.0, %v1279
        %v1281 = vpop.f32.mrf.mxu0
        %v1282 = vadd.f32 0.0, %v1281
        %1283 = vmatprep.mubr.bf16.mxu0 0
        %1284 = vmatmul.mubr.bf16.gmra.mxu0 %v985
        %v1285 = vpop.f32.mrf.mxu0
        %v1286 = vadd.f32 0.0, %v1285
        %v1287 = vpop.f32.mrf.mxu0
        %v1288 = vadd.f32 0.0, %v1287
        %v1289 = vpop.f32.mrf.mxu0
        %v1290 = vadd.f32 0.0, %v1289
        %v1291 = vpop.f32.mrf.mxu0
        %v1292 = vadd.f32 0.0, %v1291
        %1293 = vmatprep.mubr.bf16.mxu0 0
        %1294 = vmatmul.mubr.bf16.gmra.mxu0 %v986
        %v1295 = vpop.f32.mrf.mxu0
        %v1296 = vadd.f32 0.0, %v1295
        %v1297 = vpop.f32.mrf.mxu0
        %v1298 = vadd.f32 0.0, %v1297
        %v1299 = vpop.f32.mrf.mxu0
        %v1300 = vadd.f32 0.0, %v1299
        %v1301 = vpop.f32.mrf.mxu0
        %v1302 = vadd.f32 0.0, %v1301
        %1303 = vmatprep.mubr.bf16.mxu0 0
        %1304 = vmatmul.mubr.bf16.gmra.mxu0 %v987
        %v1305 = vpop.f32.mrf.mxu0
        %v1306 = vadd.f32 0.0, %v1305
        %v1307 = vpop.f32.mrf.mxu0
        %v1308 = vadd.f32 0.0, %v1307
        %v1309 = vpop.f32.mrf.mxu0
        %v1310 = vadd.f32 0.0, %v1309
        %v1311 = vpop.f32.mrf.mxu0
        %v1312 = vadd.f32 0.0, %v1311
        %1313 = vmatprep.mubr.bf16.mxu0 0
        %1314 = vmatmul.mubr.bf16.gmra.mxu0 %v988
        %v1315 = vpop.f32.mrf.mxu0
        %v1316 = vadd.f32 0.0, %v1315
        %v1317 = vpop.f32.mrf.mxu0
        %v1318 = vadd.f32 0.0, %v1317
        %v1319 = vpop.f32.mrf.mxu0
        %v1320 = vadd.f32 0.0, %v1319
        %v1321 = vpop.f32.mrf.mxu0
        %v1322 = vadd.f32 0.0, %v1321
        %1323 = vmatprep.mubr.bf16.mxu0 0
        %1324 = vmatmul.mubr.bf16.gmra.mxu0 %v989
        %v1325 = vpop.f32.mrf.mxu0
        %v1326 = vadd.f32 0.0, %v1325
        %v1327 = vpop.f32.mrf.mxu0
        %v1328 = vadd.f32 0.0, %v1327
        %v1329 = vpop.f32.mrf.mxu0
        %v1330 = vadd.f32 0.0, %v1329
        %v1331 = vpop.f32.mrf.mxu0
        %v1332 = vadd.f32 0.0, %v1331
        %1333 = vmatprep.mubr.bf16.mxu0 0
        %1334 = vmatmul.mubr.bf16.gmra.mxu0 %v990
        %v1335 = vpop.f32.mrf.mxu0
        %v1336 = vadd.f32 0.0, %v1335
        %v1337 = vpop.f32.mrf.mxu0
        %v1338 = vadd.f32 0.0, %v1337
        %v1339 = vpop.f32.mrf.mxu0
        %v1340 = vadd.f32 0.0, %v1339
        %v1341 = vpop.f32.mrf.mxu0
        %v1342 = vadd.f32 0.0, %v1341
        %1343 = vdwg.mxu0
        %1344 = vmatprep.subr.bf16.mxu0 0
        %1345 = vmatpush1.bf16.msra.mxu0 %v1126
        %1346 = vmatprep.subr.bf16.mxu0 0
        %1347 = vmatpush1.bf16.msra.mxu0 %v1123
        %1348 = vmatprep.subr.bf16.mxu0 0
        %1349 = vmatpush1.bf16.msra.mxu0 %v1120
        %1350 = vmatprep.subr.bf16.mxu0 0
        %1351 = vmatpush1.bf16.msra.mxu0 %v1117
        %1352 = vmatprep.subr.bf16.mxu0 0
        %1353 = vmatpush1.bf16.msra.mxu0 %v1114
        %1354 = vmatprep.subr.bf16.mxu0 0
        %1355 = vmatpush1.bf16.msra.mxu0 %v1111
        %1356 = vmatprep.subr.bf16.mxu0 0
        %1357 = vmatpush1.bf16.msra.mxu0 %v1108
        %1358 = vmatprep.subr.bf16.mxu0 0
        %1359 = vmatpush1.bf16.msra.mxu0 %v1105
        %1360 = vmatprep.subr.bf16.mxu0 0
        %1361 = vmatpush2.bf16.msra.mxu0 0
        %1362 = vmatprep.subr.bf16.mxu0 0
        %1363 = vmatpush2.bf16.msra.mxu0 0
        %1364 = vmatprep.subr.bf16.mxu0 0
        %1365 = vmatpush2.bf16.msra.mxu0 0
        %1366 = vmatprep.subr.bf16.mxu0 0
        %1367 = vmatpush2.bf16.msra.mxu0 0
        %1368 = vmatprep.subr.bf16.mxu0 0
        %1369 = vmatpush2.bf16.msra.mxu0 0
        %1370 = vmatprep.subr.bf16.mxu0 0
        %1371 = vmatpush2.bf16.msra.mxu0 0
        %1372 = vmatprep.subr.bf16.mxu0 0
        %1373 = vmatpush2.bf16.msra.mxu0 0
        %1374 = vmatprep.subr.bf16.mxu0 0
        %1375 = vmatpush2.bf16.msra.mxu0 0
        %1376 = vmatprep.mubr.bf16.mxu0 0
        %1377 = vmatmul.mubr.bf16.gmra.mxu0 %v975
        %v1378 = vpop.f32.mrf.mxu0
        %v1379 = vadd.f32 0.0, %v1378
        %v1380 = vpop.f32.mrf.mxu0
        %v1381 = vpop.f32.mrf.mxu0
        %v1382 = vadd.f32 0.0, %v1381
        %v1383 = vpop.f32.mrf.mxu0
        %1384 = vmatprep.mubr.bf16.mxu0 0
        %1385 = vmatmul.mubr.bf16.gmra.mxu0 %v976
        %v1386 = vpop.f32.mrf.mxu0
        %v1387 = vadd.f32 0.0, %v1386
        %v1388 = vpop.f32.mrf.mxu0
        %v1389 = vpop.f32.mrf.mxu0
        %v1390 = vadd.f32 0.0, %v1389
        %v1391 = vpop.f32.mrf.mxu0
        %1392 = vmatprep.mubr.bf16.mxu0 0
        %1393 = vmatmul.mubr.bf16.gmra.mxu0 %v977
        %v1394 = vpop.f32.mrf.mxu0
        %v1395 = vadd.f32 0.0, %v1394
        %v1396 = vpop.f32.mrf.mxu0
        %v1397 = vpop.f32.mrf.mxu0
        %v1398 = vadd.f32 0.0, %v1397
        %v1399 = vpop.f32.mrf.mxu0
        %1400 = vmatprep.mubr.bf16.mxu0 0
        %1401 = vmatmul.mubr.bf16.gmra.mxu0 %v978
        %v1402 = vpop.f32.mrf.mxu0
        %v1403 = vadd.f32 0.0, %v1402
        %v1404 = vpop.f32.mrf.mxu0
        %v1405 = vpop.f32.mrf.mxu0
        %v1406 = vadd.f32 0.0, %v1405
        %v1407 = vpop.f32.mrf.mxu0
        %1408 = vmatprep.mubr.bf16.mxu0 0
        %1409 = vmatmul.mubr.bf16.gmra.mxu0 %v979
        %v1410 = vpop.f32.mrf.mxu0
        %v1411 = vadd.f32 0.0, %v1410
        %v1412 = vpop.f32.mrf.mxu0
        %v1413 = vpop.f32.mrf.mxu0
        %v1414 = vadd.f32 0.0, %v1413
        %v1415 = vpop.f32.mrf.mxu0
        %1416 = vmatprep.mubr.bf16.mxu0 0
        %1417 = vmatmul.mubr.bf16.gmra.mxu0 %v980
        %v1418 = vpop.f32.mrf.mxu0
        %v1419 = vadd.f32 0.0, %v1418
        %v1420 = vpop.f32.mrf.mxu0
        %v1421 = vpop.f32.mrf.mxu0
        %v1422 = vadd.f32 0.0, %v1421
        %v1423 = vpop.f32.mrf.mxu0
        %1424 = vmatprep.mubr.bf16.mxu0 0
        %1425 = vmatmul.mubr.bf16.gmra.mxu0 %v981
        %v1426 = vpop.f32.mrf.mxu0
        %v1427 = vadd.f32 0.0, %v1426
        %v1428 = vpop.f32.mrf.mxu0
        %v1429 = vpop.f32.mrf.mxu0
        %v1430 = vadd.f32 0.0, %v1429
        %v1431 = vpop.f32.mrf.mxu0
        %1432 = vmatprep.mubr.bf16.mxu0 0
        %1433 = vmatmul.mubr.bf16.gmra.mxu0 %v982
        %v1434 = vpop.f32.mrf.mxu0
        %v1435 = vadd.f32 0.0, %v1434
        %v1436 = vpop.f32.mrf.mxu0
        %v1437 = vpop.f32.mrf.mxu0
        %v1438 = vadd.f32 0.0, %v1437
        %v1439 = vpop.f32.mrf.mxu0
        %1440 = vmatprep.mubr.bf16.mxu0 0
        %1441 = vmatmul.mubr.bf16.gmra.mxu0 %v983
        %v1442 = vpop.f32.mrf.mxu0
        %v1443 = vadd.f32 0.0, %v1442
        %v1444 = vpop.f32.mrf.mxu0
        %v1445 = vpop.f32.mrf.mxu0
        %v1446 = vadd.f32 0.0, %v1445
        %v1447 = vpop.f32.mrf.mxu0
        %1448 = vmatprep.mubr.bf16.mxu0 0
        %1449 = vmatmul.mubr.bf16.gmra.mxu0 %v984
        %v1450 = vpop.f32.mrf.mxu0
        %v1451 = vadd.f32 0.0, %v1450
        %v1452 = vpop.f32.mrf.mxu0
        %v1453 = vpop.f32.mrf.mxu0
        %v1454 = vadd.f32 0.0, %v1453
        %v1455 = vpop.f32.mrf.mxu0
        %1456 = vmatprep.mubr.bf16.mxu0 0
        %1457 = vmatmul.mubr.bf16.gmra.mxu0 %v985
        %v1458 = vpop.f32.mrf.mxu0
        %v1459 = vadd.f32 0.0, %v1458
        %v1460 = vpop.f32.mrf.mxu0
        %v1461 = vpop.f32.mrf.mxu0
        %v1462 = vadd.f32 0.0, %v1461
        %v1463 = vpop.f32.mrf.mxu0
        %1464 = vmatprep.mubr.bf16.mxu0 0
        %1465 = vmatmul.mubr.bf16.gmra.mxu0 %v986
        %v1466 = vpop.f32.mrf.mxu0
        %v1467 = vadd.f32 0.0, %v1466
        %v1468 = vpop.f32.mrf.mxu0
        %v1469 = vpop.f32.mrf.mxu0
        %v1470 = vadd.f32 0.0, %v1469
        %v1471 = vpop.f32.mrf.mxu0
        %1472 = vmatprep.mubr.bf16.mxu0 0
        %1473 = vmatmul.mubr.bf16.gmra.mxu0 %v987
        %v1474 = vpop.f32.mrf.mxu0
        %v1475 = vadd.f32 0.0, %v1474
        %v1476 = vpop.f32.mrf.mxu0
        %v1477 = vpop.f32.mrf.mxu0
        %v1478 = vadd.f32 0.0, %v1477
        %v1479 = vpop.f32.mrf.mxu0
        %1480 = vmatprep.mubr.bf16.mxu0 0
        %1481 = vmatmul.mubr.bf16.gmra.mxu0 %v988
        %v1482 = vpop.f32.mrf.mxu0
        %v1483 = vadd.f32 0.0, %v1482
        %v1484 = vpop.f32.mrf.mxu0
        %v1485 = vpop.f32.mrf.mxu0
        %v1486 = vadd.f32 0.0, %v1485
        %v1487 = vpop.f32.mrf.mxu0
        %1488 = vmatprep.mubr.bf16.mxu0 0
        %1489 = vmatmul.mubr.bf16.gmra.mxu0 %v989
        %v1490 = vpop.f32.mrf.mxu0
        %v1491 = vadd.f32 0.0, %v1490
        %v1492 = vpop.f32.mrf.mxu0
        %v1493 = vpop.f32.mrf.mxu0
        %v1494 = vadd.f32 0.0, %v1493
        %v1495 = vpop.f32.mrf.mxu0
        %1496 = vmatprep.mubr.bf16.mxu0 0
        %1497 = vmatmul.mubr.bf16.gmra.mxu0 %v990
        %v1498 = vpop.f32.mrf.mxu0
        %v1499 = vadd.f32 0.0, %v1498
        %v1500 = vpop.f32.mrf.mxu0
        %v1501 = vpop.f32.mrf.mxu0
        %v1502 = vadd.f32 0.0, %v1501
        %v1503 = vpop.f32.mrf.mxu0
        %1504 = vdwg.mxu0
        %v1505 = vld [vmem:[%s500] sm:$0xf]
        %v1506 = vld [vmem:[%s500 + $0x4] sm:$0xf]
        %v1507 = vld [vmem:[%s500 + $0x8] sm:$0xf]
        %v1508 = vld [vmem:[%s500 + $0xc] sm:$0xf]
        %v1509 = vld [vmem:[%s500 + $0x10] sm:$0xf]
        %v1510 = vld [vmem:[%s500 + $0x14] sm:$0xf]
        %v1511 = vld [vmem:[%s500 + $0x18] sm:$0xf]
        %v1512 = vld [vmem:[%s500 + $0x1c] sm:$0xf]
        %v1513 = vld [vmem:[%s500 + $0x20] sm:$0xf]
        %v1514 = vld [vmem:[%s500 + $0x24] sm:$0xf]
        %v1515 = vld [vmem:[%s500 + $0x28] sm:$0xf]
        %v1516 = vld [vmem:[%s500 + $0x2c] sm:$0xf]
        %v1517 = vld [vmem:[%s500 + $0x30] sm:$0xf]
        %v1518 = vld [vmem:[%s500 + $0x34] sm:$0xf]
        %v1519 = vld [vmem:[%s500 + $0x38] sm:$0xf]
        %v1520 = vld [vmem:[%s500 + $0x3c] sm:$0xf]
        %1521 = vrot.lane.b32.xlu0 %v1186, 1
        %v1522 = vpop.permute.xlu0 %1521
        %1523 = vrot.lane.b32.xlu0 %v1190, 1
        %v1524 = vpop.permute.xlu0 %1523
        %1525 = vrot.lane.b32.xlu0 %v1196, 1
        %v1526 = vpop.permute.xlu0 %1525
        %1527 = vrot.lane.b32.xlu0 %v1200, 1
        %v1528 = vpop.permute.xlu0 %1527
        %1529 = vrot.lane.b32.xlu0 %v1206, 1
        %v1530 = vpop.permute.xlu0 %1529
        %1531 = vrot.lane.b32.xlu0 %v1210, 1
        %v1532 = vpop.permute.xlu0 %1531
        %1533 = vrot.lane.b32.xlu0 %v1216, 1
        %v1534 = vpop.permute.xlu0 %1533
        %1535 = vrot.lane.b32.xlu0 %v1220, 1
        %v1536 = vpop.permute.xlu0 %1535
        %1537 = vrot.lane.b32.xlu0 %v1226, 1
        %v1538 = vpop.permute.xlu0 %1537
        %1539 = vrot.lane.b32.xlu0 %v1230, 1
        %v1540 = vpop.permute.xlu0 %1539
        %1541 = vrot.lane.b32.xlu0 %v1236, 1
        %v1542 = vpop.permute.xlu0 %1541
        %1543 = vrot.lane.b32.xlu0 %v1240, 1
        %v1544 = vpop.permute.xlu0 %1543
        %1545 = vrot.lane.b32.xlu0 %v1246, 1
        %v1546 = vpop.permute.xlu0 %1545
        %1547 = vrot.lane.b32.xlu0 %v1250, 1
        %v1548 = vpop.permute.xlu0 %1547
        %1549 = vrot.lane.b32.xlu0 %v1256, 1
        %v1550 = vpop.permute.xlu0 %1549
        %1551 = vrot.lane.b32.xlu0 %v1260, 1
        %v1552 = vpop.permute.xlu0 %1551
        %1553 = vrot.lane.b32.xlu0 %v1186, 127
        %v1554 = vpop.permute.xlu0 %1553
        %1555 = vrot.lane.b32.xlu0 %v1190, 127
        %v1556 = vpop.permute.xlu0 %1555
        %1557 = vrot.lane.b32.xlu0 %v1196, 127
        %v1558 = vpop.permute.xlu0 %1557
        %1559 = vrot.lane.b32.xlu0 %v1200, 127
        %v1560 = vpop.permute.xlu0 %1559
        %1561 = vrot.lane.b32.xlu0 %v1206, 127
        %v1562 = vpop.permute.xlu0 %1561
        %1563 = vrot.lane.b32.xlu0 %v1210, 127
        %v1564 = vpop.permute.xlu0 %1563
        %1565 = vrot.lane.b32.xlu0 %v1216, 127
        %v1566 = vpop.permute.xlu0 %1565
        %1567 = vrot.lane.b32.xlu0 %v1220, 127
        %v1568 = vpop.permute.xlu0 %1567
        %1569 = vrot.lane.b32.xlu0 %v1226, 127
        %v1570 = vpop.permute.xlu0 %1569
        %1571 = vrot.lane.b32.xlu0 %v1230, 127
        %v1572 = vpop.permute.xlu0 %1571
        %1573 = vrot.lane.b32.xlu0 %v1236, 127
        %v1574 = vpop.permute.xlu0 %1573
        %1575 = vrot.lane.b32.xlu0 %v1240, 127
        %v1576 = vpop.permute.xlu0 %1575
        %1577 = vrot.lane.b32.xlu0 %v1246, 127
        %v1578 = vpop.permute.xlu0 %1577
        %1579 = vrot.lane.b32.xlu0 %v1250, 127
        %v1580 = vpop.permute.xlu0 %1579
        %1581 = vrot.lane.b32.xlu0 %v1256, 127
        %v1582 = vpop.permute.xlu0 %1581
        %1583 = vrot.lane.b32.xlu0 %v1260, 127
        %v1584 = vpop.permute.xlu0 %1583
        %v1585 = vsel %vm681, %v1554, %v1522
        %v1586 = vsel %vm681, %v1556, %v1524
        %v1587 = vsel %vm681, %v1558, %v1526
        %v1588 = vsel %vm681, %v1560, %v1528
        %v1589 = vsel %vm681, %v1562, %v1530
        %v1590 = vsel %vm681, %v1564, %v1532
        %v1591 = vsel %vm681, %v1566, %v1534
        %v1592 = vsel %vm681, %v1568, %v1536
        %v1593 = vsel %vm681, %v1570, %v1538
        %v1594 = vsel %vm681, %v1572, %v1540
        %v1595 = vsel %vm681, %v1574, %v1542
        %v1596 = vsel %vm681, %v1576, %v1544
        %v1597 = vsel %vm681, %v1578, %v1546
        %v1598 = vsel %vm681, %v1580, %v1548
        %v1599 = vsel %vm681, %v1582, %v1550
        %v1600 = vsel %vm681, %v1584, %v1552
        %v1601 = vmul.f32 %v1186, %v644
        %v1602 = vmul.f32 %v1190, %v645
        %v1603 = vmul.f32 %v1196, %v646
        %v1604 = vmul.f32 %v1200, %v647
        %v1605 = vmul.f32 %v1206, %v648
        %v1606 = vmul.f32 %v1210, %v649
        %v1607 = vmul.f32 %v1216, %v650
        %v1608 = vmul.f32 %v1220, %v651
        %v1609 = vmul.f32 %v1226, %v652
        %v1610 = vmul.f32 %v1230, %v653
        %v1611 = vmul.f32 %v1236, %v654
        %v1612 = vmul.f32 %v1240, %v655
        %v1613 = vmul.f32 %v1246, %v656
        %v1614 = vmul.f32 %v1250, %v657
        %v1615 = vmul.f32 %v1256, %v658
        %v1616 = vmul.f32 %v1260, %v659
        %v1617 = vmul.f32 %v1585, %v660
        %v1618 = vmul.f32 %v1586, %v661
        %v1619 = vmul.f32 %v1587, %v662
        %v1620 = vmul.f32 %v1588, %v663
        %v1621 = vmul.f32 %v1589, %v664
        %v1622 = vmul.f32 %v1590, %v665
        %v1623 = vmul.f32 %v1591, %v666
        %v1624 = vmul.f32 %v1592, %v667
        %v1625 = vmul.f32 %v1593, %v668
        %v1626 = vmul.f32 %v1594, %v669
        %v1627 = vmul.f32 %v1595, %v670
        %v1628 = vmul.f32 %v1596, %v671
        %v1629 = vmul.f32 %v1597, %v672
        %v1630 = vmul.f32 %v1598, %v673
        %v1631 = vmul.f32 %v1599, %v674
        %v1632 = vmul.f32 %v1600, %v675
        %v1633 = vadd.f32 %v1601, %v1617
        %v1634 = vadd.f32 %v1602, %v1618
        %v1635 = vadd.f32 %v1603, %v1619
        %v1636 = vadd.f32 %v1604, %v1620
        %v1637 = vadd.f32 %v1605, %v1621
        %v1638 = vadd.f32 %v1606, %v1622
        %v1639 = vadd.f32 %v1607, %v1623
        %v1640 = vadd.f32 %v1608, %v1624
        %v1641 = vadd.f32 %v1609, %v1625
        %v1642 = vadd.f32 %v1610, %v1626
        %v1643 = vadd.f32 %v1611, %v1627
        %v1644 = vadd.f32 %v1612, %v1628
        %v1645 = vadd.f32 %v1613, %v1629
        %v1646 = vadd.f32 %v1614, %v1630
        %v1647 = vadd.f32 %v1615, %v1631
        %v1648 = vadd.f32 %v1616, %v1632
        %v1649 = vmul.f32 %v1633, 0.17677669
        %v1650 = vmul.f32 %v1634, 0.17677669
        %v1651 = vmul.f32 %v1635, 0.17677669
        %v1652 = vmul.f32 %v1636, 0.17677669
        %v1653 = vmul.f32 %v1637, 0.17677669
        %v1654 = vmul.f32 %v1638, 0.17677669
        %v1655 = vmul.f32 %v1639, 0.17677669
        %v1656 = vmul.f32 %v1640, 0.17677669
        %v1657 = vmul.f32 %v1641, 0.17677669
        %v1658 = vmul.f32 %v1642, 0.17677669
        %v1659 = vmul.f32 %v1643, 0.17677669
        %v1660 = vmul.f32 %v1644, 0.17677669
        %v1661 = vmul.f32 %v1645, 0.17677669
        %v1662 = vmul.f32 %v1646, 0.17677669
        %v1663 = vmul.f32 %v1647, 0.17677669
        %v1664 = vmul.f32 %v1648, 0.17677669
        %v1665 = vpack.c.bf16 %v1650, %v1649
        %v1666 = vpack.c.bf16 %v1652, %v1651
        %v1667 = vpack.c.bf16 %v1654, %v1653
        %v1668 = vpack.c.bf16 %v1656, %v1655
        %v1669 = vpack.c.bf16 %v1658, %v1657
        %v1670 = vpack.c.bf16 %v1660, %v1659
        %v1671 = vpack.c.bf16 %v1662, %v1661
        %v1672 = vpack.c.bf16 %v1664, %v1663
        %1673 = vrot.lane.b32.xlu0 %v1188, 1
        %v1674 = vpop.permute.xlu0 %1673
        %1675 = vrot.lane.b32.xlu0 %v1192, 1
        %v1676 = vpop.permute.xlu0 %1675
        %1677 = vrot.lane.b32.xlu0 %v1198, 1
        %v1678 = vpop.permute.xlu0 %1677
        %1679 = vrot.lane.b32.xlu0 %v1202, 1
        %v1680 = vpop.permute.xlu0 %1679
        %1681 = vrot.lane.b32.xlu0 %v1208, 1
        %v1682 = vpop.permute.xlu0 %1681
        %1683 = vrot.lane.b32.xlu0 %v1212, 1
        %v1684 = vpop.permute.xlu0 %1683
        %1685 = vrot.lane.b32.xlu0 %v1218, 1
        %v1686 = vpop.permute.xlu0 %1685
        %1687 = vrot.lane.b32.xlu0 %v1222, 1
        %v1688 = vpop.permute.xlu0 %1687
        %1689 = vrot.lane.b32.xlu0 %v1228, 1
        %v1690 = vpop.permute.xlu0 %1689
        %1691 = vrot.lane.b32.xlu0 %v1232, 1
        %v1692 = vpop.permute.xlu0 %1691
        %1693 = vrot.lane.b32.xlu0 %v1238, 1
        %v1694 = vpop.permute.xlu0 %1693
        %1695 = vrot.lane.b32.xlu0 %v1242, 1
        %v1696 = vpop.permute.xlu0 %1695
        %1697 = vrot.lane.b32.xlu0 %v1248, 1
        %v1698 = vpop.permute.xlu0 %1697
        %1699 = vrot.lane.b32.xlu0 %v1252, 1
        %v1700 = vpop.permute.xlu0 %1699
        %1701 = vrot.lane.b32.xlu0 %v1258, 1
        %v1702 = vpop.permute.xlu0 %1701
        %1703 = vrot.lane.b32.xlu0 %v1262, 1
        %v1704 = vpop.permute.xlu0 %1703
        %1705 = vrot.lane.b32.xlu0 %v1188, 127
        %v1706 = vpop.permute.xlu0 %1705
        %1707 = vrot.lane.b32.xlu0 %v1192, 127
        %v1708 = vpop.permute.xlu0 %1707
        %1709 = vrot.lane.b32.xlu0 %v1198, 127
        %v1710 = vpop.permute.xlu0 %1709
        %1711 = vrot.lane.b32.xlu0 %v1202, 127
        %v1712 = vpop.permute.xlu0 %1711
        %1713 = vrot.lane.b32.xlu0 %v1208, 127
        %v1714 = vpop.permute.xlu0 %1713
        %1715 = vrot.lane.b32.xlu0 %v1212, 127
        %v1716 = vpop.permute.xlu0 %1715
        %1717 = vrot.lane.b32.xlu0 %v1218, 127
        %v1718 = vpop.permute.xlu0 %1717
        %1719 = vrot.lane.b32.xlu0 %v1222, 127
        %v1720 = vpop.permute.xlu0 %1719
        %1721 = vrot.lane.b32.xlu0 %v1228, 127
        %v1722 = vpop.permute.xlu0 %1721
        %1723 = vrot.lane.b32.xlu0 %v1232, 127
        %v1724 = vpop.permute.xlu0 %1723
        %1725 = vrot.lane.b32.xlu0 %v1238, 127
        %v1726 = vpop.permute.xlu0 %1725
        %1727 = vrot.lane.b32.xlu0 %v1242, 127
        %v1728 = vpop.permute.xlu0 %1727
        %1729 = vrot.lane.b32.xlu0 %v1248, 127
        %v1730 = vpop.permute.xlu0 %1729
        %1731 = vrot.lane.b32.xlu0 %v1252, 127
        %v1732 = vpop.permute.xlu0 %1731
        %1733 = vrot.lane.b32.xlu0 %v1258, 127
        %v1734 = vpop.permute.xlu0 %1733
        %1735 = vrot.lane.b32.xlu0 %v1262, 127
        %v1736 = vpop.permute.xlu0 %1735
        %v1737 = vsel %vm681, %v1706, %v1674
        %v1738 = vsel %vm681, %v1708, %v1676
        %v1739 = vsel %vm681, %v1710, %v1678
        %v1740 = vsel %vm681, %v1712, %v1680
        %v1741 = vsel %vm681, %v1714, %v1682
        %v1742 = vsel %vm681, %v1716, %v1684
        %v1743 = vsel %vm681, %v1718, %v1686
        %v1744 = vsel %vm681, %v1720, %v1688
        %v1745 = vsel %vm681, %v1722, %v1690
        %v1746 = vsel %vm681, %v1724, %v1692
        %v1747 = vsel %vm681, %v1726, %v1694
        %v1748 = vsel %vm681, %v1728, %v1696
        %v1749 = vsel %vm681, %v1730, %v1698
        %v1750 = vsel %vm681, %v1732, %v1700
        %v1751 = vsel %vm681, %v1734, %v1702
        %v1752 = vsel %vm681, %v1736, %v1704
        %v1753 = vmul.f32 %v1188, %v644
        %v1754 = vmul.f32 %v1192, %v645
        %v1755 = vmul.f32 %v1198, %v646
        %v1756 = vmul.f32 %v1202, %v647
        %v1757 = vmul.f32 %v1208, %v648
        %v1758 = vmul.f32 %v1212, %v649
        %v1759 = vmul.f32 %v1218, %v650
        %v1760 = vmul.f32 %v1222, %v651
        %v1761 = vmul.f32 %v1228, %v652
        %v1762 = vmul.f32 %v1232, %v653
        %v1763 = vmul.f32 %v1238, %v654
        %v1764 = vmul.f32 %v1242, %v655
        %v1765 = vmul.f32 %v1248, %v656
        %v1766 = vmul.f32 %v1252, %v657
        %v1767 = vmul.f32 %v1258, %v658
        %v1768 = vmul.f32 %v1262, %v659
        %v1769 = vmul.f32 %v1737, %v660
        %v1770 = vmul.f32 %v1738, %v661
        %v1771 = vmul.f32 %v1739, %v662
        %v1772 = vmul.f32 %v1740, %v663
        %v1773 = vmul.f32 %v1741, %v664
        %v1774 = vmul.f32 %v1742, %v665
        %v1775 = vmul.f32 %v1743, %v666
        %v1776 = vmul.f32 %v1744, %v667
        %v1777 = vmul.f32 %v1745, %v668
        %v1778 = vmul.f32 %v1746, %v669
        %v1779 = vmul.f32 %v1747, %v670
        %v1780 = vmul.f32 %v1748, %v671
        %v1781 = vmul.f32 %v1749, %v672
        %v1782 = vmul.f32 %v1750, %v673
        %v1783 = vmul.f32 %v1751, %v674
        %v1784 = vmul.f32 %v1752, %v675
        %v1785 = vadd.f32 %v1753, %v1769
        %v1786 = vadd.f32 %v1754, %v1770
        %v1787 = vadd.f32 %v1755, %v1771
        %v1788 = vadd.f32 %v1756, %v1772
        %v1789 = vadd.f32 %v1757, %v1773
        %v1790 = vadd.f32 %v1758, %v1774
        %v1791 = vadd.f32 %v1759, %v1775
        %v1792 = vadd.f32 %v1760, %v1776
        %v1793 = vadd.f32 %v1761, %v1777
        %v1794 = vadd.f32 %v1762, %v1778
        %v1795 = vadd.f32 %v1763, %v1779
        %v1796 = vadd.f32 %v1764, %v1780
        %v1797 = vadd.f32 %v1765, %v1781
        %v1798 = vadd.f32 %v1766, %v1782
        %v1799 = vadd.f32 %v1767, %v1783
        %v1800 = vadd.f32 %v1768, %v1784
        %v1801 = vpack.c.bf16 %v1786, %v1785
        %v1802 = vpack.c.bf16 %v1788, %v1787
        %v1803 = vpack.c.bf16 %v1790, %v1789
        %v1804 = vpack.c.bf16 %v1792, %v1791
        %v1805 = vpack.c.bf16 %v1794, %v1793
        %v1806 = vpack.c.bf16 %v1796, %v1795
        %v1807 = vpack.c.bf16 %v1798, %v1797
        %v1808 = vpack.c.bf16 %v1800, %v1799
        %v1809 = vpack.c.bf16 %v1382, %v1379
        %v1810 = vpack.c.bf16 %v1390, %v1387
        %v1811 = vpack.c.bf16 %v1398, %v1395
        %v1812 = vpack.c.bf16 %v1406, %v1403
        %v1813 = vpack.c.bf16 %v1414, %v1411
        %v1814 = vpack.c.bf16 %v1422, %v1419
        %v1815 = vpack.c.bf16 %v1430, %v1427
        %v1816 = vpack.c.bf16 %v1438, %v1435
        %v1817 = vlaneseq
        %v1818 = vshrl.u32 %v1817, 7
        %v1819 = vsub.s32 0, %v1818
        %v1820 = vrot.slane %v676, %v1819
        %vm1821 = vcmask 261120
        %v1823 = vsel %vm1821, %v1665, 0
        %v1826 = vsel %vm1821, %v1666, 0
        %v1829 = vsel %vm1821, %v1667, 0
        %v1832 = vsel %vm1821, %v1668, 0
        %v1835 = vsel %vm1821, %v1669, 0
        %v1838 = vsel %vm1821, %v1670, 0
        %v1841 = vsel %vm1821, %v1671, 0
        %v1844 = vsel %vm1821, %v1672, 0
        %v1847 = vsel %vm1821, %v1801, 0
        %v1850 = vsel %vm1821, %v1802, 0
        %v1853 = vsel %vm1821, %v1803, 0
        %v1856 = vsel %vm1821, %v1804, 0
        %v1859 = vsel %vm1821, %v1805, 0
        %v1862 = vsel %vm1821, %v1806, 0
        %v1865 = vsel %vm1821, %v1807, 0
        %v1868 = vsel %vm1821, %v1808, 0
        %1870 = vmatprep.subr.bf16.mxu0 0
        %1871 = vmatpush1.bf16.xpose.msra.mxu0 %v1868
        %1872 = vmatprep.subr.bf16.mxu0 0
        %1873 = vmatpush1.bf16.xpose.msra.mxu0 %v1865
        %1874 = vmatprep.subr.bf16.mxu0 0
        %1875 = vmatpush1.bf16.xpose.msra.mxu0 %v1862
        %1876 = vmatprep.subr.bf16.mxu0 0
        %1877 = vmatpush1.bf16.xpose.msra.mxu0 %v1859
        %1878 = vmatprep.subr.bf16.mxu0 0
        %1879 = vmatpush1.bf16.xpose.msra.mxu0 %v1856
        %1880 = vmatprep.subr.bf16.mxu0 0
        %1881 = vmatpush1.bf16.xpose.msra.mxu0 %v1853
        %1882 = vmatprep.subr.bf16.mxu0 0
        %1883 = vmatpush1.bf16.xpose.msra.mxu0 %v1850
        %1884 = vmatprep.subr.bf16.mxu0 0
        %1885 = vmatpush1.bf16.xpose.msra.mxu0 %v1847
        %1886 = vmatprep.subr.bf16.mxu0 0
        %1887 = vmatpush2.bf16.xpose.msra.mxu0 0
        %1888 = vmatprep.subr.bf16.mxu0 0
        %1889 = vmatpush2.bf16.xpose.msra.mxu0 0
        %1890 = vmatprep.subr.bf16.mxu0 0
        %1891 = vmatpush2.bf16.xpose.msra.mxu0 0
        %1892 = vmatprep.subr.bf16.mxu0 0
        %1893 = vmatpush2.bf16.xpose.msra.mxu0 0
        %1894 = vmatprep.subr.bf16.mxu0 0
        %1895 = vmatpush2.bf16.xpose.msra.mxu0 0
        %1896 = vmatprep.subr.bf16.mxu0 0
        %1897 = vmatpush2.bf16.xpose.msra.mxu0 0
        %1898 = vmatprep.subr.bf16.mxu0 0
        %1899 = vmatpush2.bf16.xpose.msra.mxu0 0
        %1900 = vmatprep.subr.bf16.mxu0 0
        %1901 = vmatpush2.bf16.xpose.msra.mxu0 0
        %1902 = vmatprep.mubr.bf16.mxu0 0
        %1903 = vmatmul.mubr.bf16.gmra.mxu0 %v1823
        %v1904 = vpop.f32.mrf.mxu0
        %v1905 = vadd.f32 %v1820, %v1904
        %v1906 = vpop.f32.mrf.mxu0
        %v1907 = vpop.f32.mrf.mxu0
        %v1908 = vadd.f32 %v1820, %v1907
        %v1909 = vpop.f32.mrf.mxu0
        %1910 = vmatprep.mubr.bf16.mxu0 0
        %1911 = vmatmul.mubr.bf16.gmra.mxu0 %v1826
        %v1912 = vpop.f32.mrf.mxu0
        %v1913 = vadd.f32 %v1820, %v1912
        %v1914 = vpop.f32.mrf.mxu0
        %v1915 = vpop.f32.mrf.mxu0
        %v1916 = vadd.f32 %v1820, %v1915
        %v1917 = vpop.f32.mrf.mxu0
        %1918 = vmatprep.mubr.bf16.mxu0 0
        %1919 = vmatmul.mubr.bf16.gmra.mxu0 %v1829
        %v1920 = vpop.f32.mrf.mxu0
        %v1921 = vadd.f32 %v1820, %v1920
        %v1922 = vpop.f32.mrf.mxu0
        %v1923 = vpop.f32.mrf.mxu0
        %v1924 = vadd.f32 %v1820, %v1923
        %v1925 = vpop.f32.mrf.mxu0
        %1926 = vmatprep.mubr.bf16.mxu0 0
        %1927 = vmatmul.mubr.bf16.gmra.mxu0 %v1832
        %v1928 = vpop.f32.mrf.mxu0
        %v1929 = vadd.f32 %v1820, %v1928
        %v1930 = vpop.f32.mrf.mxu0
        %v1931 = vpop.f32.mrf.mxu0
        %v1932 = vadd.f32 %v1820, %v1931
        %v1933 = vpop.f32.mrf.mxu0
        %1934 = vmatprep.mubr.bf16.mxu0 0
        %1935 = vmatmul.mubr.bf16.gmra.mxu0 %v1835
        %v1936 = vpop.f32.mrf.mxu0
        %v1937 = vadd.f32 %v1820, %v1936
        %v1938 = vpop.f32.mrf.mxu0
        %v1939 = vpop.f32.mrf.mxu0
        %v1940 = vadd.f32 %v1820, %v1939
        %v1941 = vpop.f32.mrf.mxu0
        %1942 = vmatprep.mubr.bf16.mxu0 0
        %1943 = vmatmul.mubr.bf16.gmra.mxu0 %v1838
        %v1944 = vpop.f32.mrf.mxu0
        %v1945 = vadd.f32 %v1820, %v1944
        %v1946 = vpop.f32.mrf.mxu0
        %v1947 = vpop.f32.mrf.mxu0
        %v1948 = vadd.f32 %v1820, %v1947
        %v1949 = vpop.f32.mrf.mxu0
        %1950 = vmatprep.mubr.bf16.mxu0 0
        %1951 = vmatmul.mubr.bf16.gmra.mxu0 %v1841
        %v1952 = vpop.f32.mrf.mxu0
        %v1953 = vadd.f32 %v1820, %v1952
        %v1954 = vpop.f32.mrf.mxu0
        %v1955 = vpop.f32.mrf.mxu0
        %v1956 = vadd.f32 %v1820, %v1955
        %v1957 = vpop.f32.mrf.mxu0
        %1958 = vmatprep.mubr.bf16.mxu0 0
        %1959 = vmatmul.mubr.bf16.gmra.mxu0 %v1844
        %v1960 = vpop.f32.mrf.mxu0
        %v1961 = vadd.f32 %v1820, %v1960
        %v1962 = vpop.f32.mrf.mxu0
        %v1963 = vpop.f32.mrf.mxu0
        %v1964 = vadd.f32 %v1820, %v1963
        %v1965 = vpop.f32.mrf.mxu0
        %1966 = vdwg.mxu0
        %1967 = vmax.xlane.f32.xlu0 %v1905
        %v1968 = vpop.xlane.xlu0 %1967
        %1969 = vmax.xlane.f32.xlu0 %v1908
        %v1970 = vpop.xlane.xlu0 %1969
        %1971 = vmax.xlane.f32.xlu0 %v1913
        %v1972 = vpop.xlane.xlu0 %1971
        %1973 = vmax.xlane.f32.xlu0 %v1916
        %v1974 = vpop.xlane.xlu0 %1973
        %1975 = vmax.xlane.f32.xlu0 %v1921
        %v1976 = vpop.xlane.xlu0 %1975
        %1977 = vmax.xlane.f32.xlu0 %v1924
        %v1978 = vpop.xlane.xlu0 %1977
        %1979 = vmax.xlane.f32.xlu0 %v1929
        %v1980 = vpop.xlane.xlu0 %1979
        %1981 = vmax.xlane.f32.xlu0 %v1932
        %v1982 = vpop.xlane.xlu0 %1981
        %1983 = vmax.xlane.f32.xlu0 %v1937
        %v1984 = vpop.xlane.xlu0 %1983
        %1985 = vmax.xlane.f32.xlu0 %v1940
        %v1986 = vpop.xlane.xlu0 %1985
        %1987 = vmax.xlane.f32.xlu0 %v1945
        %v1988 = vpop.xlane.xlu0 %1987
        %1989 = vmax.xlane.f32.xlu0 %v1948
        %v1990 = vpop.xlane.xlu0 %1989
        %1991 = vmax.xlane.f32.xlu0 %v1953
        %v1992 = vpop.xlane.xlu0 %1991
        %1993 = vmax.xlane.f32.xlu0 %v1956
        %v1994 = vpop.xlane.xlu0 %1993
        %1995 = vmax.xlane.f32.xlu0 %v1961
        %v1996 = vpop.xlane.xlu0 %1995
        %1997 = vmax.xlane.f32.xlu0 %v1964
        %v1998 = vpop.xlane.xlu0 %1997
        %v1999 = vsub.f32 %v1905, %v1968
        %v2000 = vsub.f32 %v1908, %v1970
        %v2001 = vsub.f32 %v1913, %v1972
        %v2002 = vsub.f32 %v1916, %v1974
        %v2003 = vsub.f32 %v1921, %v1976
        %v2004 = vsub.f32 %v1924, %v1978
        %v2005 = vsub.f32 %v1929, %v1980
        %v2006 = vsub.f32 %v1932, %v1982
        %v2007 = vsub.f32 %v1937, %v1984
        %v2008 = vsub.f32 %v1940, %v1986
        %v2009 = vsub.f32 %v1945, %v1988
        %v2010 = vsub.f32 %v1948, %v1990
        %v2011 = vsub.f32 %v1953, %v1992
        %v2012 = vsub.f32 %v1956, %v1994
        %v2013 = vsub.f32 %v1961, %v1996
        %v2014 = vsub.f32 %v1964, %v1998
        %v2015 = vmul.f32 %v1999, 1.442695
        %v2016 = vpow.pop %v2015
        %v2017 = vmul.f32 %v2000, 1.442695
        %v2018 = vpow.pop %v2017
        %v2019 = vmul.f32 %v2001, 1.442695
        %v2020 = vpow.pop %v2019
        %v2021 = vmul.f32 %v2002, 1.442695
        %v2022 = vpow.pop %v2021
        %v2023 = vmul.f32 %v2003, 1.442695
        %v2024 = vpow.pop %v2023
        %v2025 = vmul.f32 %v2004, 1.442695
        %v2026 = vpow.pop %v2025
        %v2027 = vmul.f32 %v2005, 1.442695
        %v2028 = vpow.pop %v2027
        %v2029 = vmul.f32 %v2006, 1.442695
        %v2030 = vpow.pop %v2029
        %v2031 = vmul.f32 %v2007, 1.442695
        %v2032 = vpow.pop %v2031
        %v2033 = vmul.f32 %v2008, 1.442695
        %v2034 = vpow.pop %v2033
        %v2035 = vmul.f32 %v2009, 1.442695
        %v2036 = vpow.pop %v2035
        %v2037 = vmul.f32 %v2010, 1.442695
        %v2038 = vpow.pop %v2037
        %v2039 = vmul.f32 %v2011, 1.442695
        %v2040 = vpow.pop %v2039
        %v2041 = vmul.f32 %v2012, 1.442695
        %v2042 = vpow.pop %v2041
        %v2043 = vmul.f32 %v2013, 1.442695
        %v2044 = vpow.pop %v2043
        %v2045 = vmul.f32 %v2014, 1.442695
        %v2046 = vpow.pop %v2045
        %2047 = vadd.xlane.f32.xlu0 %v2016
        %v2048 = vpop.xlane.xlu0 %2047
        %2049 = vadd.xlane.f32.xlu0 %v2018
        %v2050 = vpop.xlane.xlu0 %2049
        %2051 = vadd.xlane.f32.xlu0 %v2020
        %v2052 = vpop.xlane.xlu0 %2051
        %2053 = vadd.xlane.f32.xlu0 %v2022
        %v2054 = vpop.xlane.xlu0 %2053
        %2055 = vadd.xlane.f32.xlu0 %v2024
        %v2056 = vpop.xlane.xlu0 %2055
        %2057 = vadd.xlane.f32.xlu0 %v2026
        %v2058 = vpop.xlane.xlu0 %2057
        %2059 = vadd.xlane.f32.xlu0 %v2028
        %v2060 = vpop.xlane.xlu0 %2059
        %2061 = vadd.xlane.f32.xlu0 %v2030
        %v2062 = vpop.xlane.xlu0 %2061
        %2063 = vadd.xlane.f32.xlu0 %v2032
        %v2064 = vpop.xlane.xlu0 %2063
        %2065 = vadd.xlane.f32.xlu0 %v2034
        %v2066 = vpop.xlane.xlu0 %2065
        %2067 = vadd.xlane.f32.xlu0 %v2036
        %v2068 = vpop.xlane.xlu0 %2067
        %2069 = vadd.xlane.f32.xlu0 %v2038
        %v2070 = vpop.xlane.xlu0 %2069
        %2071 = vadd.xlane.f32.xlu0 %v2040
        %v2072 = vpop.xlane.xlu0 %2071
        %2073 = vadd.xlane.f32.xlu0 %v2042
        %v2074 = vpop.xlane.xlu0 %2073
        %2075 = vadd.xlane.f32.xlu0 %v2044
        %v2076 = vpop.xlane.xlu0 %2075
        %2077 = vadd.xlane.f32.xlu0 %v2046
        %v2078 = vpop.xlane.xlu0 %2077
        %v2079 = vrcp.pop %v2048
        %v2080 = vrcp.pop %v2050
        %v2081 = vrcp.pop %v2052
        %v2082 = vrcp.pop %v2054
        %v2083 = vrcp.pop %v2056
        %v2084 = vrcp.pop %v2058
        %v2085 = vrcp.pop %v2060
        %v2086 = vrcp.pop %v2062
        %v2087 = vrcp.pop %v2064
        %v2088 = vrcp.pop %v2066
        %v2089 = vrcp.pop %v2068
        %v2090 = vrcp.pop %v2070
        %v2091 = vrcp.pop %v2072
        %v2092 = vrcp.pop %v2074
        %v2093 = vrcp.pop %v2076
        %v2094 = vrcp.pop %v2078
        %v2095 = vmul.f32 %v2016, %v2079
        %v2096 = vmul.f32 %v2018, %v2080
        %v2097 = vmul.f32 %v2020, %v2081
        %v2098 = vmul.f32 %v2022, %v2082
        %v2099 = vmul.f32 %v2024, %v2083
        %v2100 = vmul.f32 %v2026, %v2084
        %v2101 = vmul.f32 %v2028, %v2085
        %v2102 = vmul.f32 %v2030, %v2086
        %v2103 = vmul.f32 %v2032, %v2087
        %v2104 = vmul.f32 %v2034, %v2088
        %v2105 = vmul.f32 %v2036, %v2089
        %v2106 = vmul.f32 %v2038, %v2090
        %v2107 = vmul.f32 %v2040, %v2091
        %v2108 = vmul.f32 %v2042, %v2092
        %v2109 = vmul.f32 %v2044, %v2093
        %v2110 = vmul.f32 %v2046, %v2094
        %v2111 = vpack.c.bf16 %v2096, %v2095
        %v2112 = vpack.c.bf16 %v2098, %v2097
        %v2113 = vpack.c.bf16 %v2100, %v2099
        %v2114 = vpack.c.bf16 %v2102, %v2101
        %v2115 = vpack.c.bf16 %v2104, %v2103
        %v2116 = vpack.c.bf16 %v2106, %v2105
        %v2117 = vpack.c.bf16 %v2108, %v2107
        %v2118 = vpack.c.bf16 %v2110, %v2109
        %2119 = vmatprep.subr.bf16.mxu0 0
        %2120 = vmatpush1.bf16.msra.mxu0 %v1816
        %2121 = vmatprep.subr.bf16.mxu0 0
        %2122 = vmatpush1.bf16.msra.mxu0 %v1815
        %2123 = vmatprep.subr.bf16.mxu0 0
        %2124 = vmatpush1.bf16.msra.mxu0 %v1814
        %2125 = vmatprep.subr.bf16.mxu0 0
        %2126 = vmatpush1.bf16.msra.mxu0 %v1813
        %2127 = vmatprep.subr.bf16.mxu0 0
        %2128 = vmatpush1.bf16.msra.mxu0 %v1812
        %2129 = vmatprep.subr.bf16.mxu0 0
        %2130 = vmatpush1.bf16.msra.mxu0 %v1811
        %2131 = vmatprep.subr.bf16.mxu0 0
        %2132 = vmatpush1.bf16.msra.mxu0 %v1810
        %2133 = vmatprep.subr.bf16.mxu0 0
        %2134 = vmatpush1.bf16.msra.mxu0 %v1809
        %2135 = vmatprep.subr.bf16.mxu0 0
        %2136 = vmatpush2.bf16.msra.mxu0 0
        %2137 = vmatprep.subr.bf16.mxu0 0
        %2138 = vmatpush2.bf16.msra.mxu0 0
        %2139 = vmatprep.subr.bf16.mxu0 0
        %2140 = vmatpush2.bf16.msra.mxu0 0
        %2141 = vmatprep.subr.bf16.mxu0 0
        %2142 = vmatpush2.bf16.msra.mxu0 0
        %2143 = vmatprep.subr.bf16.mxu0 0
        %2144 = vmatpush2.bf16.msra.mxu0 0
        %2145 = vmatprep.subr.bf16.mxu0 0
        %2146 = vmatpush2.bf16.msra.mxu0 0
        %2147 = vmatprep.subr.bf16.mxu0 0
        %2148 = vmatpush2.bf16.msra.mxu0 0
        %2149 = vmatprep.subr.bf16.mxu0 0
        %2150 = vmatpush2.bf16.msra.mxu0 0
        %2151 = vmatprep.mubr.bf16.mxu0 0
        %2152 = vmatmul.mubr.bf16.gmra.mxu0 %v2111
        %v2153 = vpop.f32.mrf.mxu0
        %v2154 = vadd.f32 0.0, %v2153
        %v2155 = vpop.f32.mrf.mxu0
        %v2156 = vpop.f32.mrf.mxu0
        %v2157 = vadd.f32 0.0, %v2156
        %v2158 = vpop.f32.mrf.mxu0
        %2159 = vmatprep.mubr.bf16.mxu0 0
        %2160 = vmatmul.mubr.bf16.gmra.mxu0 %v2112
        %v2161 = vpop.f32.mrf.mxu0
        %v2162 = vadd.f32 0.0, %v2161
        %v2163 = vpop.f32.mrf.mxu0
        %v2164 = vpop.f32.mrf.mxu0
        %v2165 = vadd.f32 0.0, %v2164
        %v2166 = vpop.f32.mrf.mxu0
        %2167 = vmatprep.mubr.bf16.mxu0 0
        %2168 = vmatmul.mubr.bf16.gmra.mxu0 %v2113
        %v2169 = vpop.f32.mrf.mxu0
        %v2170 = vadd.f32 0.0, %v2169
        %v2171 = vpop.f32.mrf.mxu0
        %v2172 = vpop.f32.mrf.mxu0
        %v2173 = vadd.f32 0.0, %v2172
        %v2174 = vpop.f32.mrf.mxu0
        %2175 = vmatprep.mubr.bf16.mxu0 0
        %2176 = vmatmul.mubr.bf16.gmra.mxu0 %v2114
        %v2177 = vpop.f32.mrf.mxu0
        %v2178 = vadd.f32 0.0, %v2177
        %v2179 = vpop.f32.mrf.mxu0
        %v2180 = vpop.f32.mrf.mxu0
        %v2181 = vadd.f32 0.0, %v2180
        %v2182 = vpop.f32.mrf.mxu0
        %2183 = vmatprep.mubr.bf16.mxu0 0
        %2184 = vmatmul.mubr.bf16.gmra.mxu0 %v2115
        %v2185 = vpop.f32.mrf.mxu0
        %v2186 = vadd.f32 0.0, %v2185
        %v2187 = vpop.f32.mrf.mxu0
        %v2188 = vpop.f32.mrf.mxu0
        %v2189 = vadd.f32 0.0, %v2188
        %v2190 = vpop.f32.mrf.mxu0
        %2191 = vmatprep.mubr.bf16.mxu0 0
        %2192 = vmatmul.mubr.bf16.gmra.mxu0 %v2116
        %v2193 = vpop.f32.mrf.mxu0
        %v2194 = vadd.f32 0.0, %v2193
        %v2195 = vpop.f32.mrf.mxu0
        %v2196 = vpop.f32.mrf.mxu0
        %v2197 = vadd.f32 0.0, %v2196
        %v2198 = vpop.f32.mrf.mxu0
        %2199 = vmatprep.mubr.bf16.mxu0 0
        %2200 = vmatmul.mubr.bf16.gmra.mxu0 %v2117
        %v2201 = vpop.f32.mrf.mxu0
        %v2202 = vadd.f32 0.0, %v2201
        %v2203 = vpop.f32.mrf.mxu0
        %v2204 = vpop.f32.mrf.mxu0
        %v2205 = vadd.f32 0.0, %v2204
        %v2206 = vpop.f32.mrf.mxu0
        %2207 = vmatprep.mubr.bf16.mxu0 0
        %2208 = vmatmul.mubr.bf16.gmra.mxu0 %v2118
        %v2209 = vpop.f32.mrf.mxu0
        %v2210 = vadd.f32 0.0, %v2209
        %v2211 = vpop.f32.mrf.mxu0
        %v2212 = vpop.f32.mrf.mxu0
        %v2213 = vadd.f32 0.0, %v2212
        %v2214 = vpop.f32.mrf.mxu0
        %2215 = vdwg.mxu0
        %v2216 = vpack.c.bf16 %v2157, %v2154
        %v2217 = vpack.c.bf16 %v2165, %v2162
        %v2218 = vpack.c.bf16 %v2173, %v2170
        %v2219 = vpack.c.bf16 %v2181, %v2178
        %v2220 = vpack.c.bf16 %v2189, %v2186
        %v2221 = vpack.c.bf16 %v2197, %v2194
        %v2222 = vpack.c.bf16 %v2205, %v2202
        %v2223 = vpack.c.bf16 %v2213, %v2210
        %v2228 = vunpack.c.l.b16 %v1505
        %v2229 = vunpack.c.l.b16 %v1506
        %v2230 = vunpack.c.l.b16 %v1507
        %v2231 = vunpack.c.l.b16 %v1508
        %v2232 = vpack.c.b16 %v2229, %v2228
        %v2233 = vpack.c.b16 %v2231, %v2230
        %v2237 = vsel %vm1821, %v2216, 0
        %v2240 = vsel %vm1821, %v2217, 0
        %v2243 = vsel %vm1821, %v2218, 0
        %v2246 = vsel %vm1821, %v2219, 0
        %v2249 = vsel %vm1821, %v2220, 0
        %v2252 = vsel %vm1821, %v2221, 0
        %v2255 = vsel %vm1821, %v2222, 0
        %v2258 = vsel %vm1821, %v2223, 0
        %2260 = vmatprep.subr.bf16.mxu0 0
        %2261 = vmatpush1.bf16.msra.mxu0 0
        %2262 = vmatprep.subr.bf16.mxu0 0
        %2263 = vmatpush1.bf16.msra.mxu0 0
        %2264 = vmatprep.subr.bf16.mxu0 0
        %2265 = vmatpush1.bf16.msra.mxu0 0
        %2266 = vmatprep.subr.bf16.mxu0 0
        %2267 = vmatpush1.bf16.msra.mxu0 0
        %2268 = vmatprep.subr.bf16.mxu0 0
        %2269 = vmatpush1.bf16.msra.mxu0 0
        %2270 = vmatprep.subr.bf16.mxu0 0
        %2271 = vmatpush1.bf16.msra.mxu0 0
        %2272 = vmatprep.subr.bf16.mxu0 0
        %2273 = vmatpush1.bf16.msra.mxu0 %v2233
        %2274 = vmatprep.subr.bf16.mxu0 0
        %2275 = vmatpush1.bf16.msra.mxu0 %v2232
        %2276 = vmatprep.subr.bf16.mxu0 0
        %2277 = vmatpush2.bf16.msra.mxu0 0
        %2278 = vmatprep.subr.bf16.mxu0 0
        %2279 = vmatpush2.bf16.msra.mxu0 0
        %2280 = vmatprep.subr.bf16.mxu0 0
        %2281 = vmatpush2.bf16.msra.mxu0 0
        %2282 = vmatprep.subr.bf16.mxu0 0
        %2283 = vmatpush2.bf16.msra.mxu0 0
        %2284 = vmatprep.subr.bf16.mxu0 0
        %2285 = vmatpush2.bf16.msra.mxu0 0
        %2286 = vmatprep.subr.bf16.mxu0 0
        %2287 = vmatpush2.bf16.msra.mxu0 0
        %2288 = vmatprep.subr.bf16.mxu0 0
        %2289 = vmatpush2.bf16.msra.mxu0 0
        %2290 = vmatprep.subr.bf16.mxu0 0
        %2291 = vmatpush2.bf16.msra.mxu0 0
        %2292 = vmatprep.mubr.bf16.mxu0 0
        %2293 = vmatmul.mubr.bf16.gmra.mxu0 %v2237
        %v2294 = vpop.f32.mrf.mxu0
        %v2295 = vadd.f32 0.0, %v2294
        %v2296 = vpop.f32.mrf.mxu0
        %v2297 = vpop.f32.mrf.mxu0
        %v2298 = vadd.f32 0.0, %v2297
        %v2299 = vpop.f32.mrf.mxu0
        %2300 = vmatprep.mubr.bf16.mxu0 0
        %2301 = vmatmul.mubr.bf16.gmra.mxu0 %v2240
        %v2302 = vpop.f32.mrf.mxu0
        %v2303 = vadd.f32 0.0, %v2302
        %v2304 = vpop.f32.mrf.mxu0
        %v2305 = vpop.f32.mrf.mxu0
        %v2306 = vadd.f32 0.0, %v2305
        %v2307 = vpop.f32.mrf.mxu0
        %2308 = vmatprep.mubr.bf16.mxu0 0
        %2309 = vmatmul.mubr.bf16.gmra.mxu0 %v2243
        %v2310 = vpop.f32.mrf.mxu0
        %v2311 = vadd.f32 0.0, %v2310
        %v2312 = vpop.f32.mrf.mxu0
        %v2313 = vpop.f32.mrf.mxu0
        %v2314 = vadd.f32 0.0, %v2313
        %v2315 = vpop.f32.mrf.mxu0
        %2316 = vmatprep.mubr.bf16.mxu0 0
        %2317 = vmatmul.mubr.bf16.gmra.mxu0 %v2246
        %v2318 = vpop.f32.mrf.mxu0
        %v2319 = vadd.f32 0.0, %v2318
        %v2320 = vpop.f32.mrf.mxu0
        %v2321 = vpop.f32.mrf.mxu0
        %v2322 = vadd.f32 0.0, %v2321
        %v2323 = vpop.f32.mrf.mxu0
        %2324 = vmatprep.mubr.bf16.mxu0 0
        %2325 = vmatmul.mubr.bf16.gmra.mxu0 %v2249
        %v2326 = vpop.f32.mrf.mxu0
        %v2327 = vadd.f32 0.0, %v2326
        %v2328 = vpop.f32.mrf.mxu0
        %v2329 = vpop.f32.mrf.mxu0
        %v2330 = vadd.f32 0.0, %v2329
        %v2331 = vpop.f32.mrf.mxu0
        %2332 = vmatprep.mubr.bf16.mxu0 0
        %2333 = vmatmul.mubr.bf16.gmra.mxu0 %v2252
        %v2334 = vpop.f32.mrf.mxu0
        %v2335 = vadd.f32 0.0, %v2334
        %v2336 = vpop.f32.mrf.mxu0
        %v2337 = vpop.f32.mrf.mxu0
        %v2338 = vadd.f32 0.0, %v2337
        %v2339 = vpop.f32.mrf.mxu0
        %2340 = vmatprep.mubr.bf16.mxu0 0
        %2341 = vmatmul.mubr.bf16.gmra.mxu0 %v2255
        %v2342 = vpop.f32.mrf.mxu0
        %v2343 = vadd.f32 0.0, %v2342
        %v2344 = vpop.f32.mrf.mxu0
        %v2345 = vpop.f32.mrf.mxu0
        %v2346 = vadd.f32 0.0, %v2345
        %v2347 = vpop.f32.mrf.mxu0
        %2348 = vmatprep.mubr.bf16.mxu0 0
        %2349 = vmatmul.mubr.bf16.gmra.mxu0 %v2258
        %v2350 = vpop.f32.mrf.mxu0
        %v2351 = vadd.f32 0.0, %v2350
        %v2352 = vpop.f32.mrf.mxu0
        %v2353 = vpop.f32.mrf.mxu0
        %v2354 = vadd.f32 0.0, %v2353
        %v2355 = vpop.f32.mrf.mxu0
        %2356 = vdwg.mxu0
        %v2357 = vadd.f32 %v682, %v2295
        %v2358 = vadd.f32 %v683, %v2298
        %v2359 = vadd.f32 %v684, %v2303
        %v2360 = vadd.f32 %v685, %v2306
        %v2361 = vadd.f32 %v686, %v2311
        %v2362 = vadd.f32 %v687, %v2314
        %v2363 = vadd.f32 %v688, %v2319
        %v2364 = vadd.f32 %v689, %v2322
        %v2365 = vadd.f32 %v690, %v2327
        %v2366 = vadd.f32 %v691, %v2330
        %v2367 = vadd.f32 %v692, %v2335
        %v2368 = vadd.f32 %v693, %v2338
        %v2369 = vadd.f32 %v694, %v2343
        %v2370 = vadd.f32 %v695, %v2346
        %v2371 = vadd.f32 %v696, %v2351
        %v2372 = vadd.f32 %v697, %v2354
        %2381 = vrot.lane.b32.xlu0 %v1665, 96
        %v2382 = vpop.permute.xlu0 %2381
        %2383 = vrot.lane.b32.xlu0 %v1666, 96
        %v2384 = vpop.permute.xlu0 %2383
        %2385 = vrot.lane.b32.xlu0 %v1667, 96
        %v2386 = vpop.permute.xlu0 %2385
        %2387 = vrot.lane.b32.xlu0 %v1668, 96
        %v2388 = vpop.permute.xlu0 %2387
        %2389 = vrot.lane.b32.xlu0 %v1669, 96
        %v2390 = vpop.permute.xlu0 %2389
        %2391 = vrot.lane.b32.xlu0 %v1670, 96
        %v2392 = vpop.permute.xlu0 %2391
        %2393 = vrot.lane.b32.xlu0 %v1671, 96
        %v2394 = vpop.permute.xlu0 %2393
        %2395 = vrot.lane.b32.xlu0 %v1672, 96
        %v2396 = vpop.permute.xlu0 %2395
        %2405 = vrot.lane.b32.xlu0 %v1801, 96
        %v2406 = vpop.permute.xlu0 %2405
        %2407 = vrot.lane.b32.xlu0 %v1802, 96
        %v2408 = vpop.permute.xlu0 %2407
        %2409 = vrot.lane.b32.xlu0 %v1803, 96
        %v2410 = vpop.permute.xlu0 %2409
        %2411 = vrot.lane.b32.xlu0 %v1804, 96
        %v2412 = vpop.permute.xlu0 %2411
        %2413 = vrot.lane.b32.xlu0 %v1805, 96
        %v2414 = vpop.permute.xlu0 %2413
        %2415 = vrot.lane.b32.xlu0 %v1806, 96
        %v2416 = vpop.permute.xlu0 %2415
        %2417 = vrot.lane.b32.xlu0 %v1807, 96
        %v2418 = vpop.permute.xlu0 %2417
        %2419 = vrot.lane.b32.xlu0 %v1808, 96
        %v2420 = vpop.permute.xlu0 %2419
        %v2422 = vsel %vm1821, %v2382, 0
        %v2425 = vsel %vm1821, %v2384, 0
        %v2428 = vsel %vm1821, %v2386, 0
        %v2431 = vsel %vm1821, %v2388, 0
        %v2434 = vsel %vm1821, %v2390, 0
        %v2437 = vsel %vm1821, %v2392, 0
        %v2440 = vsel %vm1821, %v2394, 0
        %v2443 = vsel %vm1821, %v2396, 0
        %v2446 = vsel %vm1821, %v2406, 0
        %v2449 = vsel %vm1821, %v2408, 0
        %v2452 = vsel %vm1821, %v2410, 0
        %v2455 = vsel %vm1821, %v2412, 0
        %v2458 = vsel %vm1821, %v2414, 0
        %v2461 = vsel %vm1821, %v2416, 0
        %v2464 = vsel %vm1821, %v2418, 0
        %v2467 = vsel %vm1821, %v2420, 0
        %2469 = vmatprep.subr.bf16.mxu0 0
        %2470 = vmatpush1.bf16.xpose.msra.mxu0 %v2467
        %2471 = vmatprep.subr.bf16.mxu0 0
        %2472 = vmatpush1.bf16.xpose.msra.mxu0 %v2464
        %2473 = vmatprep.subr.bf16.mxu0 0
        %2474 = vmatpush1.bf16.xpose.msra.mxu0 %v2461
        %2475 = vmatprep.subr.bf16.mxu0 0
        %2476 = vmatpush1.bf16.xpose.msra.mxu0 %v2458
        %2477 = vmatprep.subr.bf16.mxu0 0
        %2478 = vmatpush1.bf16.xpose.msra.mxu0 %v2455
        %2479 = vmatprep.subr.bf16.mxu0 0
        %2480 = vmatpush1.bf16.xpose.msra.mxu0 %v2452
        %2481 = vmatprep.subr.bf16.mxu0 0
        %2482 = vmatpush1.bf16.xpose.msra.mxu0 %v2449
        %2483 = vmatprep.subr.bf16.mxu0 0
        %2484 = vmatpush1.bf16.xpose.msra.mxu0 %v2446
        %2485 = vmatprep.subr.bf16.mxu0 0
        %2486 = vmatpush2.bf16.xpose.msra.mxu0 0
        %2487 = vmatprep.subr.bf16.mxu0 0
        %2488 = vmatpush2.bf16.xpose.msra.mxu0 0
        %2489 = vmatprep.subr.bf16.mxu0 0
        %2490 = vmatpush2.bf16.xpose.msra.mxu0 0
        %2491 = vmatprep.subr.bf16.mxu0 0
        %2492 = vmatpush2.bf16.xpose.msra.mxu0 0
        %2493 = vmatprep.subr.bf16.mxu0 0
        %2494 = vmatpush2.bf16.xpose.msra.mxu0 0
        %2495 = vmatprep.subr.bf16.mxu0 0
        %2496 = vmatpush2.bf16.xpose.msra.mxu0 0
        %2497 = vmatprep.subr.bf16.mxu0 0
        %2498 = vmatpush2.bf16.xpose.msra.mxu0 0
        %2499 = vmatprep.subr.bf16.mxu0 0
        %2500 = vmatpush2.bf16.xpose.msra.mxu0 0
        %2501 = vmatprep.mubr.bf16.mxu0 0
        %2502 = vmatmul.mubr.bf16.gmra.mxu0 %v2422
        %v2503 = vpop.f32.mrf.mxu0
        %v2504 = vadd.f32 %v1820, %v2503
        %v2505 = vpop.f32.mrf.mxu0
        %v2506 = vpop.f32.mrf.mxu0
        %v2507 = vadd.f32 %v1820, %v2506
        %v2508 = vpop.f32.mrf.mxu0
        %2509 = vmatprep.mubr.bf16.mxu0 0
        %2510 = vmatmul.mubr.bf16.gmra.mxu0 %v2425
        %v2511 = vpop.f32.mrf.mxu0
        %v2512 = vadd.f32 %v1820, %v2511
        %v2513 = vpop.f32.mrf.mxu0
        %v2514 = vpop.f32.mrf.mxu0
        %v2515 = vadd.f32 %v1820, %v2514
        %v2516 = vpop.f32.mrf.mxu0
        %2517 = vmatprep.mubr.bf16.mxu0 0
        %2518 = vmatmul.mubr.bf16.gmra.mxu0 %v2428
        %v2519 = vpop.f32.mrf.mxu0
        %v2520 = vadd.f32 %v1820, %v2519
        %v2521 = vpop.f32.mrf.mxu0
        %v2522 = vpop.f32.mrf.mxu0
        %v2523 = vadd.f32 %v1820, %v2522
        %v2524 = vpop.f32.mrf.mxu0
        %2525 = vmatprep.mubr.bf16.mxu0 0
        %2526 = vmatmul.mubr.bf16.gmra.mxu0 %v2431
        %v2527 = vpop.f32.mrf.mxu0
        %v2528 = vadd.f32 %v1820, %v2527
        %v2529 = vpop.f32.mrf.mxu0
        %v2530 = vpop.f32.mrf.mxu0
        %v2531 = vadd.f32 %v1820, %v2530
        %v2532 = vpop.f32.mrf.mxu0
        %2533 = vmatprep.mubr.bf16.mxu0 0
        %2534 = vmatmul.mubr.bf16.gmra.mxu0 %v2434
        %v2535 = vpop.f32.mrf.mxu0
        %v2536 = vadd.f32 %v1820, %v2535
        %v2537 = vpop.f32.mrf.mxu0
        %v2538 = vpop.f32.mrf.mxu0
        %v2539 = vadd.f32 %v1820, %v2538
        %v2540 = vpop.f32.mrf.mxu0
        %2541 = vmatprep.mubr.bf16.mxu0 0
        %2542 = vmatmul.mubr.bf16.gmra.mxu0 %v2437
        %v2543 = vpop.f32.mrf.mxu0
        %v2544 = vadd.f32 %v1820, %v2543
        %v2545 = vpop.f32.mrf.mxu0
        %v2546 = vpop.f32.mrf.mxu0
        %v2547 = vadd.f32 %v1820, %v2546
        %v2548 = vpop.f32.mrf.mxu0
        %2549 = vmatprep.mubr.bf16.mxu0 0
        %2550 = vmatmul.mubr.bf16.gmra.mxu0 %v2440
        %v2551 = vpop.f32.mrf.mxu0
        %v2552 = vadd.f32 %v1820, %v2551
        %v2553 = vpop.f32.mrf.mxu0
        %v2554 = vpop.f32.mrf.mxu0
        %v2555 = vadd.f32 %v1820, %v2554
        %v2556 = vpop.f32.mrf.mxu0
        %2557 = vmatprep.mubr.bf16.mxu0 0
        %2558 = vmatmul.mubr.bf16.gmra.mxu0 %v2443
        %v2559 = vpop.f32.mrf.mxu0
        %v2560 = vadd.f32 %v1820, %v2559
        %v2561 = vpop.f32.mrf.mxu0
        %v2562 = vpop.f32.mrf.mxu0
        %v2563 = vadd.f32 %v1820, %v2562
        %v2564 = vpop.f32.mrf.mxu0
        %2565 = vdwg.mxu0
        %2566 = vmax.xlane.f32.xlu0 %v2504
        %v2567 = vpop.xlane.xlu0 %2566
        %2568 = vmax.xlane.f32.xlu0 %v2507
        %v2569 = vpop.xlane.xlu0 %2568
        %2570 = vmax.xlane.f32.xlu0 %v2512
        %v2571 = vpop.xlane.xlu0 %2570
        %2572 = vmax.xlane.f32.xlu0 %v2515
        %v2573 = vpop.xlane.xlu0 %2572
        %2574 = vmax.xlane.f32.xlu0 %v2520
        %v2575 = vpop.xlane.xlu0 %2574
        %2576 = vmax.xlane.f32.xlu0 %v2523
        %v2577 = vpop.xlane.xlu0 %2576
        %2578 = vmax.xlane.f32.xlu0 %v2528
        %v2579 = vpop.xlane.xlu0 %2578
        %2580 = vmax.xlane.f32.xlu0 %v2531
        %v2581 = vpop.xlane.xlu0 %2580
        %2582 = vmax.xlane.f32.xlu0 %v2536
        %v2583 = vpop.xlane.xlu0 %2582
        %2584 = vmax.xlane.f32.xlu0 %v2539
        %v2585 = vpop.xlane.xlu0 %2584
        %2586 = vmax.xlane.f32.xlu0 %v2544
        %v2587 = vpop.xlane.xlu0 %2586
        %2588 = vmax.xlane.f32.xlu0 %v2547
        %v2589 = vpop.xlane.xlu0 %2588
        %2590 = vmax.xlane.f32.xlu0 %v2552
        %v2591 = vpop.xlane.xlu0 %2590
        %2592 = vmax.xlane.f32.xlu0 %v2555
        %v2593 = vpop.xlane.xlu0 %2592
        %2594 = vmax.xlane.f32.xlu0 %v2560
        %v2595 = vpop.xlane.xlu0 %2594
        %2596 = vmax.xlane.f32.xlu0 %v2563
        %v2597 = vpop.xlane.xlu0 %2596
        %v2598 = vsub.f32 %v2504, %v2567
        %v2599 = vsub.f32 %v2507, %v2569
        %v2600 = vsub.f32 %v2512, %v2571
        %v2601 = vsub.f32 %v2515, %v2573
        %v2602 = vsub.f32 %v2520, %v2575
        %v2603 = vsub.f32 %v2523, %v2577
        %v2604 = vsub.f32 %v2528, %v2579
        %v2605 = vsub.f32 %v2531, %v2581
        %v2606 = vsub.f32 %v2536, %v2583
        %v2607 = vsub.f32 %v2539, %v2585
        %v2608 = vsub.f32 %v2544, %v2587
        %v2609 = vsub.f32 %v2547, %v2589
        %v2610 = vsub.f32 %v2552, %v2591
        %v2611 = vsub.f32 %v2555, %v2593
        %v2612 = vsub.f32 %v2560, %v2595
        %v2613 = vsub.f32 %v2563, %v2597
        %v2614 = vmul.f32 %v2598, 1.442695
        %v2615 = vpow.pop %v2614
        %v2616 = vmul.f32 %v2599, 1.442695
        %v2617 = vpow.pop %v2616
        %v2618 = vmul.f32 %v2600, 1.442695
        %v2619 = vpow.pop %v2618
        %v2620 = vmul.f32 %v2601, 1.442695
        %v2621 = vpow.pop %v2620
        %v2622 = vmul.f32 %v2602, 1.442695
        %v2623 = vpow.pop %v2622
        %v2624 = vmul.f32 %v2603, 1.442695
        %v2625 = vpow.pop %v2624
        %v2626 = vmul.f32 %v2604, 1.442695
        %v2627 = vpow.pop %v2626
        %v2628 = vmul.f32 %v2605, 1.442695
        %v2629 = vpow.pop %v2628
        %v2630 = vmul.f32 %v2606, 1.442695
        %v2631 = vpow.pop %v2630
        %v2632 = vmul.f32 %v2607, 1.442695
        %v2633 = vpow.pop %v2632
        %v2634 = vmul.f32 %v2608, 1.442695
        %v2635 = vpow.pop %v2634
        %v2636 = vmul.f32 %v2609, 1.442695
        %v2637 = vpow.pop %v2636
        %v2638 = vmul.f32 %v2610, 1.442695
        %v2639 = vpow.pop %v2638
        %v2640 = vmul.f32 %v2611, 1.442695
        %v2641 = vpow.pop %v2640
        %v2642 = vmul.f32 %v2612, 1.442695
        %v2643 = vpow.pop %v2642
        %v2644 = vmul.f32 %v2613, 1.442695
        %v2645 = vpow.pop %v2644
        %2646 = vadd.xlane.f32.xlu0 %v2615
        %v2647 = vpop.xlane.xlu0 %2646
        %2648 = vadd.xlane.f32.xlu0 %v2617
        %v2649 = vpop.xlane.xlu0 %2648
        %2650 = vadd.xlane.f32.xlu0 %v2619
        %v2651 = vpop.xlane.xlu0 %2650
        %2652 = vadd.xlane.f32.xlu0 %v2621
        %v2653 = vpop.xlane.xlu0 %2652
        %2654 = vadd.xlane.f32.xlu0 %v2623
        %v2655 = vpop.xlane.xlu0 %2654
        %2656 = vadd.xlane.f32.xlu0 %v2625
        %v2657 = vpop.xlane.xlu0 %2656
        %2658 = vadd.xlane.f32.xlu0 %v2627
        %v2659 = vpop.xlane.xlu0 %2658
        %2660 = vadd.xlane.f32.xlu0 %v2629
        %v2661 = vpop.xlane.xlu0 %2660
        %2662 = vadd.xlane.f32.xlu0 %v2631
        %v2663 = vpop.xlane.xlu0 %2662
        %2664 = vadd.xlane.f32.xlu0 %v2633
        %v2665 = vpop.xlane.xlu0 %2664
        %2666 = vadd.xlane.f32.xlu0 %v2635
        %v2667 = vpop.xlane.xlu0 %2666
        %2668 = vadd.xlane.f32.xlu0 %v2637
        %v2669 = vpop.xlane.xlu0 %2668
        %2670 = vadd.xlane.f32.xlu0 %v2639
        %v2671 = vpop.xlane.xlu0 %2670
        %2672 = vadd.xlane.f32.xlu0 %v2641
        %v2673 = vpop.xlane.xlu0 %2672
        %2674 = vadd.xlane.f32.xlu0 %v2643
        %v2675 = vpop.xlane.xlu0 %2674
        %2676 = vadd.xlane.f32.xlu0 %v2645
        %v2677 = vpop.xlane.xlu0 %2676
        %v2678 = vrcp.pop %v2647
        %v2679 = vrcp.pop %v2649
        %v2680 = vrcp.pop %v2651
        %v2681 = vrcp.pop %v2653
        %v2682 = vrcp.pop %v2655
        %v2683 = vrcp.pop %v2657
        %v2684 = vrcp.pop %v2659
        %v2685 = vrcp.pop %v2661
        %v2686 = vrcp.pop %v2663
        %v2687 = vrcp.pop %v2665
        %v2688 = vrcp.pop %v2667
        %v2689 = vrcp.pop %v2669
        %v2690 = vrcp.pop %v2671
        %v2691 = vrcp.pop %v2673
        %v2692 = vrcp.pop %v2675
        %v2693 = vrcp.pop %v2677
        %v2694 = vmul.f32 %v2615, %v2678
        %v2695 = vmul.f32 %v2617, %v2679
        %v2696 = vmul.f32 %v2619, %v2680
        %v2697 = vmul.f32 %v2621, %v2681
        %v2698 = vmul.f32 %v2623, %v2682
        %v2699 = vmul.f32 %v2625, %v2683
        %v2700 = vmul.f32 %v2627, %v2684
        %v2701 = vmul.f32 %v2629, %v2685
        %v2702 = vmul.f32 %v2631, %v2686
        %v2703 = vmul.f32 %v2633, %v2687
        %v2704 = vmul.f32 %v2635, %v2688
        %v2705 = vmul.f32 %v2637, %v2689
        %v2706 = vmul.f32 %v2639, %v2690
        %v2707 = vmul.f32 %v2641, %v2691
        %v2708 = vmul.f32 %v2643, %v2692
        %v2709 = vmul.f32 %v2645, %v2693
        %v2710 = vpack.c.bf16 %v2695, %v2694
        %v2711 = vpack.c.bf16 %v2697, %v2696
        %v2712 = vpack.c.bf16 %v2699, %v2698
        %v2713 = vpack.c.bf16 %v2701, %v2700
        %v2714 = vpack.c.bf16 %v2703, %v2702
        %v2715 = vpack.c.bf16 %v2705, %v2704
        %v2716 = vpack.c.bf16 %v2707, %v2706
        %v2717 = vpack.c.bf16 %v2709, %v2708
        %2726 = vrot.lane.b32.xlu0 %v1809, 96
        %v2727 = vpop.permute.xlu0 %2726
        %2728 = vrot.lane.b32.xlu0 %v1810, 96
        %v2729 = vpop.permute.xlu0 %2728
        %2730 = vrot.lane.b32.xlu0 %v1811, 96
        %v2731 = vpop.permute.xlu0 %2730
        %2732 = vrot.lane.b32.xlu0 %v1812, 96
        %v2733 = vpop.permute.xlu0 %2732
        %2734 = vrot.lane.b32.xlu0 %v1813, 96
        %v2735 = vpop.permute.xlu0 %2734
        %2736 = vrot.lane.b32.xlu0 %v1814, 96
        %v2737 = vpop.permute.xlu0 %2736
        %2738 = vrot.lane.b32.xlu0 %v1815, 96
        %v2739 = vpop.permute.xlu0 %2738
        %2740 = vrot.lane.b32.xlu0 %v1816, 96
        %v2741 = vpop.permute.xlu0 %2740
        %2750 = vmatprep.subr.bf16.mxu0 0
        %2751 = vmatpush1.bf16.msra.mxu0 %v2741
        %2752 = vmatprep.subr.bf16.mxu0 0
        %2753 = vmatpush1.bf16.msra.mxu0 %v2739
        %2754 = vmatprep.subr.bf16.mxu0 0
        %2755 = vmatpush1.bf16.msra.mxu0 %v2737
        %2756 = vmatprep.subr.bf16.mxu0 0
        %2757 = vmatpush1.bf16.msra.mxu0 %v2735
        %2758 = vmatprep.subr.bf16.mxu0 0
        %2759 = vmatpush1.bf16.msra.mxu0 %v2733
        %2760 = vmatprep.subr.bf16.mxu0 0
        %2761 = vmatpush1.bf16.msra.mxu0 %v2731
        %2762 = vmatprep.subr.bf16.mxu0 0
        %2763 = vmatpush1.bf16.msra.mxu0 %v2729
        %2764 = vmatprep.subr.bf16.mxu0 0
        %2765 = vmatpush1.bf16.msra.mxu0 %v2727
        %2766 = vmatprep.subr.bf16.mxu0 0
        %2767 = vmatpush2.bf16.msra.mxu0 0
        %2768 = vmatprep.subr.bf16.mxu0 0
        %2769 = vmatpush2.bf16.msra.mxu0 0
        %2770 = vmatprep.subr.bf16.mxu0 0
        %2771 = vmatpush2.bf16.msra.mxu0 0
        %2772 = vmatprep.subr.bf16.mxu0 0
        %2773 = vmatpush2.bf16.msra.mxu0 0
        %2774 = vmatprep.subr.bf16.mxu0 0
        %2775 = vmatpush2.bf16.msra.mxu0 0
        %2776 = vmatprep.subr.bf16.mxu0 0
        %2777 = vmatpush2.bf16.msra.mxu0 0
        %2778 = vmatprep.subr.bf16.mxu0 0
        %2779 = vmatpush2.bf16.msra.mxu0 0
        %2780 = vmatprep.subr.bf16.mxu0 0
        %2781 = vmatpush2.bf16.msra.mxu0 0
        %2782 = vmatprep.mubr.bf16.mxu0 0
        %2783 = vmatmul.mubr.bf16.gmra.mxu0 %v2710
        %v2784 = vpop.f32.mrf.mxu0
        %v2785 = vadd.f32 0.0, %v2784
        %v2786 = vpop.f32.mrf.mxu0
        %v2787 = vpop.f32.mrf.mxu0
        %v2788 = vadd.f32 0.0, %v2787
        %v2789 = vpop.f32.mrf.mxu0
        %2790 = vmatprep.mubr.bf16.mxu0 0
        %2791 = vmatmul.mubr.bf16.gmra.mxu0 %v2711
        %v2792 = vpop.f32.mrf.mxu0
        %v2793 = vadd.f32 0.0, %v2792
        %v2794 = vpop.f32.mrf.mxu0
        %v2795 = vpop.f32.mrf.mxu0
        %v2796 = vadd.f32 0.0, %v2795
        %v2797 = vpop.f32.mrf.mxu0
        %2798 = vmatprep.mubr.bf16.mxu0 0
        %2799 = vmatmul.mubr.bf16.gmra.mxu0 %v2712
        %v2800 = vpop.f32.mrf.mxu0
        %v2801 = vadd.f32 0.0, %v2800
        %v2802 = vpop.f32.mrf.mxu0
        %v2803 = vpop.f32.mrf.mxu0
        %v2804 = vadd.f32 0.0, %v2803
        %v2805 = vpop.f32.mrf.mxu0
        %2806 = vmatprep.mubr.bf16.mxu0 0
        %2807 = vmatmul.mubr.bf16.gmra.mxu0 %v2713
        %v2808 = vpop.f32.mrf.mxu0
        %v2809 = vadd.f32 0.0, %v2808
        %v2810 = vpop.f32.mrf.mxu0
        %v2811 = vpop.f32.mrf.mxu0
        %v2812 = vadd.f32 0.0, %v2811
        %v2813 = vpop.f32.mrf.mxu0
        %2814 = vmatprep.mubr.bf16.mxu0 0
        %2815 = vmatmul.mubr.bf16.gmra.mxu0 %v2714
        %v2816 = vpop.f32.mrf.mxu0
        %v2817 = vadd.f32 0.0, %v2816
        %v2818 = vpop.f32.mrf.mxu0
        %v2819 = vpop.f32.mrf.mxu0
        %v2820 = vadd.f32 0.0, %v2819
        %v2821 = vpop.f32.mrf.mxu0
        %2822 = vmatprep.mubr.bf16.mxu0 0
        %2823 = vmatmul.mubr.bf16.gmra.mxu0 %v2715
        %v2824 = vpop.f32.mrf.mxu0
        %v2825 = vadd.f32 0.0, %v2824
        %v2826 = vpop.f32.mrf.mxu0
        %v2827 = vpop.f32.mrf.mxu0
        %v2828 = vadd.f32 0.0, %v2827
        %v2829 = vpop.f32.mrf.mxu0
        %2830 = vmatprep.mubr.bf16.mxu0 0
        %2831 = vmatmul.mubr.bf16.gmra.mxu0 %v2716
        %v2832 = vpop.f32.mrf.mxu0
        %v2833 = vadd.f32 0.0, %v2832
        %v2834 = vpop.f32.mrf.mxu0
        %v2835 = vpop.f32.mrf.mxu0
        %v2836 = vadd.f32 0.0, %v2835
        %v2837 = vpop.f32.mrf.mxu0
        %2838 = vmatprep.mubr.bf16.mxu0 0
        %2839 = vmatmul.mubr.bf16.gmra.mxu0 %v2717
        %v2840 = vpop.f32.mrf.mxu0
        %v2841 = vadd.f32 0.0, %v2840
        %v2842 = vpop.f32.mrf.mxu0
        %v2843 = vpop.f32.mrf.mxu0
        %v2844 = vadd.f32 0.0, %v2843
        %v2845 = vpop.f32.mrf.mxu0
        %2846 = vdwg.mxu0
        %v2847 = vpack.c.bf16 %v2788, %v2785
        %v2848 = vpack.c.bf16 %v2796, %v2793
        %v2849 = vpack.c.bf16 %v2804, %v2801
        %v2850 = vpack.c.bf16 %v2812, %v2809
        %v2851 = vpack.c.bf16 %v2820, %v2817
        %v2852 = vpack.c.bf16 %v2828, %v2825
        %v2853 = vpack.c.bf16 %v2836, %v2833
        %v2854 = vpack.c.bf16 %v2844, %v2841
        %v2859 = vunpack.c.l.b16 %v1509
        %v2860 = vunpack.c.l.b16 %v1510
        %v2861 = vunpack.c.l.b16 %v1511
        %v2862 = vunpack.c.l.b16 %v1512
        %v2863 = vpack.c.b16 %v2860, %v2859
        %v2864 = vpack.c.b16 %v2862, %v2861
        %v2868 = vsel %vm1821, %v2847, 0
        %v2871 = vsel %vm1821, %v2848, 0
        %v2874 = vsel %vm1821, %v2849, 0
        %v2877 = vsel %vm1821, %v2850, 0
        %v2880 = vsel %vm1821, %v2851, 0
        %v2883 = vsel %vm1821, %v2852, 0
        %v2886 = vsel %vm1821, %v2853, 0
        %v2889 = vsel %vm1821, %v2854, 0
        %2891 = vmatprep.subr.bf16.mxu0 0
        %2892 = vmatpush1.bf16.msra.mxu0 0
        %2893 = vmatprep.subr.bf16.mxu0 0
        %2894 = vmatpush1.bf16.msra.mxu0 0
        %2895 = vmatprep.subr.bf16.mxu0 0
        %2896 = vmatpush1.bf16.msra.mxu0 0
        %2897 = vmatprep.subr.bf16.mxu0 0
        %2898 = vmatpush1.bf16.msra.mxu0 0
        %2899 = vmatprep.subr.bf16.mxu0 0
        %2900 = vmatpush1.bf16.msra.mxu0 0
        %2901 = vmatprep.subr.bf16.mxu0 0
        %2902 = vmatpush1.bf16.msra.mxu0 0
        %2903 = vmatprep.subr.bf16.mxu0 0
        %2904 = vmatpush1.bf16.msra.mxu0 %v2864
        %2905 = vmatprep.subr.bf16.mxu0 0
        %2906 = vmatpush1.bf16.msra.mxu0 %v2863
        %2907 = vmatprep.subr.bf16.mxu0 0
        %2908 = vmatpush2.bf16.msra.mxu0 0
        %2909 = vmatprep.subr.bf16.mxu0 0
        %2910 = vmatpush2.bf16.msra.mxu0 0
        %2911 = vmatprep.subr.bf16.mxu0 0
        %2912 = vmatpush2.bf16.msra.mxu0 0
        %2913 = vmatprep.subr.bf16.mxu0 0
        %2914 = vmatpush2.bf16.msra.mxu0 0
        %2915 = vmatprep.subr.bf16.mxu0 0
        %2916 = vmatpush2.bf16.msra.mxu0 0
        %2917 = vmatprep.subr.bf16.mxu0 0
        %2918 = vmatpush2.bf16.msra.mxu0 0
        %2919 = vmatprep.subr.bf16.mxu0 0
        %2920 = vmatpush2.bf16.msra.mxu0 0
        %2921 = vmatprep.subr.bf16.mxu0 0
        %2922 = vmatpush2.bf16.msra.mxu0 0
        %2923 = vmatprep.mubr.bf16.mxu0 0
        %2924 = vmatmul.mubr.bf16.gmra.mxu0 %v2868
        %v2925 = vpop.f32.mrf.mxu0
        %v2926 = vadd.f32 0.0, %v2925
        %v2927 = vpop.f32.mrf.mxu0
        %v2928 = vpop.f32.mrf.mxu0
        %v2929 = vadd.f32 0.0, %v2928
        %v2930 = vpop.f32.mrf.mxu0
        %2931 = vmatprep.mubr.bf16.mxu0 0
        %2932 = vmatmul.mubr.bf16.gmra.mxu0 %v2871
        %v2933 = vpop.f32.mrf.mxu0
        %v2934 = vadd.f32 0.0, %v2933
        %v2935 = vpop.f32.mrf.mxu0
        %v2936 = vpop.f32.mrf.mxu0
        %v2937 = vadd.f32 0.0, %v2936
        %v2938 = vpop.f32.mrf.mxu0
        %2939 = vmatprep.mubr.bf16.mxu0 0
        %2940 = vmatmul.mubr.bf16.gmra.mxu0 %v2874
        %v2941 = vpop.f32.mrf.mxu0
        %v2942 = vadd.f32 0.0, %v2941
        %v2943 = vpop.f32.mrf.mxu0
        %v2944 = vpop.f32.mrf.mxu0
        %v2945 = vadd.f32 0.0, %v2944
        %v2946 = vpop.f32.mrf.mxu0
        %2947 = vmatprep.mubr.bf16.mxu0 0
        %2948 = vmatmul.mubr.bf16.gmra.mxu0 %v2877
        %v2949 = vpop.f32.mrf.mxu0
        %v2950 = vadd.f32 0.0, %v2949
        %v2951 = vpop.f32.mrf.mxu0
        %v2952 = vpop.f32.mrf.mxu0
        %v2953 = vadd.f32 0.0, %v2952
        %v2954 = vpop.f32.mrf.mxu0
        %2955 = vmatprep.mubr.bf16.mxu0 0
        %2956 = vmatmul.mubr.bf16.gmra.mxu0 %v2880
        %v2957 = vpop.f32.mrf.mxu0
        %v2958 = vadd.f32 0.0, %v2957
        %v2959 = vpop.f32.mrf.mxu0
        %v2960 = vpop.f32.mrf.mxu0
        %v2961 = vadd.f32 0.0, %v2960
        %v2962 = vpop.f32.mrf.mxu0
        %2963 = vmatprep.mubr.bf16.mxu0 0
        %2964 = vmatmul.mubr.bf16.gmra.mxu0 %v2883
        %v2965 = vpop.f32.mrf.mxu0
        %v2966 = vadd.f32 0.0, %v2965
        %v2967 = vpop.f32.mrf.mxu0
        %v2968 = vpop.f32.mrf.mxu0
        %v2969 = vadd.f32 0.0, %v2968
        %v2970 = vpop.f32.mrf.mxu0
        %2971 = vmatprep.mubr.bf16.mxu0 0
        %2972 = vmatmul.mubr.bf16.gmra.mxu0 %v2886
        %v2973 = vpop.f32.mrf.mxu0
        %v2974 = vadd.f32 0.0, %v2973
        %v2975 = vpop.f32.mrf.mxu0
        %v2976 = vpop.f32.mrf.mxu0
        %v2977 = vadd.f32 0.0, %v2976
        %v2978 = vpop.f32.mrf.mxu0
        %2979 = vmatprep.mubr.bf16.mxu0 0
        %2980 = vmatmul.mubr.bf16.gmra.mxu0 %v2889
        %v2981 = vpop.f32.mrf.mxu0
        %v2982 = vadd.f32 0.0, %v2981
        %v2983 = vpop.f32.mrf.mxu0
        %v2984 = vpop.f32.mrf.mxu0
        %v2985 = vadd.f32 0.0, %v2984
        %v2986 = vpop.f32.mrf.mxu0
        %2987 = vdwg.mxu0
        %v2988 = vadd.f32 %v2357, %v2926
        %v2989 = vadd.f32 %v2358, %v2929
        %v2990 = vadd.f32 %v2359, %v2934
        %v2991 = vadd.f32 %v2360, %v2937
        %v2992 = vadd.f32 %v2361, %v2942
        %v2993 = vadd.f32 %v2362, %v2945
        %v2994 = vadd.f32 %v2363, %v2950
        %v2995 = vadd.f32 %v2364, %v2953
        %v2996 = vadd.f32 %v2365, %v2958
        %v2997 = vadd.f32 %v2366, %v2961
        %v2998 = vadd.f32 %v2367, %v2966
        %v2999 = vadd.f32 %v2368, %v2969
        %v3000 = vadd.f32 %v2369, %v2974
        %v3001 = vadd.f32 %v2370, %v2977
        %v3002 = vadd.f32 %v2371, %v2982
        %v3003 = vadd.f32 %v2372, %v2985
        %3004 = vrot.lane.b32.xlu0 %v1665, 64
        %v3005 = vpop.permute.xlu0 %3004
        %3006 = vrot.lane.b32.xlu0 %v1666, 64
        %v3007 = vpop.permute.xlu0 %3006
        %3008 = vrot.lane.b32.xlu0 %v1667, 64
        %v3009 = vpop.permute.xlu0 %3008
        %3010 = vrot.lane.b32.xlu0 %v1668, 64
        %v3011 = vpop.permute.xlu0 %3010
        %3012 = vrot.lane.b32.xlu0 %v1669, 64
        %v3013 = vpop.permute.xlu0 %3012
        %3014 = vrot.lane.b32.xlu0 %v1670, 64
        %v3015 = vpop.permute.xlu0 %3014
        %3016 = vrot.lane.b32.xlu0 %v1671, 64
        %v3017 = vpop.permute.xlu0 %3016
        %3018 = vrot.lane.b32.xlu0 %v1672, 64
        %v3019 = vpop.permute.xlu0 %3018
        %3020 = vrot.lane.b32.xlu0 %v1801, 64
        %v3021 = vpop.permute.xlu0 %3020
        %3022 = vrot.lane.b32.xlu0 %v1802, 64
        %v3023 = vpop.permute.xlu0 %3022
        %3024 = vrot.lane.b32.xlu0 %v1803, 64
        %v3025 = vpop.permute.xlu0 %3024
        %3026 = vrot.lane.b32.xlu0 %v1804, 64
        %v3027 = vpop.permute.xlu0 %3026
        %3028 = vrot.lane.b32.xlu0 %v1805, 64
        %v3029 = vpop.permute.xlu0 %3028
        %3030 = vrot.lane.b32.xlu0 %v1806, 64
        %v3031 = vpop.permute.xlu0 %3030
        %3032 = vrot.lane.b32.xlu0 %v1807, 64
        %v3033 = vpop.permute.xlu0 %3032
        %3034 = vrot.lane.b32.xlu0 %v1808, 64
        %v3035 = vpop.permute.xlu0 %3034
        %v3037 = vsel %vm1821, %v3005, 0
        %v3040 = vsel %vm1821, %v3007, 0
        %v3043 = vsel %vm1821, %v3009, 0
        %v3046 = vsel %vm1821, %v3011, 0
        %v3049 = vsel %vm1821, %v3013, 0
        %v3052 = vsel %vm1821, %v3015, 0
        %v3055 = vsel %vm1821, %v3017, 0
        %v3058 = vsel %vm1821, %v3019, 0
        %v3061 = vsel %vm1821, %v3021, 0
        %v3064 = vsel %vm1821, %v3023, 0
        %v3067 = vsel %vm1821, %v3025, 0
        %v3070 = vsel %vm1821, %v3027, 0
        %v3073 = vsel %vm1821, %v3029, 0
        %v3076 = vsel %vm1821, %v3031, 0
        %v3079 = vsel %vm1821, %v3033, 0
        %v3082 = vsel %vm1821, %v3035, 0
        %3084 = vmatprep.subr.bf16.mxu0 0
        %3085 = vmatpush1.bf16.xpose.msra.mxu0 %v3082
        %3086 = vmatprep.subr.bf16.mxu0 0
        %3087 = vmatpush1.bf16.xpose.msra.mxu0 %v3079
        %3088 = vmatprep.subr.bf16.mxu0 0
        %3089 = vmatpush1.bf16.xpose.msra.mxu0 %v3076
        %3090 = vmatprep.subr.bf16.mxu0 0
        %3091 = vmatpush1.bf16.xpose.msra.mxu0 %v3073
        %3092 = vmatprep.subr.bf16.mxu0 0
        %3093 = vmatpush1.bf16.xpose.msra.mxu0 %v3070
        %3094 = vmatprep.subr.bf16.mxu0 0
        %3095 = vmatpush1.bf16.xpose.msra.mxu0 %v3067
        %3096 = vmatprep.subr.bf16.mxu0 0
        %3097 = vmatpush1.bf16.xpose.msra.mxu0 %v3064
        %3098 = vmatprep.subr.bf16.mxu0 0
        %3099 = vmatpush1.bf16.xpose.msra.mxu0 %v3061
        %3100 = vmatprep.subr.bf16.mxu0 0
        %3101 = vmatpush2.bf16.xpose.msra.mxu0 0
        %3102 = vmatprep.subr.bf16.mxu0 0
        %3103 = vmatpush2.bf16.xpose.msra.mxu0 0
        %3104 = vmatprep.subr.bf16.mxu0 0
        %3105 = vmatpush2.bf16.xpose.msra.mxu0 0
        %3106 = vmatprep.subr.bf16.mxu0 0
        %3107 = vmatpush2.bf16.xpose.msra.mxu0 0
        %3108 = vmatprep.subr.bf16.mxu0 0
        %3109 = vmatpush2.bf16.xpose.msra.mxu0 0
        %3110 = vmatprep.subr.bf16.mxu0 0
        %3111 = vmatpush2.bf16.xpose.msra.mxu0 0
        %3112 = vmatprep.subr.bf16.mxu0 0
        %3113 = vmatpush2.bf16.xpose.msra.mxu0 0
        %3114 = vmatprep.subr.bf16.mxu0 0
        %3115 = vmatpush2.bf16.xpose.msra.mxu0 0
        %3116 = vmatprep.mubr.bf16.mxu0 0
        %3117 = vmatmul.mubr.bf16.gmra.mxu0 %v3037
        %v3118 = vpop.f32.mrf.mxu0
        %v3119 = vadd.f32 %v1820, %v3118
        %v3120 = vpop.f32.mrf.mxu0
        %v3121 = vpop.f32.mrf.mxu0
        %v3122 = vadd.f32 %v1820, %v3121
        %v3123 = vpop.f32.mrf.mxu0
        %3124 = vmatprep.mubr.bf16.mxu0 0
        %3125 = vmatmul.mubr.bf16.gmra.mxu0 %v3040
        %v3126 = vpop.f32.mrf.mxu0
        %v3127 = vadd.f32 %v1820, %v3126
        %v3128 = vpop.f32.mrf.mxu0
        %v3129 = vpop.f32.mrf.mxu0
        %v3130 = vadd.f32 %v1820, %v3129
        %v3131 = vpop.f32.mrf.mxu0
        %3132 = vmatprep.mubr.bf16.mxu0 0
        %3133 = vmatmul.mubr.bf16.gmra.mxu0 %v3043
        %v3134 = vpop.f32.mrf.mxu0
        %v3135 = vadd.f32 %v1820, %v3134
        %v3136 = vpop.f32.mrf.mxu0
        %v3137 = vpop.f32.mrf.mxu0
        %v3138 = vadd.f32 %v1820, %v3137
        %v3139 = vpop.f32.mrf.mxu0
        %3140 = vmatprep.mubr.bf16.mxu0 0
        %3141 = vmatmul.mubr.bf16.gmra.mxu0 %v3046
        %v3142 = vpop.f32.mrf.mxu0
        %v3143 = vadd.f32 %v1820, %v3142
        %v3144 = vpop.f32.mrf.mxu0
        %v3145 = vpop.f32.mrf.mxu0
        %v3146 = vadd.f32 %v1820, %v3145
        %v3147 = vpop.f32.mrf.mxu0
        %3148 = vmatprep.mubr.bf16.mxu0 0
        %3149 = vmatmul.mubr.bf16.gmra.mxu0 %v3049
        %v3150 = vpop.f32.mrf.mxu0
        %v3151 = vadd.f32 %v1820, %v3150
        %v3152 = vpop.f32.mrf.mxu0
        %v3153 = vpop.f32.mrf.mxu0
        %v3154 = vadd.f32 %v1820, %v3153
        %v3155 = vpop.f32.mrf.mxu0
        %3156 = vmatprep.mubr.bf16.mxu0 0
        %3157 = vmatmul.mubr.bf16.gmra.mxu0 %v3052
        %v3158 = vpop.f32.mrf.mxu0
        %v3159 = vadd.f32 %v1820, %v3158
        %v3160 = vpop.f32.mrf.mxu0
        %v3161 = vpop.f32.mrf.mxu0
        %v3162 = vadd.f32 %v1820, %v3161
        %v3163 = vpop.f32.mrf.mxu0
        %3164 = vmatprep.mubr.bf16.mxu0 0
        %3165 = vmatmul.mubr.bf16.gmra.mxu0 %v3055
        %v3166 = vpop.f32.mrf.mxu0
        %v3167 = vadd.f32 %v1820, %v3166
        %v3168 = vpop.f32.mrf.mxu0
        %v3169 = vpop.f32.mrf.mxu0
        %v3170 = vadd.f32 %v1820, %v3169
        %v3171 = vpop.f32.mrf.mxu0
        %3172 = vmatprep.mubr.bf16.mxu0 0
        %3173 = vmatmul.mubr.bf16.gmra.mxu0 %v3058
        %v3174 = vpop.f32.mrf.mxu0
        %v3175 = vadd.f32 %v1820, %v3174
        %v3176 = vpop.f32.mrf.mxu0
        %v3177 = vpop.f32.mrf.mxu0
        %v3178 = vadd.f32 %v1820, %v3177
        %v3179 = vpop.f32.mrf.mxu0
        %3180 = vdwg.mxu0
        %3181 = vmax.xlane.f32.xlu0 %v3119
        %v3182 = vpop.xlane.xlu0 %3181
        %3183 = vmax.xlane.f32.xlu0 %v3122
        %v3184 = vpop.xlane.xlu0 %3183
        %3185 = vmax.xlane.f32.xlu0 %v3127
        %v3186 = vpop.xlane.xlu0 %3185
        %3187 = vmax.xlane.f32.xlu0 %v3130
        %v3188 = vpop.xlane.xlu0 %3187
        %3189 = vmax.xlane.f32.xlu0 %v3135
        %v3190 = vpop.xlane.xlu0 %3189
        %3191 = vmax.xlane.f32.xlu0 %v3138
        %v3192 = vpop.xlane.xlu0 %3191
        %3193 = vmax.xlane.f32.xlu0 %v3143
        %v3194 = vpop.xlane.xlu0 %3193
        %3195 = vmax.xlane.f32.xlu0 %v3146
        %v3196 = vpop.xlane.xlu0 %3195
        %3197 = vmax.xlane.f32.xlu0 %v3151
        %v3198 = vpop.xlane.xlu0 %3197
        %3199 = vmax.xlane.f32.xlu0 %v3154
        %v3200 = vpop.xlane.xlu0 %3199
        %3201 = vmax.xlane.f32.xlu0 %v3159
        %v3202 = vpop.xlane.xlu0 %3201
        %3203 = vmax.xlane.f32.xlu0 %v3162
        %v3204 = vpop.xlane.xlu0 %3203
        %3205 = vmax.xlane.f32.xlu0 %v3167
        %v3206 = vpop.xlane.xlu0 %3205
        %3207 = vmax.xlane.f32.xlu0 %v3170
        %v3208 = vpop.xlane.xlu0 %3207
        %3209 = vmax.xlane.f32.xlu0 %v3175
        %v3210 = vpop.xlane.xlu0 %3209
        %3211 = vmax.xlane.f32.xlu0 %v3178
        %v3212 = vpop.xlane.xlu0 %3211
        %v3213 = vsub.f32 %v3119, %v3182
        %v3214 = vsub.f32 %v3122, %v3184
        %v3215 = vsub.f32 %v3127, %v3186
        %v3216 = vsub.f32 %v3130, %v3188
        %v3217 = vsub.f32 %v3135, %v3190
        %v3218 = vsub.f32 %v3138, %v3192
        %v3219 = vsub.f32 %v3143, %v3194
        %v3220 = vsub.f32 %v3146, %v3196
        %v3221 = vsub.f32 %v3151, %v3198
        %v3222 = vsub.f32 %v3154, %v3200
        %v3223 = vsub.f32 %v3159, %v3202
        %v3224 = vsub.f32 %v3162, %v3204
        %v3225 = vsub.f32 %v3167, %v3206
        %v3226 = vsub.f32 %v3170, %v3208
        %v3227 = vsub.f32 %v3175, %v3210
        %v3228 = vsub.f32 %v3178, %v3212
        %v3229 = vmul.f32 %v3213, 1.442695
        %v3230 = vpow.pop %v3229
        %v3231 = vmul.f32 %v3214, 1.442695
        %v3232 = vpow.pop %v3231
        %v3233 = vmul.f32 %v3215, 1.442695
        %v3234 = vpow.pop %v3233
        %v3235 = vmul.f32 %v3216, 1.442695
        %v3236 = vpow.pop %v3235
        %v3237 = vmul.f32 %v3217, 1.442695
        %v3238 = vpow.pop %v3237
        %v3239 = vmul.f32 %v3218, 1.442695
        %v3240 = vpow.pop %v3239
        %v3241 = vmul.f32 %v3219, 1.442695
        %v3242 = vpow.pop %v3241
        %v3243 = vmul.f32 %v3220, 1.442695
        %v3244 = vpow.pop %v3243
        %v3245 = vmul.f32 %v3221, 1.442695
        %v3246 = vpow.pop %v3245
        %v3247 = vmul.f32 %v3222, 1.442695
        %v3248 = vpow.pop %v3247
        %v3249 = vmul.f32 %v3223, 1.442695
        %v3250 = vpow.pop %v3249
        %v3251 = vmul.f32 %v3224, 1.442695
        %v3252 = vpow.pop %v3251
        %v3253 = vmul.f32 %v3225, 1.442695
        %v3254 = vpow.pop %v3253
        %v3255 = vmul.f32 %v3226, 1.442695
        %v3256 = vpow.pop %v3255
        %v3257 = vmul.f32 %v3227, 1.442695
        %v3258 = vpow.pop %v3257
        %v3259 = vmul.f32 %v3228, 1.442695
        %v3260 = vpow.pop %v3259
        %3261 = vadd.xlane.f32.xlu0 %v3230
        %v3262 = vpop.xlane.xlu0 %3261
        %3263 = vadd.xlane.f32.xlu0 %v3232
        %v3264 = vpop.xlane.xlu0 %3263
        %3265 = vadd.xlane.f32.xlu0 %v3234
        %v3266 = vpop.xlane.xlu0 %3265
        %3267 = vadd.xlane.f32.xlu0 %v3236
        %v3268 = vpop.xlane.xlu0 %3267
        %3269 = vadd.xlane.f32.xlu0 %v3238
        %v3270 = vpop.xlane.xlu0 %3269
        %3271 = vadd.xlane.f32.xlu0 %v3240
        %v3272 = vpop.xlane.xlu0 %3271
        %3273 = vadd.xlane.f32.xlu0 %v3242
        %v3274 = vpop.xlane.xlu0 %3273
        %3275 = vadd.xlane.f32.xlu0 %v3244
        %v3276 = vpop.xlane.xlu0 %3275
        %3277 = vadd.xlane.f32.xlu0 %v3246
        %v3278 = vpop.xlane.xlu0 %3277
        %3279 = vadd.xlane.f32.xlu0 %v3248
        %v3280 = vpop.xlane.xlu0 %3279
        %3281 = vadd.xlane.f32.xlu0 %v3250
        %v3282 = vpop.xlane.xlu0 %3281
        %3283 = vadd.xlane.f32.xlu0 %v3252
        %v3284 = vpop.xlane.xlu0 %3283
        %3285 = vadd.xlane.f32.xlu0 %v3254
        %v3286 = vpop.xlane.xlu0 %3285
        %3287 = vadd.xlane.f32.xlu0 %v3256
        %v3288 = vpop.xlane.xlu0 %3287
        %3289 = vadd.xlane.f32.xlu0 %v3258
        %v3290 = vpop.xlane.xlu0 %3289
        %3291 = vadd.xlane.f32.xlu0 %v3260
        %v3292 = vpop.xlane.xlu0 %3291
        %v3293 = vrcp.pop %v3262
        %v3294 = vrcp.pop %v3264
        %v3295 = vrcp.pop %v3266
        %v3296 = vrcp.pop %v3268
        %v3297 = vrcp.pop %v3270
        %v3298 = vrcp.pop %v3272
        %v3299 = vrcp.pop %v3274
        %v3300 = vrcp.pop %v3276
        %v3301 = vrcp.pop %v3278
        %v3302 = vrcp.pop %v3280
        %v3303 = vrcp.pop %v3282
        %v3304 = vrcp.pop %v3284
        %v3305 = vrcp.pop %v3286
        %v3306 = vrcp.pop %v3288
        %v3307 = vrcp.pop %v3290
        %v3308 = vrcp.pop %v3292
        %v3309 = vmul.f32 %v3230, %v3293
        %v3310 = vmul.f32 %v3232, %v3294
        %v3311 = vmul.f32 %v3234, %v3295
        %v3312 = vmul.f32 %v3236, %v3296
        %v3313 = vmul.f32 %v3238, %v3297
        %v3314 = vmul.f32 %v3240, %v3298
        %v3315 = vmul.f32 %v3242, %v3299
        %v3316 = vmul.f32 %v3244, %v3300
        %v3317 = vmul.f32 %v3246, %v3301
        %v3318 = vmul.f32 %v3248, %v3302
        %v3319 = vmul.f32 %v3250, %v3303
        %v3320 = vmul.f32 %v3252, %v3304
        %v3321 = vmul.f32 %v3254, %v3305
        %v3322 = vmul.f32 %v3256, %v3306
        %v3323 = vmul.f32 %v3258, %v3307
        %v3324 = vmul.f32 %v3260, %v3308
        %v3325 = vpack.c.bf16 %v3310, %v3309
        %v3326 = vpack.c.bf16 %v3312, %v3311
        %v3327 = vpack.c.bf16 %v3314, %v3313
        %v3328 = vpack.c.bf16 %v3316, %v3315
        %v3329 = vpack.c.bf16 %v3318, %v3317
        %v3330 = vpack.c.bf16 %v3320, %v3319
        %v3331 = vpack.c.bf16 %v3322, %v3321
        %v3332 = vpack.c.bf16 %v3324, %v3323
        %3333 = vrot.lane.b32.xlu0 %v1809, 64
        %v3334 = vpop.permute.xlu0 %3333
        %3335 = vrot.lane.b32.xlu0 %v1810, 64
        %v3336 = vpop.permute.xlu0 %3335
        %3337 = vrot.lane.b32.xlu0 %v1811, 64
        %v3338 = vpop.permute.xlu0 %3337
        %3339 = vrot.lane.b32.xlu0 %v1812, 64
        %v3340 = vpop.permute.xlu0 %3339
        %3341 = vrot.lane.b32.xlu0 %v1813, 64
        %v3342 = vpop.permute.xlu0 %3341
        %3343 = vrot.lane.b32.xlu0 %v1814, 64
        %v3344 = vpop.permute.xlu0 %3343
        %3345 = vrot.lane.b32.xlu0 %v1815, 64
        %v3346 = vpop.permute.xlu0 %3345
        %3347 = vrot.lane.b32.xlu0 %v1816, 64
        %v3348 = vpop.permute.xlu0 %3347
        %3357 = vmatprep.subr.bf16.mxu0 0
        %3358 = vmatpush1.bf16.msra.mxu0 %v3348
        %3359 = vmatprep.subr.bf16.mxu0 0
        %3360 = vmatpush1.bf16.msra.mxu0 %v3346
        %3361 = vmatprep.subr.bf16.mxu0 0
        %3362 = vmatpush1.bf16.msra.mxu0 %v3344
        %3363 = vmatprep.subr.bf16.mxu0 0
        %3364 = vmatpush1.bf16.msra.mxu0 %v3342
        %3365 = vmatprep.subr.bf16.mxu0 0
        %3366 = vmatpush1.bf16.msra.mxu0 %v3340
        %3367 = vmatprep.subr.bf16.mxu0 0
        %3368 = vmatpush1.bf16.msra.mxu0 %v3338
        %3369 = vmatprep.subr.bf16.mxu0 0
        %3370 = vmatpush1.bf16.msra.mxu0 %v3336
        %3371 = vmatprep.subr.bf16.mxu0 0
        %3372 = vmatpush1.bf16.msra.mxu0 %v3334
        %3373 = vmatprep.subr.bf16.mxu0 0
        %3374 = vmatpush2.bf16.msra.mxu0 0
        %3375 = vmatprep.subr.bf16.mxu0 0
        %3376 = vmatpush2.bf16.msra.mxu0 0
        %3377 = vmatprep.subr.bf16.mxu0 0
        %3378 = vmatpush2.bf16.msra.mxu0 0
        %3379 = vmatprep.subr.bf16.mxu0 0
        %3380 = vmatpush2.bf16.msra.mxu0 0
        %3381 = vmatprep.subr.bf16.mxu0 0
        %3382 = vmatpush2.bf16.msra.mxu0 0
        %3383 = vmatprep.subr.bf16.mxu0 0
        %3384 = vmatpush2.bf16.msra.mxu0 0
        %3385 = vmatprep.subr.bf16.mxu0 0
        %3386 = vmatpush2.bf16.msra.mxu0 0
        %3387 = vmatprep.subr.bf16.mxu0 0
        %3388 = vmatpush2.bf16.msra.mxu0 0
        %3389 = vmatprep.mubr.bf16.mxu0 0
        %3390 = vmatmul.mubr.bf16.gmra.mxu0 %v3325
        %v3391 = vpop.f32.mrf.mxu0
        %v3392 = vadd.f32 0.0, %v3391
        %v3393 = vpop.f32.mrf.mxu0
        %v3394 = vpop.f32.mrf.mxu0
        %v3395 = vadd.f32 0.0, %v3394
        %v3396 = vpop.f32.mrf.mxu0
        %3397 = vmatprep.mubr.bf16.mxu0 0
        %3398 = vmatmul.mubr.bf16.gmra.mxu0 %v3326
        %v3399 = vpop.f32.mrf.mxu0
        %v3400 = vadd.f32 0.0, %v3399
        %v3401 = vpop.f32.mrf.mxu0
        %v3402 = vpop.f32.mrf.mxu0
        %v3403 = vadd.f32 0.0, %v3402
        %v3404 = vpop.f32.mrf.mxu0
        %3405 = vmatprep.mubr.bf16.mxu0 0
        %3406 = vmatmul.mubr.bf16.gmra.mxu0 %v3327
        %v3407 = vpop.f32.mrf.mxu0
        %v3408 = vadd.f32 0.0, %v3407
        %v3409 = vpop.f32.mrf.mxu0
        %v3410 = vpop.f32.mrf.mxu0
        %v3411 = vadd.f32 0.0, %v3410
        %v3412 = vpop.f32.mrf.mxu0
        %3413 = vmatprep.mubr.bf16.mxu0 0
        %3414 = vmatmul.mubr.bf16.gmra.mxu0 %v3328
        %v3415 = vpop.f32.mrf.mxu0
        %v3416 = vadd.f32 0.0, %v3415
        %v3417 = vpop.f32.mrf.mxu0
        %v3418 = vpop.f32.mrf.mxu0
        %v3419 = vadd.f32 0.0, %v3418
        %v3420 = vpop.f32.mrf.mxu0
        %3421 = vmatprep.mubr.bf16.mxu0 0
        %3422 = vmatmul.mubr.bf16.gmra.mxu0 %v3329
        %v3423 = vpop.f32.mrf.mxu0
        %v3424 = vadd.f32 0.0, %v3423
        %v3425 = vpop.f32.mrf.mxu0
        %v3426 = vpop.f32.mrf.mxu0
        %v3427 = vadd.f32 0.0, %v3426
        %v3428 = vpop.f32.mrf.mxu0
        %3429 = vmatprep.mubr.bf16.mxu0 0
        %3430 = vmatmul.mubr.bf16.gmra.mxu0 %v3330
        %v3431 = vpop.f32.mrf.mxu0
        %v3432 = vadd.f32 0.0, %v3431
        %v3433 = vpop.f32.mrf.mxu0
        %v3434 = vpop.f32.mrf.mxu0
        %v3435 = vadd.f32 0.0, %v3434
        %v3436 = vpop.f32.mrf.mxu0
        %3437 = vmatprep.mubr.bf16.mxu0 0
        %3438 = vmatmul.mubr.bf16.gmra.mxu0 %v3331
        %v3439 = vpop.f32.mrf.mxu0
        %v3440 = vadd.f32 0.0, %v3439
        %v3441 = vpop.f32.mrf.mxu0
        %v3442 = vpop.f32.mrf.mxu0
        %v3443 = vadd.f32 0.0, %v3442
        %v3444 = vpop.f32.mrf.mxu0
        %3445 = vmatprep.mubr.bf16.mxu0 0
        %3446 = vmatmul.mubr.bf16.gmra.mxu0 %v3332
        %v3447 = vpop.f32.mrf.mxu0
        %v3448 = vadd.f32 0.0, %v3447
        %v3449 = vpop.f32.mrf.mxu0
        %v3450 = vpop.f32.mrf.mxu0
        %v3451 = vadd.f32 0.0, %v3450
        %v3452 = vpop.f32.mrf.mxu0
        %3453 = vdwg.mxu0
        %v3454 = vpack.c.bf16 %v3395, %v3392
        %v3455 = vpack.c.bf16 %v3403, %v3400
        %v3456 = vpack.c.bf16 %v3411, %v3408
        %v3457 = vpack.c.bf16 %v3419, %v3416
        %v3458 = vpack.c.bf16 %v3427, %v3424
        %v3459 = vpack.c.bf16 %v3435, %v3432
        %v3460 = vpack.c.bf16 %v3443, %v3440
        %v3461 = vpack.c.bf16 %v3451, %v3448
        %v3466 = vunpack.c.l.b16 %v1513
        %v3467 = vunpack.c.l.b16 %v1514
        %v3468 = vunpack.c.l.b16 %v1515
        %v3469 = vunpack.c.l.b16 %v1516
        %v3470 = vpack.c.b16 %v3467, %v3466
        %v3471 = vpack.c.b16 %v3469, %v3468
        %v3475 = vsel %vm1821, %v3454, 0
        %v3478 = vsel %vm1821, %v3455, 0
        %v3481 = vsel %vm1821, %v3456, 0
        %v3484 = vsel %vm1821, %v3457, 0
        %v3487 = vsel %vm1821, %v3458, 0
        %v3490 = vsel %vm1821, %v3459, 0
        %v3493 = vsel %vm1821, %v3460, 0
        %v3496 = vsel %vm1821, %v3461, 0
        %3498 = vmatprep.subr.bf16.mxu0 0
        %3499 = vmatpush1.bf16.msra.mxu0 0
        %3500 = vmatprep.subr.bf16.mxu0 0
        %3501 = vmatpush1.bf16.msra.mxu0 0
        %3502 = vmatprep.subr.bf16.mxu0 0
        %3503 = vmatpush1.bf16.msra.mxu0 0
        %3504 = vmatprep.subr.bf16.mxu0 0
        %3505 = vmatpush1.bf16.msra.mxu0 0
        %3506 = vmatprep.subr.bf16.mxu0 0
        %3507 = vmatpush1.bf16.msra.mxu0 0
        %3508 = vmatprep.subr.bf16.mxu0 0
        %3509 = vmatpush1.bf16.msra.mxu0 0
        %3510 = vmatprep.subr.bf16.mxu0 0
        %3511 = vmatpush1.bf16.msra.mxu0 %v3471
        %3512 = vmatprep.subr.bf16.mxu0 0
        %3513 = vmatpush1.bf16.msra.mxu0 %v3470
        %3514 = vmatprep.subr.bf16.mxu0 0
        %3515 = vmatpush2.bf16.msra.mxu0 0
        %3516 = vmatprep.subr.bf16.mxu0 0
        %3517 = vmatpush2.bf16.msra.mxu0 0
        %3518 = vmatprep.subr.bf16.mxu0 0
        %3519 = vmatpush2.bf16.msra.mxu0 0
        %3520 = vmatprep.subr.bf16.mxu0 0
        %3521 = vmatpush2.bf16.msra.mxu0 0
        %3522 = vmatprep.subr.bf16.mxu0 0
        %3523 = vmatpush2.bf16.msra.mxu0 0
        %3524 = vmatprep.subr.bf16.mxu0 0
        %3525 = vmatpush2.bf16.msra.mxu0 0
        %3526 = vmatprep.subr.bf16.mxu0 0
        %3527 = vmatpush2.bf16.msra.mxu0 0
        %3528 = vmatprep.subr.bf16.mxu0 0
        %3529 = vmatpush2.bf16.msra.mxu0 0
        %3530 = vmatprep.mubr.bf16.mxu0 0
        %3531 = vmatmul.mubr.bf16.gmra.mxu0 %v3475
        %v3532 = vpop.f32.mrf.mxu0
        %v3533 = vadd.f32 0.0, %v3532
        %v3534 = vpop.f32.mrf.mxu0
        %v3535 = vpop.f32.mrf.mxu0
        %v3536 = vadd.f32 0.0, %v3535
        %v3537 = vpop.f32.mrf.mxu0
        %3538 = vmatprep.mubr.bf16.mxu0 0
        %3539 = vmatmul.mubr.bf16.gmra.mxu0 %v3478
        %v3540 = vpop.f32.mrf.mxu0
        %v3541 = vadd.f32 0.0, %v3540
        %v3542 = vpop.f32.mrf.mxu0
        %v3543 = vpop.f32.mrf.mxu0
        %v3544 = vadd.f32 0.0, %v3543
        %v3545 = vpop.f32.mrf.mxu0
        %3546 = vmatprep.mubr.bf16.mxu0 0
        %3547 = vmatmul.mubr.bf16.gmra.mxu0 %v3481
        %v3548 = vpop.f32.mrf.mxu0
        %v3549 = vadd.f32 0.0, %v3548
        %v3550 = vpop.f32.mrf.mxu0
        %v3551 = vpop.f32.mrf.mxu0
        %v3552 = vadd.f32 0.0, %v3551
        %v3553 = vpop.f32.mrf.mxu0
        %3554 = vmatprep.mubr.bf16.mxu0 0
        %3555 = vmatmul.mubr.bf16.gmra.mxu0 %v3484
        %v3556 = vpop.f32.mrf.mxu0
        %v3557 = vadd.f32 0.0, %v3556
        %v3558 = vpop.f32.mrf.mxu0
        %v3559 = vpop.f32.mrf.mxu0
        %v3560 = vadd.f32 0.0, %v3559
        %v3561 = vpop.f32.mrf.mxu0
        %3562 = vmatprep.mubr.bf16.mxu0 0
        %3563 = vmatmul.mubr.bf16.gmra.mxu0 %v3487
        %v3564 = vpop.f32.mrf.mxu0
        %v3565 = vadd.f32 0.0, %v3564
        %v3566 = vpop.f32.mrf.mxu0
        %v3567 = vpop.f32.mrf.mxu0
        %v3568 = vadd.f32 0.0, %v3567
        %v3569 = vpop.f32.mrf.mxu0
        %3570 = vmatprep.mubr.bf16.mxu0 0
        %3571 = vmatmul.mubr.bf16.gmra.mxu0 %v3490
        %v3572 = vpop.f32.mrf.mxu0
        %v3573 = vadd.f32 0.0, %v3572
        %v3574 = vpop.f32.mrf.mxu0
        %v3575 = vpop.f32.mrf.mxu0
        %v3576 = vadd.f32 0.0, %v3575
        %v3577 = vpop.f32.mrf.mxu0
        %3578 = vmatprep.mubr.bf16.mxu0 0
        %3579 = vmatmul.mubr.bf16.gmra.mxu0 %v3493
        %v3580 = vpop.f32.mrf.mxu0
        %v3581 = vadd.f32 0.0, %v3580
        %v3582 = vpop.f32.mrf.mxu0
        %v3583 = vpop.f32.mrf.mxu0
        %v3584 = vadd.f32 0.0, %v3583
        %v3585 = vpop.f32.mrf.mxu0
        %3586 = vmatprep.mubr.bf16.mxu0 0
        %3587 = vmatmul.mubr.bf16.gmra.mxu0 %v3496
        %v3588 = vpop.f32.mrf.mxu0
        %v3589 = vadd.f32 0.0, %v3588
        %v3590 = vpop.f32.mrf.mxu0
        %v3591 = vpop.f32.mrf.mxu0
        %v3592 = vadd.f32 0.0, %v3591
        %v3593 = vpop.f32.mrf.mxu0
        %3594 = vdwg.mxu0
        %v3595 = vadd.f32 %v2988, %v3533
        %v3596 = vadd.f32 %v2989, %v3536
        %v3597 = vadd.f32 %v2990, %v3541
        %v3598 = vadd.f32 %v2991, %v3544
        %v3599 = vadd.f32 %v2992, %v3549
        %v3600 = vadd.f32 %v2993, %v3552
        %v3601 = vadd.f32 %v2994, %v3557
        %v3602 = vadd.f32 %v2995, %v3560
        %v3603 = vadd.f32 %v2996, %v3565
        %v3604 = vadd.f32 %v2997, %v3568
        %v3605 = vadd.f32 %v2998, %v3573
        %v3606 = vadd.f32 %v2999, %v3576
        %v3607 = vadd.f32 %v3000, %v3581
        %v3608 = vadd.f32 %v3001, %v3584
        %v3609 = vadd.f32 %v3002, %v3589
        %v3610 = vadd.f32 %v3003, %v3592
        %3611 = vrot.lane.b32.xlu0 %v1665, 32
        %v3612 = vpop.permute.xlu0 %3611
        %3613 = vrot.lane.b32.xlu0 %v1666, 32
        %v3614 = vpop.permute.xlu0 %3613
        %3615 = vrot.lane.b32.xlu0 %v1667, 32
        %v3616 = vpop.permute.xlu0 %3615
        %3617 = vrot.lane.b32.xlu0 %v1668, 32
        %v3618 = vpop.permute.xlu0 %3617
        %3619 = vrot.lane.b32.xlu0 %v1669, 32
        %v3620 = vpop.permute.xlu0 %3619
        %3621 = vrot.lane.b32.xlu0 %v1670, 32
        %v3622 = vpop.permute.xlu0 %3621
        %3623 = vrot.lane.b32.xlu0 %v1671, 32
        %v3624 = vpop.permute.xlu0 %3623
        %3625 = vrot.lane.b32.xlu0 %v1672, 32
        %v3626 = vpop.permute.xlu0 %3625
        %3627 = vrot.lane.b32.xlu0 %v1801, 32
        %v3628 = vpop.permute.xlu0 %3627
        %3629 = vrot.lane.b32.xlu0 %v1802, 32
        %v3630 = vpop.permute.xlu0 %3629
        %3631 = vrot.lane.b32.xlu0 %v1803, 32
        %v3632 = vpop.permute.xlu0 %3631
        %3633 = vrot.lane.b32.xlu0 %v1804, 32
        %v3634 = vpop.permute.xlu0 %3633
        %3635 = vrot.lane.b32.xlu0 %v1805, 32
        %v3636 = vpop.permute.xlu0 %3635
        %3637 = vrot.lane.b32.xlu0 %v1806, 32
        %v3638 = vpop.permute.xlu0 %3637
        %3639 = vrot.lane.b32.xlu0 %v1807, 32
        %v3640 = vpop.permute.xlu0 %3639
        %3641 = vrot.lane.b32.xlu0 %v1808, 32
        %v3642 = vpop.permute.xlu0 %3641
        %v3644 = vsel %vm1821, %v3612, 0
        %v3647 = vsel %vm1821, %v3614, 0
        %v3650 = vsel %vm1821, %v3616, 0
        %v3653 = vsel %vm1821, %v3618, 0
        %v3656 = vsel %vm1821, %v3620, 0
        %v3659 = vsel %vm1821, %v3622, 0
        %v3662 = vsel %vm1821, %v3624, 0
        %v3665 = vsel %vm1821, %v3626, 0
        %v3668 = vsel %vm1821, %v3628, 0
        %v3671 = vsel %vm1821, %v3630, 0
        %v3674 = vsel %vm1821, %v3632, 0
        %v3677 = vsel %vm1821, %v3634, 0
        %v3680 = vsel %vm1821, %v3636, 0
        %v3683 = vsel %vm1821, %v3638, 0
        %v3686 = vsel %vm1821, %v3640, 0
        %v3689 = vsel %vm1821, %v3642, 0
        %3691 = vmatprep.subr.bf16.mxu0 0
        %3692 = vmatpush1.bf16.xpose.msra.mxu0 %v3689
        %3693 = vmatprep.subr.bf16.mxu0 0
        %3694 = vmatpush1.bf16.xpose.msra.mxu0 %v3686
        %3695 = vmatprep.subr.bf16.mxu0 0
        %3696 = vmatpush1.bf16.xpose.msra.mxu0 %v3683
        %3697 = vmatprep.subr.bf16.mxu0 0
        %3698 = vmatpush1.bf16.xpose.msra.mxu0 %v3680
        %3699 = vmatprep.subr.bf16.mxu0 0
        %3700 = vmatpush1.bf16.xpose.msra.mxu0 %v3677
        %3701 = vmatprep.subr.bf16.mxu0 0
        %3702 = vmatpush1.bf16.xpose.msra.mxu0 %v3674
        %3703 = vmatprep.subr.bf16.mxu0 0
        %3704 = vmatpush1.bf16.xpose.msra.mxu0 %v3671
        %3705 = vmatprep.subr.bf16.mxu0 0
        %3706 = vmatpush1.bf16.xpose.msra.mxu0 %v3668
        %3707 = vmatprep.subr.bf16.mxu0 0
        %3708 = vmatpush2.bf16.xpose.msra.mxu0 0
        %3709 = vmatprep.subr.bf16.mxu0 0
        %3710 = vmatpush2.bf16.xpose.msra.mxu0 0
        %3711 = vmatprep.subr.bf16.mxu0 0
        %3712 = vmatpush2.bf16.xpose.msra.mxu0 0
        %3713 = vmatprep.subr.bf16.mxu0 0
        %3714 = vmatpush2.bf16.xpose.msra.mxu0 0
        %3715 = vmatprep.subr.bf16.mxu0 0
        %3716 = vmatpush2.bf16.xpose.msra.mxu0 0
        %3717 = vmatprep.subr.bf16.mxu0 0
        %3718 = vmatpush2.bf16.xpose.msra.mxu0 0
        %3719 = vmatprep.subr.bf16.mxu0 0
        %3720 = vmatpush2.bf16.xpose.msra.mxu0 0
        %3721 = vmatprep.subr.bf16.mxu0 0
        %3722 = vmatpush2.bf16.xpose.msra.mxu0 0
        %3723 = vmatprep.mubr.bf16.mxu0 0
        %3724 = vmatmul.mubr.bf16.gmra.mxu0 %v3644
        %v3725 = vpop.f32.mrf.mxu0
        %v3726 = vadd.f32 %v1820, %v3725
        %v3727 = vpop.f32.mrf.mxu0
        %v3728 = vpop.f32.mrf.mxu0
        %v3729 = vadd.f32 %v1820, %v3728
        %v3730 = vpop.f32.mrf.mxu0
        %3731 = vmatprep.mubr.bf16.mxu0 0
        %3732 = vmatmul.mubr.bf16.gmra.mxu0 %v3647
        %v3733 = vpop.f32.mrf.mxu0
        %v3734 = vadd.f32 %v1820, %v3733
        %v3735 = vpop.f32.mrf.mxu0
        %v3736 = vpop.f32.mrf.mxu0
        %v3737 = vadd.f32 %v1820, %v3736
        %v3738 = vpop.f32.mrf.mxu0
        %3739 = vmatprep.mubr.bf16.mxu0 0
        %3740 = vmatmul.mubr.bf16.gmra.mxu0 %v3650
        %v3741 = vpop.f32.mrf.mxu0
        %v3742 = vadd.f32 %v1820, %v3741
        %v3743 = vpop.f32.mrf.mxu0
        %v3744 = vpop.f32.mrf.mxu0
        %v3745 = vadd.f32 %v1820, %v3744
        %v3746 = vpop.f32.mrf.mxu0
        %3747 = vmatprep.mubr.bf16.mxu0 0
        %3748 = vmatmul.mubr.bf16.gmra.mxu0 %v3653
        %v3749 = vpop.f32.mrf.mxu0
        %v3750 = vadd.f32 %v1820, %v3749
        %v3751 = vpop.f32.mrf.mxu0
        %v3752 = vpop.f32.mrf.mxu0
        %v3753 = vadd.f32 %v1820, %v3752
        %v3754 = vpop.f32.mrf.mxu0
        %3755 = vmatprep.mubr.bf16.mxu0 0
        %3756 = vmatmul.mubr.bf16.gmra.mxu0 %v3656
        %v3757 = vpop.f32.mrf.mxu0
        %v3758 = vadd.f32 %v1820, %v3757
        %v3759 = vpop.f32.mrf.mxu0
        %v3760 = vpop.f32.mrf.mxu0
        %v3761 = vadd.f32 %v1820, %v3760
        %v3762 = vpop.f32.mrf.mxu0
        %3763 = vmatprep.mubr.bf16.mxu0 0
        %3764 = vmatmul.mubr.bf16.gmra.mxu0 %v3659
        %v3765 = vpop.f32.mrf.mxu0
        %v3766 = vadd.f32 %v1820, %v3765
        %v3767 = vpop.f32.mrf.mxu0
        %v3768 = vpop.f32.mrf.mxu0
        %v3769 = vadd.f32 %v1820, %v3768
        %v3770 = vpop.f32.mrf.mxu0
        %3771 = vmatprep.mubr.bf16.mxu0 0
        %3772 = vmatmul.mubr.bf16.gmra.mxu0 %v3662
        %v3773 = vpop.f32.mrf.mxu0
        %v3774 = vadd.f32 %v1820, %v3773
        %v3775 = vpop.f32.mrf.mxu0
        %v3776 = vpop.f32.mrf.mxu0
        %v3777 = vadd.f32 %v1820, %v3776
        %v3778 = vpop.f32.mrf.mxu0
        %3779 = vmatprep.mubr.bf16.mxu0 0
        %3780 = vmatmul.mubr.bf16.gmra.mxu0 %v3665
        %v3781 = vpop.f32.mrf.mxu0
        %v3782 = vadd.f32 %v1820, %v3781
        %v3783 = vpop.f32.mrf.mxu0
        %v3784 = vpop.f32.mrf.mxu0
        %v3785 = vadd.f32 %v1820, %v3784
        %v3786 = vpop.f32.mrf.mxu0
        %3787 = vdwg.mxu0
        %3788 = vmax.xlane.f32.xlu0 %v3726
        %v3789 = vpop.xlane.xlu0 %3788
        %3790 = vmax.xlane.f32.xlu0 %v3729
        %v3791 = vpop.xlane.xlu0 %3790
        %3792 = vmax.xlane.f32.xlu0 %v3734
        %v3793 = vpop.xlane.xlu0 %3792
        %3794 = vmax.xlane.f32.xlu0 %v3737
        %v3795 = vpop.xlane.xlu0 %3794
        %3796 = vmax.xlane.f32.xlu0 %v3742
        %v3797 = vpop.xlane.xlu0 %3796
        %3798 = vmax.xlane.f32.xlu0 %v3745
        %v3799 = vpop.xlane.xlu0 %3798
        %3800 = vmax.xlane.f32.xlu0 %v3750
        %v3801 = vpop.xlane.xlu0 %3800
        %3802 = vmax.xlane.f32.xlu0 %v3753
        %v3803 = vpop.xlane.xlu0 %3802
        %3804 = vmax.xlane.f32.xlu0 %v3758
        %v3805 = vpop.xlane.xlu0 %3804
        %3806 = vmax.xlane.f32.xlu0 %v3761
        %v3807 = vpop.xlane.xlu0 %3806
        %3808 = vmax.xlane.f32.xlu0 %v3766
        %v3809 = vpop.xlane.xlu0 %3808
        %3810 = vmax.xlane.f32.xlu0 %v3769
        %v3811 = vpop.xlane.xlu0 %3810
        %3812 = vmax.xlane.f32.xlu0 %v3774
        %v3813 = vpop.xlane.xlu0 %3812
        %3814 = vmax.xlane.f32.xlu0 %v3777
        %v3815 = vpop.xlane.xlu0 %3814
        %3816 = vmax.xlane.f32.xlu0 %v3782
        %v3817 = vpop.xlane.xlu0 %3816
        %3818 = vmax.xlane.f32.xlu0 %v3785
        %v3819 = vpop.xlane.xlu0 %3818
        %v3820 = vsub.f32 %v3726, %v3789
        %v3821 = vsub.f32 %v3729, %v3791
        %v3822 = vsub.f32 %v3734, %v3793
        %v3823 = vsub.f32 %v3737, %v3795
        %v3824 = vsub.f32 %v3742, %v3797
        %v3825 = vsub.f32 %v3745, %v3799
        %v3826 = vsub.f32 %v3750, %v3801
        %v3827 = vsub.f32 %v3753, %v3803
        %v3828 = vsub.f32 %v3758, %v3805
        %v3829 = vsub.f32 %v3761, %v3807
        %v3830 = vsub.f32 %v3766, %v3809
        %v3831 = vsub.f32 %v3769, %v3811
        %v3832 = vsub.f32 %v3774, %v3813
        %v3833 = vsub.f32 %v3777, %v3815
        %v3834 = vsub.f32 %v3782, %v3817
        %v3835 = vsub.f32 %v3785, %v3819
        %v3836 = vmul.f32 %v3820, 1.442695
        %v3837 = vpow.pop %v3836
        %v3838 = vmul.f32 %v3821, 1.442695
        %v3839 = vpow.pop %v3838
        %v3840 = vmul.f32 %v3822, 1.442695
        %v3841 = vpow.pop %v3840
        %v3842 = vmul.f32 %v3823, 1.442695
        %v3843 = vpow.pop %v3842
        %v3844 = vmul.f32 %v3824, 1.442695
        %v3845 = vpow.pop %v3844
        %v3846 = vmul.f32 %v3825, 1.442695
        %v3847 = vpow.pop %v3846
        %v3848 = vmul.f32 %v3826, 1.442695
        %v3849 = vpow.pop %v3848
        %v3850 = vmul.f32 %v3827, 1.442695
        %v3851 = vpow.pop %v3850
        %v3852 = vmul.f32 %v3828, 1.442695
        %v3853 = vpow.pop %v3852
        %v3854 = vmul.f32 %v3829, 1.442695
        %v3855 = vpow.pop %v3854
        %v3856 = vmul.f32 %v3830, 1.442695
        %v3857 = vpow.pop %v3856
        %v3858 = vmul.f32 %v3831, 1.442695
        %v3859 = vpow.pop %v3858
        %v3860 = vmul.f32 %v3832, 1.442695
        %v3861 = vpow.pop %v3860
        %v3862 = vmul.f32 %v3833, 1.442695
        %v3863 = vpow.pop %v3862
        %v3864 = vmul.f32 %v3834, 1.442695
        %v3865 = vpow.pop %v3864
        %v3866 = vmul.f32 %v3835, 1.442695
        %v3867 = vpow.pop %v3866
        %3868 = vadd.xlane.f32.xlu0 %v3837
        %v3869 = vpop.xlane.xlu0 %3868
        %3870 = vadd.xlane.f32.xlu0 %v3839
        %v3871 = vpop.xlane.xlu0 %3870
        %3872 = vadd.xlane.f32.xlu0 %v3841
        %v3873 = vpop.xlane.xlu0 %3872
        %3874 = vadd.xlane.f32.xlu0 %v3843
        %v3875 = vpop.xlane.xlu0 %3874
        %3876 = vadd.xlane.f32.xlu0 %v3845
        %v3877 = vpop.xlane.xlu0 %3876
        %3878 = vadd.xlane.f32.xlu0 %v3847
        %v3879 = vpop.xlane.xlu0 %3878
        %3880 = vadd.xlane.f32.xlu0 %v3849
        %v3881 = vpop.xlane.xlu0 %3880
        %3882 = vadd.xlane.f32.xlu0 %v3851
        %v3883 = vpop.xlane.xlu0 %3882
        %3884 = vadd.xlane.f32.xlu0 %v3853
        %v3885 = vpop.xlane.xlu0 %3884
        %3886 = vadd.xlane.f32.xlu0 %v3855
        %v3887 = vpop.xlane.xlu0 %3886
        %3888 = vadd.xlane.f32.xlu0 %v3857
        %v3889 = vpop.xlane.xlu0 %3888
        %3890 = vadd.xlane.f32.xlu0 %v3859
        %v3891 = vpop.xlane.xlu0 %3890
        %3892 = vadd.xlane.f32.xlu0 %v3861
        %v3893 = vpop.xlane.xlu0 %3892
        %3894 = vadd.xlane.f32.xlu0 %v3863
        %v3895 = vpop.xlane.xlu0 %3894
        %3896 = vadd.xlane.f32.xlu0 %v3865
        %v3897 = vpop.xlane.xlu0 %3896
        %3898 = vadd.xlane.f32.xlu0 %v3867
        %v3899 = vpop.xlane.xlu0 %3898
        %v3900 = vrcp.pop %v3869
        %v3901 = vrcp.pop %v3871
        %v3902 = vrcp.pop %v3873
        %v3903 = vrcp.pop %v3875
        %v3904 = vrcp.pop %v3877
        %v3905 = vrcp.pop %v3879
        %v3906 = vrcp.pop %v3881
        %v3907 = vrcp.pop %v3883
        %v3908 = vrcp.pop %v3885
        %v3909 = vrcp.pop %v3887
        %v3910 = vrcp.pop %v3889
        %v3911 = vrcp.pop %v3891
        %v3912 = vrcp.pop %v3893
        %v3913 = vrcp.pop %v3895
        %v3914 = vrcp.pop %v3897
        %v3915 = vrcp.pop %v3899
        %v3916 = vmul.f32 %v3837, %v3900
        %v3917 = vmul.f32 %v3839, %v3901
        %v3918 = vmul.f32 %v3841, %v3902
        %v3919 = vmul.f32 %v3843, %v3903
        %v3920 = vmul.f32 %v3845, %v3904
        %v3921 = vmul.f32 %v3847, %v3905
        %v3922 = vmul.f32 %v3849, %v3906
        %v3923 = vmul.f32 %v3851, %v3907
        %v3924 = vmul.f32 %v3853, %v3908
        %v3925 = vmul.f32 %v3855, %v3909
        %v3926 = vmul.f32 %v3857, %v3910
        %v3927 = vmul.f32 %v3859, %v3911
        %v3928 = vmul.f32 %v3861, %v3912
        %v3929 = vmul.f32 %v3863, %v3913
        %v3930 = vmul.f32 %v3865, %v3914
        %v3931 = vmul.f32 %v3867, %v3915
        %v3932 = vpack.c.bf16 %v3917, %v3916
        %v3933 = vpack.c.bf16 %v3919, %v3918
        %v3934 = vpack.c.bf16 %v3921, %v3920
        %v3935 = vpack.c.bf16 %v3923, %v3922
        %v3936 = vpack.c.bf16 %v3925, %v3924
        %v3937 = vpack.c.bf16 %v3927, %v3926
        %v3938 = vpack.c.bf16 %v3929, %v3928
        %v3939 = vpack.c.bf16 %v3931, %v3930
        %3940 = vrot.lane.b32.xlu0 %v1809, 32
        %v3941 = vpop.permute.xlu0 %3940
        %3942 = vrot.lane.b32.xlu0 %v1810, 32
        %v3943 = vpop.permute.xlu0 %3942
        %3944 = vrot.lane.b32.xlu0 %v1811, 32
        %v3945 = vpop.permute.xlu0 %3944
        %3946 = vrot.lane.b32.xlu0 %v1812, 32
        %v3947 = vpop.permute.xlu0 %3946
        %3948 = vrot.lane.b32.xlu0 %v1813, 32
        %v3949 = vpop.permute.xlu0 %3948
        %3950 = vrot.lane.b32.xlu0 %v1814, 32
        %v3951 = vpop.permute.xlu0 %3950
        %3952 = vrot.lane.b32.xlu0 %v1815, 32
        %v3953 = vpop.permute.xlu0 %3952
        %3954 = vrot.lane.b32.xlu0 %v1816, 32
        %v3955 = vpop.permute.xlu0 %3954
        %3964 = vmatprep.subr.bf16.mxu0 0
        %3965 = vmatpush1.bf16.msra.mxu0 %v3955
        %3966 = vmatprep.subr.bf16.mxu0 0
        %3967 = vmatpush1.bf16.msra.mxu0 %v3953
        %3968 = vmatprep.subr.bf16.mxu0 0
        %3969 = vmatpush1.bf16.msra.mxu0 %v3951
        %3970 = vmatprep.subr.bf16.mxu0 0
        %3971 = vmatpush1.bf16.msra.mxu0 %v3949
        %3972 = vmatprep.subr.bf16.mxu0 0
        %3973 = vmatpush1.bf16.msra.mxu0 %v3947
        %3974 = vmatprep.subr.bf16.mxu0 0
        %3975 = vmatpush1.bf16.msra.mxu0 %v3945
        %3976 = vmatprep.subr.bf16.mxu0 0
        %3977 = vmatpush1.bf16.msra.mxu0 %v3943
        %3978 = vmatprep.subr.bf16.mxu0 0
        %3979 = vmatpush1.bf16.msra.mxu0 %v3941
        %3980 = vmatprep.subr.bf16.mxu0 0
        %3981 = vmatpush2.bf16.msra.mxu0 0
        %3982 = vmatprep.subr.bf16.mxu0 0
        %3983 = vmatpush2.bf16.msra.mxu0 0
        %3984 = vmatprep.subr.bf16.mxu0 0
        %3985 = vmatpush2.bf16.msra.mxu0 0
        %3986 = vmatprep.subr.bf16.mxu0 0
        %3987 = vmatpush2.bf16.msra.mxu0 0
        %3988 = vmatprep.subr.bf16.mxu0 0
        %3989 = vmatpush2.bf16.msra.mxu0 0
        %3990 = vmatprep.subr.bf16.mxu0 0
        %3991 = vmatpush2.bf16.msra.mxu0 0
        %3992 = vmatprep.subr.bf16.mxu0 0
        %3993 = vmatpush2.bf16.msra.mxu0 0
        %3994 = vmatprep.subr.bf16.mxu0 0
        %3995 = vmatpush2.bf16.msra.mxu0 0
        %3996 = vmatprep.mubr.bf16.mxu0 0
        %3997 = vmatmul.mubr.bf16.gmra.mxu0 %v3932
        %v3998 = vpop.f32.mrf.mxu0
        %v3999 = vadd.f32 0.0, %v3998
        %v4000 = vpop.f32.mrf.mxu0
        %v4001 = vpop.f32.mrf.mxu0
        %v4002 = vadd.f32 0.0, %v4001
        %v4003 = vpop.f32.mrf.mxu0
        %4004 = vmatprep.mubr.bf16.mxu0 0
        %4005 = vmatmul.mubr.bf16.gmra.mxu0 %v3933
        %v4006 = vpop.f32.mrf.mxu0
        %v4007 = vadd.f32 0.0, %v4006
        %v4008 = vpop.f32.mrf.mxu0
        %v4009 = vpop.f32.mrf.mxu0
        %v4010 = vadd.f32 0.0, %v4009
        %v4011 = vpop.f32.mrf.mxu0
        %4012 = vmatprep.mubr.bf16.mxu0 0
        %4013 = vmatmul.mubr.bf16.gmra.mxu0 %v3934
        %v4014 = vpop.f32.mrf.mxu0
        %v4015 = vadd.f32 0.0, %v4014
        %v4016 = vpop.f32.mrf.mxu0
        %v4017 = vpop.f32.mrf.mxu0
        %v4018 = vadd.f32 0.0, %v4017
        %v4019 = vpop.f32.mrf.mxu0
        %4020 = vmatprep.mubr.bf16.mxu0 0
        %4021 = vmatmul.mubr.bf16.gmra.mxu0 %v3935
        %v4022 = vpop.f32.mrf.mxu0
        %v4023 = vadd.f32 0.0, %v4022
        %v4024 = vpop.f32.mrf.mxu0
        %v4025 = vpop.f32.mrf.mxu0
        %v4026 = vadd.f32 0.0, %v4025
        %v4027 = vpop.f32.mrf.mxu0
        %4028 = vmatprep.mubr.bf16.mxu0 0
        %4029 = vmatmul.mubr.bf16.gmra.mxu0 %v3936
        %v4030 = vpop.f32.mrf.mxu0
        %v4031 = vadd.f32 0.0, %v4030
        %v4032 = vpop.f32.mrf.mxu0
        %v4033 = vpop.f32.mrf.mxu0
        %v4034 = vadd.f32 0.0, %v4033
        %v4035 = vpop.f32.mrf.mxu0
        %4036 = vmatprep.mubr.bf16.mxu0 0
        %4037 = vmatmul.mubr.bf16.gmra.mxu0 %v3937
        %v4038 = vpop.f32.mrf.mxu0
        %v4039 = vadd.f32 0.0, %v4038
        %v4040 = vpop.f32.mrf.mxu0
        %v4041 = vpop.f32.mrf.mxu0
        %v4042 = vadd.f32 0.0, %v4041
        %v4043 = vpop.f32.mrf.mxu0
        %4044 = vmatprep.mubr.bf16.mxu0 0
        %4045 = vmatmul.mubr.bf16.gmra.mxu0 %v3938
        %v4046 = vpop.f32.mrf.mxu0
        %v4047 = vadd.f32 0.0, %v4046
        %v4048 = vpop.f32.mrf.mxu0
        %v4049 = vpop.f32.mrf.mxu0
        %v4050 = vadd.f32 0.0, %v4049
        %v4051 = vpop.f32.mrf.mxu0
        %4052 = vmatprep.mubr.bf16.mxu0 0
        %4053 = vmatmul.mubr.bf16.gmra.mxu0 %v3939
        %v4054 = vpop.f32.mrf.mxu0
        %v4055 = vadd.f32 0.0, %v4054
        %v4056 = vpop.f32.mrf.mxu0
        %v4057 = vpop.f32.mrf.mxu0
        %v4058 = vadd.f32 0.0, %v4057
        %v4059 = vpop.f32.mrf.mxu0
        %4060 = vdwg.mxu0
        %v4061 = vpack.c.bf16 %v4002, %v3999
        %v4062 = vpack.c.bf16 %v4010, %v4007
        %v4063 = vpack.c.bf16 %v4018, %v4015
        %v4064 = vpack.c.bf16 %v4026, %v4023
        %v4065 = vpack.c.bf16 %v4034, %v4031
        %v4066 = vpack.c.bf16 %v4042, %v4039
        %v4067 = vpack.c.bf16 %v4050, %v4047
        %v4068 = vpack.c.bf16 %v4058, %v4055
        %v4073 = vunpack.c.l.b16 %v1517
        %v4074 = vunpack.c.l.b16 %v1518
        %v4075 = vunpack.c.l.b16 %v1519
        %v4076 = vunpack.c.l.b16 %v1520
        %v4077 = vpack.c.b16 %v4074, %v4073
        %v4078 = vpack.c.b16 %v4076, %v4075
        %v4082 = vsel %vm1821, %v4061, 0
        %v4085 = vsel %vm1821, %v4062, 0
        %v4088 = vsel %vm1821, %v4063, 0
        %v4091 = vsel %vm1821, %v4064, 0
        %v4094 = vsel %vm1821, %v4065, 0
        %v4097 = vsel %vm1821, %v4066, 0
        %v4100 = vsel %vm1821, %v4067, 0
        %v4103 = vsel %vm1821, %v4068, 0
        %4105 = vmatprep.subr.bf16.mxu0 0
        %4106 = vmatpush1.bf16.msra.mxu0 0
        %4107 = vmatprep.subr.bf16.mxu0 0
        %4108 = vmatpush1.bf16.msra.mxu0 0
        %4109 = vmatprep.subr.bf16.mxu0 0
        %4110 = vmatpush1.bf16.msra.mxu0 0
        %4111 = vmatprep.subr.bf16.mxu0 0
        %4112 = vmatpush1.bf16.msra.mxu0 0
        %4113 = vmatprep.subr.bf16.mxu0 0
        %4114 = vmatpush1.bf16.msra.mxu0 0
        %4115 = vmatprep.subr.bf16.mxu0 0
        %4116 = vmatpush1.bf16.msra.mxu0 0
        %4117 = vmatprep.subr.bf16.mxu0 0
        %4118 = vmatpush1.bf16.msra.mxu0 %v4078
        %4119 = vmatprep.subr.bf16.mxu0 0
        %4120 = vmatpush1.bf16.msra.mxu0 %v4077
        %4121 = vmatprep.subr.bf16.mxu0 0
        %4122 = vmatpush2.bf16.msra.mxu0 0
        %4123 = vmatprep.subr.bf16.mxu0 0
        %4124 = vmatpush2.bf16.msra.mxu0 0
        %4125 = vmatprep.subr.bf16.mxu0 0
        %4126 = vmatpush2.bf16.msra.mxu0 0
        %4127 = vmatprep.subr.bf16.mxu0 0
        %4128 = vmatpush2.bf16.msra.mxu0 0
        %4129 = vmatprep.subr.bf16.mxu0 0
        %4130 = vmatpush2.bf16.msra.mxu0 0
        %4131 = vmatprep.subr.bf16.mxu0 0
        %4132 = vmatpush2.bf16.msra.mxu0 0
        %4133 = vmatprep.subr.bf16.mxu0 0
        %4134 = vmatpush2.bf16.msra.mxu0 0
        %4135 = vmatprep.subr.bf16.mxu0 0
        %4136 = vmatpush2.bf16.msra.mxu0 0
        %4137 = vmatprep.mubr.bf16.mxu0 0
        %4138 = vmatmul.mubr.bf16.gmra.mxu0 %v4082
        %v4139 = vpop.f32.mrf.mxu0
        %v4140 = vadd.f32 0.0, %v4139
        %v4141 = vpop.f32.mrf.mxu0
        %v4142 = vpop.f32.mrf.mxu0
        %v4143 = vadd.f32 0.0, %v4142
        %v4144 = vpop.f32.mrf.mxu0
        %4145 = vmatprep.mubr.bf16.mxu0 0
        %4146 = vmatmul.mubr.bf16.gmra.mxu0 %v4085
        %v4147 = vpop.f32.mrf.mxu0
        %v4148 = vadd.f32 0.0, %v4147
        %v4149 = vpop.f32.mrf.mxu0
        %v4150 = vpop.f32.mrf.mxu0
        %v4151 = vadd.f32 0.0, %v4150
        %v4152 = vpop.f32.mrf.mxu0
        %4153 = vmatprep.mubr.bf16.mxu0 0
        %4154 = vmatmul.mubr.bf16.gmra.mxu0 %v4088
        %v4155 = vpop.f32.mrf.mxu0
        %v4156 = vadd.f32 0.0, %v4155
        %v4157 = vpop.f32.mrf.mxu0
        %v4158 = vpop.f32.mrf.mxu0
        %v4159 = vadd.f32 0.0, %v4158
        %v4160 = vpop.f32.mrf.mxu0
        %4161 = vmatprep.mubr.bf16.mxu0 0
        %4162 = vmatmul.mubr.bf16.gmra.mxu0 %v4091
        %v4163 = vpop.f32.mrf.mxu0
        %v4164 = vadd.f32 0.0, %v4163
        %v4165 = vpop.f32.mrf.mxu0
        %v4166 = vpop.f32.mrf.mxu0
        %v4167 = vadd.f32 0.0, %v4166
        %v4168 = vpop.f32.mrf.mxu0
        %4169 = vmatprep.mubr.bf16.mxu0 0
        %4170 = vmatmul.mubr.bf16.gmra.mxu0 %v4094
        %v4171 = vpop.f32.mrf.mxu0
        %v4172 = vadd.f32 0.0, %v4171
        %v4173 = vpop.f32.mrf.mxu0
        %v4174 = vpop.f32.mrf.mxu0
        %v4175 = vadd.f32 0.0, %v4174
        %v4176 = vpop.f32.mrf.mxu0
        %4177 = vmatprep.mubr.bf16.mxu0 0
        %4178 = vmatmul.mubr.bf16.gmra.mxu0 %v4097
        %v4179 = vpop.f32.mrf.mxu0
        %v4180 = vadd.f32 0.0, %v4179
        %v4181 = vpop.f32.mrf.mxu0
        %v4182 = vpop.f32.mrf.mxu0
        %v4183 = vadd.f32 0.0, %v4182
        %v4184 = vpop.f32.mrf.mxu0
        %4185 = vmatprep.mubr.bf16.mxu0 0
        %4186 = vmatmul.mubr.bf16.gmra.mxu0 %v4100
        %v4187 = vpop.f32.mrf.mxu0
        %v4188 = vadd.f32 0.0, %v4187
        %v4189 = vpop.f32.mrf.mxu0
        %v4190 = vpop.f32.mrf.mxu0
        %v4191 = vadd.f32 0.0, %v4190
        %v4192 = vpop.f32.mrf.mxu0
        %4193 = vmatprep.mubr.bf16.mxu0 0
        %4194 = vmatmul.mubr.bf16.gmra.mxu0 %v4103
        %v4195 = vpop.f32.mrf.mxu0
        %v4196 = vadd.f32 0.0, %v4195
        %v4197 = vpop.f32.mrf.mxu0
        %v4198 = vpop.f32.mrf.mxu0
        %v4199 = vadd.f32 0.0, %v4198
        %v4200 = vpop.f32.mrf.mxu0
        %4201 = vdwg.mxu0
        %v4202 = vadd.f32 %v3595, %v4140
        %v4203 = vadd.f32 %v3596, %v4143
        %v4204 = vadd.f32 %v3597, %v4148
        %v4205 = vadd.f32 %v3598, %v4151
        %v4206 = vadd.f32 %v3599, %v4156
        %v4207 = vadd.f32 %v3600, %v4159
        %v4208 = vadd.f32 %v3601, %v4164
        %v4209 = vadd.f32 %v3602, %v4167
        %v4210 = vadd.f32 %v3603, %v4172
        %v4211 = vadd.f32 %v3604, %v4175
        %v4212 = vadd.f32 %v3605, %v4180
        %v4213 = vadd.f32 %v3606, %v4183
        %v4214 = vadd.f32 %v3607, %v4188
        %v4215 = vadd.f32 %v3608, %v4191
        %v4216 = vadd.f32 %v3609, %v4196
        %v4217 = vadd.f32 %v3610, %v4199
        %4218 = vrot.lane.b32.xlu0 %v1266, 1
        %v4219 = vpop.permute.xlu0 %4218
        %4220 = vrot.lane.b32.xlu0 %v1270, 1
        %v4221 = vpop.permute.xlu0 %4220
        %4222 = vrot.lane.b32.xlu0 %v1276, 1
        %v4223 = vpop.permute.xlu0 %4222
        %4224 = vrot.lane.b32.xlu0 %v1280, 1
        %v4225 = vpop.permute.xlu0 %4224
        %4226 = vrot.lane.b32.xlu0 %v1286, 1
        %v4227 = vpop.permute.xlu0 %4226
        %4228 = vrot.lane.b32.xlu0 %v1290, 1
        %v4229 = vpop.permute.xlu0 %4228
        %4230 = vrot.lane.b32.xlu0 %v1296, 1
        %v4231 = vpop.permute.xlu0 %4230
        %4232 = vrot.lane.b32.xlu0 %v1300, 1
        %v4233 = vpop.permute.xlu0 %4232
        %4234 = vrot.lane.b32.xlu0 %v1306, 1
        %v4235 = vpop.permute.xlu0 %4234
        %4236 = vrot.lane.b32.xlu0 %v1310, 1
        %v4237 = vpop.permute.xlu0 %4236
        %4238 = vrot.lane.b32.xlu0 %v1316, 1
        %v4239 = vpop.permute.xlu0 %4238
        %4240 = vrot.lane.b32.xlu0 %v1320, 1
        %v4241 = vpop.permute.xlu0 %4240
        %4242 = vrot.lane.b32.xlu0 %v1326, 1
        %v4243 = vpop.permute.xlu0 %4242
        %4244 = vrot.lane.b32.xlu0 %v1330, 1
        %v4245 = vpop.permute.xlu0 %4244
        %4246 = vrot.lane.b32.xlu0 %v1336, 1
        %v4247 = vpop.permute.xlu0 %4246
        %4248 = vrot.lane.b32.xlu0 %v1340, 1
        %v4249 = vpop.permute.xlu0 %4248
        %4250 = vrot.lane.b32.xlu0 %v1266, 127
        %v4251 = vpop.permute.xlu0 %4250
        %4252 = vrot.lane.b32.xlu0 %v1270, 127
        %v4253 = vpop.permute.xlu0 %4252
        %4254 = vrot.lane.b32.xlu0 %v1276, 127
        %v4255 = vpop.permute.xlu0 %4254
        %4256 = vrot.lane.b32.xlu0 %v1280, 127
        %v4257 = vpop.permute.xlu0 %4256
        %4258 = vrot.lane.b32.xlu0 %v1286, 127
        %v4259 = vpop.permute.xlu0 %4258
        %4260 = vrot.lane.b32.xlu0 %v1290, 127
        %v4261 = vpop.permute.xlu0 %4260
        %4262 = vrot.lane.b32.xlu0 %v1296, 127
        %v4263 = vpop.permute.xlu0 %4262
        %4264 = vrot.lane.b32.xlu0 %v1300, 127
        %v4265 = vpop.permute.xlu0 %4264
        %4266 = vrot.lane.b32.xlu0 %v1306, 127
        %v4267 = vpop.permute.xlu0 %4266
        %4268 = vrot.lane.b32.xlu0 %v1310, 127
        %v4269 = vpop.permute.xlu0 %4268
        %4270 = vrot.lane.b32.xlu0 %v1316, 127
        %v4271 = vpop.permute.xlu0 %4270
        %4272 = vrot.lane.b32.xlu0 %v1320, 127
        %v4273 = vpop.permute.xlu0 %4272
        %4274 = vrot.lane.b32.xlu0 %v1326, 127
        %v4275 = vpop.permute.xlu0 %4274
        %4276 = vrot.lane.b32.xlu0 %v1330, 127
        %v4277 = vpop.permute.xlu0 %4276
        %4278 = vrot.lane.b32.xlu0 %v1336, 127
        %v4279 = vpop.permute.xlu0 %4278
        %4280 = vrot.lane.b32.xlu0 %v1340, 127
        %v4281 = vpop.permute.xlu0 %4280
        %v4282 = vsel %vm681, %v4251, %v4219
        %v4283 = vsel %vm681, %v4253, %v4221
        %v4284 = vsel %vm681, %v4255, %v4223
        %v4285 = vsel %vm681, %v4257, %v4225
        %v4286 = vsel %vm681, %v4259, %v4227
        %v4287 = vsel %vm681, %v4261, %v4229
        %v4288 = vsel %vm681, %v4263, %v4231
        %v4289 = vsel %vm681, %v4265, %v4233
        %v4290 = vsel %vm681, %v4267, %v4235
        %v4291 = vsel %vm681, %v4269, %v4237
        %v4292 = vsel %vm681, %v4271, %v4239
        %v4293 = vsel %vm681, %v4273, %v4241
        %v4294 = vsel %vm681, %v4275, %v4243
        %v4295 = vsel %vm681, %v4277, %v4245
        %v4296 = vsel %vm681, %v4279, %v4247
        %v4297 = vsel %vm681, %v4281, %v4249
        %v4298 = vmul.f32 %v1266, %v644
        %v4299 = vmul.f32 %v1270, %v645
        %v4300 = vmul.f32 %v1276, %v646
        %v4301 = vmul.f32 %v1280, %v647
        %v4302 = vmul.f32 %v1286, %v648
        %v4303 = vmul.f32 %v1290, %v649
        %v4304 = vmul.f32 %v1296, %v650
        %v4305 = vmul.f32 %v1300, %v651
        %v4306 = vmul.f32 %v1306, %v652
        %v4307 = vmul.f32 %v1310, %v653
        %v4308 = vmul.f32 %v1316, %v654
        %v4309 = vmul.f32 %v1320, %v655
        %v4310 = vmul.f32 %v1326, %v656
        %v4311 = vmul.f32 %v1330, %v657
        %v4312 = vmul.f32 %v1336, %v658
        %v4313 = vmul.f32 %v1340, %v659
        %v4314 = vmul.f32 %v4282, %v660
        %v4315 = vmul.f32 %v4283, %v661
        %v4316 = vmul.f32 %v4284, %v662
        %v4317 = vmul.f32 %v4285, %v663
        %v4318 = vmul.f32 %v4286, %v664
        %v4319 = vmul.f32 %v4287, %v665
        %v4320 = vmul.f32 %v4288, %v666
        %v4321 = vmul.f32 %v4289, %v667
        %v4322 = vmul.f32 %v4290, %v668
        %v4323 = vmul.f32 %v4291, %v669
        %v4324 = vmul.f32 %v4292, %v670
        %v4325 = vmul.f32 %v4293, %v671
        %v4326 = vmul.f32 %v4294, %v672
        %v4327 = vmul.f32 %v4295, %v673
        %v4328 = vmul.f32 %v4296, %v674
        %v4329 = vmul.f32 %v4297, %v675
        %v4330 = vadd.f32 %v4298, %v4314
        %v4331 = vadd.f32 %v4299, %v4315
        %v4332 = vadd.f32 %v4300, %v4316
        %v4333 = vadd.f32 %v4301, %v4317
        %v4334 = vadd.f32 %v4302, %v4318
        %v4335 = vadd.f32 %v4303, %v4319
        %v4336 = vadd.f32 %v4304, %v4320
        %v4337 = vadd.f32 %v4305, %v4321
        %v4338 = vadd.f32 %v4306, %v4322
        %v4339 = vadd.f32 %v4307, %v4323
        %v4340 = vadd.f32 %v4308, %v4324
        %v4341 = vadd.f32 %v4309, %v4325
        %v4342 = vadd.f32 %v4310, %v4326
        %v4343 = vadd.f32 %v4311, %v4327
        %v4344 = vadd.f32 %v4312, %v4328
        %v4345 = vadd.f32 %v4313, %v4329
        %v4346 = vmul.f32 %v4330, 0.17677669
        %v4347 = vmul.f32 %v4331, 0.17677669
        %v4348 = vmul.f32 %v4332, 0.17677669
        %v4349 = vmul.f32 %v4333, 0.17677669
        %v4350 = vmul.f32 %v4334, 0.17677669
        %v4351 = vmul.f32 %v4335, 0.17677669
        %v4352 = vmul.f32 %v4336, 0.17677669
        %v4353 = vmul.f32 %v4337, 0.17677669
        %v4354 = vmul.f32 %v4338, 0.17677669
        %v4355 = vmul.f32 %v4339, 0.17677669
        %v4356 = vmul.f32 %v4340, 0.17677669
        %v4357 = vmul.f32 %v4341, 0.17677669
        %v4358 = vmul.f32 %v4342, 0.17677669
        %v4359 = vmul.f32 %v4343, 0.17677669
        %v4360 = vmul.f32 %v4344, 0.17677669
        %v4361 = vmul.f32 %v4345, 0.17677669
        %v4362 = vpack.c.bf16 %v4347, %v4346
        %v4363 = vpack.c.bf16 %v4349, %v4348
        %v4364 = vpack.c.bf16 %v4351, %v4350
        %v4365 = vpack.c.bf16 %v4353, %v4352
        %v4366 = vpack.c.bf16 %v4355, %v4354
        %v4367 = vpack.c.bf16 %v4357, %v4356
        %v4368 = vpack.c.bf16 %v4359, %v4358
        %v4369 = vpack.c.bf16 %v4361, %v4360
        %4370 = vrot.lane.b32.xlu0 %v1268, 1
        %v4371 = vpop.permute.xlu0 %4370
        %4372 = vrot.lane.b32.xlu0 %v1272, 1
        %v4373 = vpop.permute.xlu0 %4372
        %4374 = vrot.lane.b32.xlu0 %v1278, 1
        %v4375 = vpop.permute.xlu0 %4374
        %4376 = vrot.lane.b32.xlu0 %v1282, 1
        %v4377 = vpop.permute.xlu0 %4376
        %4378 = vrot.lane.b32.xlu0 %v1288, 1
        %v4379 = vpop.permute.xlu0 %4378
        %4380 = vrot.lane.b32.xlu0 %v1292, 1
        %v4381 = vpop.permute.xlu0 %4380
        %4382 = vrot.lane.b32.xlu0 %v1298, 1
        %v4383 = vpop.permute.xlu0 %4382
        %4384 = vrot.lane.b32.xlu0 %v1302, 1
        %v4385 = vpop.permute.xlu0 %4384
        %4386 = vrot.lane.b32.xlu0 %v1308, 1
        %v4387 = vpop.permute.xlu0 %4386
        %4388 = vrot.lane.b32.xlu0 %v1312, 1
        %v4389 = vpop.permute.xlu0 %4388
        %4390 = vrot.lane.b32.xlu0 %v1318, 1
        %v4391 = vpop.permute.xlu0 %4390
        %4392 = vrot.lane.b32.xlu0 %v1322, 1
        %v4393 = vpop.permute.xlu0 %4392
        %4394 = vrot.lane.b32.xlu0 %v1328, 1
        %v4395 = vpop.permute.xlu0 %4394
        %4396 = vrot.lane.b32.xlu0 %v1332, 1
        %v4397 = vpop.permute.xlu0 %4396
        %4398 = vrot.lane.b32.xlu0 %v1338, 1
        %v4399 = vpop.permute.xlu0 %4398
        %4400 = vrot.lane.b32.xlu0 %v1342, 1
        %v4401 = vpop.permute.xlu0 %4400
        %4402 = vrot.lane.b32.xlu0 %v1268, 127
        %v4403 = vpop.permute.xlu0 %4402
        %4404 = vrot.lane.b32.xlu0 %v1272, 127
        %v4405 = vpop.permute.xlu0 %4404
        %4406 = vrot.lane.b32.xlu0 %v1278, 127
        %v4407 = vpop.permute.xlu0 %4406
        %4408 = vrot.lane.b32.xlu0 %v1282, 127
        %v4409 = vpop.permute.xlu0 %4408
        %4410 = vrot.lane.b32.xlu0 %v1288, 127
        %v4411 = vpop.permute.xlu0 %4410
        %4412 = vrot.lane.b32.xlu0 %v1292, 127
        %v4413 = vpop.permute.xlu0 %4412
        %4414 = vrot.lane.b32.xlu0 %v1298, 127
        %v4415 = vpop.permute.xlu0 %4414
        %4416 = vrot.lane.b32.xlu0 %v1302, 127
        %v4417 = vpop.permute.xlu0 %4416
        %4418 = vrot.lane.b32.xlu0 %v1308, 127
        %v4419 = vpop.permute.xlu0 %4418
        %4420 = vrot.lane.b32.xlu0 %v1312, 127
        %v4421 = vpop.permute.xlu0 %4420
        %4422 = vrot.lane.b32.xlu0 %v1318, 127
        %v4423 = vpop.permute.xlu0 %4422
        %4424 = vrot.lane.b32.xlu0 %v1322, 127
        %v4425 = vpop.permute.xlu0 %4424
        %4426 = vrot.lane.b32.xlu0 %v1328, 127
        %v4427 = vpop.permute.xlu0 %4426
        %4428 = vrot.lane.b32.xlu0 %v1332, 127
        %v4429 = vpop.permute.xlu0 %4428
        %4430 = vrot.lane.b32.xlu0 %v1338, 127
        %v4431 = vpop.permute.xlu0 %4430
        %4432 = vrot.lane.b32.xlu0 %v1342, 127
        %v4433 = vpop.permute.xlu0 %4432
        %v4434 = vsel %vm681, %v4403, %v4371
        %v4435 = vsel %vm681, %v4405, %v4373
        %v4436 = vsel %vm681, %v4407, %v4375
        %v4437 = vsel %vm681, %v4409, %v4377
        %v4438 = vsel %vm681, %v4411, %v4379
        %v4439 = vsel %vm681, %v4413, %v4381
        %v4440 = vsel %vm681, %v4415, %v4383
        %v4441 = vsel %vm681, %v4417, %v4385
        %v4442 = vsel %vm681, %v4419, %v4387
        %v4443 = vsel %vm681, %v4421, %v4389
        %v4444 = vsel %vm681, %v4423, %v4391
        %v4445 = vsel %vm681, %v4425, %v4393
        %v4446 = vsel %vm681, %v4427, %v4395
        %v4447 = vsel %vm681, %v4429, %v4397
        %v4448 = vsel %vm681, %v4431, %v4399
        %v4449 = vsel %vm681, %v4433, %v4401
        %v4450 = vmul.f32 %v1268, %v644
        %v4451 = vmul.f32 %v1272, %v645
        %v4452 = vmul.f32 %v1278, %v646
        %v4453 = vmul.f32 %v1282, %v647
        %v4454 = vmul.f32 %v1288, %v648
        %v4455 = vmul.f32 %v1292, %v649
        %v4456 = vmul.f32 %v1298, %v650
        %v4457 = vmul.f32 %v1302, %v651
        %v4458 = vmul.f32 %v1308, %v652
        %v4459 = vmul.f32 %v1312, %v653
        %v4460 = vmul.f32 %v1318, %v654
        %v4461 = vmul.f32 %v1322, %v655
        %v4462 = vmul.f32 %v1328, %v656
        %v4463 = vmul.f32 %v1332, %v657
        %v4464 = vmul.f32 %v1338, %v658
        %v4465 = vmul.f32 %v1342, %v659
        %v4466 = vmul.f32 %v4434, %v660
        %v4467 = vmul.f32 %v4435, %v661
        %v4468 = vmul.f32 %v4436, %v662
        %v4469 = vmul.f32 %v4437, %v663
        %v4470 = vmul.f32 %v4438, %v664
        %v4471 = vmul.f32 %v4439, %v665
        %v4472 = vmul.f32 %v4440, %v666
        %v4473 = vmul.f32 %v4441, %v667
        %v4474 = vmul.f32 %v4442, %v668
        %v4475 = vmul.f32 %v4443, %v669
        %v4476 = vmul.f32 %v4444, %v670
        %v4477 = vmul.f32 %v4445, %v671
        %v4478 = vmul.f32 %v4446, %v672
        %v4479 = vmul.f32 %v4447, %v673
        %v4480 = vmul.f32 %v4448, %v674
        %v4481 = vmul.f32 %v4449, %v675
        %v4482 = vadd.f32 %v4450, %v4466
        %v4483 = vadd.f32 %v4451, %v4467
        %v4484 = vadd.f32 %v4452, %v4468
        %v4485 = vadd.f32 %v4453, %v4469
        %v4486 = vadd.f32 %v4454, %v4470
        %v4487 = vadd.f32 %v4455, %v4471
        %v4488 = vadd.f32 %v4456, %v4472
        %v4489 = vadd.f32 %v4457, %v4473
        %v4490 = vadd.f32 %v4458, %v4474
        %v4491 = vadd.f32 %v4459, %v4475
        %v4492 = vadd.f32 %v4460, %v4476
        %v4493 = vadd.f32 %v4461, %v4477
        %v4494 = vadd.f32 %v4462, %v4478
        %v4495 = vadd.f32 %v4463, %v4479
        %v4496 = vadd.f32 %v4464, %v4480
        %v4497 = vadd.f32 %v4465, %v4481
        %v4498 = vpack.c.bf16 %v4483, %v4482
        %v4499 = vpack.c.bf16 %v4485, %v4484
        %v4500 = vpack.c.bf16 %v4487, %v4486
        %v4501 = vpack.c.bf16 %v4489, %v4488
        %v4502 = vpack.c.bf16 %v4491, %v4490
        %v4503 = vpack.c.bf16 %v4493, %v4492
        %v4504 = vpack.c.bf16 %v4495, %v4494
        %v4505 = vpack.c.bf16 %v4497, %v4496
        %v4506 = vpack.c.bf16 %v1446, %v1443
        %v4507 = vpack.c.bf16 %v1454, %v1451
        %v4508 = vpack.c.bf16 %v1462, %v1459
        %v4509 = vpack.c.bf16 %v1470, %v1467
        %v4510 = vpack.c.bf16 %v1478, %v1475
        %v4511 = vpack.c.bf16 %v1486, %v1483
        %v4512 = vpack.c.bf16 %v1494, %v1491
        %v4513 = vpack.c.bf16 %v1502, %v1499
        %v4514 = vlaneseq
        %v4515 = vshrl.u32 %v4514, 7
        %v4516 = vsub.s32 1, %v4515
        %v4517 = vrot.slane %v676, %v4516
        %v4519 = vsel %vm1821, %v4362, 0
        %v4522 = vsel %vm1821, %v4363, 0
        %v4525 = vsel %vm1821, %v4364, 0
        %v4528 = vsel %vm1821, %v4365, 0
        %v4531 = vsel %vm1821, %v4366, 0
        %v4534 = vsel %vm1821, %v4367, 0
        %v4537 = vsel %vm1821, %v4368, 0
        %v4540 = vsel %vm1821, %v4369, 0
        %v4543 = vsel %vm1821, %v4498, 0
        %v4546 = vsel %vm1821, %v4499, 0
        %v4549 = vsel %vm1821, %v4500, 0
        %v4552 = vsel %vm1821, %v4501, 0
        %v4555 = vsel %vm1821, %v4502, 0
        %v4558 = vsel %vm1821, %v4503, 0
        %v4561 = vsel %vm1821, %v4504, 0
        %v4564 = vsel %vm1821, %v4505, 0
        %4566 = vmatprep.subr.bf16.mxu0 0
        %4567 = vmatpush1.bf16.xpose.msra.mxu0 %v4564
        %4568 = vmatprep.subr.bf16.mxu0 0
        %4569 = vmatpush1.bf16.xpose.msra.mxu0 %v4561
        %4570 = vmatprep.subr.bf16.mxu0 0
        %4571 = vmatpush1.bf16.xpose.msra.mxu0 %v4558
        %4572 = vmatprep.subr.bf16.mxu0 0
        %4573 = vmatpush1.bf16.xpose.msra.mxu0 %v4555
        %4574 = vmatprep.subr.bf16.mxu0 0
        %4575 = vmatpush1.bf16.xpose.msra.mxu0 %v4552
        %4576 = vmatprep.subr.bf16.mxu0 0
        %4577 = vmatpush1.bf16.xpose.msra.mxu0 %v4549
        %4578 = vmatprep.subr.bf16.mxu0 0
        %4579 = vmatpush1.bf16.xpose.msra.mxu0 %v4546
        %4580 = vmatprep.subr.bf16.mxu0 0
        %4581 = vmatpush1.bf16.xpose.msra.mxu0 %v4543
        %4582 = vmatprep.subr.bf16.mxu0 0
        %4583 = vmatpush2.bf16.xpose.msra.mxu0 0
        %4584 = vmatprep.subr.bf16.mxu0 0
        %4585 = vmatpush2.bf16.xpose.msra.mxu0 0
        %4586 = vmatprep.subr.bf16.mxu0 0
        %4587 = vmatpush2.bf16.xpose.msra.mxu0 0
        %4588 = vmatprep.subr.bf16.mxu0 0
        %4589 = vmatpush2.bf16.xpose.msra.mxu0 0
        %4590 = vmatprep.subr.bf16.mxu0 0
        %4591 = vmatpush2.bf16.xpose.msra.mxu0 0
        %4592 = vmatprep.subr.bf16.mxu0 0
        %4593 = vmatpush2.bf16.xpose.msra.mxu0 0
        %4594 = vmatprep.subr.bf16.mxu0 0
        %4595 = vmatpush2.bf16.xpose.msra.mxu0 0
        %4596 = vmatprep.subr.bf16.mxu0 0
        %4597 = vmatpush2.bf16.xpose.msra.mxu0 0
        %4598 = vmatprep.mubr.bf16.mxu0 0
        %4599 = vmatmul.mubr.bf16.gmra.mxu0 %v4519
        %v4600 = vpop.f32.mrf.mxu0
        %v4601 = vadd.f32 %v4517, %v4600
        %v4602 = vpop.f32.mrf.mxu0
        %v4603 = vpop.f32.mrf.mxu0
        %v4604 = vadd.f32 %v4517, %v4603
        %v4605 = vpop.f32.mrf.mxu0
        %4606 = vmatprep.mubr.bf16.mxu0 0
        %4607 = vmatmul.mubr.bf16.gmra.mxu0 %v4522
        %v4608 = vpop.f32.mrf.mxu0
        %v4609 = vadd.f32 %v4517, %v4608
        %v4610 = vpop.f32.mrf.mxu0
        %v4611 = vpop.f32.mrf.mxu0
        %v4612 = vadd.f32 %v4517, %v4611
        %v4613 = vpop.f32.mrf.mxu0
        %4614 = vmatprep.mubr.bf16.mxu0 0
        %4615 = vmatmul.mubr.bf16.gmra.mxu0 %v4525
        %v4616 = vpop.f32.mrf.mxu0
        %v4617 = vadd.f32 %v4517, %v4616
        %v4618 = vpop.f32.mrf.mxu0
        %v4619 = vpop.f32.mrf.mxu0
        %v4620 = vadd.f32 %v4517, %v4619
        %v4621 = vpop.f32.mrf.mxu0
        %4622 = vmatprep.mubr.bf16.mxu0 0
        %4623 = vmatmul.mubr.bf16.gmra.mxu0 %v4528
        %v4624 = vpop.f32.mrf.mxu0
        %v4625 = vadd.f32 %v4517, %v4624
        %v4626 = vpop.f32.mrf.mxu0
        %v4627 = vpop.f32.mrf.mxu0
        %v4628 = vadd.f32 %v4517, %v4627
        %v4629 = vpop.f32.mrf.mxu0
        %4630 = vmatprep.mubr.bf16.mxu0 0
        %4631 = vmatmul.mubr.bf16.gmra.mxu0 %v4531
        %v4632 = vpop.f32.mrf.mxu0
        %v4633 = vadd.f32 %v4517, %v4632
        %v4634 = vpop.f32.mrf.mxu0
        %v4635 = vpop.f32.mrf.mxu0
        %v4636 = vadd.f32 %v4517, %v4635
        %v4637 = vpop.f32.mrf.mxu0
        %4638 = vmatprep.mubr.bf16.mxu0 0
        %4639 = vmatmul.mubr.bf16.gmra.mxu0 %v4534
        %v4640 = vpop.f32.mrf.mxu0
        %v4641 = vadd.f32 %v4517, %v4640
        %v4642 = vpop.f32.mrf.mxu0
        %v4643 = vpop.f32.mrf.mxu0
        %v4644 = vadd.f32 %v4517, %v4643
        %v4645 = vpop.f32.mrf.mxu0
        %4646 = vmatprep.mubr.bf16.mxu0 0
        %4647 = vmatmul.mubr.bf16.gmra.mxu0 %v4537
        %v4648 = vpop.f32.mrf.mxu0
        %v4649 = vadd.f32 %v4517, %v4648
        %v4650 = vpop.f32.mrf.mxu0
        %v4651 = vpop.f32.mrf.mxu0
        %v4652 = vadd.f32 %v4517, %v4651
        %v4653 = vpop.f32.mrf.mxu0
        %4654 = vmatprep.mubr.bf16.mxu0 0
        %4655 = vmatmul.mubr.bf16.gmra.mxu0 %v4540
        %v4656 = vpop.f32.mrf.mxu0
        %v4657 = vadd.f32 %v4517, %v4656
        %v4658 = vpop.f32.mrf.mxu0
        %v4659 = vpop.f32.mrf.mxu0
        %v4660 = vadd.f32 %v4517, %v4659
        %v4661 = vpop.f32.mrf.mxu0
        %4662 = vdwg.mxu0
        %4663 = vmax.xlane.f32.xlu0 %v4601
        %v4664 = vpop.xlane.xlu0 %4663
        %4665 = vmax.xlane.f32.xlu0 %v4604
        %v4666 = vpop.xlane.xlu0 %4665
        %4667 = vmax.xlane.f32.xlu0 %v4609
        %v4668 = vpop.xlane.xlu0 %4667
        %4669 = vmax.xlane.f32.xlu0 %v4612
        %v4670 = vpop.xlane.xlu0 %4669
        %4671 = vmax.xlane.f32.xlu0 %v4617
        %v4672 = vpop.xlane.xlu0 %4671
        %4673 = vmax.xlane.f32.xlu0 %v4620
        %v4674 = vpop.xlane.xlu0 %4673
        %4675 = vmax.xlane.f32.xlu0 %v4625
        %v4676 = vpop.xlane.xlu0 %4675
        %4677 = vmax.xlane.f32.xlu0 %v4628
        %v4678 = vpop.xlane.xlu0 %4677
        %4679 = vmax.xlane.f32.xlu0 %v4633
        %v4680 = vpop.xlane.xlu0 %4679
        %4681 = vmax.xlane.f32.xlu0 %v4636
        %v4682 = vpop.xlane.xlu0 %4681
        %4683 = vmax.xlane.f32.xlu0 %v4641
        %v4684 = vpop.xlane.xlu0 %4683
        %4685 = vmax.xlane.f32.xlu0 %v4644
        %v4686 = vpop.xlane.xlu0 %4685
        %4687 = vmax.xlane.f32.xlu0 %v4649
        %v4688 = vpop.xlane.xlu0 %4687
        %4689 = vmax.xlane.f32.xlu0 %v4652
        %v4690 = vpop.xlane.xlu0 %4689
        %4691 = vmax.xlane.f32.xlu0 %v4657
        %v4692 = vpop.xlane.xlu0 %4691
        %4693 = vmax.xlane.f32.xlu0 %v4660
        %v4694 = vpop.xlane.xlu0 %4693
        %v4695 = vsub.f32 %v4601, %v4664
        %v4696 = vsub.f32 %v4604, %v4666
        %v4697 = vsub.f32 %v4609, %v4668
        %v4698 = vsub.f32 %v4612, %v4670
        %v4699 = vsub.f32 %v4617, %v4672
        %v4700 = vsub.f32 %v4620, %v4674
        %v4701 = vsub.f32 %v4625, %v4676
        %v4702 = vsub.f32 %v4628, %v4678
        %v4703 = vsub.f32 %v4633, %v4680
        %v4704 = vsub.f32 %v4636, %v4682
        %v4705 = vsub.f32 %v4641, %v4684
        %v4706 = vsub.f32 %v4644, %v4686
        %v4707 = vsub.f32 %v4649, %v4688
        %v4708 = vsub.f32 %v4652, %v4690
        %v4709 = vsub.f32 %v4657, %v4692
        %v4710 = vsub.f32 %v4660, %v4694
        %v4711 = vmul.f32 %v4695, 1.442695
        %v4712 = vpow.pop %v4711
        %v4713 = vmul.f32 %v4696, 1.442695
        %v4714 = vpow.pop %v4713
        %v4715 = vmul.f32 %v4697, 1.442695
        %v4716 = vpow.pop %v4715
        %v4717 = vmul.f32 %v4698, 1.442695
        %v4718 = vpow.pop %v4717
        %v4719 = vmul.f32 %v4699, 1.442695
        %v4720 = vpow.pop %v4719
        %v4721 = vmul.f32 %v4700, 1.442695
        %v4722 = vpow.pop %v4721
        %v4723 = vmul.f32 %v4701, 1.442695
        %v4724 = vpow.pop %v4723
        %v4725 = vmul.f32 %v4702, 1.442695
        %v4726 = vpow.pop %v4725
        %v4727 = vmul.f32 %v4703, 1.442695
        %v4728 = vpow.pop %v4727
        %v4729 = vmul.f32 %v4704, 1.442695
        %v4730 = vpow.pop %v4729
        %v4731 = vmul.f32 %v4705, 1.442695
        %v4732 = vpow.pop %v4731
        %v4733 = vmul.f32 %v4706, 1.442695
        %v4734 = vpow.pop %v4733
        %v4735 = vmul.f32 %v4707, 1.442695
        %v4736 = vpow.pop %v4735
        %v4737 = vmul.f32 %v4708, 1.442695
        %v4738 = vpow.pop %v4737
        %v4739 = vmul.f32 %v4709, 1.442695
        %v4740 = vpow.pop %v4739
        %v4741 = vmul.f32 %v4710, 1.442695
        %v4742 = vpow.pop %v4741
        %4743 = vadd.xlane.f32.xlu0 %v4712
        %v4744 = vpop.xlane.xlu0 %4743
        %4745 = vadd.xlane.f32.xlu0 %v4714
        %v4746 = vpop.xlane.xlu0 %4745
        %4747 = vadd.xlane.f32.xlu0 %v4716
        %v4748 = vpop.xlane.xlu0 %4747
        %4749 = vadd.xlane.f32.xlu0 %v4718
        %v4750 = vpop.xlane.xlu0 %4749
        %4751 = vadd.xlane.f32.xlu0 %v4720
        %v4752 = vpop.xlane.xlu0 %4751
        %4753 = vadd.xlane.f32.xlu0 %v4722
        %v4754 = vpop.xlane.xlu0 %4753
        %4755 = vadd.xlane.f32.xlu0 %v4724
        %v4756 = vpop.xlane.xlu0 %4755
        %4757 = vadd.xlane.f32.xlu0 %v4726
        %v4758 = vpop.xlane.xlu0 %4757
        %4759 = vadd.xlane.f32.xlu0 %v4728
        %v4760 = vpop.xlane.xlu0 %4759
        %4761 = vadd.xlane.f32.xlu0 %v4730
        %v4762 = vpop.xlane.xlu0 %4761
        %4763 = vadd.xlane.f32.xlu0 %v4732
        %v4764 = vpop.xlane.xlu0 %4763
        %4765 = vadd.xlane.f32.xlu0 %v4734
        %v4766 = vpop.xlane.xlu0 %4765
        %4767 = vadd.xlane.f32.xlu0 %v4736
        %v4768 = vpop.xlane.xlu0 %4767
        %4769 = vadd.xlane.f32.xlu0 %v4738
        %v4770 = vpop.xlane.xlu0 %4769
        %4771 = vadd.xlane.f32.xlu0 %v4740
        %v4772 = vpop.xlane.xlu0 %4771
        %4773 = vadd.xlane.f32.xlu0 %v4742
        %v4774 = vpop.xlane.xlu0 %4773
        %v4775 = vrcp.pop %v4744
        %v4776 = vrcp.pop %v4746
        %v4777 = vrcp.pop %v4748
        %v4778 = vrcp.pop %v4750
        %v4779 = vrcp.pop %v4752
        %v4780 = vrcp.pop %v4754
        %v4781 = vrcp.pop %v4756
        %v4782 = vrcp.pop %v4758
        %v4783 = vrcp.pop %v4760
        %v4784 = vrcp.pop %v4762
        %v4785 = vrcp.pop %v4764
        %v4786 = vrcp.pop %v4766
        %v4787 = vrcp.pop %v4768
        %v4788 = vrcp.pop %v4770
        %v4789 = vrcp.pop %v4772
        %v4790 = vrcp.pop %v4774
        %v4791 = vmul.f32 %v4712, %v4775
        %v4792 = vmul.f32 %v4714, %v4776
        %v4793 = vmul.f32 %v4716, %v4777
        %v4794 = vmul.f32 %v4718, %v4778
        %v4795 = vmul.f32 %v4720, %v4779
        %v4796 = vmul.f32 %v4722, %v4780
        %v4797 = vmul.f32 %v4724, %v4781
        %v4798 = vmul.f32 %v4726, %v4782
        %v4799 = vmul.f32 %v4728, %v4783
        %v4800 = vmul.f32 %v4730, %v4784
        %v4801 = vmul.f32 %v4732, %v4785
        %v4802 = vmul.f32 %v4734, %v4786
        %v4803 = vmul.f32 %v4736, %v4787
        %v4804 = vmul.f32 %v4738, %v4788
        %v4805 = vmul.f32 %v4740, %v4789
        %v4806 = vmul.f32 %v4742, %v4790
        %v4807 = vpack.c.bf16 %v4792, %v4791
        %v4808 = vpack.c.bf16 %v4794, %v4793
        %v4809 = vpack.c.bf16 %v4796, %v4795
        %v4810 = vpack.c.bf16 %v4798, %v4797
        %v4811 = vpack.c.bf16 %v4800, %v4799
        %v4812 = vpack.c.bf16 %v4802, %v4801
        %v4813 = vpack.c.bf16 %v4804, %v4803
        %v4814 = vpack.c.bf16 %v4806, %v4805
        %4815 = vmatprep.subr.bf16.mxu0 0
        %4816 = vmatpush1.bf16.msra.mxu0 %v4513
        %4817 = vmatprep.subr.bf16.mxu0 0
        %4818 = vmatpush1.bf16.msra.mxu0 %v4512
        %4819 = vmatprep.subr.bf16.mxu0 0
        %4820 = vmatpush1.bf16.msra.mxu0 %v4511
        %4821 = vmatprep.subr.bf16.mxu0 0
        %4822 = vmatpush1.bf16.msra.mxu0 %v4510
        %4823 = vmatprep.subr.bf16.mxu0 0
        %4824 = vmatpush1.bf16.msra.mxu0 %v4509
        %4825 = vmatprep.subr.bf16.mxu0 0
        %4826 = vmatpush1.bf16.msra.mxu0 %v4508
        %4827 = vmatprep.subr.bf16.mxu0 0
        %4828 = vmatpush1.bf16.msra.mxu0 %v4507
        %4829 = vmatprep.subr.bf16.mxu0 0
        %4830 = vmatpush1.bf16.msra.mxu0 %v4506
        %4831 = vmatprep.subr.bf16.mxu0 0
        %4832 = vmatpush2.bf16.msra.mxu0 0
        %4833 = vmatprep.subr.bf16.mxu0 0
        %4834 = vmatpush2.bf16.msra.mxu0 0
        %4835 = vmatprep.subr.bf16.mxu0 0
        %4836 = vmatpush2.bf16.msra.mxu0 0
        %4837 = vmatprep.subr.bf16.mxu0 0
        %4838 = vmatpush2.bf16.msra.mxu0 0
        %4839 = vmatprep.subr.bf16.mxu0 0
        %4840 = vmatpush2.bf16.msra.mxu0 0
        %4841 = vmatprep.subr.bf16.mxu0 0
        %4842 = vmatpush2.bf16.msra.mxu0 0
        %4843 = vmatprep.subr.bf16.mxu0 0
        %4844 = vmatpush2.bf16.msra.mxu0 0
        %4845 = vmatprep.subr.bf16.mxu0 0
        %4846 = vmatpush2.bf16.msra.mxu0 0
        %4847 = vmatprep.mubr.bf16.mxu0 0
        %4848 = vmatmul.mubr.bf16.gmra.mxu0 %v4807
        %v4849 = vpop.f32.mrf.mxu0
        %v4850 = vadd.f32 0.0, %v4849
        %v4851 = vpop.f32.mrf.mxu0
        %v4852 = vpop.f32.mrf.mxu0
        %v4853 = vadd.f32 0.0, %v4852
        %v4854 = vpop.f32.mrf.mxu0
        %4855 = vmatprep.mubr.bf16.mxu0 0
        %4856 = vmatmul.mubr.bf16.gmra.mxu0 %v4808
        %v4857 = vpop.f32.mrf.mxu0
        %v4858 = vadd.f32 0.0, %v4857
        %v4859 = vpop.f32.mrf.mxu0
        %v4860 = vpop.f32.mrf.mxu0
        %v4861 = vadd.f32 0.0, %v4860
        %v4862 = vpop.f32.mrf.mxu0
        %4863 = vmatprep.mubr.bf16.mxu0 0
        %4864 = vmatmul.mubr.bf16.gmra.mxu0 %v4809
        %v4865 = vpop.f32.mrf.mxu0
        %v4866 = vadd.f32 0.0, %v4865
        %v4867 = vpop.f32.mrf.mxu0
        %v4868 = vpop.f32.mrf.mxu0
        %v4869 = vadd.f32 0.0, %v4868
        %v4870 = vpop.f32.mrf.mxu0
        %4871 = vmatprep.mubr.bf16.mxu0 0
        %4872 = vmatmul.mubr.bf16.gmra.mxu0 %v4810
        %v4873 = vpop.f32.mrf.mxu0
        %v4874 = vadd.f32 0.0, %v4873
        %v4875 = vpop.f32.mrf.mxu0
        %v4876 = vpop.f32.mrf.mxu0
        %v4877 = vadd.f32 0.0, %v4876
        %v4878 = vpop.f32.mrf.mxu0
        %4879 = vmatprep.mubr.bf16.mxu0 0
        %4880 = vmatmul.mubr.bf16.gmra.mxu0 %v4811
        %v4881 = vpop.f32.mrf.mxu0
        %v4882 = vadd.f32 0.0, %v4881
        %v4883 = vpop.f32.mrf.mxu0
        %v4884 = vpop.f32.mrf.mxu0
        %v4885 = vadd.f32 0.0, %v4884
        %v4886 = vpop.f32.mrf.mxu0
        %4887 = vmatprep.mubr.bf16.mxu0 0
        %4888 = vmatmul.mubr.bf16.gmra.mxu0 %v4812
        %v4889 = vpop.f32.mrf.mxu0
        %v4890 = vadd.f32 0.0, %v4889
        %v4891 = vpop.f32.mrf.mxu0
        %v4892 = vpop.f32.mrf.mxu0
        %v4893 = vadd.f32 0.0, %v4892
        %v4894 = vpop.f32.mrf.mxu0
        %4895 = vmatprep.mubr.bf16.mxu0 0
        %4896 = vmatmul.mubr.bf16.gmra.mxu0 %v4813
        %v4897 = vpop.f32.mrf.mxu0
        %v4898 = vadd.f32 0.0, %v4897
        %v4899 = vpop.f32.mrf.mxu0
        %v4900 = vpop.f32.mrf.mxu0
        %v4901 = vadd.f32 0.0, %v4900
        %v4902 = vpop.f32.mrf.mxu0
        %4903 = vmatprep.mubr.bf16.mxu0 0
        %4904 = vmatmul.mubr.bf16.gmra.mxu0 %v4814
        %v4905 = vpop.f32.mrf.mxu0
        %v4906 = vadd.f32 0.0, %v4905
        %v4907 = vpop.f32.mrf.mxu0
        %v4908 = vpop.f32.mrf.mxu0
        %v4909 = vadd.f32 0.0, %v4908
        %v4910 = vpop.f32.mrf.mxu0
        %4911 = vdwg.mxu0
        %v4912 = vpack.c.bf16 %v4853, %v4850
        %v4913 = vpack.c.bf16 %v4861, %v4858
        %v4914 = vpack.c.bf16 %v4869, %v4866
        %v4915 = vpack.c.bf16 %v4877, %v4874
        %v4916 = vpack.c.bf16 %v4885, %v4882
        %v4917 = vpack.c.bf16 %v4893, %v4890
        %v4918 = vpack.c.bf16 %v4901, %v4898
        %v4919 = vpack.c.bf16 %v4909, %v4906
        %v4921 = vsel %vm1821, %v4912, 0
        %v4924 = vsel %vm1821, %v4913, 0
        %v4927 = vsel %vm1821, %v4914, 0
        %v4930 = vsel %vm1821, %v4915, 0
        %v4933 = vsel %vm1821, %v4916, 0
        %v4936 = vsel %vm1821, %v4917, 0
        %v4939 = vsel %vm1821, %v4918, 0
        %v4942 = vsel %vm1821, %v4919, 0
        %4944 = vmatprep.subr.bf16.mxu0 0
        %4945 = vmatpush1.bf16.msra.mxu0 0
        %4946 = vmatprep.subr.bf16.mxu0 0
        %4947 = vmatpush1.bf16.msra.mxu0 0
        %4948 = vmatprep.subr.bf16.mxu0 0
        %4949 = vmatpush1.bf16.msra.mxu0 0
        %4950 = vmatprep.subr.bf16.mxu0 0
        %4951 = vmatpush1.bf16.msra.mxu0 0
        %4952 = vmatprep.subr.bf16.mxu0 0
        %4953 = vmatpush1.bf16.msra.mxu0 0
        %4954 = vmatprep.subr.bf16.mxu0 0
        %4955 = vmatpush1.bf16.msra.mxu0 0
        %4956 = vmatprep.subr.bf16.mxu0 0
        %4957 = vmatpush1.bf16.msra.mxu0 %v2233
        %4958 = vmatprep.subr.bf16.mxu0 0
        %4959 = vmatpush1.bf16.msra.mxu0 %v2232
        %4960 = vmatprep.subr.bf16.mxu0 0
        %4961 = vmatpush2.bf16.msra.mxu0 0
        %4962 = vmatprep.subr.bf16.mxu0 0
        %4963 = vmatpush2.bf16.msra.mxu0 0
        %4964 = vmatprep.subr.bf16.mxu0 0
        %4965 = vmatpush2.bf16.msra.mxu0 0
        %4966 = vmatprep.subr.bf16.mxu0 0
        %4967 = vmatpush2.bf16.msra.mxu0 0
        %4968 = vmatprep.subr.bf16.mxu0 0
        %4969 = vmatpush2.bf16.msra.mxu0 0
        %4970 = vmatprep.subr.bf16.mxu0 0
        %4971 = vmatpush2.bf16.msra.mxu0 0
        %4972 = vmatprep.subr.bf16.mxu0 0
        %4973 = vmatpush2.bf16.msra.mxu0 0
        %4974 = vmatprep.subr.bf16.mxu0 0
        %4975 = vmatpush2.bf16.msra.mxu0 0
        %4976 = vmatprep.mubr.bf16.mxu0 0
        %4977 = vmatmul.mubr.bf16.gmra.mxu0 %v4921
        %v4978 = vpop.f32.mrf.mxu0
        %v4979 = vadd.f32 0.0, %v4978
        %v4980 = vpop.f32.mrf.mxu0
        %v4981 = vpop.f32.mrf.mxu0
        %v4982 = vadd.f32 0.0, %v4981
        %v4983 = vpop.f32.mrf.mxu0
        %4984 = vmatprep.mubr.bf16.mxu0 0
        %4985 = vmatmul.mubr.bf16.gmra.mxu0 %v4924
        %v4986 = vpop.f32.mrf.mxu0
        %v4987 = vadd.f32 0.0, %v4986
        %v4988 = vpop.f32.mrf.mxu0
        %v4989 = vpop.f32.mrf.mxu0
        %v4990 = vadd.f32 0.0, %v4989
        %v4991 = vpop.f32.mrf.mxu0
        %4992 = vmatprep.mubr.bf16.mxu0 0
        %4993 = vmatmul.mubr.bf16.gmra.mxu0 %v4927
        %v4994 = vpop.f32.mrf.mxu0
        %v4995 = vadd.f32 0.0, %v4994
        %v4996 = vpop.f32.mrf.mxu0
        %v4997 = vpop.f32.mrf.mxu0
        %v4998 = vadd.f32 0.0, %v4997
        %v4999 = vpop.f32.mrf.mxu0
        %5000 = vmatprep.mubr.bf16.mxu0 0
        %5001 = vmatmul.mubr.bf16.gmra.mxu0 %v4930
        %v5002 = vpop.f32.mrf.mxu0
        %v5003 = vadd.f32 0.0, %v5002
        %v5004 = vpop.f32.mrf.mxu0
        %v5005 = vpop.f32.mrf.mxu0
        %v5006 = vadd.f32 0.0, %v5005
        %v5007 = vpop.f32.mrf.mxu0
        %5008 = vmatprep.mubr.bf16.mxu0 0
        %5009 = vmatmul.mubr.bf16.gmra.mxu0 %v4933
        %v5010 = vpop.f32.mrf.mxu0
        %v5011 = vadd.f32 0.0, %v5010
        %v5012 = vpop.f32.mrf.mxu0
        %v5013 = vpop.f32.mrf.mxu0
        %v5014 = vadd.f32 0.0, %v5013
        %v5015 = vpop.f32.mrf.mxu0
        %5016 = vmatprep.mubr.bf16.mxu0 0
        %5017 = vmatmul.mubr.bf16.gmra.mxu0 %v4936
        %v5018 = vpop.f32.mrf.mxu0
        %v5019 = vadd.f32 0.0, %v5018
        %v5020 = vpop.f32.mrf.mxu0
        %v5021 = vpop.f32.mrf.mxu0
        %v5022 = vadd.f32 0.0, %v5021
        %v5023 = vpop.f32.mrf.mxu0
        %5024 = vmatprep.mubr.bf16.mxu0 0
        %5025 = vmatmul.mubr.bf16.gmra.mxu0 %v4939
        %v5026 = vpop.f32.mrf.mxu0
        %v5027 = vadd.f32 0.0, %v5026
        %v5028 = vpop.f32.mrf.mxu0
        %v5029 = vpop.f32.mrf.mxu0
        %v5030 = vadd.f32 0.0, %v5029
        %v5031 = vpop.f32.mrf.mxu0
        %5032 = vmatprep.mubr.bf16.mxu0 0
        %5033 = vmatmul.mubr.bf16.gmra.mxu0 %v4942
        %v5034 = vpop.f32.mrf.mxu0
        %v5035 = vadd.f32 0.0, %v5034
        %v5036 = vpop.f32.mrf.mxu0
        %v5037 = vpop.f32.mrf.mxu0
        %v5038 = vadd.f32 0.0, %v5037
        %v5039 = vpop.f32.mrf.mxu0
        %5040 = vdwg.mxu0
        %v5041 = vadd.f32 %v698, %v4979
        %v5042 = vadd.f32 %v699, %v4982
        %v5043 = vadd.f32 %v700, %v4987
        %v5044 = vadd.f32 %v701, %v4990
        %v5045 = vadd.f32 %v702, %v4995
        %v5046 = vadd.f32 %v703, %v4998
        %v5047 = vadd.f32 %v704, %v5003
        %v5048 = vadd.f32 %v705, %v5006
        %v5049 = vadd.f32 %v706, %v5011
        %v5050 = vadd.f32 %v707, %v5014
        %v5051 = vadd.f32 %v708, %v5019
        %v5052 = vadd.f32 %v709, %v5022
        %v5053 = vadd.f32 %v710, %v5027
        %v5054 = vadd.f32 %v711, %v5030
        %v5055 = vadd.f32 %v712, %v5035
        %v5056 = vadd.f32 %v713, %v5038
        %5065 = vrot.lane.b32.xlu0 %v4362, 96
        %v5066 = vpop.permute.xlu0 %5065
        %5067 = vrot.lane.b32.xlu0 %v4363, 96
        %v5068 = vpop.permute.xlu0 %5067
        %5069 = vrot.lane.b32.xlu0 %v4364, 96
        %v5070 = vpop.permute.xlu0 %5069
        %5071 = vrot.lane.b32.xlu0 %v4365, 96
        %v5072 = vpop.permute.xlu0 %5071
        %5073 = vrot.lane.b32.xlu0 %v4366, 96
        %v5074 = vpop.permute.xlu0 %5073
        %5075 = vrot.lane.b32.xlu0 %v4367, 96
        %v5076 = vpop.permute.xlu0 %5075
        %5077 = vrot.lane.b32.xlu0 %v4368, 96
        %v5078 = vpop.permute.xlu0 %5077
        %5079 = vrot.lane.b32.xlu0 %v4369, 96
        %v5080 = vpop.permute.xlu0 %5079
        %5089 = vrot.lane.b32.xlu0 %v4498, 96
        %v5090 = vpop.permute.xlu0 %5089
        %5091 = vrot.lane.b32.xlu0 %v4499, 96
        %v5092 = vpop.permute.xlu0 %5091
        %5093 = vrot.lane.b32.xlu0 %v4500, 96
        %v5094 = vpop.permute.xlu0 %5093
        %5095 = vrot.lane.b32.xlu0 %v4501, 96
        %v5096 = vpop.permute.xlu0 %5095
        %5097 = vrot.lane.b32.xlu0 %v4502, 96
        %v5098 = vpop.permute.xlu0 %5097
        %5099 = vrot.lane.b32.xlu0 %v4503, 96
        %v5100 = vpop.permute.xlu0 %5099
        %5101 = vrot.lane.b32.xlu0 %v4504, 96
        %v5102 = vpop.permute.xlu0 %5101
        %5103 = vrot.lane.b32.xlu0 %v4505, 96
        %v5104 = vpop.permute.xlu0 %5103
        %v5106 = vsel %vm1821, %v5066, 0
        %v5109 = vsel %vm1821, %v5068, 0
        %v5112 = vsel %vm1821, %v5070, 0
        %v5115 = vsel %vm1821, %v5072, 0
        %v5118 = vsel %vm1821, %v5074, 0
        %v5121 = vsel %vm1821, %v5076, 0
        %v5124 = vsel %vm1821, %v5078, 0
        %v5127 = vsel %vm1821, %v5080, 0
        %v5130 = vsel %vm1821, %v5090, 0
        %v5133 = vsel %vm1821, %v5092, 0
        %v5136 = vsel %vm1821, %v5094, 0
        %v5139 = vsel %vm1821, %v5096, 0
        %v5142 = vsel %vm1821, %v5098, 0
        %v5145 = vsel %vm1821, %v5100, 0
        %v5148 = vsel %vm1821, %v5102, 0
        %v5151 = vsel %vm1821, %v5104, 0
        %5153 = vmatprep.subr.bf16.mxu0 0
        %5154 = vmatpush1.bf16.xpose.msra.mxu0 %v5151
        %5155 = vmatprep.subr.bf16.mxu0 0
        %5156 = vmatpush1.bf16.xpose.msra.mxu0 %v5148
        %5157 = vmatprep.subr.bf16.mxu0 0
        %5158 = vmatpush1.bf16.xpose.msra.mxu0 %v5145
        %5159 = vmatprep.subr.bf16.mxu0 0
        %5160 = vmatpush1.bf16.xpose.msra.mxu0 %v5142
        %5161 = vmatprep.subr.bf16.mxu0 0
        %5162 = vmatpush1.bf16.xpose.msra.mxu0 %v5139
        %5163 = vmatprep.subr.bf16.mxu0 0
        %5164 = vmatpush1.bf16.xpose.msra.mxu0 %v5136
        %5165 = vmatprep.subr.bf16.mxu0 0
        %5166 = vmatpush1.bf16.xpose.msra.mxu0 %v5133
        %5167 = vmatprep.subr.bf16.mxu0 0
        %5168 = vmatpush1.bf16.xpose.msra.mxu0 %v5130
        %5169 = vmatprep.subr.bf16.mxu0 0
        %5170 = vmatpush2.bf16.xpose.msra.mxu0 0
        %5171 = vmatprep.subr.bf16.mxu0 0
        %5172 = vmatpush2.bf16.xpose.msra.mxu0 0
        %5173 = vmatprep.subr.bf16.mxu0 0
        %5174 = vmatpush2.bf16.xpose.msra.mxu0 0
        %5175 = vmatprep.subr.bf16.mxu0 0
        %5176 = vmatpush2.bf16.xpose.msra.mxu0 0
        %5177 = vmatprep.subr.bf16.mxu0 0
        %5178 = vmatpush2.bf16.xpose.msra.mxu0 0
        %5179 = vmatprep.subr.bf16.mxu0 0
        %5180 = vmatpush2.bf16.xpose.msra.mxu0 0
        %5181 = vmatprep.subr.bf16.mxu0 0
        %5182 = vmatpush2.bf16.xpose.msra.mxu0 0
        %5183 = vmatprep.subr.bf16.mxu0 0
        %5184 = vmatpush2.bf16.xpose.msra.mxu0 0
        %5185 = vmatprep.mubr.bf16.mxu0 0
        %5186 = vmatmul.mubr.bf16.gmra.mxu0 %v5106
        %v5187 = vpop.f32.mrf.mxu0
        %v5188 = vadd.f32 %v4517, %v5187
        %v5189 = vpop.f32.mrf.mxu0
        %v5190 = vpop.f32.mrf.mxu0
        %v5191 = vadd.f32 %v4517, %v5190
        %v5192 = vpop.f32.mrf.mxu0
        %5193 = vmatprep.mubr.bf16.mxu0 0
        %5194 = vmatmul.mubr.bf16.gmra.mxu0 %v5109
        %v5195 = vpop.f32.mrf.mxu0
        %v5196 = vadd.f32 %v4517, %v5195
        %v5197 = vpop.f32.mrf.mxu0
        %v5198 = vpop.f32.mrf.mxu0
        %v5199 = vadd.f32 %v4517, %v5198
        %v5200 = vpop.f32.mrf.mxu0
        %5201 = vmatprep.mubr.bf16.mxu0 0
        %5202 = vmatmul.mubr.bf16.gmra.mxu0 %v5112
        %v5203 = vpop.f32.mrf.mxu0
        %v5204 = vadd.f32 %v4517, %v5203
        %v5205 = vpop.f32.mrf.mxu0
        %v5206 = vpop.f32.mrf.mxu0
        %v5207 = vadd.f32 %v4517, %v5206
        %v5208 = vpop.f32.mrf.mxu0
        %5209 = vmatprep.mubr.bf16.mxu0 0
        %5210 = vmatmul.mubr.bf16.gmra.mxu0 %v5115
        %v5211 = vpop.f32.mrf.mxu0
        %v5212 = vadd.f32 %v4517, %v5211
        %v5213 = vpop.f32.mrf.mxu0
        %v5214 = vpop.f32.mrf.mxu0
        %v5215 = vadd.f32 %v4517, %v5214
        %v5216 = vpop.f32.mrf.mxu0
        %5217 = vmatprep.mubr.bf16.mxu0 0
        %5218 = vmatmul.mubr.bf16.gmra.mxu0 %v5118
        %v5219 = vpop.f32.mrf.mxu0
        %v5220 = vadd.f32 %v4517, %v5219
        %v5221 = vpop.f32.mrf.mxu0
        %v5222 = vpop.f32.mrf.mxu0
        %v5223 = vadd.f32 %v4517, %v5222
        %v5224 = vpop.f32.mrf.mxu0
        %5225 = vmatprep.mubr.bf16.mxu0 0
        %5226 = vmatmul.mubr.bf16.gmra.mxu0 %v5121
        %v5227 = vpop.f32.mrf.mxu0
        %v5228 = vadd.f32 %v4517, %v5227
        %v5229 = vpop.f32.mrf.mxu0
        %v5230 = vpop.f32.mrf.mxu0
        %v5231 = vadd.f32 %v4517, %v5230
        %v5232 = vpop.f32.mrf.mxu0
        %5233 = vmatprep.mubr.bf16.mxu0 0
        %5234 = vmatmul.mubr.bf16.gmra.mxu0 %v5124
        %v5235 = vpop.f32.mrf.mxu0
        %v5236 = vadd.f32 %v4517, %v5235
        %v5237 = vpop.f32.mrf.mxu0
        %v5238 = vpop.f32.mrf.mxu0
        %v5239 = vadd.f32 %v4517, %v5238
        %v5240 = vpop.f32.mrf.mxu0
        %5241 = vmatprep.mubr.bf16.mxu0 0
        %5242 = vmatmul.mubr.bf16.gmra.mxu0 %v5127
        %v5243 = vpop.f32.mrf.mxu0
        %v5244 = vadd.f32 %v4517, %v5243
        %v5245 = vpop.f32.mrf.mxu0
        %v5246 = vpop.f32.mrf.mxu0
        %v5247 = vadd.f32 %v4517, %v5246
        %v5248 = vpop.f32.mrf.mxu0
        %5249 = vdwg.mxu0
        %5250 = vmax.xlane.f32.xlu0 %v5188
        %v5251 = vpop.xlane.xlu0 %5250
        %5252 = vmax.xlane.f32.xlu0 %v5191
        %v5253 = vpop.xlane.xlu0 %5252
        %5254 = vmax.xlane.f32.xlu0 %v5196
        %v5255 = vpop.xlane.xlu0 %5254
        %5256 = vmax.xlane.f32.xlu0 %v5199
        %v5257 = vpop.xlane.xlu0 %5256
        %5258 = vmax.xlane.f32.xlu0 %v5204
        %v5259 = vpop.xlane.xlu0 %5258
        %5260 = vmax.xlane.f32.xlu0 %v5207
        %v5261 = vpop.xlane.xlu0 %5260
        %5262 = vmax.xlane.f32.xlu0 %v5212
        %v5263 = vpop.xlane.xlu0 %5262
        %5264 = vmax.xlane.f32.xlu0 %v5215
        %v5265 = vpop.xlane.xlu0 %5264
        %5266 = vmax.xlane.f32.xlu0 %v5220
        %v5267 = vpop.xlane.xlu0 %5266
        %5268 = vmax.xlane.f32.xlu0 %v5223
        %v5269 = vpop.xlane.xlu0 %5268
        %5270 = vmax.xlane.f32.xlu0 %v5228
        %v5271 = vpop.xlane.xlu0 %5270
        %5272 = vmax.xlane.f32.xlu0 %v5231
        %v5273 = vpop.xlane.xlu0 %5272
        %5274 = vmax.xlane.f32.xlu0 %v5236
        %v5275 = vpop.xlane.xlu0 %5274
        %5276 = vmax.xlane.f32.xlu0 %v5239
        %v5277 = vpop.xlane.xlu0 %5276
        %5278 = vmax.xlane.f32.xlu0 %v5244
        %v5279 = vpop.xlane.xlu0 %5278
        %5280 = vmax.xlane.f32.xlu0 %v5247
        %v5281 = vpop.xlane.xlu0 %5280
        %v5282 = vsub.f32 %v5188, %v5251
        %v5283 = vsub.f32 %v5191, %v5253
        %v5284 = vsub.f32 %v5196, %v5255
        %v5285 = vsub.f32 %v5199, %v5257
        %v5286 = vsub.f32 %v5204, %v5259
        %v5287 = vsub.f32 %v5207, %v5261
        %v5288 = vsub.f32 %v5212, %v5263
        %v5289 = vsub.f32 %v5215, %v5265
        %v5290 = vsub.f32 %v5220, %v5267
        %v5291 = vsub.f32 %v5223, %v5269
        %v5292 = vsub.f32 %v5228, %v5271
        %v5293 = vsub.f32 %v5231, %v5273
        %v5294 = vsub.f32 %v5236, %v5275
        %v5295 = vsub.f32 %v5239, %v5277
        %v5296 = vsub.f32 %v5244, %v5279
        %v5297 = vsub.f32 %v5247, %v5281
        %v5298 = vmul.f32 %v5282, 1.442695
        %v5299 = vpow.pop %v5298
        %v5300 = vmul.f32 %v5283, 1.442695
        %v5301 = vpow.pop %v5300
        %v5302 = vmul.f32 %v5284, 1.442695
        %v5303 = vpow.pop %v5302
        %v5304 = vmul.f32 %v5285, 1.442695
        %v5305 = vpow.pop %v5304
        %v5306 = vmul.f32 %v5286, 1.442695
        %v5307 = vpow.pop %v5306
        %v5308 = vmul.f32 %v5287, 1.442695
        %v5309 = vpow.pop %v5308
        %v5310 = vmul.f32 %v5288, 1.442695
        %v5311 = vpow.pop %v5310
        %v5312 = vmul.f32 %v5289, 1.442695
        %v5313 = vpow.pop %v5312
        %v5314 = vmul.f32 %v5290, 1.442695
        %v5315 = vpow.pop %v5314
        %v5316 = vmul.f32 %v5291, 1.442695
        %v5317 = vpow.pop %v5316
        %v5318 = vmul.f32 %v5292, 1.442695
        %v5319 = vpow.pop %v5318
        %v5320 = vmul.f32 %v5293, 1.442695
        %v5321 = vpow.pop %v5320
        %v5322 = vmul.f32 %v5294, 1.442695
        %v5323 = vpow.pop %v5322
        %v5324 = vmul.f32 %v5295, 1.442695
        %v5325 = vpow.pop %v5324
        %v5326 = vmul.f32 %v5296, 1.442695
        %v5327 = vpow.pop %v5326
        %v5328 = vmul.f32 %v5297, 1.442695
        %v5329 = vpow.pop %v5328
        %5330 = vadd.xlane.f32.xlu0 %v5299
        %v5331 = vpop.xlane.xlu0 %5330
        %5332 = vadd.xlane.f32.xlu0 %v5301
        %v5333 = vpop.xlane.xlu0 %5332
        %5334 = vadd.xlane.f32.xlu0 %v5303
        %v5335 = vpop.xlane.xlu0 %5334
        %5336 = vadd.xlane.f32.xlu0 %v5305
        %v5337 = vpop.xlane.xlu0 %5336
        %5338 = vadd.xlane.f32.xlu0 %v5307
        %v5339 = vpop.xlane.xlu0 %5338
        %5340 = vadd.xlane.f32.xlu0 %v5309
        %v5341 = vpop.xlane.xlu0 %5340
        %5342 = vadd.xlane.f32.xlu0 %v5311
        %v5343 = vpop.xlane.xlu0 %5342
        %5344 = vadd.xlane.f32.xlu0 %v5313
        %v5345 = vpop.xlane.xlu0 %5344
        %5346 = vadd.xlane.f32.xlu0 %v5315
        %v5347 = vpop.xlane.xlu0 %5346
        %5348 = vadd.xlane.f32.xlu0 %v5317
        %v5349 = vpop.xlane.xlu0 %5348
        %5350 = vadd.xlane.f32.xlu0 %v5319
        %v5351 = vpop.xlane.xlu0 %5350
        %5352 = vadd.xlane.f32.xlu0 %v5321
        %v5353 = vpop.xlane.xlu0 %5352
        %5354 = vadd.xlane.f32.xlu0 %v5323
        %v5355 = vpop.xlane.xlu0 %5354
        %5356 = vadd.xlane.f32.xlu0 %v5325
        %v5357 = vpop.xlane.xlu0 %5356
        %5358 = vadd.xlane.f32.xlu0 %v5327
        %v5359 = vpop.xlane.xlu0 %5358
        %5360 = vadd.xlane.f32.xlu0 %v5329
        %v5361 = vpop.xlane.xlu0 %5360
        %v5362 = vrcp.pop %v5331
        %v5363 = vrcp.pop %v5333
        %v5364 = vrcp.pop %v5335
        %v5365 = vrcp.pop %v5337
        %v5366 = vrcp.pop %v5339
        %v5367 = vrcp.pop %v5341
        %v5368 = vrcp.pop %v5343
        %v5369 = vrcp.pop %v5345
        %v5370 = vrcp.pop %v5347
        %v5371 = vrcp.pop %v5349
        %v5372 = vrcp.pop %v5351
        %v5373 = vrcp.pop %v5353
        %v5374 = vrcp.pop %v5355
        %v5375 = vrcp.pop %v5357
        %v5376 = vrcp.pop %v5359
        %v5377 = vrcp.pop %v5361
        %v5378 = vmul.f32 %v5299, %v5362
        %v5379 = vmul.f32 %v5301, %v5363
        %v5380 = vmul.f32 %v5303, %v5364
        %v5381 = vmul.f32 %v5305, %v5365
        %v5382 = vmul.f32 %v5307, %v5366
        %v5383 = vmul.f32 %v5309, %v5367
        %v5384 = vmul.f32 %v5311, %v5368
        %v5385 = vmul.f32 %v5313, %v5369
        %v5386 = vmul.f32 %v5315, %v5370
        %v5387 = vmul.f32 %v5317, %v5371
        %v5388 = vmul.f32 %v5319, %v5372
        %v5389 = vmul.f32 %v5321, %v5373
        %v5390 = vmul.f32 %v5323, %v5374
        %v5391 = vmul.f32 %v5325, %v5375
        %v5392 = vmul.f32 %v5327, %v5376
        %v5393 = vmul.f32 %v5329, %v5377
        %v5394 = vpack.c.bf16 %v5379, %v5378
        %v5395 = vpack.c.bf16 %v5381, %v5380
        %v5396 = vpack.c.bf16 %v5383, %v5382
        %v5397 = vpack.c.bf16 %v5385, %v5384
        %v5398 = vpack.c.bf16 %v5387, %v5386
        %v5399 = vpack.c.bf16 %v5389, %v5388
        %v5400 = vpack.c.bf16 %v5391, %v5390
        %v5401 = vpack.c.bf16 %v5393, %v5392
        %5410 = vrot.lane.b32.xlu0 %v4506, 96
        %v5411 = vpop.permute.xlu0 %5410
        %5412 = vrot.lane.b32.xlu0 %v4507, 96
        %v5413 = vpop.permute.xlu0 %5412
        %5414 = vrot.lane.b32.xlu0 %v4508, 96
        %v5415 = vpop.permute.xlu0 %5414
        %5416 = vrot.lane.b32.xlu0 %v4509, 96
        %v5417 = vpop.permute.xlu0 %5416
        %5418 = vrot.lane.b32.xlu0 %v4510, 96
        %v5419 = vpop.permute.xlu0 %5418
        %5420 = vrot.lane.b32.xlu0 %v4511, 96
        %v5421 = vpop.permute.xlu0 %5420
        %5422 = vrot.lane.b32.xlu0 %v4512, 96
        %v5423 = vpop.permute.xlu0 %5422
        %5424 = vrot.lane.b32.xlu0 %v4513, 96
        %v5425 = vpop.permute.xlu0 %5424
        %5434 = vmatprep.subr.bf16.mxu0 0
        %5435 = vmatpush1.bf16.msra.mxu0 %v5425
        %5436 = vmatprep.subr.bf16.mxu0 0
        %5437 = vmatpush1.bf16.msra.mxu0 %v5423
        %5438 = vmatprep.subr.bf16.mxu0 0
        %5439 = vmatpush1.bf16.msra.mxu0 %v5421
        %5440 = vmatprep.subr.bf16.mxu0 0
        %5441 = vmatpush1.bf16.msra.mxu0 %v5419
        %5442 = vmatprep.subr.bf16.mxu0 0
        %5443 = vmatpush1.bf16.msra.mxu0 %v5417
        %5444 = vmatprep.subr.bf16.mxu0 0
        %5445 = vmatpush1.bf16.msra.mxu0 %v5415
        %5446 = vmatprep.subr.bf16.mxu0 0
        %5447 = vmatpush1.bf16.msra.mxu0 %v5413
        %5448 = vmatprep.subr.bf16.mxu0 0
        %5449 = vmatpush1.bf16.msra.mxu0 %v5411
        %5450 = vmatprep.subr.bf16.mxu0 0
        %5451 = vmatpush2.bf16.msra.mxu0 0
        %5452 = vmatprep.subr.bf16.mxu0 0
        %5453 = vmatpush2.bf16.msra.mxu0 0
        %5454 = vmatprep.subr.bf16.mxu0 0
        %5455 = vmatpush2.bf16.msra.mxu0 0
        %5456 = vmatprep.subr.bf16.mxu0 0
        %5457 = vmatpush2.bf16.msra.mxu0 0
        %5458 = vmatprep.subr.bf16.mxu0 0
        %5459 = vmatpush2.bf16.msra.mxu0 0
        %5460 = vmatprep.subr.bf16.mxu0 0
        %5461 = vmatpush2.bf16.msra.mxu0 0
        %5462 = vmatprep.subr.bf16.mxu0 0
        %5463 = vmatpush2.bf16.msra.mxu0 0
        %5464 = vmatprep.subr.bf16.mxu0 0
        %5465 = vmatpush2.bf16.msra.mxu0 0
        %5466 = vmatprep.mubr.bf16.mxu0 0
        %5467 = vmatmul.mubr.bf16.gmra.mxu0 %v5394
        %v5468 = vpop.f32.mrf.mxu0
        %v5469 = vadd.f32 0.0, %v5468
        %v5470 = vpop.f32.mrf.mxu0
        %v5471 = vpop.f32.mrf.mxu0
        %v5472 = vadd.f32 0.0, %v5471
        %v5473 = vpop.f32.mrf.mxu0
        %5474 = vmatprep.mubr.bf16.mxu0 0
        %5475 = vmatmul.mubr.bf16.gmra.mxu0 %v5395
        %v5476 = vpop.f32.mrf.mxu0
        %v5477 = vadd.f32 0.0, %v5476
        %v5478 = vpop.f32.mrf.mxu0
        %v5479 = vpop.f32.mrf.mxu0
        %v5480 = vadd.f32 0.0, %v5479
        %v5481 = vpop.f32.mrf.mxu0
        %5482 = vmatprep.mubr.bf16.mxu0 0
        %5483 = vmatmul.mubr.bf16.gmra.mxu0 %v5396
        %v5484 = vpop.f32.mrf.mxu0
        %v5485 = vadd.f32 0.0, %v5484
        %v5486 = vpop.f32.mrf.mxu0
        %v5487 = vpop.f32.mrf.mxu0
        %v5488 = vadd.f32 0.0, %v5487
        %v5489 = vpop.f32.mrf.mxu0
        %5490 = vmatprep.mubr.bf16.mxu0 0
        %5491 = vmatmul.mubr.bf16.gmra.mxu0 %v5397
        %v5492 = vpop.f32.mrf.mxu0
        %v5493 = vadd.f32 0.0, %v5492
        %v5494 = vpop.f32.mrf.mxu0
        %v5495 = vpop.f32.mrf.mxu0
        %v5496 = vadd.f32 0.0, %v5495
        %v5497 = vpop.f32.mrf.mxu0
        %5498 = vmatprep.mubr.bf16.mxu0 0
        %5499 = vmatmul.mubr.bf16.gmra.mxu0 %v5398
        %v5500 = vpop.f32.mrf.mxu0
        %v5501 = vadd.f32 0.0, %v5500
        %v5502 = vpop.f32.mrf.mxu0
        %v5503 = vpop.f32.mrf.mxu0
        %v5504 = vadd.f32 0.0, %v5503
        %v5505 = vpop.f32.mrf.mxu0
        %5506 = vmatprep.mubr.bf16.mxu0 0
        %5507 = vmatmul.mubr.bf16.gmra.mxu0 %v5399
        %v5508 = vpop.f32.mrf.mxu0
        %v5509 = vadd.f32 0.0, %v5508
        %v5510 = vpop.f32.mrf.mxu0
        %v5511 = vpop.f32.mrf.mxu0
        %v5512 = vadd.f32 0.0, %v5511
        %v5513 = vpop.f32.mrf.mxu0
        %5514 = vmatprep.mubr.bf16.mxu0 0
        %5515 = vmatmul.mubr.bf16.gmra.mxu0 %v5400
        %v5516 = vpop.f32.mrf.mxu0
        %v5517 = vadd.f32 0.0, %v5516
        %v5518 = vpop.f32.mrf.mxu0
        %v5519 = vpop.f32.mrf.mxu0
        %v5520 = vadd.f32 0.0, %v5519
        %v5521 = vpop.f32.mrf.mxu0
        %5522 = vmatprep.mubr.bf16.mxu0 0
        %5523 = vmatmul.mubr.bf16.gmra.mxu0 %v5401
        %v5524 = vpop.f32.mrf.mxu0
        %v5525 = vadd.f32 0.0, %v5524
        %v5526 = vpop.f32.mrf.mxu0
        %v5527 = vpop.f32.mrf.mxu0
        %v5528 = vadd.f32 0.0, %v5527
        %v5529 = vpop.f32.mrf.mxu0
        %5530 = vdwg.mxu0
        %v5531 = vpack.c.bf16 %v5472, %v5469
        %v5532 = vpack.c.bf16 %v5480, %v5477
        %v5533 = vpack.c.bf16 %v5488, %v5485
        %v5534 = vpack.c.bf16 %v5496, %v5493
        %v5535 = vpack.c.bf16 %v5504, %v5501
        %v5536 = vpack.c.bf16 %v5512, %v5509
        %v5537 = vpack.c.bf16 %v5520, %v5517
        %v5538 = vpack.c.bf16 %v5528, %v5525
        %v5540 = vsel %vm1821, %v5531, 0
        %v5543 = vsel %vm1821, %v5532, 0
        %v5546 = vsel %vm1821, %v5533, 0
        %v5549 = vsel %vm1821, %v5534, 0
        %v5552 = vsel %vm1821, %v5535, 0
        %v5555 = vsel %vm1821, %v5536, 0
        %v5558 = vsel %vm1821, %v5537, 0
        %v5561 = vsel %vm1821, %v5538, 0
        %5563 = vmatprep.subr.bf16.mxu0 0
        %5564 = vmatpush1.bf16.msra.mxu0 0
        %5565 = vmatprep.subr.bf16.mxu0 0
        %5566 = vmatpush1.bf16.msra.mxu0 0
        %5567 = vmatprep.subr.bf16.mxu0 0
        %5568 = vmatpush1.bf16.msra.mxu0 0
        %5569 = vmatprep.subr.bf16.mxu0 0
        %5570 = vmatpush1.bf16.msra.mxu0 0
        %5571 = vmatprep.subr.bf16.mxu0 0
        %5572 = vmatpush1.bf16.msra.mxu0 0
        %5573 = vmatprep.subr.bf16.mxu0 0
        %5574 = vmatpush1.bf16.msra.mxu0 0
        %5575 = vmatprep.subr.bf16.mxu0 0
        %5576 = vmatpush1.bf16.msra.mxu0 %v2864
        %5577 = vmatprep.subr.bf16.mxu0 0
        %5578 = vmatpush1.bf16.msra.mxu0 %v2863
        %5579 = vmatprep.subr.bf16.mxu0 0
        %5580 = vmatpush2.bf16.msra.mxu0 0
        %5581 = vmatprep.subr.bf16.mxu0 0
        %5582 = vmatpush2.bf16.msra.mxu0 0
        %5583 = vmatprep.subr.bf16.mxu0 0
        %5584 = vmatpush2.bf16.msra.mxu0 0
        %5585 = vmatprep.subr.bf16.mxu0 0
        %5586 = vmatpush2.bf16.msra.mxu0 0
        %5587 = vmatprep.subr.bf16.mxu0 0
        %5588 = vmatpush2.bf16.msra.mxu0 0
        %5589 = vmatprep.subr.bf16.mxu0 0
        %5590 = vmatpush2.bf16.msra.mxu0 0
        %5591 = vmatprep.subr.bf16.mxu0 0
        %5592 = vmatpush2.bf16.msra.mxu0 0
        %5593 = vmatprep.subr.bf16.mxu0 0
        %5594 = vmatpush2.bf16.msra.mxu0 0
        %5595 = vmatprep.mubr.bf16.mxu0 0
        %5596 = vmatmul.mubr.bf16.gmra.mxu0 %v5540
        %v5597 = vpop.f32.mrf.mxu0
        %v5598 = vadd.f32 0.0, %v5597
        %v5599 = vpop.f32.mrf.mxu0
        %v5600 = vpop.f32.mrf.mxu0
        %v5601 = vadd.f32 0.0, %v5600
        %v5602 = vpop.f32.mrf.mxu0
        %5603 = vmatprep.mubr.bf16.mxu0 0
        %5604 = vmatmul.mubr.bf16.gmra.mxu0 %v5543
        %v5605 = vpop.f32.mrf.mxu0
        %v5606 = vadd.f32 0.0, %v5605
        %v5607 = vpop.f32.mrf.mxu0
        %v5608 = vpop.f32.mrf.mxu0
        %v5609 = vadd.f32 0.0, %v5608
        %v5610 = vpop.f32.mrf.mxu0
        %5611 = vmatprep.mubr.bf16.mxu0 0
        %5612 = vmatmul.mubr.bf16.gmra.mxu0 %v5546
        %v5613 = vpop.f32.mrf.mxu0
        %v5614 = vadd.f32 0.0, %v5613
        %v5615 = vpop.f32.mrf.mxu0
        %v5616 = vpop.f32.mrf.mxu0
        %v5617 = vadd.f32 0.0, %v5616
        %v5618 = vpop.f32.mrf.mxu0
        %5619 = vmatprep.mubr.bf16.mxu0 0
        %5620 = vmatmul.mubr.bf16.gmra.mxu0 %v5549
        %v5621 = vpop.f32.mrf.mxu0
        %v5622 = vadd.f32 0.0, %v5621
        %v5623 = vpop.f32.mrf.mxu0
        %v5624 = vpop.f32.mrf.mxu0
        %v5625 = vadd.f32 0.0, %v5624
        %v5626 = vpop.f32.mrf.mxu0
        %5627 = vmatprep.mubr.bf16.mxu0 0
        %5628 = vmatmul.mubr.bf16.gmra.mxu0 %v5552
        %v5629 = vpop.f32.mrf.mxu0
        %v5630 = vadd.f32 0.0, %v5629
        %v5631 = vpop.f32.mrf.mxu0
        %v5632 = vpop.f32.mrf.mxu0
        %v5633 = vadd.f32 0.0, %v5632
        %v5634 = vpop.f32.mrf.mxu0
        %5635 = vmatprep.mubr.bf16.mxu0 0
        %5636 = vmatmul.mubr.bf16.gmra.mxu0 %v5555
        %v5637 = vpop.f32.mrf.mxu0
        %v5638 = vadd.f32 0.0, %v5637
        %v5639 = vpop.f32.mrf.mxu0
        %v5640 = vpop.f32.mrf.mxu0
        %v5641 = vadd.f32 0.0, %v5640
        %v5642 = vpop.f32.mrf.mxu0
        %5643 = vmatprep.mubr.bf16.mxu0 0
        %5644 = vmatmul.mubr.bf16.gmra.mxu0 %v5558
        %v5645 = vpop.f32.mrf.mxu0
        %v5646 = vadd.f32 0.0, %v5645
        %v5647 = vpop.f32.mrf.mxu0
        %v5648 = vpop.f32.mrf.mxu0
        %v5649 = vadd.f32 0.0, %v5648
        %v5650 = vpop.f32.mrf.mxu0
        %5651 = vmatprep.mubr.bf16.mxu0 0
        %5652 = vmatmul.mubr.bf16.gmra.mxu0 %v5561
        %v5653 = vpop.f32.mrf.mxu0
        %v5654 = vadd.f32 0.0, %v5653
        %v5655 = vpop.f32.mrf.mxu0
        %v5656 = vpop.f32.mrf.mxu0
        %v5657 = vadd.f32 0.0, %v5656
        %v5658 = vpop.f32.mrf.mxu0
        %5659 = vdwg.mxu0
        %v5660 = vadd.f32 %v5041, %v5598
        %v5661 = vadd.f32 %v5042, %v5601
        %v5662 = vadd.f32 %v5043, %v5606
        %v5663 = vadd.f32 %v5044, %v5609
        %v5664 = vadd.f32 %v5045, %v5614
        %v5665 = vadd.f32 %v5046, %v5617
        %v5666 = vadd.f32 %v5047, %v5622
        %v5667 = vadd.f32 %v5048, %v5625
        %v5668 = vadd.f32 %v5049, %v5630
        %v5669 = vadd.f32 %v5050, %v5633
        %v5670 = vadd.f32 %v5051, %v5638
        %v5671 = vadd.f32 %v5052, %v5641
        %v5672 = vadd.f32 %v5053, %v5646
        %v5673 = vadd.f32 %v5054, %v5649
        %v5674 = vadd.f32 %v5055, %v5654
        %v5675 = vadd.f32 %v5056, %v5657
        %5676 = vrot.lane.b32.xlu0 %v4362, 64
        %v5677 = vpop.permute.xlu0 %5676
        %5678 = vrot.lane.b32.xlu0 %v4363, 64
        %v5679 = vpop.permute.xlu0 %5678
        %5680 = vrot.lane.b32.xlu0 %v4364, 64
        %v5681 = vpop.permute.xlu0 %5680
        %5682 = vrot.lane.b32.xlu0 %v4365, 64
        %v5683 = vpop.permute.xlu0 %5682
        %5684 = vrot.lane.b32.xlu0 %v4366, 64
        %v5685 = vpop.permute.xlu0 %5684
        %5686 = vrot.lane.b32.xlu0 %v4367, 64
        %v5687 = vpop.permute.xlu0 %5686
        %5688 = vrot.lane.b32.xlu0 %v4368, 64
        %v5689 = vpop.permute.xlu0 %5688
        %5690 = vrot.lane.b32.xlu0 %v4369, 64
        %v5691 = vpop.permute.xlu0 %5690
        %5692 = vrot.lane.b32.xlu0 %v4498, 64
        %v5693 = vpop.permute.xlu0 %5692
        %5694 = vrot.lane.b32.xlu0 %v4499, 64
        %v5695 = vpop.permute.xlu0 %5694
        %5696 = vrot.lane.b32.xlu0 %v4500, 64
        %v5697 = vpop.permute.xlu0 %5696
        %5698 = vrot.lane.b32.xlu0 %v4501, 64
        %v5699 = vpop.permute.xlu0 %5698
        %5700 = vrot.lane.b32.xlu0 %v4502, 64
        %v5701 = vpop.permute.xlu0 %5700
        %5702 = vrot.lane.b32.xlu0 %v4503, 64
        %v5703 = vpop.permute.xlu0 %5702
        %5704 = vrot.lane.b32.xlu0 %v4504, 64
        %v5705 = vpop.permute.xlu0 %5704
        %5706 = vrot.lane.b32.xlu0 %v4505, 64
        %v5707 = vpop.permute.xlu0 %5706
        %v5709 = vsel %vm1821, %v5677, 0
        %v5712 = vsel %vm1821, %v5679, 0
        %v5715 = vsel %vm1821, %v5681, 0
        %v5718 = vsel %vm1821, %v5683, 0
        %v5721 = vsel %vm1821, %v5685, 0
        %v5724 = vsel %vm1821, %v5687, 0
        %v5727 = vsel %vm1821, %v5689, 0
        %v5730 = vsel %vm1821, %v5691, 0
        %v5733 = vsel %vm1821, %v5693, 0
        %v5736 = vsel %vm1821, %v5695, 0
        %v5739 = vsel %vm1821, %v5697, 0
        %v5742 = vsel %vm1821, %v5699, 0
        %v5745 = vsel %vm1821, %v5701, 0
        %v5748 = vsel %vm1821, %v5703, 0
        %v5751 = vsel %vm1821, %v5705, 0
        %v5754 = vsel %vm1821, %v5707, 0
        %5756 = vmatprep.subr.bf16.mxu0 0
        %5757 = vmatpush1.bf16.xpose.msra.mxu0 %v5754
        %5758 = vmatprep.subr.bf16.mxu0 0
        %5759 = vmatpush1.bf16.xpose.msra.mxu0 %v5751
        %5760 = vmatprep.subr.bf16.mxu0 0
        %5761 = vmatpush1.bf16.xpose.msra.mxu0 %v5748
        %5762 = vmatprep.subr.bf16.mxu0 0
        %5763 = vmatpush1.bf16.xpose.msra.mxu0 %v5745
        %5764 = vmatprep.subr.bf16.mxu0 0
        %5765 = vmatpush1.bf16.xpose.msra.mxu0 %v5742
        %5766 = vmatprep.subr.bf16.mxu0 0
        %5767 = vmatpush1.bf16.xpose.msra.mxu0 %v5739
        %5768 = vmatprep.subr.bf16.mxu0 0
        %5769 = vmatpush1.bf16.xpose.msra.mxu0 %v5736
        %5770 = vmatprep.subr.bf16.mxu0 0
        %5771 = vmatpush1.bf16.xpose.msra.mxu0 %v5733
        %5772 = vmatprep.subr.bf16.mxu0 0
        %5773 = vmatpush2.bf16.xpose.msra.mxu0 0
        %5774 = vmatprep.subr.bf16.mxu0 0
        %5775 = vmatpush2.bf16.xpose.msra.mxu0 0
        %5776 = vmatprep.subr.bf16.mxu0 0
        %5777 = vmatpush2.bf16.xpose.msra.mxu0 0
        %5778 = vmatprep.subr.bf16.mxu0 0
        %5779 = vmatpush2.bf16.xpose.msra.mxu0 0
        %5780 = vmatprep.subr.bf16.mxu0 0
        %5781 = vmatpush2.bf16.xpose.msra.mxu0 0
        %5782 = vmatprep.subr.bf16.mxu0 0
        %5783 = vmatpush2.bf16.xpose.msra.mxu0 0
        %5784 = vmatprep.subr.bf16.mxu0 0
        %5785 = vmatpush2.bf16.xpose.msra.mxu0 0
        %5786 = vmatprep.subr.bf16.mxu0 0
        %5787 = vmatpush2.bf16.xpose.msra.mxu0 0
        %5788 = vmatprep.mubr.bf16.mxu0 0
        %5789 = vmatmul.mubr.bf16.gmra.mxu0 %v5709
        %v5790 = vpop.f32.mrf.mxu0
        %v5791 = vadd.f32 %v4517, %v5790
        %v5792 = vpop.f32.mrf.mxu0
        %v5793 = vpop.f32.mrf.mxu0
        %v5794 = vadd.f32 %v4517, %v5793
        %v5795 = vpop.f32.mrf.mxu0
        %5796 = vmatprep.mubr.bf16.mxu0 0
        %5797 = vmatmul.mubr.bf16.gmra.mxu0 %v5712
        %v5798 = vpop.f32.mrf.mxu0
        %v5799 = vadd.f32 %v4517, %v5798
        %v5800 = vpop.f32.mrf.mxu0
        %v5801 = vpop.f32.mrf.mxu0
        %v5802 = vadd.f32 %v4517, %v5801
        %v5803 = vpop.f32.mrf.mxu0
        %5804 = vmatprep.mubr.bf16.mxu0 0
        %5805 = vmatmul.mubr.bf16.gmra.mxu0 %v5715
        %v5806 = vpop.f32.mrf.mxu0
        %v5807 = vadd.f32 %v4517, %v5806
        %v5808 = vpop.f32.mrf.mxu0
        %v5809 = vpop.f32.mrf.mxu0
        %v5810 = vadd.f32 %v4517, %v5809
        %v5811 = vpop.f32.mrf.mxu0
        %5812 = vmatprep.mubr.bf16.mxu0 0
        %5813 = vmatmul.mubr.bf16.gmra.mxu0 %v5718
        %v5814 = vpop.f32.mrf.mxu0
        %v5815 = vadd.f32 %v4517, %v5814
        %v5816 = vpop.f32.mrf.mxu0
        %v5817 = vpop.f32.mrf.mxu0
        %v5818 = vadd.f32 %v4517, %v5817
        %v5819 = vpop.f32.mrf.mxu0
        %5820 = vmatprep.mubr.bf16.mxu0 0
        %5821 = vmatmul.mubr.bf16.gmra.mxu0 %v5721
        %v5822 = vpop.f32.mrf.mxu0
        %v5823 = vadd.f32 %v4517, %v5822
        %v5824 = vpop.f32.mrf.mxu0
        %v5825 = vpop.f32.mrf.mxu0
        %v5826 = vadd.f32 %v4517, %v5825
        %v5827 = vpop.f32.mrf.mxu0
        %5828 = vmatprep.mubr.bf16.mxu0 0
        %5829 = vmatmul.mubr.bf16.gmra.mxu0 %v5724
        %v5830 = vpop.f32.mrf.mxu0
        %v5831 = vadd.f32 %v4517, %v5830
        %v5832 = vpop.f32.mrf.mxu0
        %v5833 = vpop.f32.mrf.mxu0
        %v5834 = vadd.f32 %v4517, %v5833
        %v5835 = vpop.f32.mrf.mxu0
        %5836 = vmatprep.mubr.bf16.mxu0 0
        %5837 = vmatmul.mubr.bf16.gmra.mxu0 %v5727
        %v5838 = vpop.f32.mrf.mxu0
        %v5839 = vadd.f32 %v4517, %v5838
        %v5840 = vpop.f32.mrf.mxu0
        %v5841 = vpop.f32.mrf.mxu0
        %v5842 = vadd.f32 %v4517, %v5841
        %v5843 = vpop.f32.mrf.mxu0
        %5844 = vmatprep.mubr.bf16.mxu0 0
        %5845 = vmatmul.mubr.bf16.gmra.mxu0 %v5730
        %v5846 = vpop.f32.mrf.mxu0
        %v5847 = vadd.f32 %v4517, %v5846
        %v5848 = vpop.f32.mrf.mxu0
        %v5849 = vpop.f32.mrf.mxu0
        %v5850 = vadd.f32 %v4517, %v5849
        %v5851 = vpop.f32.mrf.mxu0
        %5852 = vdwg.mxu0
        %5853 = vmax.xlane.f32.xlu0 %v5791
        %v5854 = vpop.xlane.xlu0 %5853
        %5855 = vmax.xlane.f32.xlu0 %v5794
        %v5856 = vpop.xlane.xlu0 %5855
        %5857 = vmax.xlane.f32.xlu0 %v5799
        %v5858 = vpop.xlane.xlu0 %5857
        %5859 = vmax.xlane.f32.xlu0 %v5802
        %v5860 = vpop.xlane.xlu0 %5859
        %5861 = vmax.xlane.f32.xlu0 %v5807
        %v5862 = vpop.xlane.xlu0 %5861
        %5863 = vmax.xlane.f32.xlu0 %v5810
        %v5864 = vpop.xlane.xlu0 %5863
        %5865 = vmax.xlane.f32.xlu0 %v5815
        %v5866 = vpop.xlane.xlu0 %5865
        %5867 = vmax.xlane.f32.xlu0 %v5818
        %v5868 = vpop.xlane.xlu0 %5867
        %5869 = vmax.xlane.f32.xlu0 %v5823
        %v5870 = vpop.xlane.xlu0 %5869
        %5871 = vmax.xlane.f32.xlu0 %v5826
        %v5872 = vpop.xlane.xlu0 %5871
        %5873 = vmax.xlane.f32.xlu0 %v5831
        %v5874 = vpop.xlane.xlu0 %5873
        %5875 = vmax.xlane.f32.xlu0 %v5834
        %v5876 = vpop.xlane.xlu0 %5875
        %5877 = vmax.xlane.f32.xlu0 %v5839
        %v5878 = vpop.xlane.xlu0 %5877
        %5879 = vmax.xlane.f32.xlu0 %v5842
        %v5880 = vpop.xlane.xlu0 %5879
        %5881 = vmax.xlane.f32.xlu0 %v5847
        %v5882 = vpop.xlane.xlu0 %5881
        %5883 = vmax.xlane.f32.xlu0 %v5850
        %v5884 = vpop.xlane.xlu0 %5883
        %v5885 = vsub.f32 %v5791, %v5854
        %v5886 = vsub.f32 %v5794, %v5856
        %v5887 = vsub.f32 %v5799, %v5858
        %v5888 = vsub.f32 %v5802, %v5860
        %v5889 = vsub.f32 %v5807, %v5862
        %v5890 = vsub.f32 %v5810, %v5864
        %v5891 = vsub.f32 %v5815, %v5866
        %v5892 = vsub.f32 %v5818, %v5868
        %v5893 = vsub.f32 %v5823, %v5870
        %v5894 = vsub.f32 %v5826, %v5872
        %v5895 = vsub.f32 %v5831, %v5874
        %v5896 = vsub.f32 %v5834, %v5876
        %v5897 = vsub.f32 %v5839, %v5878
        %v5898 = vsub.f32 %v5842, %v5880
        %v5899 = vsub.f32 %v5847, %v5882
        %v5900 = vsub.f32 %v5850, %v5884
        %v5901 = vmul.f32 %v5885, 1.442695
        %v5902 = vpow.pop %v5901
        %v5903 = vmul.f32 %v5886, 1.442695
        %v5904 = vpow.pop %v5903
        %v5905 = vmul.f32 %v5887, 1.442695
        %v5906 = vpow.pop %v5905
        %v5907 = vmul.f32 %v5888, 1.442695
        %v5908 = vpow.pop %v5907
        %v5909 = vmul.f32 %v5889, 1.442695
        %v5910 = vpow.pop %v5909
        %v5911 = vmul.f32 %v5890, 1.442695
        %v5912 = vpow.pop %v5911
        %v5913 = vmul.f32 %v5891, 1.442695
        %v5914 = vpow.pop %v5913
        %v5915 = vmul.f32 %v5892, 1.442695
        %v5916 = vpow.pop %v5915
        %v5917 = vmul.f32 %v5893, 1.442695
        %v5918 = vpow.pop %v5917
        %v5919 = vmul.f32 %v5894, 1.442695
        %v5920 = vpow.pop %v5919
        %v5921 = vmul.f32 %v5895, 1.442695
        %v5922 = vpow.pop %v5921
        %v5923 = vmul.f32 %v5896, 1.442695
        %v5924 = vpow.pop %v5923
        %v5925 = vmul.f32 %v5897, 1.442695
        %v5926 = vpow.pop %v5925
        %v5927 = vmul.f32 %v5898, 1.442695
        %v5928 = vpow.pop %v5927
        %v5929 = vmul.f32 %v5899, 1.442695
        %v5930 = vpow.pop %v5929
        %v5931 = vmul.f32 %v5900, 1.442695
        %v5932 = vpow.pop %v5931
        %5933 = vadd.xlane.f32.xlu0 %v5902
        %v5934 = vpop.xlane.xlu0 %5933
        %5935 = vadd.xlane.f32.xlu0 %v5904
        %v5936 = vpop.xlane.xlu0 %5935
        %5937 = vadd.xlane.f32.xlu0 %v5906
        %v5938 = vpop.xlane.xlu0 %5937
        %5939 = vadd.xlane.f32.xlu0 %v5908
        %v5940 = vpop.xlane.xlu0 %5939
        %5941 = vadd.xlane.f32.xlu0 %v5910
        %v5942 = vpop.xlane.xlu0 %5941
        %5943 = vadd.xlane.f32.xlu0 %v5912
        %v5944 = vpop.xlane.xlu0 %5943
        %5945 = vadd.xlane.f32.xlu0 %v5914
        %v5946 = vpop.xlane.xlu0 %5945
        %5947 = vadd.xlane.f32.xlu0 %v5916
        %v5948 = vpop.xlane.xlu0 %5947
        %5949 = vadd.xlane.f32.xlu0 %v5918
        %v5950 = vpop.xlane.xlu0 %5949
        %5951 = vadd.xlane.f32.xlu0 %v5920
        %v5952 = vpop.xlane.xlu0 %5951
        %5953 = vadd.xlane.f32.xlu0 %v5922
        %v5954 = vpop.xlane.xlu0 %5953
        %5955 = vadd.xlane.f32.xlu0 %v5924
        %v5956 = vpop.xlane.xlu0 %5955
        %5957 = vadd.xlane.f32.xlu0 %v5926
        %v5958 = vpop.xlane.xlu0 %5957
        %5959 = vadd.xlane.f32.xlu0 %v5928
        %v5960 = vpop.xlane.xlu0 %5959
        %5961 = vadd.xlane.f32.xlu0 %v5930
        %v5962 = vpop.xlane.xlu0 %5961
        %5963 = vadd.xlane.f32.xlu0 %v5932
        %v5964 = vpop.xlane.xlu0 %5963
        %v5965 = vrcp.pop %v5934
        %v5966 = vrcp.pop %v5936
        %v5967 = vrcp.pop %v5938
        %v5968 = vrcp.pop %v5940
        %v5969 = vrcp.pop %v5942
        %v5970 = vrcp.pop %v5944
        %v5971 = vrcp.pop %v5946
        %v5972 = vrcp.pop %v5948
        %v5973 = vrcp.pop %v5950
        %v5974 = vrcp.pop %v5952
        %v5975 = vrcp.pop %v5954
        %v5976 = vrcp.pop %v5956
        %v5977 = vrcp.pop %v5958
        %v5978 = vrcp.pop %v5960
        %v5979 = vrcp.pop %v5962
        %v5980 = vrcp.pop %v5964
        %v5981 = vmul.f32 %v5902, %v5965
        %v5982 = vmul.f32 %v5904, %v5966
        %v5983 = vmul.f32 %v5906, %v5967
        %v5984 = vmul.f32 %v5908, %v5968
        %v5985 = vmul.f32 %v5910, %v5969
        %v5986 = vmul.f32 %v5912, %v5970
        %v5987 = vmul.f32 %v5914, %v5971
        %v5988 = vmul.f32 %v5916, %v5972
        %v5989 = vmul.f32 %v5918, %v5973
        %v5990 = vmul.f32 %v5920, %v5974
        %v5991 = vmul.f32 %v5922, %v5975
        %v5992 = vmul.f32 %v5924, %v5976
        %v5993 = vmul.f32 %v5926, %v5977
        %v5994 = vmul.f32 %v5928, %v5978
        %v5995 = vmul.f32 %v5930, %v5979
        %v5996 = vmul.f32 %v5932, %v5980
        %v5997 = vpack.c.bf16 %v5982, %v5981
        %v5998 = vpack.c.bf16 %v5984, %v5983
        %v5999 = vpack.c.bf16 %v5986, %v5985
        %v6000 = vpack.c.bf16 %v5988, %v5987
        %v6001 = vpack.c.bf16 %v5990, %v5989
        %v6002 = vpack.c.bf16 %v5992, %v5991
        %v6003 = vpack.c.bf16 %v5994, %v5993
        %v6004 = vpack.c.bf16 %v5996, %v5995
        %6005 = vrot.lane.b32.xlu0 %v4506, 64
        %v6006 = vpop.permute.xlu0 %6005
        %6007 = vrot.lane.b32.xlu0 %v4507, 64
        %v6008 = vpop.permute.xlu0 %6007
        %6009 = vrot.lane.b32.xlu0 %v4508, 64
        %v6010 = vpop.permute.xlu0 %6009
        %6011 = vrot.lane.b32.xlu0 %v4509, 64
        %v6012 = vpop.permute.xlu0 %6011
        %6013 = vrot.lane.b32.xlu0 %v4510, 64
        %v6014 = vpop.permute.xlu0 %6013
        %6015 = vrot.lane.b32.xlu0 %v4511, 64
        %v6016 = vpop.permute.xlu0 %6015
        %6017 = vrot.lane.b32.xlu0 %v4512, 64
        %v6018 = vpop.permute.xlu0 %6017
        %6019 = vrot.lane.b32.xlu0 %v4513, 64
        %v6020 = vpop.permute.xlu0 %6019
        %6029 = vmatprep.subr.bf16.mxu0 0
        %6030 = vmatpush1.bf16.msra.mxu0 %v6020
        %6031 = vmatprep.subr.bf16.mxu0 0
        %6032 = vmatpush1.bf16.msra.mxu0 %v6018
        %6033 = vmatprep.subr.bf16.mxu0 0
        %6034 = vmatpush1.bf16.msra.mxu0 %v6016
        %6035 = vmatprep.subr.bf16.mxu0 0
        %6036 = vmatpush1.bf16.msra.mxu0 %v6014
        %6037 = vmatprep.subr.bf16.mxu0 0
        %6038 = vmatpush1.bf16.msra.mxu0 %v6012
        %6039 = vmatprep.subr.bf16.mxu0 0
        %6040 = vmatpush1.bf16.msra.mxu0 %v6010
        %6041 = vmatprep.subr.bf16.mxu0 0
        %6042 = vmatpush1.bf16.msra.mxu0 %v6008
        %6043 = vmatprep.subr.bf16.mxu0 0
        %6044 = vmatpush1.bf16.msra.mxu0 %v6006
        %6045 = vmatprep.subr.bf16.mxu0 0
        %6046 = vmatpush2.bf16.msra.mxu0 0
        %6047 = vmatprep.subr.bf16.mxu0 0
        %6048 = vmatpush2.bf16.msra.mxu0 0
        %6049 = vmatprep.subr.bf16.mxu0 0
        %6050 = vmatpush2.bf16.msra.mxu0 0
        %6051 = vmatprep.subr.bf16.mxu0 0
        %6052 = vmatpush2.bf16.msra.mxu0 0
        %6053 = vmatprep.subr.bf16.mxu0 0
        %6054 = vmatpush2.bf16.msra.mxu0 0
        %6055 = vmatprep.subr.bf16.mxu0 0
        %6056 = vmatpush2.bf16.msra.mxu0 0
        %6057 = vmatprep.subr.bf16.mxu0 0
        %6058 = vmatpush2.bf16.msra.mxu0 0
        %6059 = vmatprep.subr.bf16.mxu0 0
        %6060 = vmatpush2.bf16.msra.mxu0 0
        %6061 = vmatprep.mubr.bf16.mxu0 0
        %6062 = vmatmul.mubr.bf16.gmra.mxu0 %v5997
        %v6063 = vpop.f32.mrf.mxu0
        %v6064 = vadd.f32 0.0, %v6063
        %v6065 = vpop.f32.mrf.mxu0
        %v6066 = vpop.f32.mrf.mxu0
        %v6067 = vadd.f32 0.0, %v6066
        %v6068 = vpop.f32.mrf.mxu0
        %6069 = vmatprep.mubr.bf16.mxu0 0
        %6070 = vmatmul.mubr.bf16.gmra.mxu0 %v5998
        %v6071 = vpop.f32.mrf.mxu0
        %v6072 = vadd.f32 0.0, %v6071
        %v6073 = vpop.f32.mrf.mxu0
        %v6074 = vpop.f32.mrf.mxu0
        %v6075 = vadd.f32 0.0, %v6074
        %v6076 = vpop.f32.mrf.mxu0
        %6077 = vmatprep.mubr.bf16.mxu0 0
        %6078 = vmatmul.mubr.bf16.gmra.mxu0 %v5999
        %v6079 = vpop.f32.mrf.mxu0
        %v6080 = vadd.f32 0.0, %v6079
        %v6081 = vpop.f32.mrf.mxu0
        %v6082 = vpop.f32.mrf.mxu0
        %v6083 = vadd.f32 0.0, %v6082
        %v6084 = vpop.f32.mrf.mxu0
        %6085 = vmatprep.mubr.bf16.mxu0 0
        %6086 = vmatmul.mubr.bf16.gmra.mxu0 %v6000
        %v6087 = vpop.f32.mrf.mxu0
        %v6088 = vadd.f32 0.0, %v6087
        %v6089 = vpop.f32.mrf.mxu0
        %v6090 = vpop.f32.mrf.mxu0
        %v6091 = vadd.f32 0.0, %v6090
        %v6092 = vpop.f32.mrf.mxu0
        %6093 = vmatprep.mubr.bf16.mxu0 0
        %6094 = vmatmul.mubr.bf16.gmra.mxu0 %v6001
        %v6095 = vpop.f32.mrf.mxu0
        %v6096 = vadd.f32 0.0, %v6095
        %v6097 = vpop.f32.mrf.mxu0
        %v6098 = vpop.f32.mrf.mxu0
        %v6099 = vadd.f32 0.0, %v6098
        %v6100 = vpop.f32.mrf.mxu0
        %6101 = vmatprep.mubr.bf16.mxu0 0
        %6102 = vmatmul.mubr.bf16.gmra.mxu0 %v6002
        %v6103 = vpop.f32.mrf.mxu0
        %v6104 = vadd.f32 0.0, %v6103
        %v6105 = vpop.f32.mrf.mxu0
        %v6106 = vpop.f32.mrf.mxu0
        %v6107 = vadd.f32 0.0, %v6106
        %v6108 = vpop.f32.mrf.mxu0
        %6109 = vmatprep.mubr.bf16.mxu0 0
        %6110 = vmatmul.mubr.bf16.gmra.mxu0 %v6003
        %v6111 = vpop.f32.mrf.mxu0
        %v6112 = vadd.f32 0.0, %v6111
        %v6113 = vpop.f32.mrf.mxu0
        %v6114 = vpop.f32.mrf.mxu0
        %v6115 = vadd.f32 0.0, %v6114
        %v6116 = vpop.f32.mrf.mxu0
        %6117 = vmatprep.mubr.bf16.mxu0 0
        %6118 = vmatmul.mubr.bf16.gmra.mxu0 %v6004
        %v6119 = vpop.f32.mrf.mxu0
        %v6120 = vadd.f32 0.0, %v6119
        %v6121 = vpop.f32.mrf.mxu0
        %v6122 = vpop.f32.mrf.mxu0
        %v6123 = vadd.f32 0.0, %v6122
        %v6124 = vpop.f32.mrf.mxu0
        %6125 = vdwg.mxu0
        %v6126 = vpack.c.bf16 %v6067, %v6064
        %v6127 = vpack.c.bf16 %v6075, %v6072
        %v6128 = vpack.c.bf16 %v6083, %v6080
        %v6129 = vpack.c.bf16 %v6091, %v6088
        %v6130 = vpack.c.bf16 %v6099, %v6096
        %v6131 = vpack.c.bf16 %v6107, %v6104
        %v6132 = vpack.c.bf16 %v6115, %v6112
        %v6133 = vpack.c.bf16 %v6123, %v6120
        %v6135 = vsel %vm1821, %v6126, 0
        %v6138 = vsel %vm1821, %v6127, 0
        %v6141 = vsel %vm1821, %v6128, 0
        %v6144 = vsel %vm1821, %v6129, 0
        %v6147 = vsel %vm1821, %v6130, 0
        %v6150 = vsel %vm1821, %v6131, 0
        %v6153 = vsel %vm1821, %v6132, 0
        %v6156 = vsel %vm1821, %v6133, 0
        %6158 = vmatprep.subr.bf16.mxu0 0
        %6159 = vmatpush1.bf16.msra.mxu0 0
        %6160 = vmatprep.subr.bf16.mxu0 0
        %6161 = vmatpush1.bf16.msra.mxu0 0
        %6162 = vmatprep.subr.bf16.mxu0 0
        %6163 = vmatpush1.bf16.msra.mxu0 0
        %6164 = vmatprep.subr.bf16.mxu0 0
        %6165 = vmatpush1.bf16.msra.mxu0 0
        %6166 = vmatprep.subr.bf16.mxu0 0
        %6167 = vmatpush1.bf16.msra.mxu0 0
        %6168 = vmatprep.subr.bf16.mxu0 0
        %6169 = vmatpush1.bf16.msra.mxu0 0
        %6170 = vmatprep.subr.bf16.mxu0 0
        %6171 = vmatpush1.bf16.msra.mxu0 %v3471
        %6172 = vmatprep.subr.bf16.mxu0 0
        %6173 = vmatpush1.bf16.msra.mxu0 %v3470
        %6174 = vmatprep.subr.bf16.mxu0 0
        %6175 = vmatpush2.bf16.msra.mxu0 0
        %6176 = vmatprep.subr.bf16.mxu0 0
        %6177 = vmatpush2.bf16.msra.mxu0 0
        %6178 = vmatprep.subr.bf16.mxu0 0
        %6179 = vmatpush2.bf16.msra.mxu0 0
        %6180 = vmatprep.subr.bf16.mxu0 0
        %6181 = vmatpush2.bf16.msra.mxu0 0
        %6182 = vmatprep.subr.bf16.mxu0 0
        %6183 = vmatpush2.bf16.msra.mxu0 0
        %6184 = vmatprep.subr.bf16.mxu0 0
        %6185 = vmatpush2.bf16.msra.mxu0 0
        %6186 = vmatprep.subr.bf16.mxu0 0
        %6187 = vmatpush2.bf16.msra.mxu0 0
        %6188 = vmatprep.subr.bf16.mxu0 0
        %6189 = vmatpush2.bf16.msra.mxu0 0
        %6190 = vmatprep.mubr.bf16.mxu0 0
        %6191 = vmatmul.mubr.bf16.gmra.mxu0 %v6135
        %v6192 = vpop.f32.mrf.mxu0
        %v6193 = vadd.f32 0.0, %v6192
        %v6194 = vpop.f32.mrf.mxu0
        %v6195 = vpop.f32.mrf.mxu0
        %v6196 = vadd.f32 0.0, %v6195
        %v6197 = vpop.f32.mrf.mxu0
        %6198 = vmatprep.mubr.bf16.mxu0 0
        %6199 = vmatmul.mubr.bf16.gmra.mxu0 %v6138
        %v6200 = vpop.f32.mrf.mxu0
        %v6201 = vadd.f32 0.0, %v6200
        %v6202 = vpop.f32.mrf.mxu0
        %v6203 = vpop.f32.mrf.mxu0
        %v6204 = vadd.f32 0.0, %v6203
        %v6205 = vpop.f32.mrf.mxu0
        %6206 = vmatprep.mubr.bf16.mxu0 0
        %6207 = vmatmul.mubr.bf16.gmra.mxu0 %v6141
        %v6208 = vpop.f32.mrf.mxu0
        %v6209 = vadd.f32 0.0, %v6208
        %v6210 = vpop.f32.mrf.mxu0
        %v6211 = vpop.f32.mrf.mxu0
        %v6212 = vadd.f32 0.0, %v6211
        %v6213 = vpop.f32.mrf.mxu0
        %6214 = vmatprep.mubr.bf16.mxu0 0
        %6215 = vmatmul.mubr.bf16.gmra.mxu0 %v6144
        %v6216 = vpop.f32.mrf.mxu0
        %v6217 = vadd.f32 0.0, %v6216
        %v6218 = vpop.f32.mrf.mxu0
        %v6219 = vpop.f32.mrf.mxu0
        %v6220 = vadd.f32 0.0, %v6219
        %v6221 = vpop.f32.mrf.mxu0
        %6222 = vmatprep.mubr.bf16.mxu0 0
        %6223 = vmatmul.mubr.bf16.gmra.mxu0 %v6147
        %v6224 = vpop.f32.mrf.mxu0
        %v6225 = vadd.f32 0.0, %v6224
        %v6226 = vpop.f32.mrf.mxu0
        %v6227 = vpop.f32.mrf.mxu0
        %v6228 = vadd.f32 0.0, %v6227
        %v6229 = vpop.f32.mrf.mxu0
        %6230 = vmatprep.mubr.bf16.mxu0 0
        %6231 = vmatmul.mubr.bf16.gmra.mxu0 %v6150
        %v6232 = vpop.f32.mrf.mxu0
        %v6233 = vadd.f32 0.0, %v6232
        %v6234 = vpop.f32.mrf.mxu0
        %v6235 = vpop.f32.mrf.mxu0
        %v6236 = vadd.f32 0.0, %v6235
        %v6237 = vpop.f32.mrf.mxu0
        %6238 = vmatprep.mubr.bf16.mxu0 0
        %6239 = vmatmul.mubr.bf16.gmra.mxu0 %v6153
        %v6240 = vpop.f32.mrf.mxu0
        %v6241 = vadd.f32 0.0, %v6240
        %v6242 = vpop.f32.mrf.mxu0
        %v6243 = vpop.f32.mrf.mxu0
        %v6244 = vadd.f32 0.0, %v6243
        %v6245 = vpop.f32.mrf.mxu0
        %6246 = vmatprep.mubr.bf16.mxu0 0
        %6247 = vmatmul.mubr.bf16.gmra.mxu0 %v6156
        %v6248 = vpop.f32.mrf.mxu0
        %v6249 = vadd.f32 0.0, %v6248
        %v6250 = vpop.f32.mrf.mxu0
        %v6251 = vpop.f32.mrf.mxu0
        %v6252 = vadd.f32 0.0, %v6251
        %v6253 = vpop.f32.mrf.mxu0
        %6254 = vdwg.mxu0
        %v6255 = vadd.f32 %v5660, %v6193
        %v6256 = vadd.f32 %v5661, %v6196
        %v6257 = vadd.f32 %v5662, %v6201
        %v6258 = vadd.f32 %v5663, %v6204
        %v6259 = vadd.f32 %v5664, %v6209
        %v6260 = vadd.f32 %v5665, %v6212
        %v6261 = vadd.f32 %v5666, %v6217
        %v6262 = vadd.f32 %v5667, %v6220
        %v6263 = vadd.f32 %v5668, %v6225
        %v6264 = vadd.f32 %v5669, %v6228
        %v6265 = vadd.f32 %v5670, %v6233
        %v6266 = vadd.f32 %v5671, %v6236
        %v6267 = vadd.f32 %v5672, %v6241
        %v6268 = vadd.f32 %v5673, %v6244
        %v6269 = vadd.f32 %v5674, %v6249
        %v6270 = vadd.f32 %v5675, %v6252
        %6271 = vrot.lane.b32.xlu0 %v4362, 32
        %v6272 = vpop.permute.xlu0 %6271
        %6273 = vrot.lane.b32.xlu0 %v4363, 32
        %v6274 = vpop.permute.xlu0 %6273
        %6275 = vrot.lane.b32.xlu0 %v4364, 32
        %v6276 = vpop.permute.xlu0 %6275
        %6277 = vrot.lane.b32.xlu0 %v4365, 32
        %v6278 = vpop.permute.xlu0 %6277
        %6279 = vrot.lane.b32.xlu0 %v4366, 32
        %v6280 = vpop.permute.xlu0 %6279
        %6281 = vrot.lane.b32.xlu0 %v4367, 32
        %v6282 = vpop.permute.xlu0 %6281
        %6283 = vrot.lane.b32.xlu0 %v4368, 32
        %v6284 = vpop.permute.xlu0 %6283
        %6285 = vrot.lane.b32.xlu0 %v4369, 32
        %v6286 = vpop.permute.xlu0 %6285
        %6287 = vrot.lane.b32.xlu0 %v4498, 32
        %v6288 = vpop.permute.xlu0 %6287
        %6289 = vrot.lane.b32.xlu0 %v4499, 32
        %v6290 = vpop.permute.xlu0 %6289
        %6291 = vrot.lane.b32.xlu0 %v4500, 32
        %v6292 = vpop.permute.xlu0 %6291
        %6293 = vrot.lane.b32.xlu0 %v4501, 32
        %v6294 = vpop.permute.xlu0 %6293
        %6295 = vrot.lane.b32.xlu0 %v4502, 32
        %v6296 = vpop.permute.xlu0 %6295
        %6297 = vrot.lane.b32.xlu0 %v4503, 32
        %v6298 = vpop.permute.xlu0 %6297
        %6299 = vrot.lane.b32.xlu0 %v4504, 32
        %v6300 = vpop.permute.xlu0 %6299
        %6301 = vrot.lane.b32.xlu0 %v4505, 32
        %v6302 = vpop.permute.xlu0 %6301
        %v6304 = vsel %vm1821, %v6272, 0
        %v6307 = vsel %vm1821, %v6274, 0
        %v6310 = vsel %vm1821, %v6276, 0
        %v6313 = vsel %vm1821, %v6278, 0
        %v6316 = vsel %vm1821, %v6280, 0
        %v6319 = vsel %vm1821, %v6282, 0
        %v6322 = vsel %vm1821, %v6284, 0
        %v6325 = vsel %vm1821, %v6286, 0
        %v6328 = vsel %vm1821, %v6288, 0
        %v6331 = vsel %vm1821, %v6290, 0
        %v6334 = vsel %vm1821, %v6292, 0
        %v6337 = vsel %vm1821, %v6294, 0
        %v6340 = vsel %vm1821, %v6296, 0
        %v6343 = vsel %vm1821, %v6298, 0
        %v6346 = vsel %vm1821, %v6300, 0
        %v6349 = vsel %vm1821, %v6302, 0
        %6351 = vmatprep.subr.bf16.mxu0 0
        %6352 = vmatpush1.bf16.xpose.msra.mxu0 %v6349
        %6353 = vmatprep.subr.bf16.mxu0 0
        %6354 = vmatpush1.bf16.xpose.msra.mxu0 %v6346
        %6355 = vmatprep.subr.bf16.mxu0 0
        %6356 = vmatpush1.bf16.xpose.msra.mxu0 %v6343
        %6357 = vmatprep.subr.bf16.mxu0 0
        %6358 = vmatpush1.bf16.xpose.msra.mxu0 %v6340
        %6359 = vmatprep.subr.bf16.mxu0 0
        %6360 = vmatpush1.bf16.xpose.msra.mxu0 %v6337
        %6361 = vmatprep.subr.bf16.mxu0 0
        %6362 = vmatpush1.bf16.xpose.msra.mxu0 %v6334
        %6363 = vmatprep.subr.bf16.mxu0 0
        %6364 = vmatpush1.bf16.xpose.msra.mxu0 %v6331
        %6365 = vmatprep.subr.bf16.mxu0 0
        %6366 = vmatpush1.bf16.xpose.msra.mxu0 %v6328
        %6367 = vmatprep.subr.bf16.mxu0 0
        %6368 = vmatpush2.bf16.xpose.msra.mxu0 0
        %6369 = vmatprep.subr.bf16.mxu0 0
        %6370 = vmatpush2.bf16.xpose.msra.mxu0 0
        %6371 = vmatprep.subr.bf16.mxu0 0
        %6372 = vmatpush2.bf16.xpose.msra.mxu0 0
        %6373 = vmatprep.subr.bf16.mxu0 0
        %6374 = vmatpush2.bf16.xpose.msra.mxu0 0
        %6375 = vmatprep.subr.bf16.mxu0 0
        %6376 = vmatpush2.bf16.xpose.msra.mxu0 0
        %6377 = vmatprep.subr.bf16.mxu0 0
        %6378 = vmatpush2.bf16.xpose.msra.mxu0 0
        %6379 = vmatprep.subr.bf16.mxu0 0
        %6380 = vmatpush2.bf16.xpose.msra.mxu0 0
        %6381 = vmatprep.subr.bf16.mxu0 0
        %6382 = vmatpush2.bf16.xpose.msra.mxu0 0
        %6383 = vmatprep.mubr.bf16.mxu0 0
        %6384 = vmatmul.mubr.bf16.gmra.mxu0 %v6304
        %v6385 = vpop.f32.mrf.mxu0
        %v6386 = vadd.f32 %v4517, %v6385
        %v6387 = vpop.f32.mrf.mxu0
        %v6388 = vpop.f32.mrf.mxu0
        %v6389 = vadd.f32 %v4517, %v6388
        %v6390 = vpop.f32.mrf.mxu0
        %6391 = vmatprep.mubr.bf16.mxu0 0
        %6392 = vmatmul.mubr.bf16.gmra.mxu0 %v6307
        %v6393 = vpop.f32.mrf.mxu0
        %v6394 = vadd.f32 %v4517, %v6393
        %v6395 = vpop.f32.mrf.mxu0
        %v6396 = vpop.f32.mrf.mxu0
        %v6397 = vadd.f32 %v4517, %v6396
        %v6398 = vpop.f32.mrf.mxu0
        %6399 = vmatprep.mubr.bf16.mxu0 0
        %6400 = vmatmul.mubr.bf16.gmra.mxu0 %v6310
        %v6401 = vpop.f32.mrf.mxu0
        %v6402 = vadd.f32 %v4517, %v6401
        %v6403 = vpop.f32.mrf.mxu0
        %v6404 = vpop.f32.mrf.mxu0
        %v6405 = vadd.f32 %v4517, %v6404
        %v6406 = vpop.f32.mrf.mxu0
        %6407 = vmatprep.mubr.bf16.mxu0 0
        %6408 = vmatmul.mubr.bf16.gmra.mxu0 %v6313
        %v6409 = vpop.f32.mrf.mxu0
        %v6410 = vadd.f32 %v4517, %v6409
        %v6411 = vpop.f32.mrf.mxu0
        %v6412 = vpop.f32.mrf.mxu0
        %v6413 = vadd.f32 %v4517, %v6412
        %v6414 = vpop.f32.mrf.mxu0
        %6415 = vmatprep.mubr.bf16.mxu0 0
        %6416 = vmatmul.mubr.bf16.gmra.mxu0 %v6316
        %v6417 = vpop.f32.mrf.mxu0
        %v6418 = vadd.f32 %v4517, %v6417
        %v6419 = vpop.f32.mrf.mxu0
        %v6420 = vpop.f32.mrf.mxu0
        %v6421 = vadd.f32 %v4517, %v6420
        %v6422 = vpop.f32.mrf.mxu0
        %6423 = vmatprep.mubr.bf16.mxu0 0
        %6424 = vmatmul.mubr.bf16.gmra.mxu0 %v6319
        %v6425 = vpop.f32.mrf.mxu0
        %v6426 = vadd.f32 %v4517, %v6425
        %v6427 = vpop.f32.mrf.mxu0
        %v6428 = vpop.f32.mrf.mxu0
        %v6429 = vadd.f32 %v4517, %v6428
        %v6430 = vpop.f32.mrf.mxu0
        %6431 = vmatprep.mubr.bf16.mxu0 0
        %6432 = vmatmul.mubr.bf16.gmra.mxu0 %v6322
        %v6433 = vpop.f32.mrf.mxu0
        %v6434 = vadd.f32 %v4517, %v6433
        %v6435 = vpop.f32.mrf.mxu0
        %v6436 = vpop.f32.mrf.mxu0
        %v6437 = vadd.f32 %v4517, %v6436
        %v6438 = vpop.f32.mrf.mxu0
        %6439 = vmatprep.mubr.bf16.mxu0 0
        %6440 = vmatmul.mubr.bf16.gmra.mxu0 %v6325
        %v6441 = vpop.f32.mrf.mxu0
        %v6442 = vadd.f32 %v4517, %v6441
        %v6443 = vpop.f32.mrf.mxu0
        %v6444 = vpop.f32.mrf.mxu0
        %v6445 = vadd.f32 %v4517, %v6444
        %v6446 = vpop.f32.mrf.mxu0
        %6447 = vdwg.mxu0
        %6448 = vmax.xlane.f32.xlu0 %v6386
        %v6449 = vpop.xlane.xlu0 %6448
        %6450 = vmax.xlane.f32.xlu0 %v6389
        %v6451 = vpop.xlane.xlu0 %6450
        %6452 = vmax.xlane.f32.xlu0 %v6394
        %v6453 = vpop.xlane.xlu0 %6452
        %6454 = vmax.xlane.f32.xlu0 %v6397
        %v6455 = vpop.xlane.xlu0 %6454
        %6456 = vmax.xlane.f32.xlu0 %v6402
        %v6457 = vpop.xlane.xlu0 %6456
        %6458 = vmax.xlane.f32.xlu0 %v6405
        %v6459 = vpop.xlane.xlu0 %6458
        %6460 = vmax.xlane.f32.xlu0 %v6410
        %v6461 = vpop.xlane.xlu0 %6460
        %6462 = vmax.xlane.f32.xlu0 %v6413
        %v6463 = vpop.xlane.xlu0 %6462
        %6464 = vmax.xlane.f32.xlu0 %v6418
        %v6465 = vpop.xlane.xlu0 %6464
        %6466 = vmax.xlane.f32.xlu0 %v6421
        %v6467 = vpop.xlane.xlu0 %6466
        %6468 = vmax.xlane.f32.xlu0 %v6426
        %v6469 = vpop.xlane.xlu0 %6468
        %6470 = vmax.xlane.f32.xlu0 %v6429
        %v6471 = vpop.xlane.xlu0 %6470
        %6472 = vmax.xlane.f32.xlu0 %v6434
        %v6473 = vpop.xlane.xlu0 %6472
        %6474 = vmax.xlane.f32.xlu0 %v6437
        %v6475 = vpop.xlane.xlu0 %6474
        %6476 = vmax.xlane.f32.xlu0 %v6442
        %v6477 = vpop.xlane.xlu0 %6476
        %6478 = vmax.xlane.f32.xlu0 %v6445
        %v6479 = vpop.xlane.xlu0 %6478
        %v6480 = vsub.f32 %v6386, %v6449
        %v6481 = vsub.f32 %v6389, %v6451
        %v6482 = vsub.f32 %v6394, %v6453
        %v6483 = vsub.f32 %v6397, %v6455
        %v6484 = vsub.f32 %v6402, %v6457
        %v6485 = vsub.f32 %v6405, %v6459
        %v6486 = vsub.f32 %v6410, %v6461
        %v6487 = vsub.f32 %v6413, %v6463
        %v6488 = vsub.f32 %v6418, %v6465
        %v6489 = vsub.f32 %v6421, %v6467
        %v6490 = vsub.f32 %v6426, %v6469
        %v6491 = vsub.f32 %v6429, %v6471
        %v6492 = vsub.f32 %v6434, %v6473
        %v6493 = vsub.f32 %v6437, %v6475
        %v6494 = vsub.f32 %v6442, %v6477
        %v6495 = vsub.f32 %v6445, %v6479
        %v6496 = vmul.f32 %v6480, 1.442695
        %v6497 = vpow.pop %v6496
        %v6498 = vmul.f32 %v6481, 1.442695
        %v6499 = vpow.pop %v6498
        %v6500 = vmul.f32 %v6482, 1.442695
        %v6501 = vpow.pop %v6500
        %v6502 = vmul.f32 %v6483, 1.442695
        %v6503 = vpow.pop %v6502
        %v6504 = vmul.f32 %v6484, 1.442695
        %v6505 = vpow.pop %v6504
        %v6506 = vmul.f32 %v6485, 1.442695
        %v6507 = vpow.pop %v6506
        %v6508 = vmul.f32 %v6486, 1.442695
        %v6509 = vpow.pop %v6508
        %v6510 = vmul.f32 %v6487, 1.442695
        %v6511 = vpow.pop %v6510
        %v6512 = vmul.f32 %v6488, 1.442695
        %v6513 = vpow.pop %v6512
        %v6514 = vmul.f32 %v6489, 1.442695
        %v6515 = vpow.pop %v6514
        %v6516 = vmul.f32 %v6490, 1.442695
        %v6517 = vpow.pop %v6516
        %v6518 = vmul.f32 %v6491, 1.442695
        %v6519 = vpow.pop %v6518
        %v6520 = vmul.f32 %v6492, 1.442695
        %v6521 = vpow.pop %v6520
        %v6522 = vmul.f32 %v6493, 1.442695
        %v6523 = vpow.pop %v6522
        %v6524 = vmul.f32 %v6494, 1.442695
        %v6525 = vpow.pop %v6524
        %v6526 = vmul.f32 %v6495, 1.442695
        %v6527 = vpow.pop %v6526
        %6528 = vadd.xlane.f32.xlu0 %v6497
        %v6529 = vpop.xlane.xlu0 %6528
        %6530 = vadd.xlane.f32.xlu0 %v6499
        %v6531 = vpop.xlane.xlu0 %6530
        %6532 = vadd.xlane.f32.xlu0 %v6501
        %v6533 = vpop.xlane.xlu0 %6532
        %6534 = vadd.xlane.f32.xlu0 %v6503
        %v6535 = vpop.xlane.xlu0 %6534
        %6536 = vadd.xlane.f32.xlu0 %v6505
        %v6537 = vpop.xlane.xlu0 %6536
        %6538 = vadd.xlane.f32.xlu0 %v6507
        %v6539 = vpop.xlane.xlu0 %6538
        %6540 = vadd.xlane.f32.xlu0 %v6509
        %v6541 = vpop.xlane.xlu0 %6540
        %6542 = vadd.xlane.f32.xlu0 %v6511
        %v6543 = vpop.xlane.xlu0 %6542
        %6544 = vadd.xlane.f32.xlu0 %v6513
        %v6545 = vpop.xlane.xlu0 %6544
        %6546 = vadd.xlane.f32.xlu0 %v6515
        %v6547 = vpop.xlane.xlu0 %6546
        %6548 = vadd.xlane.f32.xlu0 %v6517
        %v6549 = vpop.xlane.xlu0 %6548
        %6550 = vadd.xlane.f32.xlu0 %v6519
        %v6551 = vpop.xlane.xlu0 %6550
        %6552 = vadd.xlane.f32.xlu0 %v6521
        %v6553 = vpop.xlane.xlu0 %6552
        %6554 = vadd.xlane.f32.xlu0 %v6523
        %v6555 = vpop.xlane.xlu0 %6554
        %6556 = vadd.xlane.f32.xlu0 %v6525
        %v6557 = vpop.xlane.xlu0 %6556
        %6558 = vadd.xlane.f32.xlu0 %v6527
        %v6559 = vpop.xlane.xlu0 %6558
        %v6560 = vrcp.pop %v6529
        %v6561 = vrcp.pop %v6531
        %v6562 = vrcp.pop %v6533
        %v6563 = vrcp.pop %v6535
        %v6564 = vrcp.pop %v6537
        %v6565 = vrcp.pop %v6539
        %v6566 = vrcp.pop %v6541
        %v6567 = vrcp.pop %v6543
        %v6568 = vrcp.pop %v6545
        %v6569 = vrcp.pop %v6547
        %v6570 = vrcp.pop %v6549
        %v6571 = vrcp.pop %v6551
        %v6572 = vrcp.pop %v6553
        %v6573 = vrcp.pop %v6555
        %v6574 = vrcp.pop %v6557
        %v6575 = vrcp.pop %v6559
        %v6576 = vmul.f32 %v6497, %v6560
        %v6577 = vmul.f32 %v6499, %v6561
        %v6578 = vmul.f32 %v6501, %v6562
        %v6579 = vmul.f32 %v6503, %v6563
        %v6580 = vmul.f32 %v6505, %v6564
        %v6581 = vmul.f32 %v6507, %v6565
        %v6582 = vmul.f32 %v6509, %v6566
        %v6583 = vmul.f32 %v6511, %v6567
        %v6584 = vmul.f32 %v6513, %v6568
        %v6585 = vmul.f32 %v6515, %v6569
        %v6586 = vmul.f32 %v6517, %v6570
        %v6587 = vmul.f32 %v6519, %v6571
        %v6588 = vmul.f32 %v6521, %v6572
        %v6589 = vmul.f32 %v6523, %v6573
        %v6590 = vmul.f32 %v6525, %v6574
        %v6591 = vmul.f32 %v6527, %v6575
        %v6592 = vpack.c.bf16 %v6577, %v6576
        %v6593 = vpack.c.bf16 %v6579, %v6578
        %v6594 = vpack.c.bf16 %v6581, %v6580
        %v6595 = vpack.c.bf16 %v6583, %v6582
        %v6596 = vpack.c.bf16 %v6585, %v6584
        %v6597 = vpack.c.bf16 %v6587, %v6586
        %v6598 = vpack.c.bf16 %v6589, %v6588
        %v6599 = vpack.c.bf16 %v6591, %v6590
        %6600 = vrot.lane.b32.xlu0 %v4506, 32
        %v6601 = vpop.permute.xlu0 %6600
        %6602 = vrot.lane.b32.xlu0 %v4507, 32
        %v6603 = vpop.permute.xlu0 %6602
        %6604 = vrot.lane.b32.xlu0 %v4508, 32
        %v6605 = vpop.permute.xlu0 %6604
        %6606 = vrot.lane.b32.xlu0 %v4509, 32
        %v6607 = vpop.permute.xlu0 %6606
        %6608 = vrot.lane.b32.xlu0 %v4510, 32
        %v6609 = vpop.permute.xlu0 %6608
        %6610 = vrot.lane.b32.xlu0 %v4511, 32
        %v6611 = vpop.permute.xlu0 %6610
        %6612 = vrot.lane.b32.xlu0 %v4512, 32
        %v6613 = vpop.permute.xlu0 %6612
        %6614 = vrot.lane.b32.xlu0 %v4513, 32
        %v6615 = vpop.permute.xlu0 %6614
        %6624 = vmatprep.subr.bf16.mxu0 0
        %6625 = vmatpush1.bf16.msra.mxu0 %v6615
        %6626 = vmatprep.subr.bf16.mxu0 0
        %6627 = vmatpush1.bf16.msra.mxu0 %v6613
        %6628 = vmatprep.subr.bf16.mxu0 0
        %6629 = vmatpush1.bf16.msra.mxu0 %v6611
        %6630 = vmatprep.subr.bf16.mxu0 0
        %6631 = vmatpush1.bf16.msra.mxu0 %v6609
        %6632 = vmatprep.subr.bf16.mxu0 0
        %6633 = vmatpush1.bf16.msra.mxu0 %v6607
        %6634 = vmatprep.subr.bf16.mxu0 0
        %6635 = vmatpush1.bf16.msra.mxu0 %v6605
        %6636 = vmatprep.subr.bf16.mxu0 0
        %6637 = vmatpush1.bf16.msra.mxu0 %v6603
        %6638 = vmatprep.subr.bf16.mxu0 0
        %6639 = vmatpush1.bf16.msra.mxu0 %v6601
        %6640 = vmatprep.subr.bf16.mxu0 0
        %6641 = vmatpush2.bf16.msra.mxu0 0
        %6642 = vmatprep.subr.bf16.mxu0 0
        %6643 = vmatpush2.bf16.msra.mxu0 0
        %6644 = vmatprep.subr.bf16.mxu0 0
        %6645 = vmatpush2.bf16.msra.mxu0 0
        %6646 = vmatprep.subr.bf16.mxu0 0
        %6647 = vmatpush2.bf16.msra.mxu0 0
        %6648 = vmatprep.subr.bf16.mxu0 0
        %6649 = vmatpush2.bf16.msra.mxu0 0
        %6650 = vmatprep.subr.bf16.mxu0 0
        %6651 = vmatpush2.bf16.msra.mxu0 0
        %6652 = vmatprep.subr.bf16.mxu0 0
        %6653 = vmatpush2.bf16.msra.mxu0 0
        %6654 = vmatprep.subr.bf16.mxu0 0
        %6655 = vmatpush2.bf16.msra.mxu0 0
        %6656 = vmatprep.mubr.bf16.mxu0 0
        %6657 = vmatmul.mubr.bf16.gmra.mxu0 %v6592
        %v6658 = vpop.f32.mrf.mxu0
        %v6659 = vadd.f32 0.0, %v6658
        %v6660 = vpop.f32.mrf.mxu0
        %v6661 = vpop.f32.mrf.mxu0
        %v6662 = vadd.f32 0.0, %v6661
        %v6663 = vpop.f32.mrf.mxu0
        %6664 = vmatprep.mubr.bf16.mxu0 0
        %6665 = vmatmul.mubr.bf16.gmra.mxu0 %v6593
        %v6666 = vpop.f32.mrf.mxu0
        %v6667 = vadd.f32 0.0, %v6666
        %v6668 = vpop.f32.mrf.mxu0
        %v6669 = vpop.f32.mrf.mxu0
        %v6670 = vadd.f32 0.0, %v6669
        %v6671 = vpop.f32.mrf.mxu0
        %6672 = vmatprep.mubr.bf16.mxu0 0
        %6673 = vmatmul.mubr.bf16.gmra.mxu0 %v6594
        %v6674 = vpop.f32.mrf.mxu0
        %v6675 = vadd.f32 0.0, %v6674
        %v6676 = vpop.f32.mrf.mxu0
        %v6677 = vpop.f32.mrf.mxu0
        %v6678 = vadd.f32 0.0, %v6677
        %v6679 = vpop.f32.mrf.mxu0
        %6680 = vmatprep.mubr.bf16.mxu0 0
        %6681 = vmatmul.mubr.bf16.gmra.mxu0 %v6595
        %v6682 = vpop.f32.mrf.mxu0
        %v6683 = vadd.f32 0.0, %v6682
        %v6684 = vpop.f32.mrf.mxu0
        %v6685 = vpop.f32.mrf.mxu0
        %v6686 = vadd.f32 0.0, %v6685
        %v6687 = vpop.f32.mrf.mxu0
        %6688 = vmatprep.mubr.bf16.mxu0 0
        %6689 = vmatmul.mubr.bf16.gmra.mxu0 %v6596
        %v6690 = vpop.f32.mrf.mxu0
        %v6691 = vadd.f32 0.0, %v6690
        %v6692 = vpop.f32.mrf.mxu0
        %v6693 = vpop.f32.mrf.mxu0
        %v6694 = vadd.f32 0.0, %v6693
        %v6695 = vpop.f32.mrf.mxu0
        %6696 = vmatprep.mubr.bf16.mxu0 0
        %6697 = vmatmul.mubr.bf16.gmra.mxu0 %v6597
        %v6698 = vpop.f32.mrf.mxu0
        %v6699 = vadd.f32 0.0, %v6698
        %v6700 = vpop.f32.mrf.mxu0
        %v6701 = vpop.f32.mrf.mxu0
        %v6702 = vadd.f32 0.0, %v6701
        %v6703 = vpop.f32.mrf.mxu0
        %6704 = vmatprep.mubr.bf16.mxu0 0
        %6705 = vmatmul.mubr.bf16.gmra.mxu0 %v6598
        %v6706 = vpop.f32.mrf.mxu0
        %v6707 = vadd.f32 0.0, %v6706
        %v6708 = vpop.f32.mrf.mxu0
        %v6709 = vpop.f32.mrf.mxu0
        %v6710 = vadd.f32 0.0, %v6709
        %v6711 = vpop.f32.mrf.mxu0
        %6712 = vmatprep.mubr.bf16.mxu0 0
        %6713 = vmatmul.mubr.bf16.gmra.mxu0 %v6599
        %v6714 = vpop.f32.mrf.mxu0
        %v6715 = vadd.f32 0.0, %v6714
        %v6716 = vpop.f32.mrf.mxu0
        %v6717 = vpop.f32.mrf.mxu0
        %v6718 = vadd.f32 0.0, %v6717
        %v6719 = vpop.f32.mrf.mxu0
        %6720 = vdwg.mxu0
        %v6721 = vpack.c.bf16 %v6662, %v6659
        %v6722 = vpack.c.bf16 %v6670, %v6667
        %v6723 = vpack.c.bf16 %v6678, %v6675
        %v6724 = vpack.c.bf16 %v6686, %v6683
        %v6725 = vpack.c.bf16 %v6694, %v6691
        %v6726 = vpack.c.bf16 %v6702, %v6699
        %v6727 = vpack.c.bf16 %v6710, %v6707
        %v6728 = vpack.c.bf16 %v6718, %v6715
        %v6730 = vsel %vm1821, %v6721, 0
        %v6733 = vsel %vm1821, %v6722, 0
        %v6736 = vsel %vm1821, %v6723, 0
        %v6739 = vsel %vm1821, %v6724, 0
        %v6742 = vsel %vm1821, %v6725, 0
        %v6745 = vsel %vm1821, %v6726, 0
        %v6748 = vsel %vm1821, %v6727, 0
        %v6751 = vsel %vm1821, %v6728, 0
        %6753 = vmatprep.subr.bf16.mxu0 0
        %6754 = vmatpush1.bf16.msra.mxu0 0
        %6755 = vmatprep.subr.bf16.mxu0 0
        %6756 = vmatpush1.bf16.msra.mxu0 0
        %6757 = vmatprep.subr.bf16.mxu0 0
        %6758 = vmatpush1.bf16.msra.mxu0 0
        %6759 = vmatprep.subr.bf16.mxu0 0
        %6760 = vmatpush1.bf16.msra.mxu0 0
        %6761 = vmatprep.subr.bf16.mxu0 0
        %6762 = vmatpush1.bf16.msra.mxu0 0
        %6763 = vmatprep.subr.bf16.mxu0 0
        %6764 = vmatpush1.bf16.msra.mxu0 0
        %6765 = vmatprep.subr.bf16.mxu0 0
        %6766 = vmatpush1.bf16.msra.mxu0 %v4078
        %6767 = vmatprep.subr.bf16.mxu0 0
        %6768 = vmatpush1.bf16.msra.mxu0 %v4077
        %6769 = vmatprep.subr.bf16.mxu0 0
        %6770 = vmatpush2.bf16.msra.mxu0 0
        %6771 = vmatprep.subr.bf16.mxu0 0
        %6772 = vmatpush2.bf16.msra.mxu0 0
        %6773 = vmatprep.subr.bf16.mxu0 0
        %6774 = vmatpush2.bf16.msra.mxu0 0
        %6775 = vmatprep.subr.bf16.mxu0 0
        %6776 = vmatpush2.bf16.msra.mxu0 0
        %6777 = vmatprep.subr.bf16.mxu0 0
        %6778 = vmatpush2.bf16.msra.mxu0 0
        %6779 = vmatprep.subr.bf16.mxu0 0
        %6780 = vmatpush2.bf16.msra.mxu0 0
        %6781 = vmatprep.subr.bf16.mxu0 0
        %6782 = vmatpush2.bf16.msra.mxu0 0
        %6783 = vmatprep.subr.bf16.mxu0 0
        %6784 = vmatpush2.bf16.msra.mxu0 0
        %6785 = vmatprep.mubr.bf16.mxu0 0
        %6786 = vmatmul.mubr.bf16.gmra.mxu0 %v6730
        %v6787 = vpop.f32.mrf.mxu0
        %v6788 = vadd.f32 0.0, %v6787
        %v6789 = vpop.f32.mrf.mxu0
        %v6790 = vpop.f32.mrf.mxu0
        %v6791 = vadd.f32 0.0, %v6790
        %v6792 = vpop.f32.mrf.mxu0
        %6793 = vmatprep.mubr.bf16.mxu0 0
        %6794 = vmatmul.mubr.bf16.gmra.mxu0 %v6733
        %v6795 = vpop.f32.mrf.mxu0
        %v6796 = vadd.f32 0.0, %v6795
        %v6797 = vpop.f32.mrf.mxu0
        %v6798 = vpop.f32.mrf.mxu0
        %v6799 = vadd.f32 0.0, %v6798
        %v6800 = vpop.f32.mrf.mxu0
        %6801 = vmatprep.mubr.bf16.mxu0 0
        %6802 = vmatmul.mubr.bf16.gmra.mxu0 %v6736
        %v6803 = vpop.f32.mrf.mxu0
        %v6804 = vadd.f32 0.0, %v6803
        %v6805 = vpop.f32.mrf.mxu0
        %v6806 = vpop.f32.mrf.mxu0
        %v6807 = vadd.f32 0.0, %v6806
        %v6808 = vpop.f32.mrf.mxu0
        %6809 = vmatprep.mubr.bf16.mxu0 0
        %6810 = vmatmul.mubr.bf16.gmra.mxu0 %v6739
        %v6811 = vpop.f32.mrf.mxu0
        %v6812 = vadd.f32 0.0, %v6811
        %v6813 = vpop.f32.mrf.mxu0
        %v6814 = vpop.f32.mrf.mxu0
        %v6815 = vadd.f32 0.0, %v6814
        %v6816 = vpop.f32.mrf.mxu0
        %6817 = vmatprep.mubr.bf16.mxu0 0
        %6818 = vmatmul.mubr.bf16.gmra.mxu0 %v6742
        %v6819 = vpop.f32.mrf.mxu0
        %v6820 = vadd.f32 0.0, %v6819
        %v6821 = vpop.f32.mrf.mxu0
        %v6822 = vpop.f32.mrf.mxu0
        %v6823 = vadd.f32 0.0, %v6822
        %v6824 = vpop.f32.mrf.mxu0
        %6825 = vmatprep.mubr.bf16.mxu0 0
        %6826 = vmatmul.mubr.bf16.gmra.mxu0 %v6745
        %v6827 = vpop.f32.mrf.mxu0
        %v6828 = vadd.f32 0.0, %v6827
        %v6829 = vpop.f32.mrf.mxu0
        %v6830 = vpop.f32.mrf.mxu0
        %v6831 = vadd.f32 0.0, %v6830
        %v6832 = vpop.f32.mrf.mxu0
        %6833 = vmatprep.mubr.bf16.mxu0 0
        %6834 = vmatmul.mubr.bf16.gmra.mxu0 %v6748
        %v6835 = vpop.f32.mrf.mxu0
        %v6836 = vadd.f32 0.0, %v6835
        %v6837 = vpop.f32.mrf.mxu0
        %v6838 = vpop.f32.mrf.mxu0
        %v6839 = vadd.f32 0.0, %v6838
        %v6840 = vpop.f32.mrf.mxu0
        %6841 = vmatprep.mubr.bf16.mxu0 0
        %6842 = vmatmul.mubr.bf16.gmra.mxu0 %v6751
        %v6843 = vpop.f32.mrf.mxu0
        %v6844 = vadd.f32 0.0, %v6843
        %v6845 = vpop.f32.mrf.mxu0
        %v6846 = vpop.f32.mrf.mxu0
        %v6847 = vadd.f32 0.0, %v6846
        %v6848 = vpop.f32.mrf.mxu0
        %6849 = vdwg.mxu0
        %v6850 = vadd.f32 %v6255, %v6788
        %v6851 = vadd.f32 %v6256, %v6791
        %v6852 = vadd.f32 %v6257, %v6796
        %v6853 = vadd.f32 %v6258, %v6799
        %v6854 = vadd.f32 %v6259, %v6804
        %v6855 = vadd.f32 %v6260, %v6807
        %v6856 = vadd.f32 %v6261, %v6812
        %v6857 = vadd.f32 %v6262, %v6815
        %v6858 = vadd.f32 %v6263, %v6820
        %v6859 = vadd.f32 %v6264, %v6823
        %v6860 = vadd.f32 %v6265, %v6828
        %v6861 = vadd.f32 %v6266, %v6831
        %v6862 = vadd.f32 %v6267, %v6836
        %v6863 = vadd.f32 %v6268, %v6839
        %v6864 = vadd.f32 %v6269, %v6844
        %v6865 = vadd.f32 %v6270, %v6847
        %v6866 = vmul.f32 %v4202, %v4202
        %v6867 = vmul.f32 %v4203, %v4203
        %v6868 = vmul.f32 %v4204, %v4204
        %v6869 = vmul.f32 %v4205, %v4205
        %v6870 = vmul.f32 %v4206, %v4206
        %v6871 = vmul.f32 %v4207, %v4207
        %v6872 = vmul.f32 %v4208, %v4208
        %v6873 = vmul.f32 %v4209, %v4209
        %v6874 = vmul.f32 %v4210, %v4210
        %v6875 = vmul.f32 %v4211, %v4211
        %v6876 = vmul.f32 %v4212, %v4212
        %v6877 = vmul.f32 %v4213, %v4213
        %v6878 = vmul.f32 %v4214, %v4214
        %v6879 = vmul.f32 %v4215, %v4215
        %v6880 = vmul.f32 %v4216, %v4216
        %v6881 = vmul.f32 %v4217, %v4217
        %v6882 = vmul.f32 %v6850, %v6850
        %v6883 = vmul.f32 %v6851, %v6851
        %v6884 = vmul.f32 %v6852, %v6852
        %v6885 = vmul.f32 %v6853, %v6853
        %v6886 = vmul.f32 %v6854, %v6854
        %v6887 = vmul.f32 %v6855, %v6855
        %v6888 = vmul.f32 %v6856, %v6856
        %v6889 = vmul.f32 %v6857, %v6857
        %v6890 = vmul.f32 %v6858, %v6858
        %v6891 = vmul.f32 %v6859, %v6859
        %v6892 = vmul.f32 %v6860, %v6860
        %v6893 = vmul.f32 %v6861, %v6861
        %v6894 = vmul.f32 %v6862, %v6862
        %v6895 = vmul.f32 %v6863, %v6863
        %v6896 = vmul.f32 %v6864, %v6864
        %v6897 = vmul.f32 %v6865, %v6865
        %6898 = vadd.xlane.f32.xlu0 %v6866
        %v6899 = vpop.xlane.xlu0 %6898
        %6900 = vadd.xlane.f32.xlu0 %v6867
        %v6901 = vpop.xlane.xlu0 %6900
        %6902 = vadd.xlane.f32.xlu0 %v6868
        %v6903 = vpop.xlane.xlu0 %6902
        %6904 = vadd.xlane.f32.xlu0 %v6869
        %v6905 = vpop.xlane.xlu0 %6904
        %6906 = vadd.xlane.f32.xlu0 %v6870
        %v6907 = vpop.xlane.xlu0 %6906
        %6908 = vadd.xlane.f32.xlu0 %v6871
        %v6909 = vpop.xlane.xlu0 %6908
        %6910 = vadd.xlane.f32.xlu0 %v6872
        %v6911 = vpop.xlane.xlu0 %6910
        %6912 = vadd.xlane.f32.xlu0 %v6873
        %v6913 = vpop.xlane.xlu0 %6912
        %6914 = vadd.xlane.f32.xlu0 %v6874
        %v6915 = vpop.xlane.xlu0 %6914
        %6916 = vadd.xlane.f32.xlu0 %v6875
        %v6917 = vpop.xlane.xlu0 %6916
        %6918 = vadd.xlane.f32.xlu0 %v6876
        %v6919 = vpop.xlane.xlu0 %6918
        %6920 = vadd.xlane.f32.xlu0 %v6877
        %v6921 = vpop.xlane.xlu0 %6920
        %6922 = vadd.xlane.f32.xlu0 %v6878
        %v6923 = vpop.xlane.xlu0 %6922
        %6924 = vadd.xlane.f32.xlu0 %v6879
        %v6925 = vpop.xlane.xlu0 %6924
        %6926 = vadd.xlane.f32.xlu0 %v6880
        %v6927 = vpop.xlane.xlu0 %6926
        %6928 = vadd.xlane.f32.xlu0 %v6881
        %v6929 = vpop.xlane.xlu0 %6928
        %6930 = vadd.xlane.f32.xlu0 %v6882
        %v6931 = vpop.xlane.xlu0 %6930
        %6932 = vadd.xlane.f32.xlu0 %v6883
        %v6933 = vpop.xlane.xlu0 %6932
        %6934 = vadd.xlane.f32.xlu0 %v6884
        %v6935 = vpop.xlane.xlu0 %6934
        %6936 = vadd.xlane.f32.xlu0 %v6885
        %v6937 = vpop.xlane.xlu0 %6936
        %6938 = vadd.xlane.f32.xlu0 %v6886
        %v6939 = vpop.xlane.xlu0 %6938
        %6940 = vadd.xlane.f32.xlu0 %v6887
        %v6941 = vpop.xlane.xlu0 %6940
        %6942 = vadd.xlane.f32.xlu0 %v6888
        %v6943 = vpop.xlane.xlu0 %6942
        %6944 = vadd.xlane.f32.xlu0 %v6889
        %v6945 = vpop.xlane.xlu0 %6944
        %6946 = vadd.xlane.f32.xlu0 %v6890
        %v6947 = vpop.xlane.xlu0 %6946
        %6948 = vadd.xlane.f32.xlu0 %v6891
        %v6949 = vpop.xlane.xlu0 %6948
        %6950 = vadd.xlane.f32.xlu0 %v6892
        %v6951 = vpop.xlane.xlu0 %6950
        %6952 = vadd.xlane.f32.xlu0 %v6893
        %v6953 = vpop.xlane.xlu0 %6952
        %6954 = vadd.xlane.f32.xlu0 %v6894
        %v6955 = vpop.xlane.xlu0 %6954
        %6956 = vadd.xlane.f32.xlu0 %v6895
        %v6957 = vpop.xlane.xlu0 %6956
        %6958 = vadd.xlane.f32.xlu0 %v6896
        %v6959 = vpop.xlane.xlu0 %6958
        %6960 = vadd.xlane.f32.xlu0 %v6897
        %v6961 = vpop.xlane.xlu0 %6960
        %v6962 = vmul.f32 %v6899, %v810
        %v6963 = vmul.f32 %v6901, %v810
        %v6964 = vmul.f32 %v6903, %v810
        %v6965 = vmul.f32 %v6905, %v810
        %v6966 = vmul.f32 %v6907, %v810
        %v6967 = vmul.f32 %v6909, %v810
        %v6968 = vmul.f32 %v6911, %v810
        %v6969 = vmul.f32 %v6913, %v810
        %v6970 = vmul.f32 %v6915, %v810
        %v6971 = vmul.f32 %v6917, %v810
        %v6972 = vmul.f32 %v6919, %v810
        %v6973 = vmul.f32 %v6921, %v810
        %v6974 = vmul.f32 %v6923, %v810
        %v6975 = vmul.f32 %v6925, %v810
        %v6976 = vmul.f32 %v6927, %v810
        %v6977 = vmul.f32 %v6929, %v810
        %v6978 = vmul.f32 %v6931, %v810
        %v6979 = vmul.f32 %v6933, %v810
        %v6980 = vmul.f32 %v6935, %v810
        %v6981 = vmul.f32 %v6937, %v810
        %v6982 = vmul.f32 %v6939, %v810
        %v6983 = vmul.f32 %v6941, %v810
        %v6984 = vmul.f32 %v6943, %v810
        %v6985 = vmul.f32 %v6945, %v810
        %v6986 = vmul.f32 %v6947, %v810
        %v6987 = vmul.f32 %v6949, %v810
        %v6988 = vmul.f32 %v6951, %v810
        %v6989 = vmul.f32 %v6953, %v810
        %v6990 = vmul.f32 %v6955, %v810
        %v6991 = vmul.f32 %v6957, %v810
        %v6992 = vmul.f32 %v6959, %v810
        %v6993 = vmul.f32 %v6961, %v810
        %v6994 = vadd.f32 %v6962, 1e-05
        %v6995 = vadd.f32 %v6963, 1e-05
        %v6996 = vadd.f32 %v6964, 1e-05
        %v6997 = vadd.f32 %v6965, 1e-05
        %v6998 = vadd.f32 %v6966, 1e-05
        %v6999 = vadd.f32 %v6967, 1e-05
        %v7000 = vadd.f32 %v6968, 1e-05
        %v7001 = vadd.f32 %v6969, 1e-05
        %v7002 = vadd.f32 %v6970, 1e-05
        %v7003 = vadd.f32 %v6971, 1e-05
        %v7004 = vadd.f32 %v6972, 1e-05
        %v7005 = vadd.f32 %v6973, 1e-05
        %v7006 = vadd.f32 %v6974, 1e-05
        %v7007 = vadd.f32 %v6975, 1e-05
        %v7008 = vadd.f32 %v6976, 1e-05
        %v7009 = vadd.f32 %v6977, 1e-05
        %v7010 = vadd.f32 %v6978, 1e-05
        %v7011 = vadd.f32 %v6979, 1e-05
        %v7012 = vadd.f32 %v6980, 1e-05
        %v7013 = vadd.f32 %v6981, 1e-05
        %v7014 = vadd.f32 %v6982, 1e-05
        %v7015 = vadd.f32 %v6983, 1e-05
        %v7016 = vadd.f32 %v6984, 1e-05
        %v7017 = vadd.f32 %v6985, 1e-05
        %v7018 = vadd.f32 %v6986, 1e-05
        %v7019 = vadd.f32 %v6987, 1e-05
        %v7020 = vadd.f32 %v6988, 1e-05
        %v7021 = vadd.f32 %v6989, 1e-05
        %v7022 = vadd.f32 %v6990, 1e-05
        %v7023 = vadd.f32 %v6991, 1e-05
        %v7024 = vadd.f32 %v6992, 1e-05
        %v7025 = vadd.f32 %v6993, 1e-05
        %v7026 = vrsqrt.pop %v6994
        %v7027 = vrsqrt.pop %v6995
        %v7028 = vrsqrt.pop %v6996
        %v7029 = vrsqrt.pop %v6997
        %v7030 = vrsqrt.pop %v6998
        %v7031 = vrsqrt.pop %v6999
        %v7032 = vrsqrt.pop %v7000
        %v7033 = vrsqrt.pop %v7001
        %v7034 = vrsqrt.pop %v7002
        %v7035 = vrsqrt.pop %v7003
        %v7036 = vrsqrt.pop %v7004
        %v7037 = vrsqrt.pop %v7005
        %v7038 = vrsqrt.pop %v7006
        %v7039 = vrsqrt.pop %v7007
        %v7040 = vrsqrt.pop %v7008
        %v7041 = vrsqrt.pop %v7009
        %v7042 = vrsqrt.pop %v7010
        %v7043 = vrsqrt.pop %v7011
        %v7044 = vrsqrt.pop %v7012
        %v7045 = vrsqrt.pop %v7013
        %v7046 = vrsqrt.pop %v7014
        %v7047 = vrsqrt.pop %v7015
        %v7048 = vrsqrt.pop %v7016
        %v7049 = vrsqrt.pop %v7017
        %v7050 = vrsqrt.pop %v7018
        %v7051 = vrsqrt.pop %v7019
        %v7052 = vrsqrt.pop %v7020
        %v7053 = vrsqrt.pop %v7021
        %v7054 = vrsqrt.pop %v7022
        %v7055 = vrsqrt.pop %v7023
        %v7056 = vrsqrt.pop %v7024
        %v7057 = vrsqrt.pop %v7025
        %v7058 = vmul.f32 %v4202, %v7026
        %v7059 = vmul.f32 %v4203, %v7027
        %v7060 = vmul.f32 %v4204, %v7028
        %v7061 = vmul.f32 %v4205, %v7029
        %v7062 = vmul.f32 %v4206, %v7030
        %v7063 = vmul.f32 %v4207, %v7031
        %v7064 = vmul.f32 %v4208, %v7032
        %v7065 = vmul.f32 %v4209, %v7033
        %v7066 = vmul.f32 %v4210, %v7034
        %v7067 = vmul.f32 %v4211, %v7035
        %v7068 = vmul.f32 %v4212, %v7036
        %v7069 = vmul.f32 %v4213, %v7037
        %v7070 = vmul.f32 %v4214, %v7038
        %v7071 = vmul.f32 %v4215, %v7039
        %v7072 = vmul.f32 %v4216, %v7040
        %v7073 = vmul.f32 %v4217, %v7041
        %v7074 = vmul.f32 %v6850, %v7042
        %v7075 = vmul.f32 %v6851, %v7043
        %v7076 = vmul.f32 %v6852, %v7044
        %v7077 = vmul.f32 %v6853, %v7045
        %v7078 = vmul.f32 %v6854, %v7046
        %v7079 = vmul.f32 %v6855, %v7047
        %v7080 = vmul.f32 %v6856, %v7048
        %v7081 = vmul.f32 %v6857, %v7049
        %v7082 = vmul.f32 %v6858, %v7050
        %v7083 = vmul.f32 %v6859, %v7051
        %v7084 = vmul.f32 %v6860, %v7052
        %v7085 = vmul.f32 %v6861, %v7053
        %v7086 = vmul.f32 %v6862, %v7054
        %v7087 = vmul.f32 %v6863, %v7055
        %v7088 = vmul.f32 %v6864, %v7056
        %v7089 = vmul.f32 %v6865, %v7057
        %v7090 = vlaneseq
        %v7091 = vshrl.u32 %v7090, 7
        %v7092 = vsub.s32 1, %v7091
        %v7093 = vrot.slane %v677, %v7092
        %v7094 = vmul.f32 %v7058, %v7093
        %v7095 = vmul.f32 %v7059, %v7093
        %v7096 = vmul.f32 %v7060, %v7093
        %v7097 = vmul.f32 %v7061, %v7093
        %v7098 = vmul.f32 %v7062, %v7093
        %v7099 = vmul.f32 %v7063, %v7093
        %v7100 = vmul.f32 %v7064, %v7093
        %v7101 = vmul.f32 %v7065, %v7093
        %v7102 = vmul.f32 %v7066, %v7093
        %v7103 = vmul.f32 %v7067, %v7093
        %v7104 = vmul.f32 %v7068, %v7093
        %v7105 = vmul.f32 %v7069, %v7093
        %v7106 = vmul.f32 %v7070, %v7093
        %v7107 = vmul.f32 %v7071, %v7093
        %v7108 = vmul.f32 %v7072, %v7093
        %v7109 = vmul.f32 %v7073, %v7093
        %v7110 = vmul.f32 %v7074, %v7093
        %v7111 = vmul.f32 %v7075, %v7093
        %v7112 = vmul.f32 %v7076, %v7093
        %v7113 = vmul.f32 %v7077, %v7093
        %v7114 = vmul.f32 %v7078, %v7093
        %v7115 = vmul.f32 %v7079, %v7093
        %v7116 = vmul.f32 %v7080, %v7093
        %v7117 = vmul.f32 %v7081, %v7093
        %v7118 = vmul.f32 %v7082, %v7093
        %v7119 = vmul.f32 %v7083, %v7093
        %v7120 = vmul.f32 %v7084, %v7093
        %v7121 = vmul.f32 %v7085, %v7093
        %v7122 = vmul.f32 %v7086, %v7093
        %v7123 = vmul.f32 %v7087, %v7093
        %v7124 = vmul.f32 %v7088, %v7093
        %v7125 = vmul.f32 %v7089, %v7093
        %v7126 = vpack.c.bf16 %v7095, %v7094
        %v7127 = vpack.c.bf16 %v7097, %v7096
        %v7128 = vpack.c.bf16 %v7099, %v7098
        %v7129 = vpack.c.bf16 %v7101, %v7100
        %v7130 = vpack.c.bf16 %v7103, %v7102
        %v7131 = vpack.c.bf16 %v7105, %v7104
        %v7132 = vpack.c.bf16 %v7107, %v7106
        %v7133 = vpack.c.bf16 %v7109, %v7108
        %v7134 = vpack.c.bf16 %v7111, %v7110
        %v7135 = vpack.c.bf16 %v7113, %v7112
        %v7136 = vpack.c.bf16 %v7115, %v7114
        %v7137 = vpack.c.bf16 %v7117, %v7116
        %v7138 = vpack.c.bf16 %v7119, %v7118
        %v7139 = vpack.c.bf16 %v7121, %v7120
        %v7140 = vpack.c.bf16 %v7123, %v7122
        %v7141 = vpack.c.bf16 %v7125, %v7124
        %v7142 = vld [vmem:[%s509] sm:$0xff]
        %v7143 = vld [vmem:[%s509 + $0x8] sm:$0xff]
        %v7144 = vld [vmem:[%s509 + $0x10] sm:$0xff]
        %v7145 = vld [vmem:[%s509 + $0x18] sm:$0xff]
        %v7146 = vld [vmem:[%s509 + $0x20] sm:$0xff]
        %v7147 = vld [vmem:[%s509 + $0x28] sm:$0xff]
        %v7148 = vld [vmem:[%s509 + $0x30] sm:$0xff]
        %v7149 = vld [vmem:[%s509 + $0x38] sm:$0xff]
        %v7150 = vld [vmem:[%s509 + $0x40] sm:$0xff]
        %v7151 = vld [vmem:[%s509 + $0x48] sm:$0xff]
        %v7152 = vld [vmem:[%s509 + $0x50] sm:$0xff]
        %v7153 = vld [vmem:[%s509 + $0x58] sm:$0xff]
        %v7154 = vld [vmem:[%s509 + $0x60] sm:$0xff]
        %v7155 = vld [vmem:[%s509 + $0x68] sm:$0xff]
        %v7156 = vld [vmem:[%s509 + $0x70] sm:$0xff]
        %v7157 = vld [vmem:[%s509 + $0x78] sm:$0xff]
        %v7158 = vld [vmem:[%s509 + $0x80] sm:$0xff]
        %v7159 = vld [vmem:[%s509 + $0x88] sm:$0xff]
        %v7160 = vld [vmem:[%s509 + $0x90] sm:$0xff]
        %v7161 = vld [vmem:[%s509 + $0x98] sm:$0xff]
        %v7162 = vld [vmem:[%s509 + $0xa0] sm:$0xff]
        %v7163 = vld [vmem:[%s509 + $0xa8] sm:$0xff]
        %v7164 = vld [vmem:[%s509 + $0xb0] sm:$0xff]
        %v7165 = vld [vmem:[%s509 + $0xb8] sm:$0xff]
        %v7166 = vld [vmem:[%s509 + $0xc0] sm:$0xff]
        %v7167 = vld [vmem:[%s509 + $0xc8] sm:$0xff]
        %v7168 = vld [vmem:[%s509 + $0xd0] sm:$0xff]
        %v7169 = vld [vmem:[%s509 + $0xd8] sm:$0xff]
        %v7170 = vld [vmem:[%s509 + $0xe0] sm:$0xff]
        %v7171 = vld [vmem:[%s509 + $0xe8] sm:$0xff]
        %v7172 = vld [vmem:[%s509 + $0xf0] sm:$0xff]
        %v7173 = vld [vmem:[%s509 + $0xf8] sm:$0xff]
        %v7206 = vunpack.c.l.b16 %v7142
        %v7207 = vunpack.c.h.b16 %v7142
        %v7208 = vunpack.c.l.b16 %v7143
        %v7209 = vunpack.c.h.b16 %v7143
        %v7210 = vunpack.c.l.b16 %v7144
        %v7211 = vunpack.c.h.b16 %v7144
        %v7212 = vunpack.c.l.b16 %v7145
        %v7213 = vunpack.c.h.b16 %v7145
        %v7214 = vunpack.c.l.b16 %v7146
        %v7215 = vunpack.c.h.b16 %v7146
        %v7216 = vunpack.c.l.b16 %v7147
        %v7217 = vunpack.c.h.b16 %v7147
        %v7218 = vunpack.c.l.b16 %v7148
        %v7219 = vunpack.c.h.b16 %v7148
        %v7220 = vunpack.c.l.b16 %v7149
        %v7221 = vunpack.c.h.b16 %v7149
        %v7222 = vunpack.c.l.b16 %v7150
        %v7223 = vunpack.c.h.b16 %v7150
        %v7224 = vunpack.c.l.b16 %v7151
        %v7225 = vunpack.c.h.b16 %v7151
        %v7226 = vunpack.c.l.b16 %v7152
        %v7227 = vunpack.c.h.b16 %v7152
        %v7228 = vunpack.c.l.b16 %v7153
        %v7229 = vunpack.c.h.b16 %v7153
        %v7230 = vunpack.c.l.b16 %v7154
        %v7231 = vunpack.c.h.b16 %v7154
        %v7232 = vunpack.c.l.b16 %v7155
        %v7233 = vunpack.c.h.b16 %v7155
        %v7234 = vunpack.c.l.b16 %v7156
        %v7235 = vunpack.c.h.b16 %v7156
        %v7236 = vunpack.c.l.b16 %v7157
        %v7237 = vunpack.c.h.b16 %v7157
        %v7238 = vunpack.c.l.b16 %v7158
        %v7239 = vunpack.c.h.b16 %v7158
        %v7240 = vunpack.c.l.b16 %v7159
        %v7241 = vunpack.c.h.b16 %v7159
        %v7242 = vunpack.c.l.b16 %v7160
        %v7243 = vunpack.c.h.b16 %v7160
        %v7244 = vunpack.c.l.b16 %v7161
        %v7245 = vunpack.c.h.b16 %v7161
        %v7246 = vunpack.c.l.b16 %v7162
        %v7247 = vunpack.c.h.b16 %v7162
        %v7248 = vunpack.c.l.b16 %v7163
        %v7249 = vunpack.c.h.b16 %v7163
        %v7250 = vunpack.c.l.b16 %v7164
        %v7251 = vunpack.c.h.b16 %v7164
        %v7252 = vunpack.c.l.b16 %v7165
        %v7253 = vunpack.c.h.b16 %v7165
        %v7254 = vunpack.c.l.b16 %v7166
        %v7255 = vunpack.c.h.b16 %v7166
        %v7256 = vunpack.c.l.b16 %v7167
        %v7257 = vunpack.c.h.b16 %v7167
        %v7258 = vunpack.c.l.b16 %v7168
        %v7259 = vunpack.c.h.b16 %v7168
        %v7260 = vunpack.c.l.b16 %v7169
        %v7261 = vunpack.c.h.b16 %v7169
        %v7262 = vunpack.c.l.b16 %v7170
        %v7263 = vunpack.c.h.b16 %v7170
        %v7264 = vunpack.c.l.b16 %v7171
        %v7265 = vunpack.c.h.b16 %v7171
        %v7266 = vunpack.c.l.b16 %v7172
        %v7267 = vunpack.c.h.b16 %v7172
        %v7268 = vunpack.c.l.b16 %v7173
        %v7269 = vunpack.c.h.b16 %v7173
        %v7270 = vpack.c.b16 %v7210, %v7206
        %v7271 = vpack.c.b16 %v7211, %v7207
        %v7272 = vpack.c.b16 %v7212, %v7208
        %v7273 = vpack.c.b16 %v7213, %v7209
        %v7274 = vpack.c.b16 %v7218, %v7214
        %v7275 = vpack.c.b16 %v7219, %v7215
        %v7276 = vpack.c.b16 %v7220, %v7216
        %v7277 = vpack.c.b16 %v7221, %v7217
        %v7278 = vpack.c.b16 %v7226, %v7222
        %v7279 = vpack.c.b16 %v7227, %v7223
        %v7280 = vpack.c.b16 %v7228, %v7224
        %v7281 = vpack.c.b16 %v7229, %v7225
        %v7282 = vpack.c.b16 %v7234, %v7230
        %v7283 = vpack.c.b16 %v7235, %v7231
        %v7284 = vpack.c.b16 %v7236, %v7232
        %v7285 = vpack.c.b16 %v7237, %v7233
        %v7286 = vpack.c.b16 %v7242, %v7238
        %v7287 = vpack.c.b16 %v7243, %v7239
        %v7288 = vpack.c.b16 %v7244, %v7240
        %v7289 = vpack.c.b16 %v7245, %v7241
        %v7290 = vpack.c.b16 %v7250, %v7246
        %v7291 = vpack.c.b16 %v7251, %v7247
        %v7292 = vpack.c.b16 %v7252, %v7248
        %v7293 = vpack.c.b16 %v7253, %v7249
        %v7294 = vpack.c.b16 %v7258, %v7254
        %v7295 = vpack.c.b16 %v7259, %v7255
        %v7296 = vpack.c.b16 %v7260, %v7256
        %v7297 = vpack.c.b16 %v7261, %v7257
        %v7298 = vpack.c.b16 %v7266, %v7262
        %v7299 = vpack.c.b16 %v7267, %v7263
        %v7300 = vpack.c.b16 %v7268, %v7264
        %v7301 = vpack.c.b16 %v7269, %v7265
        %7334 = vmatprep.subr.bf16.mxu0 %v7299
        %7335 = vmatpush1.bf16.msra.mxu0 %v7298
        %7336 = vmatprep.subr.bf16.mxu0 %v7295
        %7337 = vmatpush1.bf16.msra.mxu0 %v7294
        %7338 = vmatprep.subr.bf16.mxu0 %v7291
        %7339 = vmatpush1.bf16.msra.mxu0 %v7290
        %7340 = vmatprep.subr.bf16.mxu0 %v7287
        %7341 = vmatpush1.bf16.msra.mxu0 %v7286
        %7342 = vmatprep.subr.bf16.mxu0 %v7283
        %7343 = vmatpush1.bf16.msra.mxu0 %v7282
        %7344 = vmatprep.subr.bf16.mxu0 %v7279
        %7345 = vmatpush1.bf16.msra.mxu0 %v7278
        %7346 = vmatprep.subr.bf16.mxu0 %v7275
        %7347 = vmatpush1.bf16.msra.mxu0 %v7274
        %7348 = vmatprep.subr.bf16.mxu0 %v7271
        %7349 = vmatpush1.bf16.msra.mxu0 %v7270
        %7350 = vmatprep.subr.bf16.mxu0 0
        %7351 = vmatpush2.bf16.msra.mxu0 0
        %7352 = vmatprep.subr.bf16.mxu0 0
        %7353 = vmatpush2.bf16.msra.mxu0 0
        %7354 = vmatprep.subr.bf16.mxu0 0
        %7355 = vmatpush2.bf16.msra.mxu0 0
        %7356 = vmatprep.subr.bf16.mxu0 0
        %7357 = vmatpush2.bf16.msra.mxu0 0
        %7358 = vmatprep.subr.bf16.mxu0 0
        %7359 = vmatpush2.bf16.msra.mxu0 0
        %7360 = vmatprep.subr.bf16.mxu0 0
        %7361 = vmatpush2.bf16.msra.mxu0 0
        %7362 = vmatprep.subr.bf16.mxu0 0
        %7363 = vmatpush2.bf16.msra.mxu0 0
        %7364 = vmatprep.subr.bf16.mxu0 0
        %7365 = vmatpush2.bf16.msra.mxu0 0
        %7366 = vmatprep.mubr.bf16.mxu0 0
        %7367 = vmatmul.mubr.bf16.gmra.mxu0 %v7126
        %v7368 = vpop.f32.mrf.mxu0
        %v7369 = vadd.f32 0.0, %v7368
        %v7370 = vpop.f32.mrf.mxu0
        %v7371 = vadd.f32 0.0, %v7370
        %v7372 = vpop.f32.mrf.mxu0
        %v7373 = vadd.f32 0.0, %v7372
        %v7374 = vpop.f32.mrf.mxu0
        %v7375 = vadd.f32 0.0, %v7374
        %7376 = vmatprep.mubr.bf16.mxu0 0
        %7377 = vmatmul.mubr.bf16.gmra.mxu0 %v7127
        %v7378 = vpop.f32.mrf.mxu0
        %v7379 = vadd.f32 0.0, %v7378
        %v7380 = vpop.f32.mrf.mxu0
        %v7381 = vadd.f32 0.0, %v7380
        %v7382 = vpop.f32.mrf.mxu0
        %v7383 = vadd.f32 0.0, %v7382
        %v7384 = vpop.f32.mrf.mxu0
        %v7385 = vadd.f32 0.0, %v7384
        %7386 = vmatprep.mubr.bf16.mxu0 0
        %7387 = vmatmul.mubr.bf16.gmra.mxu0 %v7128
        %v7388 = vpop.f32.mrf.mxu0
        %v7389 = vadd.f32 0.0, %v7388
        %v7390 = vpop.f32.mrf.mxu0
        %v7391 = vadd.f32 0.0, %v7390
        %v7392 = vpop.f32.mrf.mxu0
        %v7393 = vadd.f32 0.0, %v7392
        %v7394 = vpop.f32.mrf.mxu0
        %v7395 = vadd.f32 0.0, %v7394
        %7396 = vmatprep.mubr.bf16.mxu0 0
        %7397 = vmatmul.mubr.bf16.gmra.mxu0 %v7129
        %v7398 = vpop.f32.mrf.mxu0
        %v7399 = vadd.f32 0.0, %v7398
        %v7400 = vpop.f32.mrf.mxu0
        %v7401 = vadd.f32 0.0, %v7400
        %v7402 = vpop.f32.mrf.mxu0
        %v7403 = vadd.f32 0.0, %v7402
        %v7404 = vpop.f32.mrf.mxu0
        %v7405 = vadd.f32 0.0, %v7404
        %7406 = vmatprep.mubr.bf16.mxu0 0
        %7407 = vmatmul.mubr.bf16.gmra.mxu0 %v7130
        %v7408 = vpop.f32.mrf.mxu0
        %v7409 = vadd.f32 0.0, %v7408
        %v7410 = vpop.f32.mrf.mxu0
        %v7411 = vadd.f32 0.0, %v7410
        %v7412 = vpop.f32.mrf.mxu0
        %v7413 = vadd.f32 0.0, %v7412
        %v7414 = vpop.f32.mrf.mxu0
        %v7415 = vadd.f32 0.0, %v7414
        %7416 = vmatprep.mubr.bf16.mxu0 0
        %7417 = vmatmul.mubr.bf16.gmra.mxu0 %v7131
        %v7418 = vpop.f32.mrf.mxu0
        %v7419 = vadd.f32 0.0, %v7418
        %v7420 = vpop.f32.mrf.mxu0
        %v7421 = vadd.f32 0.0, %v7420
        %v7422 = vpop.f32.mrf.mxu0
        %v7423 = vadd.f32 0.0, %v7422
        %v7424 = vpop.f32.mrf.mxu0
        %v7425 = vadd.f32 0.0, %v7424
        %7426 = vmatprep.mubr.bf16.mxu0 0
        %7427 = vmatmul.mubr.bf16.gmra.mxu0 %v7132
        %v7428 = vpop.f32.mrf.mxu0
        %v7429 = vadd.f32 0.0, %v7428
        %v7430 = vpop.f32.mrf.mxu0
        %v7431 = vadd.f32 0.0, %v7430
        %v7432 = vpop.f32.mrf.mxu0
        %v7433 = vadd.f32 0.0, %v7432
        %v7434 = vpop.f32.mrf.mxu0
        %v7435 = vadd.f32 0.0, %v7434
        %7436 = vmatprep.mubr.bf16.mxu0 0
        %7437 = vmatmul.mubr.bf16.gmra.mxu0 %v7133
        %v7438 = vpop.f32.mrf.mxu0
        %v7439 = vadd.f32 0.0, %v7438
        %v7440 = vpop.f32.mrf.mxu0
        %v7441 = vadd.f32 0.0, %v7440
        %v7442 = vpop.f32.mrf.mxu0
        %v7443 = vadd.f32 0.0, %v7442
        %v7444 = vpop.f32.mrf.mxu0
        %v7445 = vadd.f32 0.0, %v7444
        %7446 = vmatprep.mubr.bf16.mxu0 0
        %7447 = vmatmul.mubr.bf16.gmra.mxu0 %v7134
        %v7448 = vpop.f32.mrf.mxu0
        %v7449 = vadd.f32 0.0, %v7448
        %v7450 = vpop.f32.mrf.mxu0
        %v7451 = vadd.f32 0.0, %v7450
        %v7452 = vpop.f32.mrf.mxu0
        %v7453 = vadd.f32 0.0, %v7452
        %v7454 = vpop.f32.mrf.mxu0
        %v7455 = vadd.f32 0.0, %v7454
        %7456 = vmatprep.mubr.bf16.mxu0 0
        %7457 = vmatmul.mubr.bf16.gmra.mxu0 %v7135
        %v7458 = vpop.f32.mrf.mxu0
        %v7459 = vadd.f32 0.0, %v7458
        %v7460 = vpop.f32.mrf.mxu0
        %v7461 = vadd.f32 0.0, %v7460
        %v7462 = vpop.f32.mrf.mxu0
        %v7463 = vadd.f32 0.0, %v7462
        %v7464 = vpop.f32.mrf.mxu0
        %v7465 = vadd.f32 0.0, %v7464
        %7466 = vmatprep.mubr.bf16.mxu0 0
        %7467 = vmatmul.mubr.bf16.gmra.mxu0 %v7136
        %v7468 = vpop.f32.mrf.mxu0
        %v7469 = vadd.f32 0.0, %v7468
        %v7470 = vpop.f32.mrf.mxu0
        %v7471 = vadd.f32 0.0, %v7470
        %v7472 = vpop.f32.mrf.mxu0
        %v7473 = vadd.f32 0.0, %v7472
        %v7474 = vpop.f32.mrf.mxu0
        %v7475 = vadd.f32 0.0, %v7474
        %7476 = vmatprep.mubr.bf16.mxu0 0
        %7477 = vmatmul.mubr.bf16.gmra.mxu0 %v7137
        %v7478 = vpop.f32.mrf.mxu0
        %v7479 = vadd.f32 0.0, %v7478
        %v7480 = vpop.f32.mrf.mxu0
        %v7481 = vadd.f32 0.0, %v7480
        %v7482 = vpop.f32.mrf.mxu0
        %v7483 = vadd.f32 0.0, %v7482
        %v7484 = vpop.f32.mrf.mxu0
        %v7485 = vadd.f32 0.0, %v7484
        %7486 = vmatprep.mubr.bf16.mxu0 0
        %7487 = vmatmul.mubr.bf16.gmra.mxu0 %v7138
        %v7488 = vpop.f32.mrf.mxu0
        %v7489 = vadd.f32 0.0, %v7488
        %v7490 = vpop.f32.mrf.mxu0
        %v7491 = vadd.f32 0.0, %v7490
        %v7492 = vpop.f32.mrf.mxu0
        %v7493 = vadd.f32 0.0, %v7492
        %v7494 = vpop.f32.mrf.mxu0
        %v7495 = vadd.f32 0.0, %v7494
        %7496 = vmatprep.mubr.bf16.mxu0 0
        %7497 = vmatmul.mubr.bf16.gmra.mxu0 %v7139
        %v7498 = vpop.f32.mrf.mxu0
        %v7499 = vadd.f32 0.0, %v7498
        %v7500 = vpop.f32.mrf.mxu0
        %v7501 = vadd.f32 0.0, %v7500
        %v7502 = vpop.f32.mrf.mxu0
        %v7503 = vadd.f32 0.0, %v7502
        %v7504 = vpop.f32.mrf.mxu0
        %v7505 = vadd.f32 0.0, %v7504
        %7506 = vmatprep.mubr.bf16.mxu0 0
        %7507 = vmatmul.mubr.bf16.gmra.mxu0 %v7140
        %v7508 = vpop.f32.mrf.mxu0
        %v7509 = vadd.f32 0.0, %v7508
        %v7510 = vpop.f32.mrf.mxu0
        %v7511 = vadd.f32 0.0, %v7510
        %v7512 = vpop.f32.mrf.mxu0
        %v7513 = vadd.f32 0.0, %v7512
        %v7514 = vpop.f32.mrf.mxu0
        %v7515 = vadd.f32 0.0, %v7514
        %7516 = vmatprep.mubr.bf16.mxu0 0
        %7517 = vmatmul.mubr.bf16.gmra.mxu0 %v7141
        %v7518 = vpop.f32.mrf.mxu0
        %v7519 = vadd.f32 0.0, %v7518
        %v7520 = vpop.f32.mrf.mxu0
        %v7521 = vadd.f32 0.0, %v7520
        %v7522 = vpop.f32.mrf.mxu0
        %v7523 = vadd.f32 0.0, %v7522
        %v7524 = vpop.f32.mrf.mxu0
        %v7525 = vadd.f32 0.0, %v7524
        %7526 = vdwg.mxu0
        %7527 = vmatprep.subr.bf16.mxu0 %v7301
        %7528 = vmatpush1.bf16.msra.mxu0 %v7300
        %7529 = vmatprep.subr.bf16.mxu0 %v7297
        %7530 = vmatpush1.bf16.msra.mxu0 %v7296
        %7531 = vmatprep.subr.bf16.mxu0 %v7293
        %7532 = vmatpush1.bf16.msra.mxu0 %v7292
        %7533 = vmatprep.subr.bf16.mxu0 %v7289
        %7534 = vmatpush1.bf16.msra.mxu0 %v7288
        %7535 = vmatprep.subr.bf16.mxu0 %v7285
        %7536 = vmatpush1.bf16.msra.mxu0 %v7284
        %7537 = vmatprep.subr.bf16.mxu0 %v7281
        %7538 = vmatpush1.bf16.msra.mxu0 %v7280
        %7539 = vmatprep.subr.bf16.mxu0 %v7277
        %7540 = vmatpush1.bf16.msra.mxu0 %v7276
        %7541 = vmatprep.subr.bf16.mxu0 %v7273
        %7542 = vmatpush1.bf16.msra.mxu0 %v7272
        %7543 = vmatprep.subr.bf16.mxu0 0
        %7544 = vmatpush2.bf16.msra.mxu0 0
        %7545 = vmatprep.subr.bf16.mxu0 0
        %7546 = vmatpush2.bf16.msra.mxu0 0
        %7547 = vmatprep.subr.bf16.mxu0 0
        %7548 = vmatpush2.bf16.msra.mxu0 0
        %7549 = vmatprep.subr.bf16.mxu0 0
        %7550 = vmatpush2.bf16.msra.mxu0 0
        %7551 = vmatprep.subr.bf16.mxu0 0
        %7552 = vmatpush2.bf16.msra.mxu0 0
        %7553 = vmatprep.subr.bf16.mxu0 0
        %7554 = vmatpush2.bf16.msra.mxu0 0
        %7555 = vmatprep.subr.bf16.mxu0 0
        %7556 = vmatpush2.bf16.msra.mxu0 0
        %7557 = vmatprep.subr.bf16.mxu0 0
        %7558 = vmatpush2.bf16.msra.mxu0 0
        %7559 = vmatprep.mubr.bf16.mxu0 0
        %7560 = vmatmul.mubr.bf16.gmra.mxu0 %v7126
        %v7561 = vpop.f32.mrf.mxu0
        %v7562 = vadd.f32 0.0, %v7561
        %v7563 = vpop.f32.mrf.mxu0
        %v7564 = vadd.f32 0.0, %v7563
        %v7565 = vpop.f32.mrf.mxu0
        %v7566 = vadd.f32 0.0, %v7565
        %v7567 = vpop.f32.mrf.mxu0
        %v7568 = vadd.f32 0.0, %v7567
        %7569 = vmatprep.mubr.bf16.mxu0 0
        %7570 = vmatmul.mubr.bf16.gmra.mxu0 %v7127
        %v7571 = vpop.f32.mrf.mxu0
        %v7572 = vadd.f32 0.0, %v7571
        %v7573 = vpop.f32.mrf.mxu0
        %v7574 = vadd.f32 0.0, %v7573
        %v7575 = vpop.f32.mrf.mxu0
        %v7576 = vadd.f32 0.0, %v7575
        %v7577 = vpop.f32.mrf.mxu0
        %v7578 = vadd.f32 0.0, %v7577
        %7579 = vmatprep.mubr.bf16.mxu0 0
        %7580 = vmatmul.mubr.bf16.gmra.mxu0 %v7128
        %v7581 = vpop.f32.mrf.mxu0
        %v7582 = vadd.f32 0.0, %v7581
        %v7583 = vpop.f32.mrf.mxu0
        %v7584 = vadd.f32 0.0, %v7583
        %v7585 = vpop.f32.mrf.mxu0
        %v7586 = vadd.f32 0.0, %v7585
        %v7587 = vpop.f32.mrf.mxu0
        %v7588 = vadd.f32 0.0, %v7587
        %7589 = vmatprep.mubr.bf16.mxu0 0
        %7590 = vmatmul.mubr.bf16.gmra.mxu0 %v7129
        %v7591 = vpop.f32.mrf.mxu0
        %v7592 = vadd.f32 0.0, %v7591
        %v7593 = vpop.f32.mrf.mxu0
        %v7594 = vadd.f32 0.0, %v7593
        %v7595 = vpop.f32.mrf.mxu0
        %v7596 = vadd.f32 0.0, %v7595
        %v7597 = vpop.f32.mrf.mxu0
        %v7598 = vadd.f32 0.0, %v7597
        %7599 = vmatprep.mubr.bf16.mxu0 0
        %7600 = vmatmul.mubr.bf16.gmra.mxu0 %v7130
        %v7601 = vpop.f32.mrf.mxu0
        %v7602 = vadd.f32 0.0, %v7601
        %v7603 = vpop.f32.mrf.mxu0
        %v7604 = vadd.f32 0.0, %v7603
        %v7605 = vpop.f32.mrf.mxu0
        %v7606 = vadd.f32 0.0, %v7605
        %v7607 = vpop.f32.mrf.mxu0
        %v7608 = vadd.f32 0.0, %v7607
        %7609 = vmatprep.mubr.bf16.mxu0 0
        %7610 = vmatmul.mubr.bf16.gmra.mxu0 %v7131
        %v7611 = vpop.f32.mrf.mxu0
        %v7612 = vadd.f32 0.0, %v7611
        %v7613 = vpop.f32.mrf.mxu0
        %v7614 = vadd.f32 0.0, %v7613
        %v7615 = vpop.f32.mrf.mxu0
        %v7616 = vadd.f32 0.0, %v7615
        %v7617 = vpop.f32.mrf.mxu0
        %v7618 = vadd.f32 0.0, %v7617
        %7619 = vmatprep.mubr.bf16.mxu0 0
        %7620 = vmatmul.mubr.bf16.gmra.mxu0 %v7132
        %v7621 = vpop.f32.mrf.mxu0
        %v7622 = vadd.f32 0.0, %v7621
        %v7623 = vpop.f32.mrf.mxu0
        %v7624 = vadd.f32 0.0, %v7623
        %v7625 = vpop.f32.mrf.mxu0
        %v7626 = vadd.f32 0.0, %v7625
        %v7627 = vpop.f32.mrf.mxu0
        %v7628 = vadd.f32 0.0, %v7627
        %7629 = vmatprep.mubr.bf16.mxu0 0
        %7630 = vmatmul.mubr.bf16.gmra.mxu0 %v7133
        %v7631 = vpop.f32.mrf.mxu0
        %v7632 = vadd.f32 0.0, %v7631
        %v7633 = vpop.f32.mrf.mxu0
        %v7634 = vadd.f32 0.0, %v7633
        %v7635 = vpop.f32.mrf.mxu0
        %v7636 = vadd.f32 0.0, %v7635
        %v7637 = vpop.f32.mrf.mxu0
        %v7638 = vadd.f32 0.0, %v7637
        %7639 = vmatprep.mubr.bf16.mxu0 0
        %7640 = vmatmul.mubr.bf16.gmra.mxu0 %v7134
        %v7641 = vpop.f32.mrf.mxu0
        %v7642 = vadd.f32 0.0, %v7641
        %v7643 = vpop.f32.mrf.mxu0
        %v7644 = vadd.f32 0.0, %v7643
        %v7645 = vpop.f32.mrf.mxu0
        %v7646 = vadd.f32 0.0, %v7645
        %v7647 = vpop.f32.mrf.mxu0
        %v7648 = vadd.f32 0.0, %v7647
        %7649 = vmatprep.mubr.bf16.mxu0 0
        %7650 = vmatmul.mubr.bf16.gmra.mxu0 %v7135
        %v7651 = vpop.f32.mrf.mxu0
        %v7652 = vadd.f32 0.0, %v7651
        %v7653 = vpop.f32.mrf.mxu0
        %v7654 = vadd.f32 0.0, %v7653
        %v7655 = vpop.f32.mrf.mxu0
        %v7656 = vadd.f32 0.0, %v7655
        %v7657 = vpop.f32.mrf.mxu0
        %v7658 = vadd.f32 0.0, %v7657
        %7659 = vmatprep.mubr.bf16.mxu0 0
        %7660 = vmatmul.mubr.bf16.gmra.mxu0 %v7136
        %v7661 = vpop.f32.mrf.mxu0
        %v7662 = vadd.f32 0.0, %v7661
        %v7663 = vpop.f32.mrf.mxu0
        %v7664 = vadd.f32 0.0, %v7663
        %v7665 = vpop.f32.mrf.mxu0
        %v7666 = vadd.f32 0.0, %v7665
        %v7667 = vpop.f32.mrf.mxu0
        %v7668 = vadd.f32 0.0, %v7667
        %7669 = vmatprep.mubr.bf16.mxu0 0
        %7670 = vmatmul.mubr.bf16.gmra.mxu0 %v7137
        %v7671 = vpop.f32.mrf.mxu0
        %v7672 = vadd.f32 0.0, %v7671
        %v7673 = vpop.f32.mrf.mxu0
        %v7674 = vadd.f32 0.0, %v7673
        %v7675 = vpop.f32.mrf.mxu0
        %v7676 = vadd.f32 0.0, %v7675
        %v7677 = vpop.f32.mrf.mxu0
        %v7678 = vadd.f32 0.0, %v7677
        %7679 = vmatprep.mubr.bf16.mxu0 0
        %7680 = vmatmul.mubr.bf16.gmra.mxu0 %v7138
        %v7681 = vpop.f32.mrf.mxu0
        %v7682 = vadd.f32 0.0, %v7681
        %v7683 = vpop.f32.mrf.mxu0
        %v7684 = vadd.f32 0.0, %v7683
        %v7685 = vpop.f32.mrf.mxu0
        %v7686 = vadd.f32 0.0, %v7685
        %v7687 = vpop.f32.mrf.mxu0
        %v7688 = vadd.f32 0.0, %v7687
        %7689 = vmatprep.mubr.bf16.mxu0 0
        %7690 = vmatmul.mubr.bf16.gmra.mxu0 %v7139
        %v7691 = vpop.f32.mrf.mxu0
        %v7692 = vadd.f32 0.0, %v7691
        %v7693 = vpop.f32.mrf.mxu0
        %v7694 = vadd.f32 0.0, %v7693
        %v7695 = vpop.f32.mrf.mxu0
        %v7696 = vadd.f32 0.0, %v7695
        %v7697 = vpop.f32.mrf.mxu0
        %v7698 = vadd.f32 0.0, %v7697
        %7699 = vmatprep.mubr.bf16.mxu0 0
        %7700 = vmatmul.mubr.bf16.gmra.mxu0 %v7140
        %v7701 = vpop.f32.mrf.mxu0
        %v7702 = vadd.f32 0.0, %v7701
        %v7703 = vpop.f32.mrf.mxu0
        %v7704 = vadd.f32 0.0, %v7703
        %v7705 = vpop.f32.mrf.mxu0
        %v7706 = vadd.f32 0.0, %v7705
        %v7707 = vpop.f32.mrf.mxu0
        %v7708 = vadd.f32 0.0, %v7707
        %7709 = vmatprep.mubr.bf16.mxu0 0
        %7710 = vmatmul.mubr.bf16.gmra.mxu0 %v7141
        %v7711 = vpop.f32.mrf.mxu0
        %v7712 = vadd.f32 0.0, %v7711
        %v7713 = vpop.f32.mrf.mxu0
        %v7714 = vadd.f32 0.0, %v7713
        %v7715 = vpop.f32.mrf.mxu0
        %v7716 = vadd.f32 0.0, %v7715
        %v7717 = vpop.f32.mrf.mxu0
        %v7718 = vadd.f32 0.0, %v7717
        %7719 = vdwg.mxu0
        %v7720 = vxor.u32 %v7369, 2147483648
        %v7721 = vxor.u32 %v7371, 2147483648
        %v7722 = vxor.u32 %v7373, 2147483648
        %v7723 = vxor.u32 %v7375, 2147483648
        %v7724 = vxor.u32 %v7379, 2147483648
        %v7725 = vxor.u32 %v7381, 2147483648
        %v7726 = vxor.u32 %v7383, 2147483648
        %v7727 = vxor.u32 %v7385, 2147483648
        %v7728 = vxor.u32 %v7389, 2147483648
        %v7729 = vxor.u32 %v7391, 2147483648
        %v7730 = vxor.u32 %v7393, 2147483648
        %v7731 = vxor.u32 %v7395, 2147483648
        %v7732 = vxor.u32 %v7399, 2147483648
        %v7733 = vxor.u32 %v7401, 2147483648
        %v7734 = vxor.u32 %v7403, 2147483648
        %v7735 = vxor.u32 %v7405, 2147483648
        %v7736 = vxor.u32 %v7409, 2147483648
        %v7737 = vxor.u32 %v7411, 2147483648
        %v7738 = vxor.u32 %v7413, 2147483648
        %v7739 = vxor.u32 %v7415, 2147483648
        %v7740 = vxor.u32 %v7419, 2147483648
        %v7741 = vxor.u32 %v7421, 2147483648
        %v7742 = vxor.u32 %v7423, 2147483648
        %v7743 = vxor.u32 %v7425, 2147483648
        %v7744 = vxor.u32 %v7429, 2147483648
        %v7745 = vxor.u32 %v7431, 2147483648
        %v7746 = vxor.u32 %v7433, 2147483648
        %v7747 = vxor.u32 %v7435, 2147483648
        %v7748 = vxor.u32 %v7439, 2147483648
        %v7749 = vxor.u32 %v7441, 2147483648
        %v7750 = vxor.u32 %v7443, 2147483648
        %v7751 = vxor.u32 %v7445, 2147483648
        %v7752 = vxor.u32 %v7449, 2147483648
        %v7753 = vxor.u32 %v7451, 2147483648
        %v7754 = vxor.u32 %v7453, 2147483648
        %v7755 = vxor.u32 %v7455, 2147483648
        %v7756 = vxor.u32 %v7459, 2147483648
        %v7757 = vxor.u32 %v7461, 2147483648
        %v7758 = vxor.u32 %v7463, 2147483648
        %v7759 = vxor.u32 %v7465, 2147483648
        %v7760 = vxor.u32 %v7469, 2147483648
        %v7761 = vxor.u32 %v7471, 2147483648
        %v7762 = vxor.u32 %v7473, 2147483648
        %v7763 = vxor.u32 %v7475, 2147483648
        %v7764 = vxor.u32 %v7479, 2147483648
        %v7765 = vxor.u32 %v7481, 2147483648
        %v7766 = vxor.u32 %v7483, 2147483648
        %v7767 = vxor.u32 %v7485, 2147483648
        %v7768 = vxor.u32 %v7489, 2147483648
        %v7769 = vxor.u32 %v7491, 2147483648
        %v7770 = vxor.u32 %v7493, 2147483648
        %v7771 = vxor.u32 %v7495, 2147483648
        %v7772 = vxor.u32 %v7499, 2147483648
        %v7773 = vxor.u32 %v7501, 2147483648
        %v7774 = vxor.u32 %v7503, 2147483648
        %v7775 = vxor.u32 %v7505, 2147483648
        %v7776 = vxor.u32 %v7509, 2147483648
        %v7777 = vxor.u32 %v7511, 2147483648
        %v7778 = vxor.u32 %v7513, 2147483648
        %v7779 = vxor.u32 %v7515, 2147483648
        %v7780 = vxor.u32 %v7519, 2147483648
        %v7781 = vxor.u32 %v7521, 2147483648
        %v7782 = vxor.u32 %v7523, 2147483648
        %v7783 = vxor.u32 %v7525, 2147483648
        %v7784 = vmul.f32 %v7720, 1.442695
        %v7785 = vpow.pop %v7784
        %v7786 = vmul.f32 %v7721, 1.442695
        %v7787 = vpow.pop %v7786
        %v7788 = vmul.f32 %v7722, 1.442695
        %v7789 = vpow.pop %v7788
        %v7790 = vmul.f32 %v7723, 1.442695
        %v7791 = vpow.pop %v7790
        %v7792 = vmul.f32 %v7724, 1.442695
        %v7793 = vpow.pop %v7792
        %v7794 = vmul.f32 %v7725, 1.442695
        %v7795 = vpow.pop %v7794
        %v7796 = vmul.f32 %v7726, 1.442695
        %v7797 = vpow.pop %v7796
        %v7798 = vmul.f32 %v7727, 1.442695
        %v7799 = vpow.pop %v7798
        %v7800 = vmul.f32 %v7728, 1.442695
        %v7801 = vpow.pop %v7800
        %v7802 = vmul.f32 %v7729, 1.442695
        %v7803 = vpow.pop %v7802
        %v7804 = vmul.f32 %v7730, 1.442695
        %v7805 = vpow.pop %v7804
        %v7806 = vmul.f32 %v7731, 1.442695
        %v7807 = vpow.pop %v7806
        %v7808 = vmul.f32 %v7732, 1.442695
        %v7809 = vpow.pop %v7808
        %v7810 = vmul.f32 %v7733, 1.442695
        %v7811 = vpow.pop %v7810
        %v7812 = vmul.f32 %v7734, 1.442695
        %v7813 = vpow.pop %v7812
        %v7814 = vmul.f32 %v7735, 1.442695
        %v7815 = vpow.pop %v7814
        %v7816 = vmul.f32 %v7736, 1.442695
        %v7817 = vpow.pop %v7816
        %v7818 = vmul.f32 %v7737, 1.442695
        %v7819 = vpow.pop %v7818
        %v7820 = vmul.f32 %v7738, 1.442695
        %v7821 = vpow.pop %v7820
        %v7822 = vmul.f32 %v7739, 1.442695
        %v7823 = vpow.pop %v7822
        %v7824 = vmul.f32 %v7740, 1.442695
        %v7825 = vpow.pop %v7824
        %v7826 = vmul.f32 %v7741, 1.442695
        %v7827 = vpow.pop %v7826
        %v7828 = vmul.f32 %v7742, 1.442695
        %v7829 = vpow.pop %v7828
        %v7830 = vmul.f32 %v7743, 1.442695
        %v7831 = vpow.pop %v7830
        %v7832 = vmul.f32 %v7744, 1.442695
        %v7833 = vpow.pop %v7832
        %v7834 = vmul.f32 %v7745, 1.442695
        %v7835 = vpow.pop %v7834
        %v7836 = vmul.f32 %v7746, 1.442695
        %v7837 = vpow.pop %v7836
        %v7838 = vmul.f32 %v7747, 1.442695
        %v7839 = vpow.pop %v7838
        %v7840 = vmul.f32 %v7748, 1.442695
        %v7841 = vpow.pop %v7840
        %v7842 = vmul.f32 %v7749, 1.442695
        %v7843 = vpow.pop %v7842
        %v7844 = vmul.f32 %v7750, 1.442695
        %v7845 = vpow.pop %v7844
        %v7846 = vmul.f32 %v7751, 1.442695
        %v7847 = vpow.pop %v7846
        %v7848 = vmul.f32 %v7752, 1.442695
        %v7849 = vpow.pop %v7848
        %v7850 = vmul.f32 %v7753, 1.442695
        %v7851 = vpow.pop %v7850
        %v7852 = vmul.f32 %v7754, 1.442695
        %v7853 = vpow.pop %v7852
        %v7854 = vmul.f32 %v7755, 1.442695
        %v7855 = vpow.pop %v7854
        %v7856 = vmul.f32 %v7756, 1.442695
        %v7857 = vpow.pop %v7856
        %v7858 = vmul.f32 %v7757, 1.442695
        %v7859 = vpow.pop %v7858
        %v7860 = vmul.f32 %v7758, 1.442695
        %v7861 = vpow.pop %v7860
        %v7862 = vmul.f32 %v7759, 1.442695
        %v7863 = vpow.pop %v7862
        %v7864 = vmul.f32 %v7760, 1.442695
        %v7865 = vpow.pop %v7864
        %v7866 = vmul.f32 %v7761, 1.442695
        %v7867 = vpow.pop %v7866
        %v7868 = vmul.f32 %v7762, 1.442695
        %v7869 = vpow.pop %v7868
        %v7870 = vmul.f32 %v7763, 1.442695
        %v7871 = vpow.pop %v7870
        %v7872 = vmul.f32 %v7764, 1.442695
        %v7873 = vpow.pop %v7872
        %v7874 = vmul.f32 %v7765, 1.442695
        %v7875 = vpow.pop %v7874
        %v7876 = vmul.f32 %v7766, 1.442695
        %v7877 = vpow.pop %v7876
        %v7878 = vmul.f32 %v7767, 1.442695
        %v7879 = vpow.pop %v7878
        %v7880 = vmul.f32 %v7768, 1.442695
        %v7881 = vpow.pop %v7880
        %v7882 = vmul.f32 %v7769, 1.442695
        %v7883 = vpow.pop %v7882
        %v7884 = vmul.f32 %v7770, 1.442695
        %v7885 = vpow.pop %v7884
        %v7886 = vmul.f32 %v7771, 1.442695
        %v7887 = vpow.pop %v7886
        %v7888 = vmul.f32 %v7772, 1.442695
        %v7889 = vpow.pop %v7888
        %v7890 = vmul.f32 %v7773, 1.442695
        %v7891 = vpow.pop %v7890
        %v7892 = vmul.f32 %v7774, 1.442695
        %v7893 = vpow.pop %v7892
        %v7894 = vmul.f32 %v7775, 1.442695
        %v7895 = vpow.pop %v7894
        %v7896 = vmul.f32 %v7776, 1.442695
        %v7897 = vpow.pop %v7896
        %v7898 = vmul.f32 %v7777, 1.442695
        %v7899 = vpow.pop %v7898
        %v7900 = vmul.f32 %v7778, 1.442695
        %v7901 = vpow.pop %v7900
        %v7902 = vmul.f32 %v7779, 1.442695
        %v7903 = vpow.pop %v7902
        %v7904 = vmul.f32 %v7780, 1.442695
        %v7905 = vpow.pop %v7904
        %v7906 = vmul.f32 %v7781, 1.442695
        %v7907 = vpow.pop %v7906
        %v7908 = vmul.f32 %v7782, 1.442695
        %v7909 = vpow.pop %v7908
        %v7910 = vmul.f32 %v7783, 1.442695
        %v7911 = vpow.pop %v7910
        %v7912 = vadd.f32 %v7785, 1.0
        %v7913 = vadd.f32 %v7787, 1.0
        %v7914 = vadd.f32 %v7789, 1.0
        %v7915 = vadd.f32 %v7791, 1.0
        %v7916 = vadd.f32 %v7793, 1.0
        %v7917 = vadd.f32 %v7795, 1.0
        %v7918 = vadd.f32 %v7797, 1.0
        %v7919 = vadd.f32 %v7799, 1.0
        %v7920 = vadd.f32 %v7801, 1.0
        %v7921 = vadd.f32 %v7803, 1.0
        %v7922 = vadd.f32 %v7805, 1.0
        %v7923 = vadd.f32 %v7807, 1.0
        %v7924 = vadd.f32 %v7809, 1.0
        %v7925 = vadd.f32 %v7811, 1.0
        %v7926 = vadd.f32 %v7813, 1.0
        %v7927 = vadd.f32 %v7815, 1.0
        %v7928 = vadd.f32 %v7817, 1.0
        %v7929 = vadd.f32 %v7819, 1.0
        %v7930 = vadd.f32 %v7821, 1.0
        %v7931 = vadd.f32 %v7823, 1.0
        %v7932 = vadd.f32 %v7825, 1.0
        %v7933 = vadd.f32 %v7827, 1.0
        %v7934 = vadd.f32 %v7829, 1.0
        %v7935 = vadd.f32 %v7831, 1.0
        %v7936 = vadd.f32 %v7833, 1.0
        %v7937 = vadd.f32 %v7835, 1.0
        %v7938 = vadd.f32 %v7837, 1.0
        %v7939 = vadd.f32 %v7839, 1.0
        %v7940 = vadd.f32 %v7841, 1.0
        %v7941 = vadd.f32 %v7843, 1.0
        %v7942 = vadd.f32 %v7845, 1.0
        %v7943 = vadd.f32 %v7847, 1.0
        %v7944 = vadd.f32 %v7849, 1.0
        %v7945 = vadd.f32 %v7851, 1.0
        %v7946 = vadd.f32 %v7853, 1.0
        %v7947 = vadd.f32 %v7855, 1.0
        %v7948 = vadd.f32 %v7857, 1.0
        %v7949 = vadd.f32 %v7859, 1.0
        %v7950 = vadd.f32 %v7861, 1.0
        %v7951 = vadd.f32 %v7863, 1.0
        %v7952 = vadd.f32 %v7865, 1.0
        %v7953 = vadd.f32 %v7867, 1.0
        %v7954 = vadd.f32 %v7869, 1.0
        %v7955 = vadd.f32 %v7871, 1.0
        %v7956 = vadd.f32 %v7873, 1.0
        %v7957 = vadd.f32 %v7875, 1.0
        %v7958 = vadd.f32 %v7877, 1.0
        %v7959 = vadd.f32 %v7879, 1.0
        %v7960 = vadd.f32 %v7881, 1.0
        %v7961 = vadd.f32 %v7883, 1.0
        %v7962 = vadd.f32 %v7885, 1.0
        %v7963 = vadd.f32 %v7887, 1.0
        %v7964 = vadd.f32 %v7889, 1.0
        %v7965 = vadd.f32 %v7891, 1.0
        %v7966 = vadd.f32 %v7893, 1.0
        %v7967 = vadd.f32 %v7895, 1.0
        %v7968 = vadd.f32 %v7897, 1.0
        %v7969 = vadd.f32 %v7899, 1.0
        %v7970 = vadd.f32 %v7901, 1.0
        %v7971 = vadd.f32 %v7903, 1.0
        %v7972 = vadd.f32 %v7905, 1.0
        %v7973 = vadd.f32 %v7907, 1.0
        %v7974 = vadd.f32 %v7909, 1.0
        %v7975 = vadd.f32 %v7911, 1.0
        %v7976 = vrcp.pop %v7912
        %v7977 = vmul.f32 1.0, %v7976
        %v7978 = vrcp.pop %v7913
        %v7979 = vmul.f32 1.0, %v7978
        %v7980 = vrcp.pop %v7914
        %v7981 = vmul.f32 1.0, %v7980
        %v7982 = vrcp.pop %v7915
        %v7983 = vmul.f32 1.0, %v7982
        %v7984 = vrcp.pop %v7916
        %v7985 = vmul.f32 1.0, %v7984
        %v7986 = vrcp.pop %v7917
        %v7987 = vmul.f32 1.0, %v7986
        %v7988 = vrcp.pop %v7918
        %v7989 = vmul.f32 1.0, %v7988
        %v7990 = vrcp.pop %v7919
        %v7991 = vmul.f32 1.0, %v7990
        %v7992 = vrcp.pop %v7920
        %v7993 = vmul.f32 1.0, %v7992
        %v7994 = vrcp.pop %v7921
        %v7995 = vmul.f32 1.0, %v7994
        %v7996 = vrcp.pop %v7922
        %v7997 = vmul.f32 1.0, %v7996
        %v7998 = vrcp.pop %v7923
        %v7999 = vmul.f32 1.0, %v7998
        %v8000 = vrcp.pop %v7924
        %v8001 = vmul.f32 1.0, %v8000
        %v8002 = vrcp.pop %v7925
        %v8003 = vmul.f32 1.0, %v8002
        %v8004 = vrcp.pop %v7926
        %v8005 = vmul.f32 1.0, %v8004
        %v8006 = vrcp.pop %v7927
        %v8007 = vmul.f32 1.0, %v8006
        %v8008 = vrcp.pop %v7928
        %v8009 = vmul.f32 1.0, %v8008
        %v8010 = vrcp.pop %v7929
        %v8011 = vmul.f32 1.0, %v8010
        %v8012 = vrcp.pop %v7930
        %v8013 = vmul.f32 1.0, %v8012
        %v8014 = vrcp.pop %v7931
        %v8015 = vmul.f32 1.0, %v8014
        %v8016 = vrcp.pop %v7932
        %v8017 = vmul.f32 1.0, %v8016
        %v8018 = vrcp.pop %v7933
        %v8019 = vmul.f32 1.0, %v8018
        %v8020 = vrcp.pop %v7934
        %v8021 = vmul.f32 1.0, %v8020
        %v8022 = vrcp.pop %v7935
        %v8023 = vmul.f32 1.0, %v8022
        %v8024 = vrcp.pop %v7936
        %v8025 = vmul.f32 1.0, %v8024
        %v8026 = vrcp.pop %v7937
        %v8027 = vmul.f32 1.0, %v8026
        %v8028 = vrcp.pop %v7938
        %v8029 = vmul.f32 1.0, %v8028
        %v8030 = vrcp.pop %v7939
        %v8031 = vmul.f32 1.0, %v8030
        %v8032 = vrcp.pop %v7940
        %v8033 = vmul.f32 1.0, %v8032
        %v8034 = vrcp.pop %v7941
        %v8035 = vmul.f32 1.0, %v8034
        %v8036 = vrcp.pop %v7942
        %v8037 = vmul.f32 1.0, %v8036
        %v8038 = vrcp.pop %v7943
        %v8039 = vmul.f32 1.0, %v8038
        %v8040 = vrcp.pop %v7944
        %v8041 = vmul.f32 1.0, %v8040
        %v8042 = vrcp.pop %v7945
        %v8043 = vmul.f32 1.0, %v8042
        %v8044 = vrcp.pop %v7946
        %v8045 = vmul.f32 1.0, %v8044
        %v8046 = vrcp.pop %v7947
        %v8047 = vmul.f32 1.0, %v8046
        %v8048 = vrcp.pop %v7948
        %v8049 = vmul.f32 1.0, %v8048
        %v8050 = vrcp.pop %v7949
        %v8051 = vmul.f32 1.0, %v8050
        %v8052 = vrcp.pop %v7950
        %v8053 = vmul.f32 1.0, %v8052
        %v8054 = vrcp.pop %v7951
        %v8055 = vmul.f32 1.0, %v8054
        %v8056 = vrcp.pop %v7952
        %v8057 = vmul.f32 1.0, %v8056
        %v8058 = vrcp.pop %v7953
        %v8059 = vmul.f32 1.0, %v8058
        %v8060 = vrcp.pop %v7954
        %v8061 = vmul.f32 1.0, %v8060
        %v8062 = vrcp.pop %v7955
        %v8063 = vmul.f32 1.0, %v8062
        %v8064 = vrcp.pop %v7956
        %v8065 = vmul.f32 1.0, %v8064
        %v8066 = vrcp.pop %v7957
        %v8067 = vmul.f32 1.0, %v8066
        %v8068 = vrcp.pop %v7958
        %v8069 = vmul.f32 1.0, %v8068
        %v8070 = vrcp.pop %v7959
        %v8071 = vmul.f32 1.0, %v8070
        %v8072 = vrcp.pop %v7960
        %v8073 = vmul.f32 1.0, %v8072
        %v8074 = vrcp.pop %v7961
        %v8075 = vmul.f32 1.0, %v8074
        %v8076 = vrcp.pop %v7962
        %v8077 = vmul.f32 1.0, %v8076
        %v8078 = vrcp.pop %v7963
        %v8079 = vmul.f32 1.0, %v8078
        %v8080 = vrcp.pop %v7964
        %v8081 = vmul.f32 1.0, %v8080
        %v8082 = vrcp.pop %v7965
        %v8083 = vmul.f32 1.0, %v8082
        %v8084 = vrcp.pop %v7966
        %v8085 = vmul.f32 1.0, %v8084
        %v8086 = vrcp.pop %v7967
        %v8087 = vmul.f32 1.0, %v8086
        %v8088 = vrcp.pop %v7968
        %v8089 = vmul.f32 1.0, %v8088
        %v8090 = vrcp.pop %v7969
        %v8091 = vmul.f32 1.0, %v8090
        %v8092 = vrcp.pop %v7970
        %v8093 = vmul.f32 1.0, %v8092
        %v8094 = vrcp.pop %v7971
        %v8095 = vmul.f32 1.0, %v8094
        %v8096 = vrcp.pop %v7972
        %v8097 = vmul.f32 1.0, %v8096
        %v8098 = vrcp.pop %v7973
        %v8099 = vmul.f32 1.0, %v8098
        %v8100 = vrcp.pop %v7974
        %v8101 = vmul.f32 1.0, %v8100
        %v8102 = vrcp.pop %v7975
        %v8103 = vmul.f32 1.0, %v8102
        %v8104 = vmul.f32 %v7369, %v7977
        %v8105 = vmul.f32 %v7371, %v7979
        %v8106 = vmul.f32 %v7373, %v7981
        %v8107 = vmul.f32 %v7375, %v7983
        %v8108 = vmul.f32 %v7379, %v7985
        %v8109 = vmul.f32 %v7381, %v7987
        %v8110 = vmul.f32 %v7383, %v7989
        %v8111 = vmul.f32 %v7385, %v7991
        %v8112 = vmul.f32 %v7389, %v7993
        %v8113 = vmul.f32 %v7391, %v7995
        %v8114 = vmul.f32 %v7393, %v7997
        %v8115 = vmul.f32 %v7395, %v7999
        %v8116 = vmul.f32 %v7399, %v8001
        %v8117 = vmul.f32 %v7401, %v8003
        %v8118 = vmul.f32 %v7403, %v8005
        %v8119 = vmul.f32 %v7405, %v8007
        %v8120 = vmul.f32 %v7409, %v8009
        %v8121 = vmul.f32 %v7411, %v8011
        %v8122 = vmul.f32 %v7413, %v8013
        %v8123 = vmul.f32 %v7415, %v8015
        %v8124 = vmul.f32 %v7419, %v8017
        %v8125 = vmul.f32 %v7421, %v8019
        %v8126 = vmul.f32 %v7423, %v8021
        %v8127 = vmul.f32 %v7425, %v8023
        %v8128 = vmul.f32 %v7429, %v8025
        %v8129 = vmul.f32 %v7431, %v8027
        %v8130 = vmul.f32 %v7433, %v8029
        %v8131 = vmul.f32 %v7435, %v8031
        %v8132 = vmul.f32 %v7439, %v8033
        %v8133 = vmul.f32 %v7441, %v8035
        %v8134 = vmul.f32 %v7443, %v8037
        %v8135 = vmul.f32 %v7445, %v8039
        %v8136 = vmul.f32 %v7449, %v8041
        %v8137 = vmul.f32 %v7451, %v8043
        %v8138 = vmul.f32 %v7453, %v8045
        %v8139 = vmul.f32 %v7455, %v8047
        %v8140 = vmul.f32 %v7459, %v8049
        %v8141 = vmul.f32 %v7461, %v8051
        %v8142 = vmul.f32 %v7463, %v8053
        %v8143 = vmul.f32 %v7465, %v8055
        %v8144 = vmul.f32 %v7469, %v8057
        %v8145 = vmul.f32 %v7471, %v8059
        %v8146 = vmul.f32 %v7473, %v8061
        %v8147 = vmul.f32 %v7475, %v8063
        %v8148 = vmul.f32 %v7479, %v8065
        %v8149 = vmul.f32 %v7481, %v8067
        %v8150 = vmul.f32 %v7483, %v8069
        %v8151 = vmul.f32 %v7485, %v8071
        %v8152 = vmul.f32 %v7489, %v8073
        %v8153 = vmul.f32 %v7491, %v8075
        %v8154 = vmul.f32 %v7493, %v8077
        %v8155 = vmul.f32 %v7495, %v8079
        %v8156 = vmul.f32 %v7499, %v8081
        %v8157 = vmul.f32 %v7501, %v8083
        %v8158 = vmul.f32 %v7503, %v8085
        %v8159 = vmul.f32 %v7505, %v8087
        %v8160 = vmul.f32 %v7509, %v8089
        %v8161 = vmul.f32 %v7511, %v8091
        %v8162 = vmul.f32 %v7513, %v8093
        %v8163 = vmul.f32 %v7515, %v8095
        %v8164 = vmul.f32 %v7519, %v8097
        %v8165 = vmul.f32 %v7521, %v8099
        %v8166 = vmul.f32 %v7523, %v8101
        %v8167 = vmul.f32 %v7525, %v8103
        %v8168 = vmul.f32 %v8104, %v7562
        %v8169 = vmul.f32 %v8105, %v7564
        %v8170 = vmul.f32 %v8106, %v7566
        %v8171 = vmul.f32 %v8107, %v7568
        %v8172 = vmul.f32 %v8108, %v7572
        %v8173 = vmul.f32 %v8109, %v7574
        %v8174 = vmul.f32 %v8110, %v7576
        %v8175 = vmul.f32 %v8111, %v7578
        %v8176 = vmul.f32 %v8112, %v7582
        %v8177 = vmul.f32 %v8113, %v7584
        %v8178 = vmul.f32 %v8114, %v7586
        %v8179 = vmul.f32 %v8115, %v7588
        %v8180 = vmul.f32 %v8116, %v7592
        %v8181 = vmul.f32 %v8117, %v7594
        %v8182 = vmul.f32 %v8118, %v7596
        %v8183 = vmul.f32 %v8119, %v7598
        %v8184 = vmul.f32 %v8120, %v7602
        %v8185 = vmul.f32 %v8121, %v7604
        %v8186 = vmul.f32 %v8122, %v7606
        %v8187 = vmul.f32 %v8123, %v7608
        %v8188 = vmul.f32 %v8124, %v7612
        %v8189 = vmul.f32 %v8125, %v7614
        %v8190 = vmul.f32 %v8126, %v7616
        %v8191 = vmul.f32 %v8127, %v7618
        %v8192 = vmul.f32 %v8128, %v7622
        %v8193 = vmul.f32 %v8129, %v7624
        %v8194 = vmul.f32 %v8130, %v7626
        %v8195 = vmul.f32 %v8131, %v7628
        %v8196 = vmul.f32 %v8132, %v7632
        %v8197 = vmul.f32 %v8133, %v7634
        %v8198 = vmul.f32 %v8134, %v7636
        %v8199 = vmul.f32 %v8135, %v7638
        %v8200 = vmul.f32 %v8136, %v7642
        %v8201 = vmul.f32 %v8137, %v7644
        %v8202 = vmul.f32 %v8138, %v7646
        %v8203 = vmul.f32 %v8139, %v7648
        %v8204 = vmul.f32 %v8140, %v7652
        %v8205 = vmul.f32 %v8141, %v7654
        %v8206 = vmul.f32 %v8142, %v7656
        %v8207 = vmul.f32 %v8143, %v7658
        %v8208 = vmul.f32 %v8144, %v7662
        %v8209 = vmul.f32 %v8145, %v7664
        %v8210 = vmul.f32 %v8146, %v7666
        %v8211 = vmul.f32 %v8147, %v7668
        %v8212 = vmul.f32 %v8148, %v7672
        %v8213 = vmul.f32 %v8149, %v7674
        %v8214 = vmul.f32 %v8150, %v7676
        %v8215 = vmul.f32 %v8151, %v7678
        %v8216 = vmul.f32 %v8152, %v7682
        %v8217 = vmul.f32 %v8153, %v7684
        %v8218 = vmul.f32 %v8154, %v7686
        %v8219 = vmul.f32 %v8155, %v7688
        %v8220 = vmul.f32 %v8156, %v7692
        %v8221 = vmul.f32 %v8157, %v7694
        %v8222 = vmul.f32 %v8158, %v7696
        %v8223 = vmul.f32 %v8159, %v7698
        %v8224 = vmul.f32 %v8160, %v7702
        %v8225 = vmul.f32 %v8161, %v7704
        %v8226 = vmul.f32 %v8162, %v7706
        %v8227 = vmul.f32 %v8163, %v7708
        %v8228 = vmul.f32 %v8164, %v7712
        %v8229 = vmul.f32 %v8165, %v7714
        %v8230 = vmul.f32 %v8166, %v7716
        %v8231 = vmul.f32 %v8167, %v7718
        %v8232 = vpack.c.bf16 %v8170, %v8168
        %v8233 = vpack.c.bf16 %v8171, %v8169
        %v8234 = vpack.c.bf16 %v8174, %v8172
        %v8235 = vpack.c.bf16 %v8175, %v8173
        %v8236 = vpack.c.bf16 %v8178, %v8176
        %v8237 = vpack.c.bf16 %v8179, %v8177
        %v8238 = vpack.c.bf16 %v8182, %v8180
        %v8239 = vpack.c.bf16 %v8183, %v8181
        %v8240 = vpack.c.bf16 %v8186, %v8184
        %v8241 = vpack.c.bf16 %v8187, %v8185
        %v8242 = vpack.c.bf16 %v8190, %v8188
        %v8243 = vpack.c.bf16 %v8191, %v8189
        %v8244 = vpack.c.bf16 %v8194, %v8192
        %v8245 = vpack.c.bf16 %v8195, %v8193
        %v8246 = vpack.c.bf16 %v8198, %v8196
        %v8247 = vpack.c.bf16 %v8199, %v8197
        %v8248 = vpack.c.bf16 %v8202, %v8200
        %v8249 = vpack.c.bf16 %v8203, %v8201
        %v8250 = vpack.c.bf16 %v8206, %v8204
        %v8251 = vpack.c.bf16 %v8207, %v8205
        %v8252 = vpack.c.bf16 %v8210, %v8208
        %v8253 = vpack.c.bf16 %v8211, %v8209
        %v8254 = vpack.c.bf16 %v8214, %v8212
        %v8255 = vpack.c.bf16 %v8215, %v8213
        %v8256 = vpack.c.bf16 %v8218, %v8216
        %v8257 = vpack.c.bf16 %v8219, %v8217
        %v8258 = vpack.c.bf16 %v8222, %v8220
        %v8259 = vpack.c.bf16 %v8223, %v8221
        %v8260 = vpack.c.bf16 %v8226, %v8224
        %v8261 = vpack.c.bf16 %v8227, %v8225
        %v8262 = vpack.c.bf16 %v8230, %v8228
        %v8263 = vpack.c.bf16 %v8231, %v8229
        %v8264 = vld [vmem:[%s518] sm:$0xf]
        %v8265 = vld [vmem:[%s518 + $0x4] sm:$0xf]
        %v8266 = vld [vmem:[%s518 + $0x8] sm:$0xf]
        %v8267 = vld [vmem:[%s518 + $0xc] sm:$0xf]
        %v8268 = vld [vmem:[%s518 + $0x10] sm:$0xf]
        %v8269 = vld [vmem:[%s518 + $0x14] sm:$0xf]
        %v8270 = vld [vmem:[%s518 + $0x18] sm:$0xf]
        %v8271 = vld [vmem:[%s518 + $0x1c] sm:$0xf]
        %v8272 = vld [vmem:[%s518 + $0x20] sm:$0xf]
        %v8273 = vld [vmem:[%s518 + $0x24] sm:$0xf]
        %v8274 = vld [vmem:[%s518 + $0x28] sm:$0xf]
        %v8275 = vld [vmem:[%s518 + $0x2c] sm:$0xf]
        %v8276 = vld [vmem:[%s518 + $0x30] sm:$0xf]
        %v8277 = vld [vmem:[%s518 + $0x34] sm:$0xf]
        %v8278 = vld [vmem:[%s518 + $0x38] sm:$0xf]
        %v8279 = vld [vmem:[%s518 + $0x3c] sm:$0xf]
        %v8280 = vld [vmem:[%s518 + $0x40] sm:$0xf]
        %v8281 = vld [vmem:[%s518 + $0x44] sm:$0xf]
        %v8282 = vld [vmem:[%s518 + $0x48] sm:$0xf]
        %v8283 = vld [vmem:[%s518 + $0x4c] sm:$0xf]
        %v8284 = vld [vmem:[%s518 + $0x50] sm:$0xf]
        %v8285 = vld [vmem:[%s518 + $0x54] sm:$0xf]
        %v8286 = vld [vmem:[%s518 + $0x58] sm:$0xf]
        %v8287 = vld [vmem:[%s518 + $0x5c] sm:$0xf]
        %v8288 = vld [vmem:[%s518 + $0x60] sm:$0xf]
        %v8289 = vld [vmem:[%s518 + $0x64] sm:$0xf]
        %v8290 = vld [vmem:[%s518 + $0x68] sm:$0xf]
        %v8291 = vld [vmem:[%s518 + $0x6c] sm:$0xf]
        %v8292 = vld [vmem:[%s518 + $0x70] sm:$0xf]
        %v8293 = vld [vmem:[%s518 + $0x74] sm:$0xf]
        %v8294 = vld [vmem:[%s518 + $0x78] sm:$0xf]
        %v8295 = vld [vmem:[%s518 + $0x7c] sm:$0xf]
        %v8328 = vunpack.c.l.b16 %v8264
        %v8329 = vunpack.c.l.b16 %v8265
        %v8330 = vunpack.c.l.b16 %v8266
        %v8331 = vunpack.c.l.b16 %v8267
        %v8332 = vunpack.c.l.b16 %v8268
        %v8333 = vunpack.c.l.b16 %v8269
        %v8334 = vunpack.c.l.b16 %v8270
        %v8335 = vunpack.c.l.b16 %v8271
        %v8336 = vunpack.c.l.b16 %v8272
        %v8337 = vunpack.c.l.b16 %v8273
        %v8338 = vunpack.c.l.b16 %v8274
        %v8339 = vunpack.c.l.b16 %v8275
        %v8340 = vunpack.c.l.b16 %v8276
        %v8341 = vunpack.c.l.b16 %v8277
        %v8342 = vunpack.c.l.b16 %v8278
        %v8343 = vunpack.c.l.b16 %v8279
        %v8344 = vunpack.c.l.b16 %v8280
        %v8345 = vunpack.c.l.b16 %v8281
        %v8346 = vunpack.c.l.b16 %v8282
        %v8347 = vunpack.c.l.b16 %v8283
        %v8348 = vunpack.c.l.b16 %v8284
        %v8349 = vunpack.c.l.b16 %v8285
        %v8350 = vunpack.c.l.b16 %v8286
        %v8351 = vunpack.c.l.b16 %v8287
        %v8352 = vunpack.c.l.b16 %v8288
        %v8353 = vunpack.c.l.b16 %v8289
        %v8354 = vunpack.c.l.b16 %v8290
        %v8355 = vunpack.c.l.b16 %v8291
        %v8356 = vunpack.c.l.b16 %v8292
        %v8357 = vunpack.c.l.b16 %v8293
        %v8358 = vunpack.c.l.b16 %v8294
        %v8359 = vunpack.c.l.b16 %v8295
        %v8360 = vpack.c.b16 %v8329, %v8328
        %v8361 = vpack.c.b16 %v8331, %v8330
        %v8362 = vpack.c.b16 %v8333, %v8332
        %v8363 = vpack.c.b16 %v8335, %v8334
        %v8364 = vpack.c.b16 %v8337, %v8336
        %v8365 = vpack.c.b16 %v8339, %v8338
        %v8366 = vpack.c.b16 %v8341, %v8340
        %v8367 = vpack.c.b16 %v8343, %v8342
        %v8368 = vpack.c.b16 %v8345, %v8344
        %v8369 = vpack.c.b16 %v8347, %v8346
        %v8370 = vpack.c.b16 %v8349, %v8348
        %v8371 = vpack.c.b16 %v8351, %v8350
        %v8372 = vpack.c.b16 %v8353, %v8352
        %v8373 = vpack.c.b16 %v8355, %v8354
        %v8374 = vpack.c.b16 %v8357, %v8356
        %v8375 = vpack.c.b16 %v8359, %v8358
        %8392 = vmatprep.subr.bf16.mxu0 0
        %8393 = vmatpush1.bf16.msra.mxu0 %v8367
        %8394 = vmatprep.subr.bf16.mxu0 0
        %8395 = vmatpush1.bf16.msra.mxu0 %v8366
        %8396 = vmatprep.subr.bf16.mxu0 0
        %8397 = vmatpush1.bf16.msra.mxu0 %v8365
        %8398 = vmatprep.subr.bf16.mxu0 0
        %8399 = vmatpush1.bf16.msra.mxu0 %v8364
        %8400 = vmatprep.subr.bf16.mxu0 0
        %8401 = vmatpush1.bf16.msra.mxu0 %v8363
        %8402 = vmatprep.subr.bf16.mxu0 0
        %8403 = vmatpush1.bf16.msra.mxu0 %v8362
        %8404 = vmatprep.subr.bf16.mxu0 0
        %8405 = vmatpush1.bf16.msra.mxu0 %v8361
        %8406 = vmatprep.subr.bf16.mxu0 0
        %8407 = vmatpush1.bf16.msra.mxu0 %v8360
        %8408 = vmatprep.subr.bf16.mxu0 0
        %8409 = vmatpush2.bf16.msra.mxu0 %v8375
        %8410 = vmatprep.subr.bf16.mxu0 0
        %8411 = vmatpush2.bf16.msra.mxu0 %v8374
        %8412 = vmatprep.subr.bf16.mxu0 0
        %8413 = vmatpush2.bf16.msra.mxu0 %v8373
        %8414 = vmatprep.subr.bf16.mxu0 0
        %8415 = vmatpush2.bf16.msra.mxu0 %v8372
        %8416 = vmatprep.subr.bf16.mxu0 0
        %8417 = vmatpush2.bf16.msra.mxu0 %v8371
        %8418 = vmatprep.subr.bf16.mxu0 0
        %8419 = vmatpush2.bf16.msra.mxu0 %v8370
        %8420 = vmatprep.subr.bf16.mxu0 0
        %8421 = vmatpush2.bf16.msra.mxu0 %v8369
        %8422 = vmatprep.subr.bf16.mxu0 0
        %8423 = vmatpush2.bf16.msra.mxu0 %v8368
        %8424 = vmatprep.mubr.bf16.mxu0 %v8233
        %8425 = vmatmul.mubr.bf16.gmra.mxu0 %v8232
        %v8426 = vpop.f32.mrf.mxu0
        %v8427 = vadd.f32 0.0, %v8426
        %v8428 = vpop.f32.mrf.mxu0
        %v8429 = vpop.f32.mrf.mxu0
        %v8430 = vadd.f32 0.0, %v8429
        %v8431 = vpop.f32.mrf.mxu0
        %8432 = vmatprep.mubr.bf16.mxu0 %v8235
        %8433 = vmatmul.mubr.bf16.gmra.mxu0 %v8234
        %v8434 = vpop.f32.mrf.mxu0
        %v8435 = vadd.f32 0.0, %v8434
        %v8436 = vpop.f32.mrf.mxu0
        %v8437 = vpop.f32.mrf.mxu0
        %v8438 = vadd.f32 0.0, %v8437
        %v8439 = vpop.f32.mrf.mxu0
        %8440 = vmatprep.mubr.bf16.mxu0 %v8237
        %8441 = vmatmul.mubr.bf16.gmra.mxu0 %v8236
        %v8442 = vpop.f32.mrf.mxu0
        %v8443 = vadd.f32 0.0, %v8442
        %v8444 = vpop.f32.mrf.mxu0
        %v8445 = vpop.f32.mrf.mxu0
        %v8446 = vadd.f32 0.0, %v8445
        %v8447 = vpop.f32.mrf.mxu0
        %8448 = vmatprep.mubr.bf16.mxu0 %v8239
        %8449 = vmatmul.mubr.bf16.gmra.mxu0 %v8238
        %v8450 = vpop.f32.mrf.mxu0
        %v8451 = vadd.f32 0.0, %v8450
        %v8452 = vpop.f32.mrf.mxu0
        %v8453 = vpop.f32.mrf.mxu0
        %v8454 = vadd.f32 0.0, %v8453
        %v8455 = vpop.f32.mrf.mxu0
        %8456 = vmatprep.mubr.bf16.mxu0 %v8241
        %8457 = vmatmul.mubr.bf16.gmra.mxu0 %v8240
        %v8458 = vpop.f32.mrf.mxu0
        %v8459 = vadd.f32 0.0, %v8458
        %v8460 = vpop.f32.mrf.mxu0
        %v8461 = vpop.f32.mrf.mxu0
        %v8462 = vadd.f32 0.0, %v8461
        %v8463 = vpop.f32.mrf.mxu0
        %8464 = vmatprep.mubr.bf16.mxu0 %v8243
        %8465 = vmatmul.mubr.bf16.gmra.mxu0 %v8242
        %v8466 = vpop.f32.mrf.mxu0
        %v8467 = vadd.f32 0.0, %v8466
        %v8468 = vpop.f32.mrf.mxu0
        %v8469 = vpop.f32.mrf.mxu0
        %v8470 = vadd.f32 0.0, %v8469
        %v8471 = vpop.f32.mrf.mxu0
        %8472 = vmatprep.mubr.bf16.mxu0 %v8245
        %8473 = vmatmul.mubr.bf16.gmra.mxu0 %v8244
        %v8474 = vpop.f32.mrf.mxu0
        %v8475 = vadd.f32 0.0, %v8474
        %v8476 = vpop.f32.mrf.mxu0
        %v8477 = vpop.f32.mrf.mxu0
        %v8478 = vadd.f32 0.0, %v8477
        %v8479 = vpop.f32.mrf.mxu0
        %8480 = vmatprep.mubr.bf16.mxu0 %v8247
        %8481 = vmatmul.mubr.bf16.gmra.mxu0 %v8246
        %v8482 = vpop.f32.mrf.mxu0
        %v8483 = vadd.f32 0.0, %v8482
        %v8484 = vpop.f32.mrf.mxu0
        %v8485 = vpop.f32.mrf.mxu0
        %v8486 = vadd.f32 0.0, %v8485
        %v8487 = vpop.f32.mrf.mxu0
        %8488 = vmatprep.mubr.bf16.mxu0 %v8249
        %8489 = vmatmul.mubr.bf16.gmra.mxu0 %v8248
        %v8490 = vpop.f32.mrf.mxu0
        %v8491 = vadd.f32 0.0, %v8490
        %v8492 = vpop.f32.mrf.mxu0
        %v8493 = vpop.f32.mrf.mxu0
        %v8494 = vadd.f32 0.0, %v8493
        %v8495 = vpop.f32.mrf.mxu0
        %8496 = vmatprep.mubr.bf16.mxu0 %v8251
        %8497 = vmatmul.mubr.bf16.gmra.mxu0 %v8250
        %v8498 = vpop.f32.mrf.mxu0
        %v8499 = vadd.f32 0.0, %v8498
        %v8500 = vpop.f32.mrf.mxu0
        %v8501 = vpop.f32.mrf.mxu0
        %v8502 = vadd.f32 0.0, %v8501
        %v8503 = vpop.f32.mrf.mxu0
        %8504 = vmatprep.mubr.bf16.mxu0 %v8253
        %8505 = vmatmul.mubr.bf16.gmra.mxu0 %v8252
        %v8506 = vpop.f32.mrf.mxu0
        %v8507 = vadd.f32 0.0, %v8506
        %v8508 = vpop.f32.mrf.mxu0
        %v8509 = vpop.f32.mrf.mxu0
        %v8510 = vadd.f32 0.0, %v8509
        %v8511 = vpop.f32.mrf.mxu0
        %8512 = vmatprep.mubr.bf16.mxu0 %v8255
        %8513 = vmatmul.mubr.bf16.gmra.mxu0 %v8254
        %v8514 = vpop.f32.mrf.mxu0
        %v8515 = vadd.f32 0.0, %v8514
        %v8516 = vpop.f32.mrf.mxu0
        %v8517 = vpop.f32.mrf.mxu0
        %v8518 = vadd.f32 0.0, %v8517
        %v8519 = vpop.f32.mrf.mxu0
        %8520 = vmatprep.mubr.bf16.mxu0 %v8257
        %8521 = vmatmul.mubr.bf16.gmra.mxu0 %v8256
        %v8522 = vpop.f32.mrf.mxu0
        %v8523 = vadd.f32 0.0, %v8522
        %v8524 = vpop.f32.mrf.mxu0
        %v8525 = vpop.f32.mrf.mxu0
        %v8526 = vadd.f32 0.0, %v8525
        %v8527 = vpop.f32.mrf.mxu0
        %8528 = vmatprep.mubr.bf16.mxu0 %v8259
        %8529 = vmatmul.mubr.bf16.gmra.mxu0 %v8258
        %v8530 = vpop.f32.mrf.mxu0
        %v8531 = vadd.f32 0.0, %v8530
        %v8532 = vpop.f32.mrf.mxu0
        %v8533 = vpop.f32.mrf.mxu0
        %v8534 = vadd.f32 0.0, %v8533
        %v8535 = vpop.f32.mrf.mxu0
        %8536 = vmatprep.mubr.bf16.mxu0 %v8261
        %8537 = vmatmul.mubr.bf16.gmra.mxu0 %v8260
        %v8538 = vpop.f32.mrf.mxu0
        %v8539 = vadd.f32 0.0, %v8538
        %v8540 = vpop.f32.mrf.mxu0
        %v8541 = vpop.f32.mrf.mxu0
        %v8542 = vadd.f32 0.0, %v8541
        %v8543 = vpop.f32.mrf.mxu0
        %8544 = vmatprep.mubr.bf16.mxu0 %v8263
        %8545 = vmatmul.mubr.bf16.gmra.mxu0 %v8262
        %v8546 = vpop.f32.mrf.mxu0
        %v8547 = vadd.f32 0.0, %v8546
        %v8548 = vpop.f32.mrf.mxu0
        %v8549 = vpop.f32.mrf.mxu0
        %v8550 = vadd.f32 0.0, %v8549
        %v8551 = vpop.f32.mrf.mxu0
        %8552 = vdwg.mxu0
        %v8553 = vadd.f32 %v4202, %v8427
        %v8554 = vadd.f32 %v4203, %v8430
        %v8555 = vadd.f32 %v4204, %v8435
        %v8556 = vadd.f32 %v4205, %v8438
        %v8557 = vadd.f32 %v4206, %v8443
        %v8558 = vadd.f32 %v4207, %v8446
        %v8559 = vadd.f32 %v4208, %v8451
        %v8560 = vadd.f32 %v4209, %v8454
        %v8561 = vadd.f32 %v4210, %v8459
        %v8562 = vadd.f32 %v4211, %v8462
        %v8563 = vadd.f32 %v4212, %v8467
        %v8564 = vadd.f32 %v4213, %v8470
        %v8565 = vadd.f32 %v4214, %v8475
        %v8566 = vadd.f32 %v4215, %v8478
        %v8567 = vadd.f32 %v4216, %v8483
        %v8568 = vadd.f32 %v4217, %v8486
        %v8569 = vadd.f32 %v6850, %v8491
        %v8570 = vadd.f32 %v6851, %v8494
        %v8571 = vadd.f32 %v6852, %v8499
        %v8572 = vadd.f32 %v6853, %v8502
        %v8573 = vadd.f32 %v6854, %v8507
        %v8574 = vadd.f32 %v6855, %v8510
        %v8575 = vadd.f32 %v6856, %v8515
        %v8576 = vadd.f32 %v6857, %v8518
        %v8577 = vadd.f32 %v6858, %v8523
        %v8578 = vadd.f32 %v6859, %v8526
        %v8579 = vadd.f32 %v6860, %v8531
        %v8580 = vadd.f32 %v6861, %v8534
        %v8581 = vadd.f32 %v6862, %v8539
        %v8582 = vadd.f32 %v6863, %v8542
        %v8583 = vadd.f32 %v6864, %v8547
        %v8584 = vadd.f32 %v6865, %v8550
        %8585 = vst [vmem:[#allocation2] sm:$0xff] %v8553
        %8586 = vst [vmem:[#allocation2 + $0x8] sm:$0xff] %v8554
        %8587 = vst [vmem:[#allocation2 + $0x10] sm:$0xff] %v8555
        %8588 = vst [vmem:[#allocation2 + $0x18] sm:$0xff] %v8556
        %8589 = vst [vmem:[#allocation2 + $0x20] sm:$0xff] %v8557
        %8590 = vst [vmem:[#allocation2 + $0x28] sm:$0xff] %v8558
        %8591 = vst [vmem:[#allocation2 + $0x30] sm:$0xff] %v8559
        %8592 = vst [vmem:[#allocation2 + $0x38] sm:$0xff] %v8560
        %8593 = vst [vmem:[#allocation2 + $0x40] sm:$0xff] %v8561
        %8594 = vst [vmem:[#allocation2 + $0x48] sm:$0xff] %v8562
        %8595 = vst [vmem:[#allocation2 + $0x50] sm:$0xff] %v8563
        %8596 = vst [vmem:[#allocation2 + $0x58] sm:$0xff] %v8564
        %8597 = vst [vmem:[#allocation2 + $0x60] sm:$0xff] %v8565
        %8598 = vst [vmem:[#allocation2 + $0x68] sm:$0xff] %v8566
        %8599 = vst [vmem:[#allocation2 + $0x70] sm:$0xff] %v8567
        %8600 = vst [vmem:[#allocation2 + $0x78] sm:$0xff] %v8568
        %8601 = vst [vmem:[#allocation2 + $0x80] sm:$0xff] %v8569
        %8602 = vst [vmem:[#allocation2 + $0x88] sm:$0xff] %v8570
        %8603 = vst [vmem:[#allocation2 + $0x90] sm:$0xff] %v8571
        %8604 = vst [vmem:[#allocation2 + $0x98] sm:$0xff] %v8572
        %8605 = vst [vmem:[#allocation2 + $0xa0] sm:$0xff] %v8573
        %8606 = vst [vmem:[#allocation2 + $0xa8] sm:$0xff] %v8574
        %8607 = vst [vmem:[#allocation2 + $0xb0] sm:$0xff] %v8575
        %8608 = vst [vmem:[#allocation2 + $0xb8] sm:$0xff] %v8576
        %8609 = vst [vmem:[#allocation2 + $0xc0] sm:$0xff] %v8577
        %8610 = vst [vmem:[#allocation2 + $0xc8] sm:$0xff] %v8578
        %8611 = vst [vmem:[#allocation2 + $0xd0] sm:$0xff] %v8579
        %8612 = vst [vmem:[#allocation2 + $0xd8] sm:$0xff] %v8580
        %8613 = vst [vmem:[#allocation2 + $0xe0] sm:$0xff] %v8581
        %8614 = vst [vmem:[#allocation2 + $0xe8] sm:$0xff] %v8582
        %8615 = vst [vmem:[#allocation2 + $0xf0] sm:$0xff] %v8583
        %8616 = vst [vmem:[#allocation2 + $0xf8] sm:$0xff] %v8584
        %p8617 = scmp.eq.s32.totalorder %s26, 1
        // Predicated region
        $region101: #{tpu_custom_call.1} parent=63 // pred_check
          %p8618 = pneg %p8617
        $region102: #{tpu_custom_call.1} parent=63 // pred_check_branch
          %8620 = sbr.rel (%p8618) target = $region104
        $region103: #{tpu_custom_call.1} parent=63 // pred_region
          %v8621 = vld [vmem:[%s4] sm:$0xf]
          %v8624 = vunpack.c.l.s4 1983009808
          %v8625 = vunpack.c.0.s8 %v8624
          %v8626 = vlaneseq
          %v8627 = vshrl.u32 %v8626, 7
          %v8628 = vsub.s32 %v8625, %v8627
          %v8629 = vrot.slane %v8621, %v8628
          %v8630 = vcombine.high %v8629, %v8629
          %8633 = vmatprep.subr.mxu0 0.0
          %8634 = vmatpush1.msra.mxu0 %v8568
          %8635 = vmatprep.subr.mxu0 0.0
          %8636 = vmatpush1.msra.mxu0 %v8567
          %8637 = vmatprep.subr.mxu0 0.0
          %8638 = vmatpush1.msra.mxu0 %v8566
          %8639 = vmatprep.subr.mxu0 0.0
          %8640 = vmatpush1.msra.mxu0 %v8565
          %8641 = vmatprep.subr.mxu0 0.0
          %8642 = vmatpush1.msra.mxu0 %v8564
          %8643 = vmatprep.subr.mxu0 0.0
          %8644 = vmatpush1.msra.mxu0 %v8563
          %8645 = vmatprep.subr.mxu0 0.0
          %8646 = vmatpush1.msra.mxu0 %v8562
          %8647 = vmatprep.subr.mxu0 0.0
          %8648 = vmatpush1.msra.mxu0 %v8561
          %8649 = vmatprep.subr.mxu0 0.0
          %8650 = vmatpush1.msra.mxu0 %v8560
          %8651 = vmatprep.subr.mxu0 0.0
          %8652 = vmatpush1.msra.mxu0 %v8559
          %8653 = vmatprep.subr.mxu0 0.0
          %8654 = vmatpush1.msra.mxu0 %v8558
          %8655 = vmatprep.subr.mxu0 0.0
          %8656 = vmatpush1.msra.mxu0 %v8557
          %8657 = vmatprep.subr.mxu0 0.0
          %8658 = vmatpush1.msra.mxu0 %v8556
          %8659 = vmatprep.subr.mxu0 0.0
          %8660 = vmatpush1.msra.mxu0 %v8555
          %8661 = vmatprep.subr.mxu0 0.0
          %8662 = vmatpush1.msra.mxu0 %v8554
          %8663 = vmatprep.subr.mxu0 0.0
          %8664 = vmatpush1.msra.mxu0 %v8553
          %8665 = vmatprep.subr.mxu0 0.0
          %8666 = vmatpush2.msra.mxu0 %v8584
          %8667 = vmatprep.subr.mxu0 0.0
          %8668 = vmatpush2.msra.mxu0 %v8583
          %8669 = vmatprep.subr.mxu0 0.0
          %8670 = vmatpush2.msra.mxu0 %v8582
          %8671 = vmatprep.subr.mxu0 0.0
          %8672 = vmatpush2.msra.mxu0 %v8581
          %8673 = vmatprep.subr.mxu0 0.0
          %8674 = vmatpush2.msra.mxu0 %v8580
          %8675 = vmatprep.subr.mxu0 0.0
          %8676 = vmatpush2.msra.mxu0 %v8579
          %8677 = vmatprep.subr.mxu0 0.0
          %8678 = vmatpush2.msra.mxu0 %v8578
          %8679 = vmatprep.subr.mxu0 0.0
          %8680 = vmatpush2.msra.mxu0 %v8577
          %8681 = vmatprep.subr.mxu0 0.0
          %8682 = vmatpush2.msra.mxu0 %v8576
          %8683 = vmatprep.subr.mxu0 0.0
          %8684 = vmatpush2.msra.mxu0 %v8575
          %8685 = vmatprep.subr.mxu0 0.0
          %8686 = vmatpush2.msra.mxu0 %v8574
          %8687 = vmatprep.subr.mxu0 0.0
          %8688 = vmatpush2.msra.mxu0 %v8573
          %8689 = vmatprep.subr.mxu0 0.0
          %8690 = vmatpush2.msra.mxu0 %v8572
          %8691 = vmatprep.subr.mxu0 0.0
          %8692 = vmatpush2.msra.mxu0 %v8571
          %8693 = vmatprep.subr.mxu0 0.0
          %8694 = vmatpush2.msra.mxu0 %v8570
          %8695 = vmatprep.subr.mxu0 0.0
          %8696 = vmatpush2.msra.mxu0 %v8569
          %8697 = vmatprep.mubr.f32.mxu0 %v8630
          %8698 = vmatmul.mubr.f32.gmra.mxu0 %v8629
          %v8699 = vpop.f32.mrf.mxu0
          %v8700 = vadd.f32 0.0, %v8699
          %v8701 = vpop.f32.mrf.mxu0
          %8702 = vdwg.mxu0
          %v8703 = vld [vmem:[%s5] sm:$0x3]
          %8705 = vset.pattern.permute.xlu0 0
          %8706 = vperm.xlu0 %8705, %v8703
          %v8707 = vpop.permute.xlu0 %8706
          %v8709 = vmul.f32 %v8700, %v8707
          %8710 = vst [vmem:[#allocation15] sm:$0x3] %v8709
        $region104: #{tpu_custom_call.1} parent=63 // pred_fallthru
          _
        // Predicated region
        $region105: #{tpu_custom_call.1} parent=63 // pred_check
          %p8711 = pneg %p295
        $region106: #{tpu_custom_call.1} parent=63 // pred_check_branch
          %8713 = sbr.rel (%p8711) target = $region108
        $region107: #{tpu_custom_call.1} parent=63 // pred_region
          %s8715 = ssub.s32 32, 32
          %8716 = vsyncadd [#allocation5], %s8715
          %s8718 = sshll.u32 [#allocation15], 4
          %s8719 = int_to_ptr.vmem [resolvable:$true] %s8718
          %8721 = dma.vmem_to_hbm [thread:$0]  %s8719, 32, %s11, [#allocation5]
        $region108: #{tpu_custom_call.1} parent=63 // pred_fallthru
          _
        // Predicated region
        $region109: #{tpu_custom_call.1} parent=63 // pred_check
          %p8722 = pneg %p295
        $region110: #{tpu_custom_call.1} parent=63 // pred_check_branch
          %8724 = sbr.rel (%p8722) target = $region112
        $region111: #{tpu_custom_call.1} parent=63 // pred_region
          %8725 = dma.done [#allocation5], 32
        $region112: #{tpu_custom_call.1} parent=63 // pred_fallthru
          _
      $region64: #{tpu_custom_call.1} parent=5 // pred_fallthru
        _
      %p8726 = scmp.le.s32.totalorder 2, %s21
      // Predicated region
      $region113: #{tpu_custom_call.1} parent=5 // pred_check
        %p8727 = pneg %p8726
      $region114: #{tpu_custom_call.1} parent=5 // pred_check_branch
        %8729 = sbr.rel (%p8727) target = $region116
      $region115: #{tpu_custom_call.1} parent=5 // pred_region
        %s8730 = ssub.s32 %s21, 2
      $region116: #{tpu_custom_call.1} parent=5 // pred_fallthru
        _
    $region6: #{tpu_custom_call.1} parent=1 // loop_footer
      %s25 = sadd.s32 1, %s21
    $region7: #{tpu_custom_call.1} parent=1 // loop_footer_branch
      %20 = sbr.rel target = $region3
    $region8: #{tpu_custom_call.1} parent=1 // loop_exit
      _
    %8731 = vsyncpa [#allocation4], 1
    %s8732 = scalar_lea.sflag [#allocation4], 1
    %8733 = vsyncpa %s8732, 1
    %8734 = vsyncpa [#allocation7], 1
    %8735 = vsyncpa [#allocation10], 1
    %8736 = vsyncpa [#allocation5], 1
    %s8737 = scalar_lea.sflag [#allocation5], 1
    %8738 = vsyncpa %s8737, 1

</llo_original>
